<compile_context>
chip_gen: v6e
topology: v6e:2x2x1
jax: 0.10.0
libtpu: 0.0.40
codegen_flags: <defaults>
</compile_context>

<pallas_src>
import functools
import math

import jax
import jax.numpy as jnp
from jax import lax
from jax.experimental import pallas as pl
from jax.experimental.pallas import tpu as pltpu

C = 16                     # TCN hidden channels (num_channels1 = num_channels2 = [16] * 4)
K = 11                     # conv kernel size
ENC = 8                    # GaussianEncoding encoded_size
N_BLOCKS = 8               # 4 temporal blocks in tcn1 + 4 in tcn2
N_LAYERS = 2 * N_BLOCKS    # 16 conv layers
SIGMA = 0.07               # GaussianEncoding sigma
MAX_DIL = 8                # dilations cycle 1,2,4,8
PAD = (K - 1) * MAX_DIL    # 80: per-sequence left margin covering the largest dilation
SPAD = 128                 # scratch data offset (vreg-aligned stores; SPAD >= PAD)


def seq2seq_kernel(x_ref, cw_ref, cb_ref, dw_ref, db_ref,
                   eb_ref, lw_ref, lb_ref, o_ref, pad_ref, *, seg, n_valid):
    """One grid step processes a slab of n_valid // seg packed sequences.

    x_ref  : (1, C, W)    packed activations, zero segment margins
    cw_ref : (L, C, K*C)  im2col conv weights
    cb_ref : (L, C, 1)    conv biases
    dw_ref : (C, C)       block-0 downsample weight, db_ref : (C, 1) its bias
    eb_ref : (ENC, C)     GaussianEncoding B matrix
    lw_ref : (OUT, 2*ENC) linear head weight, lb_ref : (OUT, 1) its bias
    o_ref  : (1, OUT, W)
    pad_ref: (C, SPAD + W) persistent VMEM scratch, data region starts at SPAD
    """
    W = x_ref.shape[-1]

    # Zero the scratch left margin once per grid step (2 vregs, negligible).
    pad_ref[:, :SPAD] = jnp.zeros((C, SPAD), jnp.float32)

    # Mask of "real data" columns: inside a segment and past its 80-col margin.
    # Built directly at (C, W) so no broadcast is re-emitted per use.
    col = lax.broadcasted_iota(jnp.int32, (C, W), 1)
    data_mask = jnp.logical_and(col % seg >= PAD, col < n_valid)

    def causal_conv(layer, v, dil):
        # v: (C, W) with zero segment margins / zero lane-pad tail.
        pad_ref[:, SPAD:SPAD + W] = v            # 128-aligned store
        taps = []
        for k in range(K):                       # static unroll over taps
            s = (K - 1 - k) * dil                # tap reads x[t - s], zeros for t < s
            taps.append(pad_ref[:, SPAD - s:SPAD - s + W])
        xs = jnp.concatenate(taps, axis=0)       # (K*C, W) im2col tile
        return jnp.dot(cw_ref[layer], xs,
                       preferred_element_type=jnp.float32) + cb_ref[layer]

    h = x_ref[0]                                 # (C, W)

    # --- tcn1 + tcn2: 8 TemporalBlocks (conv->tanh->conv->tanh + residual) ---
    for blk in range(N_BLOCKS):
        dil = 2 ** (blk % 4)                     # 1,2,4,8 then 1,2,4,8
        if blk == 0:
            # first block of tcn1 has a 1x1 downsample (input_size != 16)
            res = jnp.dot(dw_ref[...], h,
                          preferred_element_type=jnp.float32) + db_ref[...]
        else:
            res = h
        h1 = jnp.where(data_mask, jnp.tanh(causal_conv(2 * blk, h, dil)), 0.0)
        h2 = jnp.tanh(causal_conv(2 * blk + 1, h1, dil))
        h = jnp.where(data_mask, jnp.tanh(h2 + res), 0.0)

    # --- GaussianEncoding: [cos(2*pi*B@h), sin(2*pi*B@h)] along channels ---
    vp = (2.0 * math.pi) * jnp.dot(eb_ref[...], h,
                                   preferred_element_type=jnp.float32)   # (ENC, W)
    feat = jnp.concatenate([jnp.cos(vp), jnp.sin(vp)], axis=0)           # (2*ENC, W)

    # --- linear1 head ---
    o_ref[0] = jnp.dot(lw_ref[...], feat,
                       preferred_element_type=jnp.float32) + lb_ref[...]  # (OUT, W)


def make_params(key, input_size, output_size):
    """Deterministic synthetic parameters (shapes match the PyTorch module)."""
    ks = jax.random.split(key, 7)
    in_mask = (jnp.arange(C) < input_size).astype(jnp.float32)

    conv_w = 0.05 * jax.random.normal(ks[0], (N_LAYERS, K, C, C), jnp.float32)
    # first conv of tcn1 really has input_size in-channels; zero the padded columns
    conv_w = conv_w.at[0].set(conv_w[0] * in_mask[None, None, :])
    conv_b = 0.05 * jax.random.normal(ks[1], (N_LAYERS, C), jnp.float32)
    down_w = 0.05 * jax.random.normal(ks[2], (C, C), jnp.float32) * in_mask[None, :]
    down_b = 0.05 * jax.random.normal(ks[3], (C, 1), jnp.float32)
    enc_b = SIGMA * jax.random.normal(ks[4], (ENC, C), jnp.float32)              # rff B matrix
    lin_w = 0.1 * jax.random.normal(ks[5], (output_size, 2 * ENC), jnp.float32)  # normal_(0, 0.1)
    lin_b = 0.05 * jax.random.normal(ks[6], (output_size, 1), jnp.float32)
    return dict(conv_w=conv_w, conv_b=conv_b, down_w=down_w, down_b=down_b,
                enc_b=enc_b, lin_w=lin_w, lin_b=lin_b)


def seq2seq_forward(x, params, *, batch_pack=None):
    """x: (B, T, input_size) -> (B, T, output_size), like the PyTorch module."""
    B, T, cin = x.shape
    out_size = params['lin_w'].shape[0]
    seg = PAD + T                                        # per-sequence segment width

    # Pack enough sequences per grid step to fill ~1024 lanes (MXU-friendly N,
    # amortises per-step overhead), capped by the batch size.
    if batch_pack is None:
        batch_pack = max(1, min(B, max(1, 1024 // seg)))
    bt = batch_pack
    G = -(-B // bt)                                      # grid steps
    Bp = G * bt                                          # batch padded to multiple of bt
    n_valid = bt * seg
    W = -(-n_valid // 128) * 128                         # lane-dense slab width

    # (B, T, cin) -> packed slabs (G, C, W): [80 zero margin | T data] per sequence.
    xc = jnp.transpose(x, (0, 2, 1)).astype(jnp.float32)           # (B, cin, T)
    xc = jnp.pad(xc, ((0, Bp - B), (0, C - cin), (0, 0)))           # (Bp, C, T)
    xc = jnp.pad(xc, ((0, 0), (0, 0), (PAD, 0)))                    # (Bp, C, seg)
    slab = xc.reshape(G, bt, C, seg).transpose(0, 2, 1, 3).reshape(G, C, n_valid)
    slab = jnp.pad(slab, ((0, 0), (0, 0), (0, W - n_valid)))        # (G, C, W)

    # conv weights (L, K, O, I) -> im2col layout (L, O, K*I); biases -> (L, C, 1).
    conv_w2 = jnp.transpose(params['conv_w'], (0, 2, 1, 3)).reshape(N_LAYERS, C, K * C)
    conv_b2 = params['conv_b'][..., None]

    def full_spec(a):
        nd = a.ndim
        return pl.BlockSpec(a.shape, lambda g, nd=nd: (0,) * nd)

    flops = G * W * (2 * N_LAYERS * C * K * C + 2 * C * C
                     + 2 * ENC * C + 2 * out_size * 2 * ENC)
    transcendentals = G * W * (3 * N_BLOCKS * C + 2 * ENC)
    bytes_accessed = 4 * (G * C * W + G * out_size * W
                          + conv_w2.size + conv_b2.size + params['down_w'].size
                          + params['down_b'].size + params['enc_b'].size
                          + params['lin_w'].size + params['lin_b'].size)

    kernel = functools.partial(seq2seq_kernel, seg=seg, n_valid=n_valid)

    out = pl.pallas_call(
        kernel,
        out_shape=jax.ShapeDtypeStruct((G, out_size, W), jnp.float32),
        grid_spec=pltpu.PrefetchScalarGridSpec(
            num_scalar_prefetch=0,
            grid=(G,),
            in_specs=[
                pl.BlockSpec((1, C, W), lambda g: (g, 0, 0)),
                full_spec(conv_w2),
                full_spec(conv_b2),
                full_spec(params['down_w']),
                full_spec(params['down_b']),
                full_spec(params['enc_b']),
                full_spec(params['lin_w']),
                full_spec(params['lin_b']),
            ],
            out_specs=pl.BlockSpec((1, out_size, W), lambda g: (g, 0, 0)),
            scratch_shapes=[pltpu.VMEM((C, SPAD + W), jnp.float32)],
        ),
        compiler_params=pltpu.CompilerParams(
            dimension_semantics=("parallel",)),
        cost_estimate=pl.CostEstimate(
            flops=int(flops), transcendentals=int(transcendentals),
            bytes_accessed=int(bytes_accessed)),
    )(slab, conv_w2, conv_b2, params['down_w'], params['down_b'],
      params['enc_b'], params['lin_w'], params['lin_b'])

    # (G, OUT, W) -> (B, T, OUT): drop lane padding, unpack segments, drop margins.
    y = out[:, :, :n_valid].reshape(G, out_size, bt, seg)
    y = y.transpose(0, 2, 3, 1).reshape(Bp, seg, out_size)
    return y[:B, PAD:, :]


def ref_forward(x, params):
    """Pure-JAX reference mirroring the PyTorch forward (f32)."""
    B, T, cin = x.shape
    prec = lax.Precision.HIGHEST
    h = jnp.transpose(x, (0, 2, 1)).astype(jnp.float32)
    h = jnp.pad(h, ((0, 0), (0, C - cin), (0, 0)))

    def cconv(v, w_koi, b, d):
        w = jnp.transpose(w_koi, (1, 2, 0))                     # (O, I, K)
        out = lax.conv_general_dilated(
            v, w, window_strides=(1,), padding=[((K - 1) * d, 0)],
            rhs_dilation=(d,), dimension_numbers=('NCH', 'OIH', 'NCH'),
            precision=prec)
        return out + b[None, :, None]

    for blk in range(N_BLOCKS):
        d = 2 ** (blk % 4)
        if blk == 0:
            res = jnp.einsum('oc,bct->bot', params['down_w'], h,
                             precision=prec) + params['down_b'][None]
        else:
            res = h
        h1 = jnp.tanh(cconv(h, params['conv_w'][2 * blk], params['conv_b'][2 * blk], d))
        h2 = jnp.tanh(cconv(h1, params['conv_w'][2 * blk + 1], params['conv_b'][2 * blk + 1], d))
        h = jnp.tanh(h2 + res)

    y = jnp.transpose(h, (0, 2, 1))                             # (B, T, C)
    vp = 2.0 * math.pi * jnp.einsum('btc,ec->bte', y, params['enc_b'], precision=prec)
    feat = jnp.concatenate([jnp.cos(vp), jnp.sin(vp)], axis=-1)
    out = jnp.einsum('btf,of->bto', feat, params['lin_w'], precision=prec)
    return out + params['lin_b'][:, 0][None, None, :]


if __name__ == "__main__":
    import numpy as np

    B, T, INPUT_SIZE, OUTPUT_SIZE = 2, 32, 4, 4
    key = jax.random.PRNGKey(0)
    kx, kp = jax.random.split(key)
    x = jax.random.normal(kx, (B, T, INPUT_SIZE), jnp.float32)
    params = make_params(kp, INPUT_SIZE, OUTPUT_SIZE)

    y = seq2seq_forward(x, params)
    y = jax.block_until_ready(y)
    assert y.shape == (B, T, OUTPUT_SIZE)

    y_ref = ref_forward(x, params)
    np.testing.assert_allclose(np.asarray(y), np.asarray(y_ref), atol=3e-3, rtol=3e-3)
    print("KERNEL_OK")
</pallas_src>

<mosaic_0001>
module attributes {stable_mosaic.version = 11 : i64} {
  func.func @seq2seq_kernel(%arg0: i32, %arg1: memref<1x16x256xf32, #tpu.memory_space<vmem>>, %arg2: memref<16x16x176xf32, #tpu.memory_space<vmem>>, %arg3: memref<16x16x1xf32, #tpu.memory_space<vmem>>, %arg4: memref<16x16xf32, #tpu.memory_space<vmem>>, %arg5: memref<16x1xf32, #tpu.memory_space<vmem>>, %arg6: memref<8x16xf32, #tpu.memory_space<vmem>>, %arg7: memref<4x16xf32, #tpu.memory_space<vmem>>, %arg8: memref<4x1xf32, #tpu.memory_space<vmem>>, %arg9: memref<1x4x256xf32, #tpu.memory_space<vmem>>, %arg10: memref<16x384xf32, #tpu.memory_space<vmem>>) attributes {dimension_semantics = [#tpu.dimension_semantics<parallel>], iteration_bounds = array<i64: 1>, scalar_prefetch = 0 : i64, scratch_operands = 1 : i64, tpu.core_type = #tpu.core_type<tc>, window_params = [{transform_indices = @transform_0, window_bounds = array<i64: 1, 16, 256>}, {pipeline_mode = #tpu.pipeline_mode<synchronous>, transform_indices = @transform_1, window_bounds = array<i64: 16, 16, 176>}, {pipeline_mode = #tpu.pipeline_mode<synchronous>, transform_indices = @transform_2, window_bounds = array<i64: 16, 16, 1>}, {pipeline_mode = #tpu.pipeline_mode<synchronous>, transform_indices = @transform_3, window_bounds = array<i64: 16, 16>}, {pipeline_mode = #tpu.pipeline_mode<synchronous>, transform_indices = @transform_4, window_bounds = array<i64: 16, 1>}, {pipeline_mode = #tpu.pipeline_mode<synchronous>, transform_indices = @transform_5, window_bounds = array<i64: 8, 16>}, {pipeline_mode = #tpu.pipeline_mode<synchronous>, transform_indices = @transform_6, window_bounds = array<i64: 4, 16>}, {pipeline_mode = #tpu.pipeline_mode<synchronous>, transform_indices = @transform_7, window_bounds = array<i64: 4, 1>}, {transform_indices = @transform_8, window_bounds = array<i64: 1, 4, 256>}]} {
    %cst = arith.constant 0.000000e+00 : f32
    %0 = vector.broadcast %cst : f32 to vector<16x128xf32>
    %c0 = arith.constant 0 : index
    %c0_0 = arith.constant 0 : index
    %1 = vector.load %arg10[%c0, %c0_0] : memref<16x384xf32, #tpu.memory_space<vmem>>, vector<16x128xf32>
    tpu.vector_store %arg10[%c0, %c0_0], %0 {strides = array<i32>} : memref<16x384xf32, #tpu.memory_space<vmem>>, vector<16x128xf32>,
    %2 = tpu.iota {dimensions = array<i32: 1>} : vector<16x256xi32>
    %c112_i32 = arith.constant 112 : i32
    %c0_i32 = arith.constant 0 : i32
    %3 = arith.cmpi eq, %c112_i32, %c0_i32 : i32
    %c1_i32 = arith.constant 1 : i32
    %4 = arith.select %3, %c1_i32, %c112_i32 : i32
    %5 = vector.broadcast %4 : i32 to vector<16x256xi32>
    %6 = arith.remsi %2, %5 : vector<16x256xi32>
    %c0_i32_1 = arith.constant 0 : i32
    %7 = vector.broadcast %c0_i32_1 : i32 to vector<16x256xi32>
    %8 = arith.cmpi ne, %6, %7 : vector<16x256xi32>
    %c0_i32_2 = arith.constant 0 : i32
    %9 = vector.broadcast %c0_i32_2 : i32 to vector<16x256xi32>
    %10 = arith.cmpi slt, %6, %9 : vector<16x256xi32>
    %c0_i32_3 = arith.constant 0 : i32
    %11 = arith.cmpi slt, %4, %c0_i32_3 : i32
    %12 = vector.broadcast %11 : i1 to vector<16x256xi1>
    %13 = vector.broadcast %12 : vector<16x256xi1> to vector<16x256xi1>
    %14 = arith.xori %10, %13 : vector<16x256xi1>
    %15 = arith.andi %14, %8 : vector<16x256xi1>
    %16 = vector.broadcast %4 : i32 to vector<16x256xi32>
    %17 = arith.addi %6, %16 : vector<16x256xi32>
    %18 = arith.select %15, %17, %6 : vector<16x256xi1>, vector<16x256xi32>
    %c80_i32 = arith.constant 80 : i32
    %19 = vector.broadcast %c80_i32 : i32 to vector<16x256xi32>
    %20 = arith.cmpi sge, %18, %19 : vector<16x256xi32>
    %c224_i32 = arith.constant 224 : i32
    %21 = vector.broadcast %c224_i32 : i32 to vector<16x256xi32>
    %22 = arith.cmpi slt, %2, %21 : vector<16x256xi32>
    %23 = arith.andi %20, %22 : vector<16x256xi1>
    %c0_4 = arith.constant 0 : index
    %c0_5 = arith.constant 0 : index
    %c0_6 = arith.constant 0 : index
    %24 = vector.load %arg1[%c0_4, %c0_5, %c0_6] : memref<1x16x256xf32, #tpu.memory_space<vmem>>, vector<1x16x256xf32>
    %25 = vector.shape_cast %24 : vector<1x16x256xf32> to vector<16x256xf32>
    %c0_7 = arith.constant 0 : index
    %c0_8 = arith.constant 0 : index
    %26 = vector.load %arg4[%c0_7, %c0_8] : memref<16x16xf32, #tpu.memory_space<vmem>>, vector<16x16xf32>
    %cst_9 = arith.constant dense<0.000000e+00> : vector<16x256xf32>
    %27 = tpu.matmul %26, %25, %cst_9 {dimension_numbers = #tpu.dot_dimension_numbers<[1], [0], [0], [1], [0, 0, 1, 1], [], []>} : vector<16x16xf32>, vector<16x256xf32>, vector<16x256xf32> -> vector<16x256xf32>
    %c0_10 = arith.constant 0 : index
    %c0_11 = arith.constant 0 : index
    %28 = vector.load %arg5[%c0_10, %c0_11] : memref<16x1xf32, #tpu.memory_space<vmem>>, vector<16x1xf32>
    %29 = vector.broadcast %28 : vector<16x1xf32> to vector<16x256xf32>
    %30 = arith.addf %27, %29 : vector<16x256xf32>
    %c0_12 = arith.constant 0 : index
    %c128 = arith.constant 128 : index
    %31 = vector.load %arg10[%c0_12, %c128] : memref<16x384xf32, #tpu.memory_space<vmem>>, vector<16x256xf32>
    tpu.vector_store %arg10[%c0_12, %c128], %25 {strides = array<i32>} : memref<16x384xf32, #tpu.memory_space<vmem>>, vector<16x256xf32>,
    %c0_13 = arith.constant 0 : index
    %c118 = arith.constant 118 : index
    %32 = vector.load %arg10[%c0_13, %c118] : memref<16x384xf32, #tpu.memory_space<vmem>>, vector<16x256xf32>
    %c0_14 = arith.constant 0 : index
    %c119 = arith.constant 119 : index
    %33 = vector.load %arg10[%c0_14, %c119] : memref<16x384xf32, #tpu.memory_space<vmem>>, vector<16x256xf32>
    %c0_15 = arith.constant 0 : index
    %c120 = arith.constant 120 : index
    %34 = vector.load %arg10[%c0_15, %c120] : memref<16x384xf32, #tpu.memory_space<vmem>>, vector<16x256xf32>
    %c0_16 = arith.constant 0 : index
    %c121 = arith.constant 121 : index
    %35 = vector.load %arg10[%c0_16, %c121] : memref<16x384xf32, #tpu.memory_space<vmem>>, vector<16x256xf32>
    %c0_17 = arith.constant 0 : index
    %c122 = arith.constant 122 : index
    %36 = vector.load %arg10[%c0_17, %c122] : memref<16x384xf32, #tpu.memory_space<vmem>>, vector<16x256xf32>
    %c0_18 = arith.constant 0 : index
    %c123 = arith.constant 123 : index
    %37 = vector.load %arg10[%c0_18, %c123] : memref<16x384xf32, #tpu.memory_space<vmem>>, vector<16x256xf32>
    %c0_19 = arith.constant 0 : index
    %c124 = arith.constant 124 : index
    %38 = vector.load %arg10[%c0_19, %c124] : memref<16x384xf32, #tpu.memory_space<vmem>>, vector<16x256xf32>
    %c0_20 = arith.constant 0 : index
    %c125 = arith.constant 125 : index
    %39 = vector.load %arg10[%c0_20, %c125] : memref<16x384xf32, #tpu.memory_space<vmem>>, vector<16x256xf32>
    %c0_21 = arith.constant 0 : index
    %c126 = arith.constant 126 : index
    %40 = vector.load %arg10[%c0_21, %c126] : memref<16x384xf32, #tpu.memory_space<vmem>>, vector<16x256xf32>
    %c0_22 = arith.constant 0 : index
    %c127 = arith.constant 127 : index
    %41 = vector.load %arg10[%c0_22, %c127] : memref<16x384xf32, #tpu.memory_space<vmem>>, vector<16x256xf32>
    %c0_23 = arith.constant 0 : index
    %c128_24 = arith.constant 128 : index
    %42 = vector.load %arg10[%c0_23, %c128_24] : memref<16x384xf32, #tpu.memory_space<vmem>>, vector<16x256xf32>
    %43 = tpu.concatenate %32, %33, %34, %35, %36, %37, %38, %39, %40, %41, %42 in 0 : vector<16x256xf32>, vector<16x256xf32>, vector<16x256xf32>, vector<16x256xf32>, vector<16x256xf32>, vector<16x256xf32>, vector<16x256xf32>, vector<16x256xf32>, vector<16x256xf32>, vector<16x256xf32>, vector<16x256xf32> -> vector<176x256xf32>
    %c0_25 = arith.constant 0 : index
    %c0_26 = arith.constant 0 : index
    %c0_27 = arith.constant 0 : index
    %44 = vector.load %arg2[%c0_25, %c0_26, %c0_27] : memref<16x16x176xf32, #tpu.memory_space<vmem>>, vector<1x16x176xf32>
    %45 = vector.shape_cast %44 : vector<1x16x176xf32> to vector<16x176xf32>
    %cst_28 = arith.constant dense<0.000000e+00> : vector<16x256xf32>
    %46 = tpu.matmul %45, %43, %cst_28 {dimension_numbers = #tpu.dot_dimension_numbers<[1], [0], [0], [1], [0, 0, 1, 1], [], []>} : vector<16x176xf32>, vector<176x256xf32>, vector<16x256xf32> -> vector<16x256xf32>
    %c0_29 = arith.constant 0 : index
    %c0_30 = arith.constant 0 : index
    %c0_31 = arith.constant 0 : index
    %47 = vector.load %arg3[%c0_29, %c0_30, %c0_31] : memref<16x16x1xf32, #tpu.memory_space<vmem>>, vector<1x16x1xf32>
    %48 = vector.shape_cast %47 : vector<1x16x1xf32> to vector<16x1xf32>
    %49 = vector.broadcast %48 : vector<16x1xf32> to vector<16x256xf32>
    %50 = arith.addf %46, %49 : vector<16x256xf32>
    %51 = math.tanh %50 : vector<16x256xf32>
    %cst_32 = arith.constant 0.000000e+00 : f32
    %52 = vector.broadcast %cst_32 : f32 to vector<16x256xf32>
    %53 = arith.select %23, %51, %52 : vector<16x256xi1>, vector<16x256xf32>
    %c0_33 = arith.constant 0 : index
    %c128_34 = arith.constant 128 : index
    %54 = vector.load %arg10[%c0_33, %c128_34] : memref<16x384xf32, #tpu.memory_space<vmem>>, vector<16x256xf32>
    tpu.vector_store %arg10[%c0_33, %c128_34], %53 {strides = array<i32>} : memref<16x384xf32, #tpu.memory_space<vmem>>, vector<16x256xf32>,
    %c0_35 = arith.constant 0 : index
    %c118_36 = arith.constant 118 : index
    %55 = vector.load %arg10[%c0_35, %c118_36] : memref<16x384xf32, #tpu.memory_space<vmem>>, vector<16x256xf32>
    %c0_37 = arith.constant 0 : index
    %c119_38 = arith.constant 119 : index
    %56 = vector.load %arg10[%c0_37, %c119_38] : memref<16x384xf32, #tpu.memory_space<vmem>>, vector<16x256xf32>
    %c0_39 = arith.constant 0 : index
    %c120_40 = arith.constant 120 : index
    %57 = vector.load %arg10[%c0_39, %c120_40] : memref<16x384xf32, #tpu.memory_space<vmem>>, vector<16x256xf32>
    %c0_41 = arith.constant 0 : index
    %c121_42 = arith.constant 121 : index
    %58 = vector.load %arg10[%c0_41, %c121_42] : memref<16x384xf32, #tpu.memory_space<vmem>>, vector<16x256xf32>
    %c0_43 = arith.constant 0 : index
    %c122_44 = arith.constant 122 : index
    %59 = vector.load %arg10[%c0_43, %c122_44] : memref<16x384xf32, #tpu.memory_space<vmem>>, vector<16x256xf32>
    %c0_45 = arith.constant 0 : index
    %c123_46 = arith.constant 123 : index
    %60 = vector.load %arg10[%c0_45, %c123_46] : memref<16x384xf32, #tpu.memory_space<vmem>>, vector<16x256xf32>
    %c0_47 = arith.constant 0 : index
    %c124_48 = arith.constant 124 : index
    %61 = vector.load %arg10[%c0_47, %c124_48] : memref<16x384xf32, #tpu.memory_space<vmem>>, vector<16x256xf32>
    %c0_49 = arith.constant 0 : index
    %c125_50 = arith.constant 125 : index
    %62 = vector.load %arg10[%c0_49, %c125_50] : memref<16x384xf32, #tpu.memory_space<vmem>>, vector<16x256xf32>
    %c0_51 = arith.constant 0 : index
    %c126_52 = arith.constant 126 : index
    %63 = vector.load %arg10[%c0_51, %c126_52] : memref<16x384xf32, #tpu.memory_space<vmem>>, vector<16x256xf32>
    %c0_53 = arith.constant 0 : index
    %c127_54 = arith.constant 127 : index
    %64 = vector.load %arg10[%c0_53, %c127_54] : memref<16x384xf32, #tpu.memory_space<vmem>>, vector<16x256xf32>
    %c0_55 = arith.constant 0 : index
    %c128_56 = arith.constant 128 : index
    %65 = vector.load %arg10[%c0_55, %c128_56] : memref<16x384xf32, #tpu.memory_space<vmem>>, vector<16x256xf32>
    %66 = tpu.concatenate %55, %56, %57, %58, %59, %60, %61, %62, %63, %64, %65 in 0 : vector<16x256xf32>, vector<16x256xf32>, vector<16x256xf32>, vector<16x256xf32>, vector<16x256xf32>, vector<16x256xf32>, vector<16x256xf32>, vector<16x256xf32>, vector<16x256xf32>, vector<16x256xf32>, vector<16x256xf32> -> vector<176x256xf32>
    %c1 = arith.constant 1 : index
    %c0_57 = arith.constant 0 : index
    %c0_58 = arith.constant 0 : index
    %67 = vector.load %arg2[%c1, %c0_57, %c0_58] : memref<16x16x176xf32, #tpu.memory_space<vmem>>, vector<1x16x176xf32>
    %68 = vector.shape_cast %67 : vector<1x16x176xf32> to vector<16x176xf32>
    %cst_59 = arith.constant dense<0.000000e+00> : vector<16x256xf32>
    %69 = tpu.matmul %68, %66, %cst_59 {dimension_numbers = #tpu.dot_dimension_numbers<[1], [0], [0], [1], [0, 0, 1, 1], [], []>} : vector<16x176xf32>, vector<176x256xf32>, vector<16x256xf32> -> vector<16x256xf32>
    %c1_60 = arith.constant 1 : index
    %c0_61 = arith.constant 0 : index
    %c0_62 = arith.constant 0 : index
    %70 = vector.load %arg3[%c1_60, %c0_61, %c0_62] : memref<16x16x1xf32, #tpu.memory_space<vmem>>, vector<1x16x1xf32>
    %71 = vector.shape_cast %70 : vector<1x16x1xf32> to vector<16x1xf32>
    %72 = vector.broadcast %71 : vector<16x1xf32> to vector<16x256xf32>
    %73 = arith.addf %69, %72 : vector<16x256xf32>
    %74 = math.tanh %73 : vector<16x256xf32>
    %75 = arith.addf %74, %30 : vector<16x256xf32>
    %76 = math.tanh %75 : vector<16x256xf32>
    %cst_63 = arith.constant 0.000000e+00 : f32
    %77 = vector.broadcast %cst_63 : f32 to vector<16x256xf32>
    %78 = arith.select %23, %76, %77 : vector<16x256xi1>, vector<16x256xf32>
    %c0_64 = arith.constant 0 : index
    %c128_65 = arith.constant 128 : index
    %79 = vector.load %arg10[%c0_64, %c128_65] : memref<16x384xf32, #tpu.memory_space<vmem>>, vector<16x256xf32>
    tpu.vector_store %arg10[%c0_64, %c128_65], %78 {strides = array<i32>} : memref<16x384xf32, #tpu.memory_space<vmem>>, vector<16x256xf32>,
    %c0_66 = arith.constant 0 : index
    %c108 = arith.constant 108 : index
    %80 = vector.load %arg10[%c0_66, %c108] : memref<16x384xf32, #tpu.memory_space<vmem>>, vector<16x256xf32>
    %c0_67 = arith.constant 0 : index
    %c110 = arith.constant 110 : index
    %81 = vector.load %arg10[%c0_67, %c110] : memref<16x384xf32, #tpu.memory_space<vmem>>, vector<16x256xf32>
    %c0_68 = arith.constant 0 : index
    %c112 = arith.constant 112 : index
    %82 = vector.load %arg10[%c0_68, %c112] : memref<16x384xf32, #tpu.memory_space<vmem>>, vector<16x256xf32>
    %c0_69 = arith.constant 0 : index
    %c114 = arith.constant 114 : index
    %83 = vector.load %arg10[%c0_69, %c114] : memref<16x384xf32, #tpu.memory_space<vmem>>, vector<16x256xf32>
    %c0_70 = arith.constant 0 : index
    %c116 = arith.constant 116 : index
    %84 = vector.load %arg10[%c0_70, %c116] : memref<16x384xf32, #tpu.memory_space<vmem>>, vector<16x256xf32>
    %c0_71 = arith.constant 0 : index
    %c118_72 = arith.constant 118 : index
    %85 = vector.load %arg10[%c0_71, %c118_72] : memref<16x384xf32, #tpu.memory_space<vmem>>, vector<16x256xf32>
    %c0_73 = arith.constant 0 : index
    %c120_74 = arith.constant 120 : index
    %86 = vector.load %arg10[%c0_73, %c120_74] : memref<16x384xf32, #tpu.memory_space<vmem>>, vector<16x256xf32>
    %c0_75 = arith.constant 0 : index
    %c122_76 = arith.constant 122 : index
    %87 = vector.load %arg10[%c0_75, %c122_76] : memref<16x384xf32, #tpu.memory_space<vmem>>, vector<16x256xf32>
    %c0_77 = arith.constant 0 : index
    %c124_78 = arith.constant 124 : index
    %88 = vector.load %arg10[%c0_77, %c124_78] : memref<16x384xf32, #tpu.memory_space<vmem>>, vector<16x256xf32>
    %c0_79 = arith.constant 0 : index
    %c126_80 = arith.constant 126 : index
    %89 = vector.load %arg10[%c0_79, %c126_80] : memref<16x384xf32, #tpu.memory_space<vmem>>, vector<16x256xf32>
    %c0_81 = arith.constant 0 : index
    %c128_82 = arith.constant 128 : index
    %90 = vector.load %arg10[%c0_81, %c128_82] : memref<16x384xf32, #tpu.memory_space<vmem>>, vector<16x256xf32>
    %91 = tpu.concatenate %80, %81, %82, %83, %84, %85, %86, %87, %88, %89, %90 in 0 : vector<16x256xf32>, vector<16x256xf32>, vector<16x256xf32>, vector<16x256xf32>, vector<16x256xf32>, vector<16x256xf32>, vector<16x256xf32>, vector<16x256xf32>, vector<16x256xf32>, vector<16x256xf32>, vector<16x256xf32> -> vector<176x256xf32>
    %c2 = arith.constant 2 : index
    %c0_83 = arith.constant 0 : index
    %c0_84 = arith.constant 0 : index
    %92 = vector.load %arg2[%c2, %c0_83, %c0_84] : memref<16x16x176xf32, #tpu.memory_space<vmem>>, vector<1x16x176xf32>
    %93 = vector.shape_cast %92 : vector<1x16x176xf32> to vector<16x176xf32>
    %cst_85 = arith.constant dense<0.000000e+00> : vector<16x256xf32>
    %94 = tpu.matmul %93, %91, %cst_85 {dimension_numbers = #tpu.dot_dimension_numbers<[1], [0], [0], [1], [0, 0, 1, 1], [], []>} : vector<16x176xf32>, vector<176x256xf32>, vector<16x256xf32> -> vector<16x256xf32>
    %c2_86 = arith.constant 2 : index
    %c0_87 = arith.constant 0 : index
    %c0_88 = arith.constant 0 : index
    %95 = vector.load %arg3[%c2_86, %c0_87, %c0_88] : memref<16x16x1xf32, #tpu.memory_space<vmem>>, vector<1x16x1xf32>
    %96 = vector.shape_cast %95 : vector<1x16x1xf32> to vector<16x1xf32>
    %97 = vector.broadcast %96 : vector<16x1xf32> to vector<16x256xf32>
    %98 = arith.addf %94, %97 : vector<16x256xf32>
    %99 = math.tanh %98 : vector<16x256xf32>
    %cst_89 = arith.constant 0.000000e+00 : f32
    %100 = vector.broadcast %cst_89 : f32 to vector<16x256xf32>
    %101 = arith.select %23, %99, %100 : vector<16x256xi1>, vector<16x256xf32>
    %c0_90 = arith.constant 0 : index
    %c128_91 = arith.constant 128 : index
    %102 = vector.load %arg10[%c0_90, %c128_91] : memref<16x384xf32, #tpu.memory_space<vmem>>, vector<16x256xf32>
    tpu.vector_store %arg10[%c0_90, %c128_91], %101 {strides = array<i32>} : memref<16x384xf32, #tpu.memory_space<vmem>>, vector<16x256xf32>,
    %c0_92 = arith.constant 0 : index
    %c108_93 = arith.constant 108 : index
    %103 = vector.load %arg10[%c0_92, %c108_93] : memref<16x384xf32, #tpu.memory_space<vmem>>, vector<16x256xf32>
    %c0_94 = arith.constant 0 : index
    %c110_95 = arith.constant 110 : index
    %104 = vector.load %arg10[%c0_94, %c110_95] : memref<16x384xf32, #tpu.memory_space<vmem>>, vector<16x256xf32>
    %c0_96 = arith.constant 0 : index
    %c112_97 = arith.constant 112 : index
    %105 = vector.load %arg10[%c0_96, %c112_97] : memref<16x384xf32, #tpu.memory_space<vmem>>, vector<16x256xf32>
    %c0_98 = arith.constant 0 : index
    %c114_99 = arith.constant 114 : index
    %106 = vector.load %arg10[%c0_98, %c114_99] : memref<16x384xf32, #tpu.memory_space<vmem>>, vector<16x256xf32>
    %c0_100 = arith.constant 0 : index
    %c116_101 = arith.constant 116 : index
    %107 = vector.load %arg10[%c0_100, %c116_101] : memref<16x384xf32, #tpu.memory_space<vmem>>, vector<16x256xf32>
    %c0_102 = arith.constant 0 : index
    %c118_103 = arith.constant 118 : index
    %108 = vector.load %arg10[%c0_102, %c118_103] : memref<16x384xf32, #tpu.memory_space<vmem>>, vector<16x256xf32>
    %c0_104 = arith.constant 0 : index
    %c120_105 = arith.constant 120 : index
    %109 = vector.load %arg10[%c0_104, %c120_105] : memref<16x384xf32, #tpu.memory_space<vmem>>, vector<16x256xf32>
    %c0_106 = arith.constant 0 : index
    %c122_107 = arith.constant 122 : index
    %110 = vector.load %arg10[%c0_106, %c122_107] : memref<16x384xf32, #tpu.memory_space<vmem>>, vector<16x256xf32>
    %c0_108 = arith.constant 0 : index
    %c124_109 = arith.constant 124 : index
    %111 = vector.load %arg10[%c0_108, %c124_109] : memref<16x384xf32, #tpu.memory_space<vmem>>, vector<16x256xf32>
    %c0_110 = arith.constant 0 : index
    %c126_111 = arith.constant 126 : index
    %112 = vector.load %arg10[%c0_110, %c126_111] : memref<16x384xf32, #tpu.memory_space<vmem>>, vector<16x256xf32>
    %c0_112 = arith.constant 0 : index
    %c128_113 = arith.constant 128 : index
    %113 = vector.load %arg10[%c0_112, %c128_113] : memref<16x384xf32, #tpu.memory_space<vmem>>, vector<16x256xf32>
    %114 = tpu.concatenate %103, %104, %105, %106, %107, %108, %109, %110, %111, %112, %113 in 0 : vector<16x256xf32>, vector<16x256xf32>, vector<16x256xf32>, vector<16x256xf32>, vector<16x256xf32>, vector<16x256xf32>, vector<16x256xf32>, vector<16x256xf32>, vector<16x256xf32>, vector<16x256xf32>, vector<16x256xf32> -> vector<176x256xf32>
    %c3 = arith.constant 3 : index
    %c0_114 = arith.constant 0 : index
    %c0_115 = arith.constant 0 : index
    %115 = vector.load %arg2[%c3, %c0_114, %c0_115] : memref<16x16x176xf32, #tpu.memory_space<vmem>>, vector<1x16x176xf32>
    %116 = vector.shape_cast %115 : vector<1x16x176xf32> to vector<16x176xf32>
    %cst_116 = arith.constant dense<0.000000e+00> : vector<16x256xf32>
    %117 = tpu.matmul %116, %114, %cst_116 {dimension_numbers = #tpu.dot_dimension_numbers<[1], [0], [0], [1], [0, 0, 1, 1], [], []>} : vector<16x176xf32>, vector<176x256xf32>, vector<16x256xf32> -> vector<16x256xf32>
    %c3_117 = arith.constant 3 : index
    %c0_118 = arith.constant 0 : index
    %c0_119 = arith.constant 0 : index
    %118 = vector.load %arg3[%c3_117, %c0_118, %c0_119] : memref<16x16x1xf32, #tpu.memory_space<vmem>>, vector<1x16x1xf32>
    %119 = vector.shape_cast %118 : vector<1x16x1xf32> to vector<16x1xf32>
    %120 = vector.broadcast %119 : vector<16x1xf32> to vector<16x256xf32>
    %121 = arith.addf %117, %120 : vector<16x256xf32>
    %122 = math.tanh %121 : vector<16x256xf32>
    %123 = arith.addf %122, %78 : vector<16x256xf32>
    %124 = math.tanh %123 : vector<16x256xf32>
    %cst_120 = arith.constant 0.000000e+00 : f32
    %125 = vector.broadcast %cst_120 : f32 to vector<16x256xf32>
    %126 = arith.select %23, %124, %125 : vector<16x256xi1>, vector<16x256xf32>
    %c0_121 = arith.constant 0 : index
    %c128_122 = arith.constant 128 : index
    %127 = vector.load %arg10[%c0_121, %c128_122] : memref<16x384xf32, #tpu.memory_space<vmem>>, vector<16x256xf32>
    tpu.vector_store %arg10[%c0_121, %c128_122], %126 {strides = array<i32>} : memref<16x384xf32, #tpu.memory_space<vmem>>, vector<16x256xf32>,
    %c0_123 = arith.constant 0 : index
    %c88 = arith.constant 88 : index
    %128 = vector.load %arg10[%c0_123, %c88] : memref<16x384xf32, #tpu.memory_space<vmem>>, vector<16x256xf32>
    %c0_124 = arith.constant 0 : index
    %c92 = arith.constant 92 : index
    %129 = vector.load %arg10[%c0_124, %c92] : memref<16x384xf32, #tpu.memory_space<vmem>>, vector<16x256xf32>
    %c0_125 = arith.constant 0 : index
    %c96 = arith.constant 96 : index
    %130 = vector.load %arg10[%c0_125, %c96] : memref<16x384xf32, #tpu.memory_space<vmem>>, vector<16x256xf32>
    %c0_126 = arith.constant 0 : index
    %c100 = arith.constant 100 : index
    %131 = vector.load %arg10[%c0_126, %c100] : memref<16x384xf32, #tpu.memory_space<vmem>>, vector<16x256xf32>
    %c0_127 = arith.constant 0 : index
    %c104 = arith.constant 104 : index
    %132 = vector.load %arg10[%c0_127, %c104] : memref<16x384xf32, #tpu.memory_space<vmem>>, vector<16x256xf32>
    %c0_128 = arith.constant 0 : index
    %c108_129 = arith.constant 108 : index
    %133 = vector.load %arg10[%c0_128, %c108_129] : memref<16x384xf32, #tpu.memory_space<vmem>>, vector<16x256xf32>
    %c0_130 = arith.constant 0 : index
    %c112_131 = arith.constant 112 : index
    %134 = vector.load %arg10[%c0_130, %c112_131] : memref<16x384xf32, #tpu.memory_space<vmem>>, vector<16x256xf32>
    %c0_132 = arith.constant 0 : index
    %c116_133 = arith.constant 116 : index
    %135 = vector.load %arg10[%c0_132, %c116_133] : memref<16x384xf32, #tpu.memory_space<vmem>>, vector<16x256xf32>
    %c0_134 = arith.constant 0 : index
    %c120_135 = arith.constant 120 : index
    %136 = vector.load %arg10[%c0_134, %c120_135] : memref<16x384xf32, #tpu.memory_space<vmem>>, vector<16x256xf32>
    %c0_136 = arith.constant 0 : index
    %c124_137 = arith.constant 124 : index
    %137 = vector.load %arg10[%c0_136, %c124_137] : memref<16x384xf32, #tpu.memory_space<vmem>>, vector<16x256xf32>
    %c0_138 = arith.constant 0 : index
    %c128_139 = arith.constant 128 : index
    %138 = vector.load %arg10[%c0_138, %c128_139] : memref<16x384xf32, #tpu.memory_space<vmem>>, vector<16x256xf32>
    %139 = tpu.concatenate %128, %129, %130, %131, %132, %133, %134, %135, %136, %137, %138 in 0 : vector<16x256xf32>, vector<16x256xf32>, vector<16x256xf32>, vector<16x256xf32>, vector<16x256xf32>, vector<16x256xf32>, vector<16x256xf32>, vector<16x256xf32>, vector<16x256xf32>, vector<16x256xf32>, vector<16x256xf32> -> vector<176x256xf32>
    %c4 = arith.constant 4 : index
    %c0_140 = arith.constant 0 : index
    %c0_141 = arith.constant 0 : index
    %140 = vector.load %arg2[%c4, %c0_140, %c0_141] : memref<16x16x176xf32, #tpu.memory_space<vmem>>, vector<1x16x176xf32>
    %141 = vector.shape_cast %140 : vector<1x16x176xf32> to vector<16x176xf32>
    %cst_142 = arith.constant dense<0.000000e+00> : vector<16x256xf32>
    %142 = tpu.matmul %141, %139, %cst_142 {dimension_numbers = #tpu.dot_dimension_numbers<[1], [0], [0], [1], [0, 0, 1, 1], [], []>} : vector<16x176xf32>, vector<176x256xf32>, vector<16x256xf32> -> vector<16x256xf32>
    %c4_143 = arith.constant 4 : index
    %c0_144 = arith.constant 0 : index
    %c0_145 = arith.constant 0 : index
    %143 = vector.load %arg3[%c4_143, %c0_144, %c0_145] : memref<16x16x1xf32, #tpu.memory_space<vmem>>, vector<1x16x1xf32>
    %144 = vector.shape_cast %143 : vector<1x16x1xf32> to vector<16x1xf32>
    %145 = vector.broadcast %144 : vector<16x1xf32> to vector<16x256xf32>
    %146 = arith.addf %142, %145 : vector<16x256xf32>
    %147 = math.tanh %146 : vector<16x256xf32>
    %cst_146 = arith.constant 0.000000e+00 : f32
    %148 = vector.broadcast %cst_146 : f32 to vector<16x256xf32>
    %149 = arith.select %23, %147, %148 : vector<16x256xi1>, vector<16x256xf32>
    %c0_147 = arith.constant 0 : index
    %c128_148 = arith.constant 128 : index
    %150 = vector.load %arg10[%c0_147, %c128_148] : memref<16x384xf32, #tpu.memory_space<vmem>>, vector<16x256xf32>
    tpu.vector_store %arg10[%c0_147, %c128_148], %149 {strides = array<i32>} : memref<16x384xf32, #tpu.memory_space<vmem>>, vector<16x256xf32>,
    %c0_149 = arith.constant 0 : index
    %c88_150 = arith.constant 88 : index
    %151 = vector.load %arg10[%c0_149, %c88_150] : memref<16x384xf32, #tpu.memory_space<vmem>>, vector<16x256xf32>
    %c0_151 = arith.constant 0 : index
    %c92_152 = arith.constant 92 : index
    %152 = vector.load %arg10[%c0_151, %c92_152] : memref<16x384xf32, #tpu.memory_space<vmem>>, vector<16x256xf32>
    %c0_153 = arith.constant 0 : index
    %c96_154 = arith.constant 96 : index
    %153 = vector.load %arg10[%c0_153, %c96_154] : memref<16x384xf32, #tpu.memory_space<vmem>>, vector<16x256xf32>
    %c0_155 = arith.constant 0 : index
    %c100_156 = arith.constant 100 : index
    %154 = vector.load %arg10[%c0_155, %c100_156] : memref<16x384xf32, #tpu.memory_space<vmem>>, vector<16x256xf32>
    %c0_157 = arith.constant 0 : index
    %c104_158 = arith.constant 104 : index
    %155 = vector.load %arg10[%c0_157, %c104_158] : memref<16x384xf32, #tpu.memory_space<vmem>>, vector<16x256xf32>
    %c0_159 = arith.constant 0 : index
    %c108_160 = arith.constant 108 : index
    %156 = vector.load %arg10[%c0_159, %c108_160] : memref<16x384xf32, #tpu.memory_space<vmem>>, vector<16x256xf32>
    %c0_161 = arith.constant 0 : index
    %c112_162 = arith.constant 112 : index
    %157 = vector.load %arg10[%c0_161, %c112_162] : memref<16x384xf32, #tpu.memory_space<vmem>>, vector<16x256xf32>
    %c0_163 = arith.constant 0 : index
    %c116_164 = arith.constant 116 : index
    %158 = vector.load %arg10[%c0_163, %c116_164] : memref<16x384xf32, #tpu.memory_space<vmem>>, vector<16x256xf32>
    %c0_165 = arith.constant 0 : index
    %c120_166 = arith.constant 120 : index
    %159 = vector.load %arg10[%c0_165, %c120_166] : memref<16x384xf32, #tpu.memory_space<vmem>>, vector<16x256xf32>
    %c0_167 = arith.constant 0 : index
    %c124_168 = arith.constant 124 : index
    %160 = vector.load %arg10[%c0_167, %c124_168] : memref<16x384xf32, #tpu.memory_space<vmem>>, vector<16x256xf32>
    %c0_169 = arith.constant 0 : index
    %c128_170 = arith.constant 128 : index
    %161 = vector.load %arg10[%c0_169, %c128_170] : memref<16x384xf32, #tpu.memory_space<vmem>>, vector<16x256xf32>
    %162 = tpu.concatenate %151, %152, %153, %154, %155, %156, %157, %158, %159, %160, %161 in 0 : vector<16x256xf32>, vector<16x256xf32>, vector<16x256xf32>, vector<16x256xf32>, vector<16x256xf32>, vector<16x256xf32>, vector<16x256xf32>, vector<16x256xf32>, vector<16x256xf32>, vector<16x256xf32>, vector<16x256xf32> -> vector<176x256xf32>
    %c5 = arith.constant 5 : index
    %c0_171 = arith.constant 0 : index
    %c0_172 = arith.constant 0 : index
    %163 = vector.load %arg2[%c5, %c0_171, %c0_172] : memref<16x16x176xf32, #tpu.memory_space<vmem>>, vector<1x16x176xf32>
    %164 = vector.shape_cast %163 : vector<1x16x176xf32> to vector<16x176xf32>
    %cst_173 = arith.constant dense<0.000000e+00> : vector<16x256xf32>
    %165 = tpu.matmul %164, %162, %cst_173 {dimension_numbers = #tpu.dot_dimension_numbers<[1], [0], [0], [1], [0, 0, 1, 1], [], []>} : vector<16x176xf32>, vector<176x256xf32>, vector<16x256xf32> -> vector<16x256xf32>
    %c5_174 = arith.constant 5 : index
    %c0_175 = arith.constant 0 : index
    %c0_176 = arith.constant 0 : index
    %166 = vector.load %arg3[%c5_174, %c0_175, %c0_176] : memref<16x16x1xf32, #tpu.memory_space<vmem>>, vector<1x16x1xf32>
    %167 = vector.shape_cast %166 : vector<1x16x1xf32> to vector<16x1xf32>
    %168 = vector.broadcast %167 : vector<16x1xf32> to vector<16x256xf32>
    %169 = arith.addf %165, %168 : vector<16x256xf32>
    %170 = math.tanh %169 : vector<16x256xf32>
    %171 = arith.addf %170, %126 : vector<16x256xf32>
    %172 = math.tanh %171 : vector<16x256xf32>
    %cst_177 = arith.constant 0.000000e+00 : f32
    %173 = vector.broadcast %cst_177 : f32 to vector<16x256xf32>
    %174 = arith.select %23, %172, %173 : vector<16x256xi1>, vector<16x256xf32>
    %c0_178 = arith.constant 0 : index
    %c128_179 = arith.constant 128 : index
    %175 = vector.load %arg10[%c0_178, %c128_179] : memref<16x384xf32, #tpu.memory_space<vmem>>, vector<16x256xf32>
    tpu.vector_store %arg10[%c0_178, %c128_179], %174 {strides = array<i32>} : memref<16x384xf32, #tpu.memory_space<vmem>>, vector<16x256xf32>,
    %c0_180 = arith.constant 0 : index
    %c48 = arith.constant 48 : index
    %176 = vector.load %arg10[%c0_180, %c48] : memref<16x384xf32, #tpu.memory_space<vmem>>, vector<16x256xf32>
    %c0_181 = arith.constant 0 : index
    %c56 = arith.constant 56 : index
    %177 = vector.load %arg10[%c0_181, %c56] : memref<16x384xf32, #tpu.memory_space<vmem>>, vector<16x256xf32>
    %c0_182 = arith.constant 0 : index
    %c64 = arith.constant 64 : index
    %178 = vector.load %arg10[%c0_182, %c64] : memref<16x384xf32, #tpu.memory_space<vmem>>, vector<16x256xf32>
    %c0_183 = arith.constant 0 : index
    %c72 = arith.constant 72 : index
    %179 = vector.load %arg10[%c0_183, %c72] : memref<16x384xf32, #tpu.memory_space<vmem>>, vector<16x256xf32>
    %c0_184 = arith.constant 0 : index
    %c80 = arith.constant 80 : index
    %180 = vector.load %arg10[%c0_184, %c80] : memref<16x384xf32, #tpu.memory_space<vmem>>, vector<16x256xf32>
    %c0_185 = arith.constant 0 : index
    %c88_186 = arith.constant 88 : index
    %181 = vector.load %arg10[%c0_185, %c88_186] : memref<16x384xf32, #tpu.memory_space<vmem>>, vector<16x256xf32>
    %c0_187 = arith.constant 0 : index
    %c96_188 = arith.constant 96 : index
    %182 = vector.load %arg10[%c0_187, %c96_188] : memref<16x384xf32, #tpu.memory_space<vmem>>, vector<16x256xf32>
    %c0_189 = arith.constant 0 : index
    %c104_190 = arith.constant 104 : index
    %183 = vector.load %arg10[%c0_189, %c104_190] : memref<16x384xf32, #tpu.memory_space<vmem>>, vector<16x256xf32>
    %c0_191 = arith.constant 0 : index
    %c112_192 = arith.constant 112 : index
    %184 = vector.load %arg10[%c0_191, %c112_192] : memref<16x384xf32, #tpu.memory_space<vmem>>, vector<16x256xf32>
    %c0_193 = arith.constant 0 : index
    %c120_194 = arith.constant 120 : index
    %185 = vector.load %arg10[%c0_193, %c120_194] : memref<16x384xf32, #tpu.memory_space<vmem>>, vector<16x256xf32>
    %c0_195 = arith.constant 0 : index
    %c128_196 = arith.constant 128 : index
    %186 = vector.load %arg10[%c0_195, %c128_196] : memref<16x384xf32, #tpu.memory_space<vmem>>, vector<16x256xf32>
    %187 = tpu.concatenate %176, %177, %178, %179, %180, %181, %182, %183, %184, %185, %186 in 0 : vector<16x256xf32>, vector<16x256xf32>, vector<16x256xf32>, vector<16x256xf32>, vector<16x256xf32>, vector<16x256xf32>, vector<16x256xf32>, vector<16x256xf32>, vector<16x256xf32>, vector<16x256xf32>, vector<16x256xf32> -> vector<176x256xf32>
    %c6 = arith.constant 6 : index
    %c0_197 = arith.constant 0 : index
    %c0_198 = arith.constant 0 : index
    %188 = vector.load %arg2[%c6, %c0_197, %c0_198] : memref<16x16x176xf32, #tpu.memory_space<vmem>>, vector<1x16x176xf32>
    %189 = vector.shape_cast %188 : vector<1x16x176xf32> to vector<16x176xf32>
    %cst_199 = arith.constant dense<0.000000e+00> : vector<16x256xf32>
    %190 = tpu.matmul %189, %187, %cst_199 {dimension_numbers = #tpu.dot_dimension_numbers<[1], [0], [0], [1], [0, 0, 1, 1], [], []>} : vector<16x176xf32>, vector<176x256xf32>, vector<16x256xf32> -> vector<16x256xf32>
    %c6_200 = arith.constant 6 : index
    %c0_201 = arith.constant 0 : index
    %c0_202 = arith.constant 0 : index
    %191 = vector.load %arg3[%c6_200, %c0_201, %c0_202] : memref<16x16x1xf32, #tpu.memory_space<vmem>>, vector<1x16x1xf32>
    %192 = vector.shape_cast %191 : vector<1x16x1xf32> to vector<16x1xf32>
    %193 = vector.broadcast %192 : vector<16x1xf32> to vector<16x256xf32>
    %194 = arith.addf %190, %193 : vector<16x256xf32>
    %195 = math.tanh %194 : vector<16x256xf32>
    %cst_203 = arith.constant 0.000000e+00 : f32
    %196 = vector.broadcast %cst_203 : f32 to vector<16x256xf32>
    %197 = arith.select %23, %195, %196 : vector<16x256xi1>, vector<16x256xf32>
    %c0_204 = arith.constant 0 : index
    %c128_205 = arith.constant 128 : index
    %198 = vector.load %arg10[%c0_204, %c128_205] : memref<16x384xf32, #tpu.memory_space<vmem>>, vector<16x256xf32>
    tpu.vector_store %arg10[%c0_204, %c128_205], %197 {strides = array<i32>} : memref<16x384xf32, #tpu.memory_space<vmem>>, vector<16x256xf32>,
    %c0_206 = arith.constant 0 : index
    %c48_207 = arith.constant 48 : index
    %199 = vector.load %arg10[%c0_206, %c48_207] : memref<16x384xf32, #tpu.memory_space<vmem>>, vector<16x256xf32>
    %c0_208 = arith.constant 0 : index
    %c56_209 = arith.constant 56 : index
    %200 = vector.load %arg10[%c0_208, %c56_209] : memref<16x384xf32, #tpu.memory_space<vmem>>, vector<16x256xf32>
    %c0_210 = arith.constant 0 : index
    %c64_211 = arith.constant 64 : index
    %201 = vector.load %arg10[%c0_210, %c64_211] : memref<16x384xf32, #tpu.memory_space<vmem>>, vector<16x256xf32>
    %c0_212 = arith.constant 0 : index
    %c72_213 = arith.constant 72 : index
    %202 = vector.load %arg10[%c0_212, %c72_213] : memref<16x384xf32, #tpu.memory_space<vmem>>, vector<16x256xf32>
    %c0_214 = arith.constant 0 : index
    %c80_215 = arith.constant 80 : index
    %203 = vector.load %arg10[%c0_214, %c80_215] : memref<16x384xf32, #tpu.memory_space<vmem>>, vector<16x256xf32>
    %c0_216 = arith.constant 0 : index
    %c88_217 = arith.constant 88 : index
    %204 = vector.load %arg10[%c0_216, %c88_217] : memref<16x384xf32, #tpu.memory_space<vmem>>, vector<16x256xf32>
    %c0_218 = arith.constant 0 : index
    %c96_219 = arith.constant 96 : index
    %205 = vector.load %arg10[%c0_218, %c96_219] : memref<16x384xf32, #tpu.memory_space<vmem>>, vector<16x256xf32>
    %c0_220 = arith.constant 0 : index
    %c104_221 = arith.constant 104 : index
    %206 = vector.load %arg10[%c0_220, %c104_221] : memref<16x384xf32, #tpu.memory_space<vmem>>, vector<16x256xf32>
    %c0_222 = arith.constant 0 : index
    %c112_223 = arith.constant 112 : index
    %207 = vector.load %arg10[%c0_222, %c112_223] : memref<16x384xf32, #tpu.memory_space<vmem>>, vector<16x256xf32>
    %c0_224 = arith.constant 0 : index
    %c120_225 = arith.constant 120 : index
    %208 = vector.load %arg10[%c0_224, %c120_225] : memref<16x384xf32, #tpu.memory_space<vmem>>, vector<16x256xf32>
    %c0_226 = arith.constant 0 : index
    %c128_227 = arith.constant 128 : index
    %209 = vector.load %arg10[%c0_226, %c128_227] : memref<16x384xf32, #tpu.memory_space<vmem>>, vector<16x256xf32>
    %210 = tpu.concatenate %199, %200, %201, %202, %203, %204, %205, %206, %207, %208, %209 in 0 : vector<16x256xf32>, vector<16x256xf32>, vector<16x256xf32>, vector<16x256xf32>, vector<16x256xf32>, vector<16x256xf32>, vector<16x256xf32>, vector<16x256xf32>, vector<16x256xf32>, vector<16x256xf32>, vector<16x256xf32> -> vector<176x256xf32>
    %c7 = arith.constant 7 : index
    %c0_228 = arith.constant 0 : index
    %c0_229 = arith.constant 0 : index
    %211 = vector.load %arg2[%c7, %c0_228, %c0_229] : memref<16x16x176xf32, #tpu.memory_space<vmem>>, vector<1x16x176xf32>
    %212 = vector.shape_cast %211 : vector<1x16x176xf32> to vector<16x176xf32>
    %cst_230 = arith.constant dense<0.000000e+00> : vector<16x256xf32>
    %213 = tpu.matmul %212, %210, %cst_230 {dimension_numbers = #tpu.dot_dimension_numbers<[1], [0], [0], [1], [0, 0, 1, 1], [], []>} : vector<16x176xf32>, vector<176x256xf32>, vector<16x256xf32> -> vector<16x256xf32>
    %c7_231 = arith.constant 7 : index
    %c0_232 = arith.constant 0 : index
    %c0_233 = arith.constant 0 : index
    %214 = vector.load %arg3[%c7_231, %c0_232, %c0_233] : memref<16x16x1xf32, #tpu.memory_space<vmem>>, vector<1x16x1xf32>
    %215 = vector.shape_cast %214 : vector<1x16x1xf32> to vector<16x1xf32>
    %216 = vector.broadcast %215 : vector<16x1xf32> to vector<16x256xf32>
    %217 = arith.addf %213, %216 : vector<16x256xf32>
    %218 = math.tanh %217 : vector<16x256xf32>
    %219 = arith.addf %218, %174 : vector<16x256xf32>
    %220 = math.tanh %219 : vector<16x256xf32>
    %cst_234 = arith.constant 0.000000e+00 : f32
    %221 = vector.broadcast %cst_234 : f32 to vector<16x256xf32>
    %222 = arith.select %23, %220, %221 : vector<16x256xi1>, vector<16x256xf32>
    %c0_235 = arith.constant 0 : index
    %c128_236 = arith.constant 128 : index
    %223 = vector.load %arg10[%c0_235, %c128_236] : memref<16x384xf32, #tpu.memory_space<vmem>>, vector<16x256xf32>
    tpu.vector_store %arg10[%c0_235, %c128_236], %222 {strides = array<i32>} : memref<16x384xf32, #tpu.memory_space<vmem>>, vector<16x256xf32>,
    %c0_237 = arith.constant 0 : index
    %c118_238 = arith.constant 118 : index
    %224 = vector.load %arg10[%c0_237, %c118_238] : memref<16x384xf32, #tpu.memory_space<vmem>>, vector<16x256xf32>
    %c0_239 = arith.constant 0 : index
    %c119_240 = arith.constant 119 : index
    %225 = vector.load %arg10[%c0_239, %c119_240] : memref<16x384xf32, #tpu.memory_space<vmem>>, vector<16x256xf32>
    %c0_241 = arith.constant 0 : index
    %c120_242 = arith.constant 120 : index
    %226 = vector.load %arg10[%c0_241, %c120_242] : memref<16x384xf32, #tpu.memory_space<vmem>>, vector<16x256xf32>
    %c0_243 = arith.constant 0 : index
    %c121_244 = arith.constant 121 : index
    %227 = vector.load %arg10[%c0_243, %c121_244] : memref<16x384xf32, #tpu.memory_space<vmem>>, vector<16x256xf32>
    %c0_245 = arith.constant 0 : index
    %c122_246 = arith.constant 122 : index
    %228 = vector.load %arg10[%c0_245, %c122_246] : memref<16x384xf32, #tpu.memory_space<vmem>>, vector<16x256xf32>
    %c0_247 = arith.constant 0 : index
    %c123_248 = arith.constant 123 : index
    %229 = vector.load %arg10[%c0_247, %c123_248] : memref<16x384xf32, #tpu.memory_space<vmem>>, vector<16x256xf32>
    %c0_249 = arith.constant 0 : index
    %c124_250 = arith.constant 124 : index
    %230 = vector.load %arg10[%c0_249, %c124_250] : memref<16x384xf32, #tpu.memory_space<vmem>>, vector<16x256xf32>
    %c0_251 = arith.constant 0 : index
    %c125_252 = arith.constant 125 : index
    %231 = vector.load %arg10[%c0_251, %c125_252] : memref<16x384xf32, #tpu.memory_space<vmem>>, vector<16x256xf32>
    %c0_253 = arith.constant 0 : index
    %c126_254 = arith.constant 126 : index
    %232 = vector.load %arg10[%c0_253, %c126_254] : memref<16x384xf32, #tpu.memory_space<vmem>>, vector<16x256xf32>
    %c0_255 = arith.constant 0 : index
    %c127_256 = arith.constant 127 : index
    %233 = vector.load %arg10[%c0_255, %c127_256] : memref<16x384xf32, #tpu.memory_space<vmem>>, vector<16x256xf32>
    %c0_257 = arith.constant 0 : index
    %c128_258 = arith.constant 128 : index
    %234 = vector.load %arg10[%c0_257, %c128_258] : memref<16x384xf32, #tpu.memory_space<vmem>>, vector<16x256xf32>
    %235 = tpu.concatenate %224, %225, %226, %227, %228, %229, %230, %231, %232, %233, %234 in 0 : vector<16x256xf32>, vector<16x256xf32>, vector<16x256xf32>, vector<16x256xf32>, vector<16x256xf32>, vector<16x256xf32>, vector<16x256xf32>, vector<16x256xf32>, vector<16x256xf32>, vector<16x256xf32>, vector<16x256xf32> -> vector<176x256xf32>
    %c8 = arith.constant 8 : index
    %c0_259 = arith.constant 0 : index
    %c0_260 = arith.constant 0 : index
    %236 = vector.load %arg2[%c8, %c0_259, %c0_260] : memref<16x16x176xf32, #tpu.memory_space<vmem>>, vector<1x16x176xf32>
    %237 = vector.shape_cast %236 : vector<1x16x176xf32> to vector<16x176xf32>
    %cst_261 = arith.constant dense<0.000000e+00> : vector<16x256xf32>
    %238 = tpu.matmul %237, %235, %cst_261 {dimension_numbers = #tpu.dot_dimension_numbers<[1], [0], [0], [1], [0, 0, 1, 1], [], []>} : vector<16x176xf32>, vector<176x256xf32>, vector<16x256xf32> -> vector<16x256xf32>
    %c8_262 = arith.constant 8 : index
    %c0_263 = arith.constant 0 : index
    %c0_264 = arith.constant 0 : index
    %239 = vector.load %arg3[%c8_262, %c0_263, %c0_264] : memref<16x16x1xf32, #tpu.memory_space<vmem>>, vector<1x16x1xf32>
    %240 = vector.shape_cast %239 : vector<1x16x1xf32> to vector<16x1xf32>
    %241 = vector.broadcast %240 : vector<16x1xf32> to vector<16x256xf32>
    %242 = arith.addf %238, %241 : vector<16x256xf32>
    %243 = math.tanh %242 : vector<16x256xf32>
    %cst_265 = arith.constant 0.000000e+00 : f32
    %244 = vector.broadcast %cst_265 : f32 to vector<16x256xf32>
    %245 = arith.select %23, %243, %244 : vector<16x256xi1>, vector<16x256xf32>
    %c0_266 = arith.constant 0 : index
    %c128_267 = arith.constant 128 : index
    %246 = vector.load %arg10[%c0_266, %c128_267] : memref<16x384xf32, #tpu.memory_space<vmem>>, vector<16x256xf32>
    tpu.vector_store %arg10[%c0_266, %c128_267], %245 {strides = array<i32>} : memref<16x384xf32, #tpu.memory_space<vmem>>, vector<16x256xf32>,
    %c0_268 = arith.constant 0 : index
    %c118_269 = arith.constant 118 : index
    %247 = vector.load %arg10[%c0_268, %c118_269] : memref<16x384xf32, #tpu.memory_space<vmem>>, vector<16x256xf32>
    %c0_270 = arith.constant 0 : index
    %c119_271 = arith.constant 119 : index
    %248 = vector.load %arg10[%c0_270, %c119_271] : memref<16x384xf32, #tpu.memory_space<vmem>>, vector<16x256xf32>
    %c0_272 = arith.constant 0 : index
    %c120_273 = arith.constant 120 : index
    %249 = vector.load %arg10[%c0_272, %c120_273] : memref<16x384xf32, #tpu.memory_space<vmem>>, vector<16x256xf32>
    %c0_274 = arith.constant 0 : index
    %c121_275 = arith.constant 121 : index
    %250 = vector.load %arg10[%c0_274, %c121_275] : memref<16x384xf32, #tpu.memory_space<vmem>>, vector<16x256xf32>
    %c0_276 = arith.constant 0 : index
    %c122_277 = arith.constant 122 : index
    %251 = vector.load %arg10[%c0_276, %c122_277] : memref<16x384xf32, #tpu.memory_space<vmem>>, vector<16x256xf32>
    %c0_278 = arith.constant 0 : index
    %c123_279 = arith.constant 123 : index
    %252 = vector.load %arg10[%c0_278, %c123_279] : memref<16x384xf32, #tpu.memory_space<vmem>>, vector<16x256xf32>
    %c0_280 = arith.constant 0 : index
    %c124_281 = arith.constant 124 : index
    %253 = vector.load %arg10[%c0_280, %c124_281] : memref<16x384xf32, #tpu.memory_space<vmem>>, vector<16x256xf32>
    %c0_282 = arith.constant 0 : index
    %c125_283 = arith.constant 125 : index
    %254 = vector.load %arg10[%c0_282, %c125_283] : memref<16x384xf32, #tpu.memory_space<vmem>>, vector<16x256xf32>
    %c0_284 = arith.constant 0 : index
    %c126_285 = arith.constant 126 : index
    %255 = vector.load %arg10[%c0_284, %c126_285] : memref<16x384xf32, #tpu.memory_space<vmem>>, vector<16x256xf32>
    %c0_286 = arith.constant 0 : index
    %c127_287 = arith.constant 127 : index
    %256 = vector.load %arg10[%c0_286, %c127_287] : memref<16x384xf32, #tpu.memory_space<vmem>>, vector<16x256xf32>
    %c0_288 = arith.constant 0 : index
    %c128_289 = arith.constant 128 : index
    %257 = vector.load %arg10[%c0_288, %c128_289] : memref<16x384xf32, #tpu.memory_space<vmem>>, vector<16x256xf32>
    %258 = tpu.concatenate %247, %248, %249, %250, %251, %252, %253, %254, %255, %256, %257 in 0 : vector<16x256xf32>, vector<16x256xf32>, vector<16x256xf32>, vector<16x256xf32>, vector<16x256xf32>, vector<16x256xf32>, vector<16x256xf32>, vector<16x256xf32>, vector<16x256xf32>, vector<16x256xf32>, vector<16x256xf32> -> vector<176x256xf32>
    %c9 = arith.constant 9 : index
    %c0_290 = arith.constant 0 : index
    %c0_291 = arith.constant 0 : index
    %259 = vector.load %arg2[%c9, %c0_290, %c0_291] : memref<16x16x176xf32, #tpu.memory_space<vmem>>, vector<1x16x176xf32>
    %260 = vector.shape_cast %259 : vector<1x16x176xf32> to vector<16x176xf32>
    %cst_292 = arith.constant dense<0.000000e+00> : vector<16x256xf32>
    %261 = tpu.matmul %260, %258, %cst_292 {dimension_numbers = #tpu.dot_dimension_numbers<[1], [0], [0], [1], [0, 0, 1, 1], [], []>} : vector<16x176xf32>, vector<176x256xf32>, vector<16x256xf32> -> vector<16x256xf32>
    %c9_293 = arith.constant 9 : index
    %c0_294 = arith.constant 0 : index
    %c0_295 = arith.constant 0 : index
    %262 = vector.load %arg3[%c9_293, %c0_294, %c0_295] : memref<16x16x1xf32, #tpu.memory_space<vmem>>, vector<1x16x1xf32>
    %263 = vector.shape_cast %262 : vector<1x16x1xf32> to vector<16x1xf32>
    %264 = vector.broadcast %263 : vector<16x1xf32> to vector<16x256xf32>
    %265 = arith.addf %261, %264 : vector<16x256xf32>
    %266 = math.tanh %265 : vector<16x256xf32>
    %267 = arith.addf %266, %222 : vector<16x256xf32>
    %268 = math.tanh %267 : vector<16x256xf32>
    %cst_296 = arith.constant 0.000000e+00 : f32
    %269 = vector.broadcast %cst_296 : f32 to vector<16x256xf32>
    %270 = arith.select %23, %268, %269 : vector<16x256xi1>, vector<16x256xf32>
    %c0_297 = arith.constant 0 : index
    %c128_298 = arith.constant 128 : index
    %271 = vector.load %arg10[%c0_297, %c128_298] : memref<16x384xf32, #tpu.memory_space<vmem>>, vector<16x256xf32>
    tpu.vector_store %arg10[%c0_297, %c128_298], %270 {strides = array<i32>} : memref<16x384xf32, #tpu.memory_space<vmem>>, vector<16x256xf32>,
    %c0_299 = arith.constant 0 : index
    %c108_300 = arith.constant 108 : index
    %272 = vector.load %arg10[%c0_299, %c108_300] : memref<16x384xf32, #tpu.memory_space<vmem>>, vector<16x256xf32>
    %c0_301 = arith.constant 0 : index
    %c110_302 = arith.constant 110 : index
    %273 = vector.load %arg10[%c0_301, %c110_302] : memref<16x384xf32, #tpu.memory_space<vmem>>, vector<16x256xf32>
    %c0_303 = arith.constant 0 : index
    %c112_304 = arith.constant 112 : index
    %274 = vector.load %arg10[%c0_303, %c112_304] : memref<16x384xf32, #tpu.memory_space<vmem>>, vector<16x256xf32>
    %c0_305 = arith.constant 0 : index
    %c114_306 = arith.constant 114 : index
    %275 = vector.load %arg10[%c0_305, %c114_306] : memref<16x384xf32, #tpu.memory_space<vmem>>, vector<16x256xf32>
    %c0_307 = arith.constant 0 : index
    %c116_308 = arith.constant 116 : index
    %276 = vector.load %arg10[%c0_307, %c116_308] : memref<16x384xf32, #tpu.memory_space<vmem>>, vector<16x256xf32>
    %c0_309 = arith.constant 0 : index
    %c118_310 = arith.constant 118 : index
    %277 = vector.load %arg10[%c0_309, %c118_310] : memref<16x384xf32, #tpu.memory_space<vmem>>, vector<16x256xf32>
    %c0_311 = arith.constant 0 : index
    %c120_312 = arith.constant 120 : index
    %278 = vector.load %arg10[%c0_311, %c120_312] : memref<16x384xf32, #tpu.memory_space<vmem>>, vector<16x256xf32>
    %c0_313 = arith.constant 0 : index
    %c122_314 = arith.constant 122 : index
    %279 = vector.load %arg10[%c0_313, %c122_314] : memref<16x384xf32, #tpu.memory_space<vmem>>, vector<16x256xf32>
    %c0_315 = arith.constant 0 : index
    %c124_316 = arith.constant 124 : index
    %280 = vector.load %arg10[%c0_315, %c124_316] : memref<16x384xf32, #tpu.memory_space<vmem>>, vector<16x256xf32>
    %c0_317 = arith.constant 0 : index
    %c126_318 = arith.constant 126 : index
    %281 = vector.load %arg10[%c0_317, %c126_318] : memref<16x384xf32, #tpu.memory_space<vmem>>, vector<16x256xf32>
    %c0_319 = arith.constant 0 : index
    %c128_320 = arith.constant 128 : index
    %282 = vector.load %arg10[%c0_319, %c128_320] : memref<16x384xf32, #tpu.memory_space<vmem>>, vector<16x256xf32>
    %283 = tpu.concatenate %272, %273, %274, %275, %276, %277, %278, %279, %280, %281, %282 in 0 : vector<16x256xf32>, vector<16x256xf32>, vector<16x256xf32>, vector<16x256xf32>, vector<16x256xf32>, vector<16x256xf32>, vector<16x256xf32>, vector<16x256xf32>, vector<16x256xf32>, vector<16x256xf32>, vector<16x256xf32> -> vector<176x256xf32>
    %c10 = arith.constant 10 : index
    %c0_321 = arith.constant 0 : index
    %c0_322 = arith.constant 0 : index
    %284 = vector.load %arg2[%c10, %c0_321, %c0_322] : memref<16x16x176xf32, #tpu.memory_space<vmem>>, vector<1x16x176xf32>
    %285 = vector.shape_cast %284 : vector<1x16x176xf32> to vector<16x176xf32>
    %cst_323 = arith.constant dense<0.000000e+00> : vector<16x256xf32>
    %286 = tpu.matmul %285, %283, %cst_323 {dimension_numbers = #tpu.dot_dimension_numbers<[1], [0], [0], [1], [0, 0, 1, 1], [], []>} : vector<16x176xf32>, vector<176x256xf32>, vector<16x256xf32> -> vector<16x256xf32>
    %c10_324 = arith.constant 10 : index
    %c0_325 = arith.constant 0 : index
    %c0_326 = arith.constant 0 : index
    %287 = vector.load %arg3[%c10_324, %c0_325, %c0_326] : memref<16x16x1xf32, #tpu.memory_space<vmem>>, vector<1x16x1xf32>
    %288 = vector.shape_cast %287 : vector<1x16x1xf32> to vector<16x1xf32>
    %289 = vector.broadcast %288 : vector<16x1xf32> to vector<16x256xf32>
    %290 = arith.addf %286, %289 : vector<16x256xf32>
    %291 = math.tanh %290 : vector<16x256xf32>
    %cst_327 = arith.constant 0.000000e+00 : f32
    %292 = vector.broadcast %cst_327 : f32 to vector<16x256xf32>
    %293 = arith.select %23, %291, %292 : vector<16x256xi1>, vector<16x256xf32>
    %c0_328 = arith.constant 0 : index
    %c128_329 = arith.constant 128 : index
    %294 = vector.load %arg10[%c0_328, %c128_329] : memref<16x384xf32, #tpu.memory_space<vmem>>, vector<16x256xf32>
    tpu.vector_store %arg10[%c0_328, %c128_329], %293 {strides = array<i32>} : memref<16x384xf32, #tpu.memory_space<vmem>>, vector<16x256xf32>,
    %c0_330 = arith.constant 0 : index
    %c108_331 = arith.constant 108 : index
    %295 = vector.load %arg10[%c0_330, %c108_331] : memref<16x384xf32, #tpu.memory_space<vmem>>, vector<16x256xf32>
    %c0_332 = arith.constant 0 : index
    %c110_333 = arith.constant 110 : index
    %296 = vector.load %arg10[%c0_332, %c110_333] : memref<16x384xf32, #tpu.memory_space<vmem>>, vector<16x256xf32>
    %c0_334 = arith.constant 0 : index
    %c112_335 = arith.constant 112 : index
    %297 = vector.load %arg10[%c0_334, %c112_335] : memref<16x384xf32, #tpu.memory_space<vmem>>, vector<16x256xf32>
    %c0_336 = arith.constant 0 : index
    %c114_337 = arith.constant 114 : index
    %298 = vector.load %arg10[%c0_336, %c114_337] : memref<16x384xf32, #tpu.memory_space<vmem>>, vector<16x256xf32>
    %c0_338 = arith.constant 0 : index
    %c116_339 = arith.constant 116 : index
    %299 = vector.load %arg10[%c0_338, %c116_339] : memref<16x384xf32, #tpu.memory_space<vmem>>, vector<16x256xf32>
    %c0_340 = arith.constant 0 : index
    %c118_341 = arith.constant 118 : index
    %300 = vector.load %arg10[%c0_340, %c118_341] : memref<16x384xf32, #tpu.memory_space<vmem>>, vector<16x256xf32>
    %c0_342 = arith.constant 0 : index
    %c120_343 = arith.constant 120 : index
    %301 = vector.load %arg10[%c0_342, %c120_343] : memref<16x384xf32, #tpu.memory_space<vmem>>, vector<16x256xf32>
    %c0_344 = arith.constant 0 : index
    %c122_345 = arith.constant 122 : index
    %302 = vector.load %arg10[%c0_344, %c122_345] : memref<16x384xf32, #tpu.memory_space<vmem>>, vector<16x256xf32>
    %c0_346 = arith.constant 0 : index
    %c124_347 = arith.constant 124 : index
    %303 = vector.load %arg10[%c0_346, %c124_347] : memref<16x384xf32, #tpu.memory_space<vmem>>, vector<16x256xf32>
    %c0_348 = arith.constant 0 : index
    %c126_349 = arith.constant 126 : index
    %304 = vector.load %arg10[%c0_348, %c126_349] : memref<16x384xf32, #tpu.memory_space<vmem>>, vector<16x256xf32>
    %c0_350 = arith.constant 0 : index
    %c128_351 = arith.constant 128 : index
    %305 = vector.load %arg10[%c0_350, %c128_351] : memref<16x384xf32, #tpu.memory_space<vmem>>, vector<16x256xf32>
    %306 = tpu.concatenate %295, %296, %297, %298, %299, %300, %301, %302, %303, %304, %305 in 0 : vector<16x256xf32>, vector<16x256xf32>, vector<16x256xf32>, vector<16x256xf32>, vector<16x256xf32>, vector<16x256xf32>, vector<16x256xf32>, vector<16x256xf32>, vector<16x256xf32>, vector<16x256xf32>, vector<16x256xf32> -> vector<176x256xf32>
    %c11 = arith.constant 11 : index
    %c0_352 = arith.constant 0 : index
    %c0_353 = arith.constant 0 : index
    %307 = vector.load %arg2[%c11, %c0_352, %c0_353] : memref<16x16x176xf32, #tpu.memory_space<vmem>>, vector<1x16x176xf32>
    %308 = vector.shape_cast %307 : vector<1x16x176xf32> to vector<16x176xf32>
    %cst_354 = arith.constant dense<0.000000e+00> : vector<16x256xf32>
    %309 = tpu.matmul %308, %306, %cst_354 {dimension_numbers = #tpu.dot_dimension_numbers<[1], [0], [0], [1], [0, 0, 1, 1], [], []>} : vector<16x176xf32>, vector<176x256xf32>, vector<16x256xf32> -> vector<16x256xf32>
    %c11_355 = arith.constant 11 : index
    %c0_356 = arith.constant 0 : index
    %c0_357 = arith.constant 0 : index
    %310 = vector.load %arg3[%c11_355, %c0_356, %c0_357] : memref<16x16x1xf32, #tpu.memory_space<vmem>>, vector<1x16x1xf32>
    %311 = vector.shape_cast %310 : vector<1x16x1xf32> to vector<16x1xf32>
    %312 = vector.broadcast %311 : vector<16x1xf32> to vector<16x256xf32>
    %313 = arith.addf %309, %312 : vector<16x256xf32>
    %314 = math.tanh %313 : vector<16x256xf32>
    %315 = arith.addf %314, %270 : vector<16x256xf32>
    %316 = math.tanh %315 : vector<16x256xf32>
    %cst_358 = arith.constant 0.000000e+00 : f32
    %317 = vector.broadcast %cst_358 : f32 to vector<16x256xf32>
    %318 = arith.select %23, %316, %317 : vector<16x256xi1>, vector<16x256xf32>
    %c0_359 = arith.constant 0 : index
    %c128_360 = arith.constant 128 : index
    %319 = vector.load %arg10[%c0_359, %c128_360] : memref<16x384xf32, #tpu.memory_space<vmem>>, vector<16x256xf32>
    tpu.vector_store %arg10[%c0_359, %c128_360], %318 {strides = array<i32>} : memref<16x384xf32, #tpu.memory_space<vmem>>, vector<16x256xf32>,
    %c0_361 = arith.constant 0 : index
    %c88_362 = arith.constant 88 : index
    %320 = vector.load %arg10[%c0_361, %c88_362] : memref<16x384xf32, #tpu.memory_space<vmem>>, vector<16x256xf32>
    %c0_363 = arith.constant 0 : index
    %c92_364 = arith.constant 92 : index
    %321 = vector.load %arg10[%c0_363, %c92_364] : memref<16x384xf32, #tpu.memory_space<vmem>>, vector<16x256xf32>
    %c0_365 = arith.constant 0 : index
    %c96_366 = arith.constant 96 : index
    %322 = vector.load %arg10[%c0_365, %c96_366] : memref<16x384xf32, #tpu.memory_space<vmem>>, vector<16x256xf32>
    %c0_367 = arith.constant 0 : index
    %c100_368 = arith.constant 100 : index
    %323 = vector.load %arg10[%c0_367, %c100_368] : memref<16x384xf32, #tpu.memory_space<vmem>>, vector<16x256xf32>
    %c0_369 = arith.constant 0 : index
    %c104_370 = arith.constant 104 : index
    %324 = vector.load %arg10[%c0_369, %c104_370] : memref<16x384xf32, #tpu.memory_space<vmem>>, vector<16x256xf32>
    %c0_371 = arith.constant 0 : index
    %c108_372 = arith.constant 108 : index
    %325 = vector.load %arg10[%c0_371, %c108_372] : memref<16x384xf32, #tpu.memory_space<vmem>>, vector<16x256xf32>
    %c0_373 = arith.constant 0 : index
    %c112_374 = arith.constant 112 : index
    %326 = vector.load %arg10[%c0_373, %c112_374] : memref<16x384xf32, #tpu.memory_space<vmem>>, vector<16x256xf32>
    %c0_375 = arith.constant 0 : index
    %c116_376 = arith.constant 116 : index
    %327 = vector.load %arg10[%c0_375, %c116_376] : memref<16x384xf32, #tpu.memory_space<vmem>>, vector<16x256xf32>
    %c0_377 = arith.constant 0 : index
    %c120_378 = arith.constant 120 : index
    %328 = vector.load %arg10[%c0_377, %c120_378] : memref<16x384xf32, #tpu.memory_space<vmem>>, vector<16x256xf32>
    %c0_379 = arith.constant 0 : index
    %c124_380 = arith.constant 124 : index
    %329 = vector.load %arg10[%c0_379, %c124_380] : memref<16x384xf32, #tpu.memory_space<vmem>>, vector<16x256xf32>
    %c0_381 = arith.constant 0 : index
    %c128_382 = arith.constant 128 : index
    %330 = vector.load %arg10[%c0_381, %c128_382] : memref<16x384xf32, #tpu.memory_space<vmem>>, vector<16x256xf32>
    %331 = tpu.concatenate %320, %321, %322, %323, %324, %325, %326, %327, %328, %329, %330 in 0 : vector<16x256xf32>, vector<16x256xf32>, vector<16x256xf32>, vector<16x256xf32>, vector<16x256xf32>, vector<16x256xf32>, vector<16x256xf32>, vector<16x256xf32>, vector<16x256xf32>, vector<16x256xf32>, vector<16x256xf32> -> vector<176x256xf32>
    %c12 = arith.constant 12 : index
    %c0_383 = arith.constant 0 : index
    %c0_384 = arith.constant 0 : index
    %332 = vector.load %arg2[%c12, %c0_383, %c0_384] : memref<16x16x176xf32, #tpu.memory_space<vmem>>, vector<1x16x176xf32>
    %333 = vector.shape_cast %332 : vector<1x16x176xf32> to vector<16x176xf32>
    %cst_385 = arith.constant dense<0.000000e+00> : vector<16x256xf32>
    %334 = tpu.matmul %333, %331, %cst_385 {dimension_numbers = #tpu.dot_dimension_numbers<[1], [0], [0], [1], [0, 0, 1, 1], [], []>} : vector<16x176xf32>, vector<176x256xf32>, vector<16x256xf32> -> vector<16x256xf32>
    %c12_386 = arith.constant 12 : index
    %c0_387 = arith.constant 0 : index
    %c0_388 = arith.constant 0 : index
    %335 = vector.load %arg3[%c12_386, %c0_387, %c0_388] : memref<16x16x1xf32, #tpu.memory_space<vmem>>, vector<1x16x1xf32>
    %336 = vector.shape_cast %335 : vector<1x16x1xf32> to vector<16x1xf32>
    %337 = vector.broadcast %336 : vector<16x1xf32> to vector<16x256xf32>
    %338 = arith.addf %334, %337 : vector<16x256xf32>
    %339 = math.tanh %338 : vector<16x256xf32>
    %cst_389 = arith.constant 0.000000e+00 : f32
    %340 = vector.broadcast %cst_389 : f32 to vector<16x256xf32>
    %341 = arith.select %23, %339, %340 : vector<16x256xi1>, vector<16x256xf32>
    %c0_390 = arith.constant 0 : index
    %c128_391 = arith.constant 128 : index
    %342 = vector.load %arg10[%c0_390, %c128_391] : memref<16x384xf32, #tpu.memory_space<vmem>>, vector<16x256xf32>
    tpu.vector_store %arg10[%c0_390, %c128_391], %341 {strides = array<i32>} : memref<16x384xf32, #tpu.memory_space<vmem>>, vector<16x256xf32>,
    %c0_392 = arith.constant 0 : index
    %c88_393 = arith.constant 88 : index
    %343 = vector.load %arg10[%c0_392, %c88_393] : memref<16x384xf32, #tpu.memory_space<vmem>>, vector<16x256xf32>
    %c0_394 = arith.constant 0 : index
    %c92_395 = arith.constant 92 : index
    %344 = vector.load %arg10[%c0_394, %c92_395] : memref<16x384xf32, #tpu.memory_space<vmem>>, vector<16x256xf32>
    %c0_396 = arith.constant 0 : index
    %c96_397 = arith.constant 96 : index
    %345 = vector.load %arg10[%c0_396, %c96_397] : memref<16x384xf32, #tpu.memory_space<vmem>>, vector<16x256xf32>
    %c0_398 = arith.constant 0 : index
    %c100_399 = arith.constant 100 : index
    %346 = vector.load %arg10[%c0_398, %c100_399] : memref<16x384xf32, #tpu.memory_space<vmem>>, vector<16x256xf32>
    %c0_400 = arith.constant 0 : index
    %c104_401 = arith.constant 104 : index
    %347 = vector.load %arg10[%c0_400, %c104_401] : memref<16x384xf32, #tpu.memory_space<vmem>>, vector<16x256xf32>
    %c0_402 = arith.constant 0 : index
    %c108_403 = arith.constant 108 : index
    %348 = vector.load %arg10[%c0_402, %c108_403] : memref<16x384xf32, #tpu.memory_space<vmem>>, vector<16x256xf32>
    %c0_404 = arith.constant 0 : index
    %c112_405 = arith.constant 112 : index
    %349 = vector.load %arg10[%c0_404, %c112_405] : memref<16x384xf32, #tpu.memory_space<vmem>>, vector<16x256xf32>
    %c0_406 = arith.constant 0 : index
    %c116_407 = arith.constant 116 : index
    %350 = vector.load %arg10[%c0_406, %c116_407] : memref<16x384xf32, #tpu.memory_space<vmem>>, vector<16x256xf32>
    %c0_408 = arith.constant 0 : index
    %c120_409 = arith.constant 120 : index
    %351 = vector.load %arg10[%c0_408, %c120_409] : memref<16x384xf32, #tpu.memory_space<vmem>>, vector<16x256xf32>
    %c0_410 = arith.constant 0 : index
    %c124_411 = arith.constant 124 : index
    %352 = vector.load %arg10[%c0_410, %c124_411] : memref<16x384xf32, #tpu.memory_space<vmem>>, vector<16x256xf32>
    %c0_412 = arith.constant 0 : index
    %c128_413 = arith.constant 128 : index
    %353 = vector.load %arg10[%c0_412, %c128_413] : memref<16x384xf32, #tpu.memory_space<vmem>>, vector<16x256xf32>
    %354 = tpu.concatenate %343, %344, %345, %346, %347, %348, %349, %350, %351, %352, %353 in 0 : vector<16x256xf32>, vector<16x256xf32>, vector<16x256xf32>, vector<16x256xf32>, vector<16x256xf32>, vector<16x256xf32>, vector<16x256xf32>, vector<16x256xf32>, vector<16x256xf32>, vector<16x256xf32>, vector<16x256xf32> -> vector<176x256xf32>
    %c13 = arith.constant 13 : index
    %c0_414 = arith.constant 0 : index
    %c0_415 = arith.constant 0 : index
    %355 = vector.load %arg2[%c13, %c0_414, %c0_415] : memref<16x16x176xf32, #tpu.memory_space<vmem>>, vector<1x16x176xf32>
    %356 = vector.shape_cast %355 : vector<1x16x176xf32> to vector<16x176xf32>
    %cst_416 = arith.constant dense<0.000000e+00> : vector<16x256xf32>
    %357 = tpu.matmul %356, %354, %cst_416 {dimension_numbers = #tpu.dot_dimension_numbers<[1], [0], [0], [1], [0, 0, 1, 1], [], []>} : vector<16x176xf32>, vector<176x256xf32>, vector<16x256xf32> -> vector<16x256xf32>
    %c13_417 = arith.constant 13 : index
    %c0_418 = arith.constant 0 : index
    %c0_419 = arith.constant 0 : index
    %358 = vector.load %arg3[%c13_417, %c0_418, %c0_419] : memref<16x16x1xf32, #tpu.memory_space<vmem>>, vector<1x16x1xf32>
    %359 = vector.shape_cast %358 : vector<1x16x1xf32> to vector<16x1xf32>
    %360 = vector.broadcast %359 : vector<16x1xf32> to vector<16x256xf32>
    %361 = arith.addf %357, %360 : vector<16x256xf32>
    %362 = math.tanh %361 : vector<16x256xf32>
    %363 = arith.addf %362, %318 : vector<16x256xf32>
    %364 = math.tanh %363 : vector<16x256xf32>
    %cst_420 = arith.constant 0.000000e+00 : f32
    %365 = vector.broadcast %cst_420 : f32 to vector<16x256xf32>
    %366 = arith.select %23, %364, %365 : vector<16x256xi1>, vector<16x256xf32>
    %c0_421 = arith.constant 0 : index
    %c128_422 = arith.constant 128 : index
    %367 = vector.load %arg10[%c0_421, %c128_422] : memref<16x384xf32, #tpu.memory_space<vmem>>, vector<16x256xf32>
    tpu.vector_store %arg10[%c0_421, %c128_422], %366 {strides = array<i32>} : memref<16x384xf32, #tpu.memory_space<vmem>>, vector<16x256xf32>,
    %c0_423 = arith.constant 0 : index
    %c48_424 = arith.constant 48 : index
    %368 = vector.load %arg10[%c0_423, %c48_424] : memref<16x384xf32, #tpu.memory_space<vmem>>, vector<16x256xf32>
    %c0_425 = arith.constant 0 : index
    %c56_426 = arith.constant 56 : index
    %369 = vector.load %arg10[%c0_425, %c56_426] : memref<16x384xf32, #tpu.memory_space<vmem>>, vector<16x256xf32>
    %c0_427 = arith.constant 0 : index
    %c64_428 = arith.constant 64 : index
    %370 = vector.load %arg10[%c0_427, %c64_428] : memref<16x384xf32, #tpu.memory_space<vmem>>, vector<16x256xf32>
    %c0_429 = arith.constant 0 : index
    %c72_430 = arith.constant 72 : index
    %371 = vector.load %arg10[%c0_429, %c72_430] : memref<16x384xf32, #tpu.memory_space<vmem>>, vector<16x256xf32>
    %c0_431 = arith.constant 0 : index
    %c80_432 = arith.constant 80 : index
    %372 = vector.load %arg10[%c0_431, %c80_432] : memref<16x384xf32, #tpu.memory_space<vmem>>, vector<16x256xf32>
    %c0_433 = arith.constant 0 : index
    %c88_434 = arith.constant 88 : index
    %373 = vector.load %arg10[%c0_433, %c88_434] : memref<16x384xf32, #tpu.memory_space<vmem>>, vector<16x256xf32>
    %c0_435 = arith.constant 0 : index
    %c96_436 = arith.constant 96 : index
    %374 = vector.load %arg10[%c0_435, %c96_436] : memref<16x384xf32, #tpu.memory_space<vmem>>, vector<16x256xf32>
    %c0_437 = arith.constant 0 : index
    %c104_438 = arith.constant 104 : index
    %375 = vector.load %arg10[%c0_437, %c104_438] : memref<16x384xf32, #tpu.memory_space<vmem>>, vector<16x256xf32>
    %c0_439 = arith.constant 0 : index
    %c112_440 = arith.constant 112 : index
    %376 = vector.load %arg10[%c0_439, %c112_440] : memref<16x384xf32, #tpu.memory_space<vmem>>, vector<16x256xf32>
    %c0_441 = arith.constant 0 : index
    %c120_442 = arith.constant 120 : index
    %377 = vector.load %arg10[%c0_441, %c120_442] : memref<16x384xf32, #tpu.memory_space<vmem>>, vector<16x256xf32>
    %c0_443 = arith.constant 0 : index
    %c128_444 = arith.constant 128 : index
    %378 = vector.load %arg10[%c0_443, %c128_444] : memref<16x384xf32, #tpu.memory_space<vmem>>, vector<16x256xf32>
    %379 = tpu.concatenate %368, %369, %370, %371, %372, %373, %374, %375, %376, %377, %378 in 0 : vector<16x256xf32>, vector<16x256xf32>, vector<16x256xf32>, vector<16x256xf32>, vector<16x256xf32>, vector<16x256xf32>, vector<16x256xf32>, vector<16x256xf32>, vector<16x256xf32>, vector<16x256xf32>, vector<16x256xf32> -> vector<176x256xf32>
    %c14 = arith.constant 14 : index
    %c0_445 = arith.constant 0 : index
    %c0_446 = arith.constant 0 : index
    %380 = vector.load %arg2[%c14, %c0_445, %c0_446] : memref<16x16x176xf32, #tpu.memory_space<vmem>>, vector<1x16x176xf32>
    %381 = vector.shape_cast %380 : vector<1x16x176xf32> to vector<16x176xf32>
    %cst_447 = arith.constant dense<0.000000e+00> : vector<16x256xf32>
    %382 = tpu.matmul %381, %379, %cst_447 {dimension_numbers = #tpu.dot_dimension_numbers<[1], [0], [0], [1], [0, 0, 1, 1], [], []>} : vector<16x176xf32>, vector<176x256xf32>, vector<16x256xf32> -> vector<16x256xf32>
    %c14_448 = arith.constant 14 : index
    %c0_449 = arith.constant 0 : index
    %c0_450 = arith.constant 0 : index
    %383 = vector.load %arg3[%c14_448, %c0_449, %c0_450] : memref<16x16x1xf32, #tpu.memory_space<vmem>>, vector<1x16x1xf32>
    %384 = vector.shape_cast %383 : vector<1x16x1xf32> to vector<16x1xf32>
    %385 = vector.broadcast %384 : vector<16x1xf32> to vector<16x256xf32>
    %386 = arith.addf %382, %385 : vector<16x256xf32>
    %387 = math.tanh %386 : vector<16x256xf32>
    %cst_451 = arith.constant 0.000000e+00 : f32
    %388 = vector.broadcast %cst_451 : f32 to vector<16x256xf32>
    %389 = arith.select %23, %387, %388 : vector<16x256xi1>, vector<16x256xf32>
    %c0_452 = arith.constant 0 : index
    %c128_453 = arith.constant 128 : index
    %390 = vector.load %arg10[%c0_452, %c128_453] : memref<16x384xf32, #tpu.memory_space<vmem>>, vector<16x256xf32>
    tpu.vector_store %arg10[%c0_452, %c128_453], %389 {strides = array<i32>} : memref<16x384xf32, #tpu.memory_space<vmem>>, vector<16x256xf32>,
    %c0_454 = arith.constant 0 : index
    %c48_455 = arith.constant 48 : index
    %391 = vector.load %arg10[%c0_454, %c48_455] : memref<16x384xf32, #tpu.memory_space<vmem>>, vector<16x256xf32>
    %c0_456 = arith.constant 0 : index
    %c56_457 = arith.constant 56 : index
    %392 = vector.load %arg10[%c0_456, %c56_457] : memref<16x384xf32, #tpu.memory_space<vmem>>, vector<16x256xf32>
    %c0_458 = arith.constant 0 : index
    %c64_459 = arith.constant 64 : index
    %393 = vector.load %arg10[%c0_458, %c64_459] : memref<16x384xf32, #tpu.memory_space<vmem>>, vector<16x256xf32>
    %c0_460 = arith.constant 0 : index
    %c72_461 = arith.constant 72 : index
    %394 = vector.load %arg10[%c0_460, %c72_461] : memref<16x384xf32, #tpu.memory_space<vmem>>, vector<16x256xf32>
    %c0_462 = arith.constant 0 : index
    %c80_463 = arith.constant 80 : index
    %395 = vector.load %arg10[%c0_462, %c80_463] : memref<16x384xf32, #tpu.memory_space<vmem>>, vector<16x256xf32>
    %c0_464 = arith.constant 0 : index
    %c88_465 = arith.constant 88 : index
    %396 = vector.load %arg10[%c0_464, %c88_465] : memref<16x384xf32, #tpu.memory_space<vmem>>, vector<16x256xf32>
    %c0_466 = arith.constant 0 : index
    %c96_467 = arith.constant 96 : index
    %397 = vector.load %arg10[%c0_466, %c96_467] : memref<16x384xf32, #tpu.memory_space<vmem>>, vector<16x256xf32>
    %c0_468 = arith.constant 0 : index
    %c104_469 = arith.constant 104 : index
    %398 = vector.load %arg10[%c0_468, %c104_469] : memref<16x384xf32, #tpu.memory_space<vmem>>, vector<16x256xf32>
    %c0_470 = arith.constant 0 : index
    %c112_471 = arith.constant 112 : index
    %399 = vector.load %arg10[%c0_470, %c112_471] : memref<16x384xf32, #tpu.memory_space<vmem>>, vector<16x256xf32>
    %c0_472 = arith.constant 0 : index
    %c120_473 = arith.constant 120 : index
    %400 = vector.load %arg10[%c0_472, %c120_473] : memref<16x384xf32, #tpu.memory_space<vmem>>, vector<16x256xf32>
    %c0_474 = arith.constant 0 : index
    %c128_475 = arith.constant 128 : index
    %401 = vector.load %arg10[%c0_474, %c128_475] : memref<16x384xf32, #tpu.memory_space<vmem>>, vector<16x256xf32>
    %402 = tpu.concatenate %391, %392, %393, %394, %395, %396, %397, %398, %399, %400, %401 in 0 : vector<16x256xf32>, vector<16x256xf32>, vector<16x256xf32>, vector<16x256xf32>, vector<16x256xf32>, vector<16x256xf32>, vector<16x256xf32>, vector<16x256xf32>, vector<16x256xf32>, vector<16x256xf32>, vector<16x256xf32> -> vector<176x256xf32>
    %c15 = arith.constant 15 : index
    %c0_476 = arith.constant 0 : index
    %c0_477 = arith.constant 0 : index
    %403 = vector.load %arg2[%c15, %c0_476, %c0_477] : memref<16x16x176xf32, #tpu.memory_space<vmem>>, vector<1x16x176xf32>
    %404 = vector.shape_cast %403 : vector<1x16x176xf32> to vector<16x176xf32>
    %cst_478 = arith.constant dense<0.000000e+00> : vector<16x256xf32>
    %405 = tpu.matmul %404, %402, %cst_478 {dimension_numbers = #tpu.dot_dimension_numbers<[1], [0], [0], [1], [0, 0, 1, 1], [], []>} : vector<16x176xf32>, vector<176x256xf32>, vector<16x256xf32> -> vector<16x256xf32>
    %c15_479 = arith.constant 15 : index
    %c0_480 = arith.constant 0 : index
    %c0_481 = arith.constant 0 : index
    %406 = vector.load %arg3[%c15_479, %c0_480, %c0_481] : memref<16x16x1xf32, #tpu.memory_space<vmem>>, vector<1x16x1xf32>
    %407 = vector.shape_cast %406 : vector<1x16x1xf32> to vector<16x1xf32>
    %408 = vector.broadcast %407 : vector<16x1xf32> to vector<16x256xf32>
    %409 = arith.addf %405, %408 : vector<16x256xf32>
    %410 = math.tanh %409 : vector<16x256xf32>
    %411 = arith.addf %410, %366 : vector<16x256xf32>
    %412 = math.tanh %411 : vector<16x256xf32>
    %cst_482 = arith.constant 0.000000e+00 : f32
    %413 = vector.broadcast %cst_482 : f32 to vector<16x256xf32>
    %414 = arith.select %23, %412, %413 : vector<16x256xi1>, vector<16x256xf32>
    %c0_483 = arith.constant 0 : index
    %c0_484 = arith.constant 0 : index
    %415 = vector.load %arg6[%c0_483, %c0_484] : memref<8x16xf32, #tpu.memory_space<vmem>>, vector<8x16xf32>
    %cst_485 = arith.constant dense<0.000000e+00> : vector<8x256xf32>
    %416 = tpu.matmul %415, %414, %cst_485 {dimension_numbers = #tpu.dot_dimension_numbers<[1], [0], [0], [1], [0, 0, 1, 1], [], []>} : vector<8x16xf32>, vector<16x256xf32>, vector<8x256xf32> -> vector<8x256xf32>
    %cst_486 = arith.constant 6.28318548 : f32
    %417 = vector.broadcast %cst_486 : f32 to vector<8x256xf32>
    %418 = arith.mulf %417, %416 : vector<8x256xf32>
    %419 = math.cos %418 : vector<8x256xf32>
    %420 = math.sin %418 : vector<8x256xf32>
    %421 = tpu.concatenate %419, %420 in 0 : vector<8x256xf32>, vector<8x256xf32> -> vector<16x256xf32>
    %c0_487 = arith.constant 0 : index
    %c0_488 = arith.constant 0 : index
    %422 = vector.load %arg7[%c0_487, %c0_488] : memref<4x16xf32, #tpu.memory_space<vmem>>, vector<4x16xf32>
    %cst_489 = arith.constant dense<0.000000e+00> : vector<4x256xf32>
    %423 = tpu.matmul %422, %421, %cst_489 {dimension_numbers = #tpu.dot_dimension_numbers<[1], [0], [0], [1], [0, 0, 1, 1], [], []>} : vector<4x16xf32>, vector<16x256xf32>, vector<4x256xf32> -> vector<4x256xf32>
    %c0_490 = arith.constant 0 : index
    %c0_491 = arith.constant 0 : index
    %424 = vector.load %arg8[%c0_490, %c0_491] : memref<4x1xf32, #tpu.memory_space<vmem>>, vector<4x1xf32>
    %425 = vector.broadcast %424 : vector<4x1xf32> to vector<4x256xf32>
    %426 = arith.addf %423, %425 : vector<4x256xf32>
    %c0_492 = arith.constant 0 : index
    %c0_493 = arith.constant 0 : index
    %c0_494 = arith.constant 0 : index
    %427 = vector.load %arg9[%c0_492, %c0_493, %c0_494] : memref<1x4x256xf32, #tpu.memory_space<vmem>>, vector<1x4x256xf32>
    %428 = vector.shape_cast %427 : vector<1x4x256xf32> to vector<4x256xf32>
    %429 = vector.shape_cast %426 : vector<4x256xf32> to vector<1x4x256xf32>
    tpu.vector_store %arg9[%c0_492, %c0_493, %c0_494], %429 {strides = array<i32>} : memref<1x4x256xf32, #tpu.memory_space<vmem>>, vector<1x4x256xf32>,
    return
  }
  func.func @transform_0(%arg0: i32) -> (i32, i32, i32) {
    %c0_i32 = arith.constant 0 : i32
    %c0_i32_0 = arith.constant 0 : i32
    %c0_i32_1 = arith.constant 0 : i32
    return %arg0, %c0_i32, %c0_i32_0 : i32, i32, i32
  }
  func.func @transform_1(%arg0: i32) -> (i32, i32, i32) {
    %c0_i32 = arith.constant 0 : i32
    %c0_i32_0 = arith.constant 0 : i32
    %c0_i32_1 = arith.constant 0 : i32
    %c0_i32_2 = arith.constant 0 : i32
    return %c0_i32, %c0_i32_0, %c0_i32_1 : i32, i32, i32
  }
  func.func @transform_2(%arg0: i32) -> (i32, i32, i32) {
    %c0_i32 = arith.constant 0 : i32
    %c0_i32_0 = arith.constant 0 : i32
    %c0_i32_1 = arith.constant 0 : i32
    %c0_i32_2 = arith.constant 0 : i32
    return %c0_i32, %c0_i32_0, %c0_i32_1 : i32, i32, i32
  }
  func.func @transform_3(%arg0: i32) -> (i32, i32) {
    %c0_i32 = arith.constant 0 : i32
    %c0_i32_0 = arith.constant 0 : i32
    %c0_i32_1 = arith.constant 0 : i32
    return %c0_i32, %c0_i32_0 : i32, i32
  }
  func.func @transform_4(%arg0: i32) -> (i32, i32) {
    %c0_i32 = arith.constant 0 : i32
    %c0_i32_0 = arith.constant 0 : i32
    %c0_i32_1 = arith.constant 0 : i32
    return %c0_i32, %c0_i32_0 : i32, i32
  }
  func.func @transform_5(%arg0: i32) -> (i32, i32) {
    %c0_i32 = arith.constant 0 : i32
    %c0_i32_0 = arith.constant 0 : i32
    %c0_i32_1 = arith.constant 0 : i32
    return %c0_i32, %c0_i32_0 : i32, i32
  }
  func.func @transform_6(%arg0: i32) -> (i32, i32) {
    %c0_i32 = arith.constant 0 : i32
    %c0_i32_0 = arith.constant 0 : i32
    %c0_i32_1 = arith.constant 0 : i32
    return %c0_i32, %c0_i32_0 : i32, i32
  }
  func.func @transform_7(%arg0: i32) -> (i32, i32) {
    %c0_i32 = arith.constant 0 : i32
    %c0_i32_0 = arith.constant 0 : i32
    %c0_i32_1 = arith.constant 0 : i32
    return %c0_i32, %c0_i32_0 : i32, i32
  }
  func.func @transform_8(%arg0: i32) -> (i32, i32, i32) {
    %c0_i32 = arith.constant 0 : i32
    %c0_i32_0 = arith.constant 0 : i32
    %c0_i32_1 = arith.constant 0 : i32
    return %arg0, %c0_i32, %c0_i32_0 : i32, i32, i32
  }
}

</mosaic_0001>

<llo_original>
// kernel: tpu_custom_call.1
$region0: #{tpu_custom_call.1}
  #allocation0 [shape = 'u32[]', space=smem, size = 0x4, offset = 0x4, fixed_abs, tag = 'smem constant byte address 0x4 - core index']
  #allocation1 [shape = 'u32[144,128]{1,0:T(1,128)}', space=vmem, size = 0x12000, scoped, tag = 'internal scratch']
  #allocation2 [shape = 'f32[16,384]{1,0:T(8,128)}', space=vmem, size = 0x6000, scoped, tag = 'scratch operand']
  %s0 = inlined_call_operand.vmem [shape: f32[1,16,256], index: 0, kind: input, shape index: {}]
  %s1 = inlined_call_operand.hbm [shape: f32[16,16,176], index: 1, kind: input, shape index: {}]
  %s2 = inlined_call_operand.vmem [shape: f32[16,16,1], index: 2, kind: input, shape index: {}]
  %s3 = inlined_call_operand.vmem [shape: f32[16,16], index: 3, kind: input, shape index: {}]
  %s4 = inlined_call_operand.vmem [shape: f32[16,1], index: 4, kind: input, shape index: {}]
  %s5 = inlined_call_operand.vmem [shape: f32[8,16], index: 5, kind: input, shape index: {}]
  %s6 = inlined_call_operand.vmem [shape: f32[4,16], index: 6, kind: input, shape index: {}]
  %s7 = inlined_call_operand.vmem [shape: f32[4,1], index: 7, kind: input, shape index: {}]
  %s8 = inlined_call_operand.hbm [shape: f32[1,4,256], index: 8, kind: output, shape index: {}]
  %s9 = sld [smem:[#allocation0]]
  $region46: #{tpu_custom_call.1} parent=0
    _
  %s11 = ssub.s32 1, %s9
  %s12 = scalar_select 0, %s11, %s9
  $region1: #{tpu_custom_call.1} parent=0
    #allocation3 [shape = 'u8[262144]{0}', space=vmem, size = 0x40000, scoped, tag = 'input window, operand 1, single buffered']
    #allocation4 [shape = 's32[1]{0}', space=sflag, size = 0x4, scoped, tag = 'scoped memory for tpu_custom_call.1']
    #allocation5 [shape = 's32[1]{0}', space=sflag, size = 0x4, scoped, tag = 'scoped memory for tpu_custom_call.1']
    #allocation6 [shape = 'u8[4096]{0}', space=vmem, size = 0x1000, scoped, tag = 'output window, operand 0, single buffered']
    %13 = vsyncpa [#allocation4], 0
    %14 = vsyncpa [#allocation5], 0
    // Predicated region
    $region2: #{tpu_custom_call.1} parent=1 // pred_check
      _
    $region3: #{tpu_custom_call.1} parent=1 // pred_check_branch
      %16 = sbr.rel (0) target = $region5
    $region4: #{tpu_custom_call.1} parent=1 // pred_region
      _
    $region5: #{tpu_custom_call.1} parent=1 // pred_fallthru
      _
    // Predicated region
    $region6: #{tpu_custom_call.1} parent=1 // pred_check
      _
    $region7: #{tpu_custom_call.1} parent=1 // pred_check_branch
      %18 = sbr.rel (0) target = $region9
    $region8: #{tpu_custom_call.1} parent=1 // pred_region
      %s20 = ssub.s32 8192, 8192
      %21 = vsyncadd [#allocation4], %s20
      %s22 = sshll.u32 [#allocation3], 4
      %s23 = int_to_ptr.vmem [resolvable:$true] %s22
      %28 = dma.hbm_to_vmem [thread:$0]  %s1, 8192, %s23, [#allocation4], 256, 256, 16
    $region9: #{tpu_custom_call.1} parent=1 // pred_fallthru
      _
    // Predicated region
    $region10: #{tpu_custom_call.1} parent=1 // pred_check
      _
    $region11: #{tpu_custom_call.1} parent=1 // pred_check_branch
      %30 = sbr.rel (0) target = $region13
    $region12: #{tpu_custom_call.1} parent=1 // pred_region
      _
    $region13: #{tpu_custom_call.1} parent=1 // pred_fallthru
      _
    // Predicated region
    $region14: #{tpu_custom_call.1} parent=1 // pred_check
      _
    $region15: #{tpu_custom_call.1} parent=1 // pred_check_branch
      %32 = sbr.rel (0) target = $region17
    $region16: #{tpu_custom_call.1} parent=1 // pred_region
      _
    $region17: #{tpu_custom_call.1} parent=1 // pred_fallthru
      _
    // Predicated region
    $region18: #{tpu_custom_call.1} parent=1 // pred_check
      _
    $region19: #{tpu_custom_call.1} parent=1 // pred_check_branch
      %34 = sbr.rel (0) target = $region21
    $region20: #{tpu_custom_call.1} parent=1 // pred_region
      _
    $region21: #{tpu_custom_call.1} parent=1 // pred_fallthru
      _
    // Predicated region
    $region22: #{tpu_custom_call.1} parent=1 // pred_check
      _
    $region23: #{tpu_custom_call.1} parent=1 // pred_check_branch
      %36 = sbr.rel (0) target = $region25
    $region24: #{tpu_custom_call.1} parent=1 // pred_region
      _
    $region25: #{tpu_custom_call.1} parent=1 // pred_fallthru
      _
    // Predicated region
    $region26: #{tpu_custom_call.1} parent=1 // pred_check
      _
    $region27: #{tpu_custom_call.1} parent=1 // pred_check_branch
      %38 = sbr.rel (0) target = $region29
    $region28: #{tpu_custom_call.1} parent=1 // pred_region
      _
    $region29: #{tpu_custom_call.1} parent=1 // pred_fallthru
      _
    // Predicated region
    $region30: #{tpu_custom_call.1} parent=1 // pred_check
      _
    $region31: #{tpu_custom_call.1} parent=1 // pred_check_branch
      %40 = sbr.rel (0) target = $region33
    $region32: #{tpu_custom_call.1} parent=1 // pred_region
      _
    $region33: #{tpu_custom_call.1} parent=1 // pred_fallthru
      _
    // Predicated region
    $region34: #{tpu_custom_call.1} parent=1 // pred_check
      _
    $region35: #{tpu_custom_call.1} parent=1 // pred_check_branch
      %42 = sbr.rel (0) target = $region37
    $region36: #{tpu_custom_call.1} parent=1 // pred_region
      %43 = dma.done [#allocation4], 8192
    $region37: #{tpu_custom_call.1} parent=1 // pred_fallthru
      _
    %44 = vst [vmem:[#allocation2] sm:$0xff] 0.0
    %45 = vst [vmem:[#allocation2 + $0x18] sm:$0xff] 0.0
    %v46 = vlaneseq
    %v47 = vand.u32 %v46, 127
    %v48 = vadd.s32 %v47, 128
    %vm49 = vcmp.lt.s32.totalorder %v47, 0
    %v50 = vsub.s32 0, %v47
    %v51 = vsel %vm49, %v50, %v47
    %v52 = vmul.u32.u64.compose %v51, 2454267026
    %v53 = vextract.low.u32 %v52
    %v54 = vextract.high.u32 %v52
    %vm55 = vc.u32 %v53, 2454267026
    %v56 = vsel %vm55, 1, 0
    %v57 = vadd.s32 %v54, %v56
    %v58 = vshrl.u32 %v57, 6
    %v59 = vmul.u32 %v58, 112
    %v60 = vsub.s32 %v51, %v59
    %v61 = vsub.s32 0, %v60
    %v62 = vsel %vm49, %v61, %v60
    %vm63 = vcmp.lt.s32.totalorder %v48, 0
    %v64 = vsub.s32 0, %v48
    %v65 = vsel %vm63, %v64, %v48
    %v66 = vmul.u32.u64.compose %v65, 2454267026
    %v67 = vextract.low.u32 %v66
    %v68 = vextract.high.u32 %v66
    %vm69 = vc.u32 %v67, 2454267026
    %v70 = vsel %vm69, 1, 0
    %v71 = vadd.s32 %v68, %v70
    %v72 = vshrl.u32 %v71, 6
    %v73 = vmul.u32 %v72, 112
    %v74 = vsub.s32 %v65, %v73
    %v75 = vsub.s32 0, %v74
    %v76 = vsel %vm63, %v75, %v74
    %vm77 = vcmp.ne.s32.totalorder %v62, 0
    %vm78 = vcmp.ne.s32.totalorder %v76, 0
    %vm79 = vcmp.lt.s32.totalorder %v62, 0
    %vm80 = vcmp.lt.s32.totalorder %v76, 0
    %vm81 = vmand %vm79, %vm77
    %vm82 = vmand %vm80, %vm78
    %v83 = vadd.s32 %v62, 112
    %v84 = vadd.s32 %v76, 112
    %v85 = vsel %vm81, %v83, %v62
    %v86 = vsel %vm82, %v84, %v76
    %vm87 = vcmp.ge.s32.totalorder %v85, 80
    %vm88 = vcmp.ge.s32.totalorder %v86, 80
    %vm89 = vcmp.lt.s32.totalorder %v47, 224
    %vm90 = vcmp.lt.s32.totalorder %v48, 224
    %vm91 = vmand %vm87, %vm89
    %vm92 = vmand %vm88, %vm90
    %v93 = vld [vmem:[%s0] sm:$0xff]
    %v94 = vld [vmem:[%s0 + $0x8] sm:$0xff]
    %v95 = vld [vmem:[%s0 + $0x10] sm:$0xff]
    %v96 = vld [vmem:[%s0 + $0x18] sm:$0xff]
    %v97 = vld [vmem:[%s3] sm:$0xff]
    %v98 = vld [vmem:[%s3 + $0x8] sm:$0xff]
    %v99 = vld [vmem:[%s4] sm:$0xff]
    %v100 = vld [vmem:[%s4 + $0x8] sm:$0xff]
    %102 = vset.pattern.permute.xlu0 0
    %103 = vperm.xlu0 %102, %v99
    %v104 = vpop.permute.xlu0 %103
    %107 = vset.pattern.permute.xlu0 0
    %108 = vperm.xlu0 %107, %v100
    %v109 = vpop.permute.xlu0 %108
    %vm111 = vcmask 130048
    %v113 = vsel %vm111, %v97, 0
    %v116 = vsel %vm111, %v98, 0
    %118 = vmatprep.subr.mxu0 0.0
    %119 = vmatpush1.msra.mxu0 0.0
    %120 = vmatprep.subr.mxu0 0.0
    %121 = vmatpush1.msra.mxu0 0.0
    %122 = vmatprep.subr.mxu0 0.0
    %123 = vmatpush1.msra.mxu0 0.0
    %124 = vmatprep.subr.mxu0 0.0
    %125 = vmatpush1.msra.mxu0 0.0
    %126 = vmatprep.subr.mxu0 0.0
    %127 = vmatpush1.msra.mxu0 0.0
    %128 = vmatprep.subr.mxu0 0.0
    %129 = vmatpush1.msra.mxu0 0.0
    %130 = vmatprep.subr.mxu0 0.0
    %131 = vmatpush1.msra.mxu0 0.0
    %132 = vmatprep.subr.mxu0 0.0
    %133 = vmatpush1.msra.mxu0 0.0
    %134 = vmatprep.subr.mxu0 0.0
    %135 = vmatpush1.msra.mxu0 0.0
    %136 = vmatprep.subr.mxu0 0.0
    %137 = vmatpush1.msra.mxu0 0.0
    %138 = vmatprep.subr.mxu0 0.0
    %139 = vmatpush1.msra.mxu0 0.0
    %140 = vmatprep.subr.mxu0 0.0
    %141 = vmatpush1.msra.mxu0 0.0
    %142 = vmatprep.subr.mxu0 0.0
    %143 = vmatpush1.msra.mxu0 0.0
    %144 = vmatprep.subr.mxu0 0.0
    %145 = vmatpush1.msra.mxu0 0.0
    %146 = vmatprep.subr.mxu0 %v96
    %147 = vmatpush1.msra.mxu0 %v95
    %148 = vmatprep.subr.mxu0 %v94
    %149 = vmatpush1.msra.mxu0 %v93
    %150 = vmatprep.subr.mxu0 0.0
    %151 = vmatpush2.msra.mxu0 0.0
    %152 = vmatprep.subr.mxu0 0.0
    %153 = vmatpush2.msra.mxu0 0.0
    %154 = vmatprep.subr.mxu0 0.0
    %155 = vmatpush2.msra.mxu0 0.0
    %156 = vmatprep.subr.mxu0 0.0
    %157 = vmatpush2.msra.mxu0 0.0
    %158 = vmatprep.subr.mxu0 0.0
    %159 = vmatpush2.msra.mxu0 0.0
    %160 = vmatprep.subr.mxu0 0.0
    %161 = vmatpush2.msra.mxu0 0.0
    %162 = vmatprep.subr.mxu0 0.0
    %163 = vmatpush2.msra.mxu0 0.0
    %164 = vmatprep.subr.mxu0 0.0
    %165 = vmatpush2.msra.mxu0 0.0
    %166 = vmatprep.subr.mxu0 0.0
    %167 = vmatpush2.msra.mxu0 0.0
    %168 = vmatprep.subr.mxu0 0.0
    %169 = vmatpush2.msra.mxu0 0.0
    %170 = vmatprep.subr.mxu0 0.0
    %171 = vmatpush2.msra.mxu0 0.0
    %172 = vmatprep.subr.mxu0 0.0
    %173 = vmatpush2.msra.mxu0 0.0
    %174 = vmatprep.subr.mxu0 0.0
    %175 = vmatpush2.msra.mxu0 0.0
    %176 = vmatprep.subr.mxu0 0.0
    %177 = vmatpush2.msra.mxu0 0.0
    %178 = vmatprep.subr.mxu0 0.0
    %179 = vmatpush2.msra.mxu0 0.0
    %180 = vmatprep.subr.mxu0 0.0
    %181 = vmatpush2.msra.mxu0 0.0
    %182 = vmatprep.mubr.f32.mxu0 0.0
    %183 = vmatmul.mubr.f32.gmra.mxu0 %v113
    %v184 = vpop.f32.mrf.mxu0
    %v185 = vadd.f32 %v104, %v184
    %v186 = vpop.f32.mrf.mxu0
    %v187 = vadd.f32 %v104, %v186
    %188 = vmatprep.mubr.f32.mxu0 0.0
    %189 = vmatmul.mubr.f32.gmra.mxu0 %v116
    %v190 = vpop.f32.mrf.mxu0
    %v191 = vadd.f32 %v109, %v190
    %v192 = vpop.f32.mrf.mxu0
    %v193 = vadd.f32 %v109, %v192
    %194 = vdwg.mxu0
    %195 = vst [vmem:[#allocation2 + $0x8] sm:$0xff] %v93
    %196 = vst [vmem:[#allocation2 + $0x10] sm:$0xff] %v94
    %197 = vst [vmem:[#allocation2 + $0x20] sm:$0xff] %v95
    %198 = vst [vmem:[#allocation2 + $0x28] sm:$0xff] %v96
    %v199 = vld [vmem:[#allocation2] sm:$0xff]
    %v200 = vld [vmem:[#allocation2 + $0x8] sm:$0xff]
    %v201 = vld [vmem:[#allocation2 + $0x10] sm:$0xff]
    %v202 = vld [vmem:[#allocation2 + $0x18] sm:$0xff]
    %v203 = vld [vmem:[#allocation2 + $0x20] sm:$0xff]
    %v204 = vld [vmem:[#allocation2 + $0x28] sm:$0xff]
    %211 = vrot.lane.b32.xlu0 %v199, 127
    %v212 = vpop.permute.xlu0 %211
    %213 = vrot.lane.b32.xlu0 %v200, 127
    %v214 = vpop.permute.xlu0 %213
    %215 = vrot.lane.b32.xlu0 %v201, 127
    %v216 = vpop.permute.xlu0 %215
    %217 = vrot.lane.b32.xlu0 %v202, 127
    %v218 = vpop.permute.xlu0 %217
    %219 = vrot.lane.b32.xlu0 %v203, 127
    %v220 = vpop.permute.xlu0 %219
    %221 = vrot.lane.b32.xlu0 %v204, 127
    %v222 = vpop.permute.xlu0 %221
    %vm223 = vcmask 1039360
    %v224 = vsel %vm223, %v212, %v214
    %v225 = vsel %vm223, %v214, %v216
    %v226 = vsel %vm223, %v218, %v220
    %v227 = vsel %vm223, %v220, %v222
    %228 = vrot.lane.b32.xlu0 %v199, 126
    %v229 = vpop.permute.xlu0 %228
    %230 = vrot.lane.b32.xlu0 %v200, 126
    %v231 = vpop.permute.xlu0 %230
    %232 = vrot.lane.b32.xlu0 %v201, 126
    %v233 = vpop.permute.xlu0 %232
    %234 = vrot.lane.b32.xlu0 %v202, 126
    %v235 = vpop.permute.xlu0 %234
    %236 = vrot.lane.b32.xlu0 %v203, 126
    %v237 = vpop.permute.xlu0 %236
    %238 = vrot.lane.b32.xlu0 %v204, 126
    %v239 = vpop.permute.xlu0 %238
    %vm240 = vcmask 1031168
    %v241 = vsel %vm240, %v229, %v231
    %v242 = vsel %vm240, %v231, %v233
    %v243 = vsel %vm240, %v235, %v237
    %v244 = vsel %vm240, %v237, %v239
    %245 = vrot.lane.b32.xlu0 %v199, 125
    %v246 = vpop.permute.xlu0 %245
    %247 = vrot.lane.b32.xlu0 %v200, 125
    %v248 = vpop.permute.xlu0 %247
    %249 = vrot.lane.b32.xlu0 %v201, 125
    %v250 = vpop.permute.xlu0 %249
    %251 = vrot.lane.b32.xlu0 %v202, 125
    %v252 = vpop.permute.xlu0 %251
    %253 = vrot.lane.b32.xlu0 %v203, 125
    %v254 = vpop.permute.xlu0 %253
    %255 = vrot.lane.b32.xlu0 %v204, 125
    %v256 = vpop.permute.xlu0 %255
    %vm257 = vcmask 1022976
    %v258 = vsel %vm257, %v246, %v248
    %v259 = vsel %vm257, %v248, %v250
    %v260 = vsel %vm257, %v252, %v254
    %v261 = vsel %vm257, %v254, %v256
    %262 = vrot.lane.b32.xlu0 %v199, 124
    %v263 = vpop.permute.xlu0 %262
    %264 = vrot.lane.b32.xlu0 %v200, 124
    %v265 = vpop.permute.xlu0 %264
    %266 = vrot.lane.b32.xlu0 %v201, 124
    %v267 = vpop.permute.xlu0 %266
    %268 = vrot.lane.b32.xlu0 %v202, 124
    %v269 = vpop.permute.xlu0 %268
    %270 = vrot.lane.b32.xlu0 %v203, 124
    %v271 = vpop.permute.xlu0 %270
    %272 = vrot.lane.b32.xlu0 %v204, 124
    %v273 = vpop.permute.xlu0 %272
    %vm274 = vcmask 1014784
    %v275 = vsel %vm274, %v263, %v265
    %v276 = vsel %vm274, %v265, %v267
    %v277 = vsel %vm274, %v269, %v271
    %v278 = vsel %vm274, %v271, %v273
    %279 = vrot.lane.b32.xlu0 %v199, 123
    %v280 = vpop.permute.xlu0 %279
    %281 = vrot.lane.b32.xlu0 %v200, 123
    %v282 = vpop.permute.xlu0 %281
    %283 = vrot.lane.b32.xlu0 %v201, 123
    %v284 = vpop.permute.xlu0 %283
    %285 = vrot.lane.b32.xlu0 %v202, 123
    %v286 = vpop.permute.xlu0 %285
    %287 = vrot.lane.b32.xlu0 %v203, 123
    %v288 = vpop.permute.xlu0 %287
    %289 = vrot.lane.b32.xlu0 %v204, 123
    %v290 = vpop.permute.xlu0 %289
    %vm291 = vcmask 1006592
    %v292 = vsel %vm291, %v280, %v282
    %v293 = vsel %vm291, %v282, %v284
    %v294 = vsel %vm291, %v286, %v288
    %v295 = vsel %vm291, %v288, %v290
    %296 = vrot.lane.b32.xlu0 %v199, 122
    %v297 = vpop.permute.xlu0 %296
    %298 = vrot.lane.b32.xlu0 %v200, 122
    %v299 = vpop.permute.xlu0 %298
    %300 = vrot.lane.b32.xlu0 %v201, 122
    %v301 = vpop.permute.xlu0 %300
    %302 = vrot.lane.b32.xlu0 %v202, 122
    %v303 = vpop.permute.xlu0 %302
    %304 = vrot.lane.b32.xlu0 %v203, 122
    %v305 = vpop.permute.xlu0 %304
    %306 = vrot.lane.b32.xlu0 %v204, 122
    %v307 = vpop.permute.xlu0 %306
    %vm308 = vcmask 998400
    %v309 = vsel %vm308, %v297, %v299
    %v310 = vsel %vm308, %v299, %v301
    %v311 = vsel %vm308, %v303, %v305
    %v312 = vsel %vm308, %v305, %v307
    %313 = vrot.lane.b32.xlu0 %v199, 121
    %v314 = vpop.permute.xlu0 %313
    %315 = vrot.lane.b32.xlu0 %v200, 121
    %v316 = vpop.permute.xlu0 %315
    %317 = vrot.lane.b32.xlu0 %v201, 121
    %v318 = vpop.permute.xlu0 %317
    %319 = vrot.lane.b32.xlu0 %v202, 121
    %v320 = vpop.permute.xlu0 %319
    %321 = vrot.lane.b32.xlu0 %v203, 121
    %v322 = vpop.permute.xlu0 %321
    %323 = vrot.lane.b32.xlu0 %v204, 121
    %v324 = vpop.permute.xlu0 %323
    %vm325 = vcmask 990208
    %v326 = vsel %vm325, %v314, %v316
    %v327 = vsel %vm325, %v316, %v318
    %v328 = vsel %vm325, %v320, %v322
    %v329 = vsel %vm325, %v322, %v324
    %330 = vrot.lane.b32.xlu0 %v199, 120
    %v331 = vpop.permute.xlu0 %330
    %332 = vrot.lane.b32.xlu0 %v200, 120
    %v333 = vpop.permute.xlu0 %332
    %334 = vrot.lane.b32.xlu0 %v201, 120
    %v335 = vpop.permute.xlu0 %334
    %336 = vrot.lane.b32.xlu0 %v202, 120
    %v337 = vpop.permute.xlu0 %336
    %338 = vrot.lane.b32.xlu0 %v203, 120
    %v339 = vpop.permute.xlu0 %338
    %340 = vrot.lane.b32.xlu0 %v204, 120
    %v341 = vpop.permute.xlu0 %340
    %vm342 = vcmask 982016
    %v343 = vsel %vm342, %v331, %v333
    %v344 = vsel %vm342, %v333, %v335
    %v345 = vsel %vm342, %v337, %v339
    %v346 = vsel %vm342, %v339, %v341
    %347 = vrot.lane.b32.xlu0 %v199, 119
    %v348 = vpop.permute.xlu0 %347
    %349 = vrot.lane.b32.xlu0 %v200, 119
    %v350 = vpop.permute.xlu0 %349
    %351 = vrot.lane.b32.xlu0 %v201, 119
    %v352 = vpop.permute.xlu0 %351
    %353 = vrot.lane.b32.xlu0 %v202, 119
    %v354 = vpop.permute.xlu0 %353
    %355 = vrot.lane.b32.xlu0 %v203, 119
    %v356 = vpop.permute.xlu0 %355
    %357 = vrot.lane.b32.xlu0 %v204, 119
    %v358 = vpop.permute.xlu0 %357
    %vm359 = vcmask 973824
    %v360 = vsel %vm359, %v348, %v350
    %v361 = vsel %vm359, %v350, %v352
    %v362 = vsel %vm359, %v354, %v356
    %v363 = vsel %vm359, %v356, %v358
    %364 = vrot.lane.b32.xlu0 %v200, 118
    %v365 = vpop.permute.xlu0 %364
    %366 = vrot.lane.b32.xlu0 %v201, 118
    %v367 = vpop.permute.xlu0 %366
    %368 = vrot.lane.b32.xlu0 %v203, 118
    %v369 = vpop.permute.xlu0 %368
    %370 = vrot.lane.b32.xlu0 %v204, 118
    %v371 = vpop.permute.xlu0 %370
    %vm372 = vcmask 965632
    %v373 = vsel %vm372, %v365, %v367
    %v374 = vsel %vm372, %v369, %v371
    %v375 = vld [vmem:[#allocation3] sm:$0xff]
    %v376 = vld [vmem:[#allocation3 + $0x8] sm:$0xff]
    %v377 = vld [vmem:[#allocation3 + $0x10] sm:$0xff]
    %v378 = vld [vmem:[#allocation3 + $0x18] sm:$0xff]
    %v379 = vld [vmem:[%s2] sm:$0xff]
    %v380 = vld [vmem:[%s2 + $0x8] sm:$0xff]
    %382 = vset.pattern.permute.xlu0 0
    %383 = vperm.xlu0 %382, %v379
    %v384 = vpop.permute.xlu0 %383
    %387 = vset.pattern.permute.xlu0 0
    %388 = vperm.xlu0 %387, %v380
    %v389 = vpop.permute.xlu0 %388
    %391 = vrot.lane.b32.xlu0 %v199, 10
    %v392 = vpop.permute.xlu0 %391
    %393 = vrot.lane.b32.xlu0 %v200, 10
    %v394 = vpop.permute.xlu0 %393
    %395 = vrot.lane.b32.xlu0 %v201, 10
    %v396 = vpop.permute.xlu0 %395
    %397 = vrot.lane.b32.xlu0 %v202, 10
    %v398 = vpop.permute.xlu0 %397
    %399 = vrot.lane.b32.xlu0 %v203, 10
    %v400 = vpop.permute.xlu0 %399
    %401 = vrot.lane.b32.xlu0 %v204, 10
    %v402 = vpop.permute.xlu0 %401
    %403 = vrot.lane.b32.xlu0 %v224, 10
    %v404 = vpop.permute.xlu0 %403
    %405 = vrot.lane.b32.xlu0 %v225, 10
    %v406 = vpop.permute.xlu0 %405
    %407 = vrot.lane.b32.xlu0 %v216, 10
    %v408 = vpop.permute.xlu0 %407
    %409 = vrot.lane.b32.xlu0 %v226, 10
    %v410 = vpop.permute.xlu0 %409
    %411 = vrot.lane.b32.xlu0 %v227, 10
    %v412 = vpop.permute.xlu0 %411
    %413 = vrot.lane.b32.xlu0 %v222, 10
    %v414 = vpop.permute.xlu0 %413
    %415 = vrot.lane.b32.xlu0 %v241, 10
    %v416 = vpop.permute.xlu0 %415
    %417 = vrot.lane.b32.xlu0 %v242, 10
    %v418 = vpop.permute.xlu0 %417
    %419 = vrot.lane.b32.xlu0 %v233, 10
    %v420 = vpop.permute.xlu0 %419
    %421 = vrot.lane.b32.xlu0 %v243, 10
    %v422 = vpop.permute.xlu0 %421
    %423 = vrot.lane.b32.xlu0 %v244, 10
    %v424 = vpop.permute.xlu0 %423
    %425 = vrot.lane.b32.xlu0 %v239, 10
    %v426 = vpop.permute.xlu0 %425
    %427 = vrot.lane.b32.xlu0 %v258, 10
    %v428 = vpop.permute.xlu0 %427
    %429 = vrot.lane.b32.xlu0 %v259, 10
    %v430 = vpop.permute.xlu0 %429
    %431 = vrot.lane.b32.xlu0 %v250, 10
    %v432 = vpop.permute.xlu0 %431
    %433 = vrot.lane.b32.xlu0 %v260, 10
    %v434 = vpop.permute.xlu0 %433
    %435 = vrot.lane.b32.xlu0 %v261, 10
    %v436 = vpop.permute.xlu0 %435
    %437 = vrot.lane.b32.xlu0 %v256, 10
    %v438 = vpop.permute.xlu0 %437
    %439 = vrot.lane.b32.xlu0 %v275, 10
    %v440 = vpop.permute.xlu0 %439
    %441 = vrot.lane.b32.xlu0 %v276, 10
    %v442 = vpop.permute.xlu0 %441
    %443 = vrot.lane.b32.xlu0 %v267, 10
    %v444 = vpop.permute.xlu0 %443
    %445 = vrot.lane.b32.xlu0 %v277, 10
    %v446 = vpop.permute.xlu0 %445
    %447 = vrot.lane.b32.xlu0 %v278, 10
    %v448 = vpop.permute.xlu0 %447
    %449 = vrot.lane.b32.xlu0 %v273, 10
    %v450 = vpop.permute.xlu0 %449
    %451 = vrot.lane.b32.xlu0 %v292, 10
    %v452 = vpop.permute.xlu0 %451
    %453 = vrot.lane.b32.xlu0 %v293, 10
    %v454 = vpop.permute.xlu0 %453
    %455 = vrot.lane.b32.xlu0 %v284, 10
    %v456 = vpop.permute.xlu0 %455
    %457 = vrot.lane.b32.xlu0 %v294, 10
    %v458 = vpop.permute.xlu0 %457
    %459 = vrot.lane.b32.xlu0 %v295, 10
    %v460 = vpop.permute.xlu0 %459
    %461 = vrot.lane.b32.xlu0 %v290, 10
    %v462 = vpop.permute.xlu0 %461
    %463 = vrot.lane.b32.xlu0 %v309, 10
    %v464 = vpop.permute.xlu0 %463
    %465 = vrot.lane.b32.xlu0 %v310, 10
    %v466 = vpop.permute.xlu0 %465
    %467 = vrot.lane.b32.xlu0 %v301, 10
    %v468 = vpop.permute.xlu0 %467
    %469 = vrot.lane.b32.xlu0 %v311, 10
    %v470 = vpop.permute.xlu0 %469
    %471 = vrot.lane.b32.xlu0 %v312, 10
    %v472 = vpop.permute.xlu0 %471
    %473 = vrot.lane.b32.xlu0 %v307, 10
    %v474 = vpop.permute.xlu0 %473
    %475 = vrot.lane.b32.xlu0 %v326, 10
    %v476 = vpop.permute.xlu0 %475
    %477 = vrot.lane.b32.xlu0 %v327, 10
    %v478 = vpop.permute.xlu0 %477
    %479 = vrot.lane.b32.xlu0 %v318, 10
    %v480 = vpop.permute.xlu0 %479
    %481 = vrot.lane.b32.xlu0 %v328, 10
    %v482 = vpop.permute.xlu0 %481
    %483 = vrot.lane.b32.xlu0 %v329, 10
    %v484 = vpop.permute.xlu0 %483
    %485 = vrot.lane.b32.xlu0 %v324, 10
    %v486 = vpop.permute.xlu0 %485
    %487 = vrot.lane.b32.xlu0 %v343, 10
    %v488 = vpop.permute.xlu0 %487
    %489 = vrot.lane.b32.xlu0 %v344, 10
    %v490 = vpop.permute.xlu0 %489
    %491 = vrot.lane.b32.xlu0 %v335, 10
    %v492 = vpop.permute.xlu0 %491
    %493 = vrot.lane.b32.xlu0 %v345, 10
    %v494 = vpop.permute.xlu0 %493
    %495 = vrot.lane.b32.xlu0 %v346, 10
    %v496 = vpop.permute.xlu0 %495
    %497 = vrot.lane.b32.xlu0 %v341, 10
    %v498 = vpop.permute.xlu0 %497
    %499 = vrot.lane.b32.xlu0 %v360, 10
    %v500 = vpop.permute.xlu0 %499
    %501 = vrot.lane.b32.xlu0 %v361, 10
    %v502 = vpop.permute.xlu0 %501
    %503 = vrot.lane.b32.xlu0 %v352, 10
    %v504 = vpop.permute.xlu0 %503
    %505 = vrot.lane.b32.xlu0 %v362, 10
    %v506 = vpop.permute.xlu0 %505
    %507 = vrot.lane.b32.xlu0 %v363, 10
    %v508 = vpop.permute.xlu0 %507
    %509 = vrot.lane.b32.xlu0 %v358, 10
    %v510 = vpop.permute.xlu0 %509
    %511 = vrot.lane.b32.xlu0 %v365, 10
    %v512 = vpop.permute.xlu0 %511
    %513 = vrot.lane.b32.xlu0 %v373, 10
    %v514 = vpop.permute.xlu0 %513
    %515 = vrot.lane.b32.xlu0 %v367, 10
    %v516 = vpop.permute.xlu0 %515
    %517 = vrot.lane.b32.xlu0 %v369, 10
    %v518 = vpop.permute.xlu0 %517
    %519 = vrot.lane.b32.xlu0 %v374, 10
    %v520 = vpop.permute.xlu0 %519
    %521 = vrot.lane.b32.xlu0 %v371, 10
    %v522 = vpop.permute.xlu0 %521
    %vm523 = vcmask 80896
    %v524 = vsel %vm523, %v392, %v394
    %v525 = vsel %vm523, %v394, %v396
    %v526 = vsel %vm523, %v398, %v400
    %v527 = vsel %vm523, %v400, %v402
    %v528 = vsel %vm523, %v404, %v406
    %v529 = vsel %vm523, %v406, %v408
    %v530 = vsel %vm523, %v410, %v412
    %v531 = vsel %vm523, %v412, %v414
    %v532 = vsel %vm523, %v416, %v418
    %v533 = vsel %vm523, %v418, %v420
    %v534 = vsel %vm523, %v422, %v424
    %v535 = vsel %vm523, %v424, %v426
    %v536 = vsel %vm523, %v428, %v430
    %v537 = vsel %vm523, %v430, %v432
    %v538 = vsel %vm523, %v434, %v436
    %v539 = vsel %vm523, %v436, %v438
    %v540 = vsel %vm523, %v440, %v442
    %v541 = vsel %vm523, %v442, %v444
    %v542 = vsel %vm523, %v446, %v448
    %v543 = vsel %vm523, %v448, %v450
    %v544 = vsel %vm523, %v452, %v454
    %v545 = vsel %vm523, %v454, %v456
    %v546 = vsel %vm523, %v458, %v460
    %v547 = vsel %vm523, %v460, %v462
    %v548 = vsel %vm523, %v464, %v466
    %v549 = vsel %vm523, %v466, %v468
    %v550 = vsel %vm523, %v470, %v472
    %v551 = vsel %vm523, %v472, %v474
    %v552 = vsel %vm523, %v476, %v478
    %v553 = vsel %vm523, %v478, %v480
    %v554 = vsel %vm523, %v482, %v484
    %v555 = vsel %vm523, %v484, %v486
    %v556 = vsel %vm523, %v488, %v490
    %v557 = vsel %vm523, %v490, %v492
    %v558 = vsel %vm523, %v494, %v496
    %v559 = vsel %vm523, %v496, %v498
    %v560 = vsel %vm523, %v500, %v502
    %v561 = vsel %vm523, %v502, %v504
    %v562 = vsel %vm523, %v506, %v508
    %v563 = vsel %vm523, %v508, %v510
    %v564 = vsel %vm523, %v512, %v514
    %v565 = vsel %vm523, %v514, %v516
    %v566 = vsel %vm523, %v518, %v520
    %v567 = vsel %vm523, %v520, %v522
    %vm612 = vcmask 392192
    %v614 = vsel %vm612, %v376, 0
    %v617 = vsel %vm612, %v378, 0
    %619 = vmatprep.subr.mxu0 %v555
    %620 = vmatpush1.msra.mxu0 %v554
    %621 = vmatprep.subr.mxu0 %v553
    %622 = vmatpush1.msra.mxu0 %v552
    %623 = vmatprep.subr.mxu0 %v551
    %624 = vmatpush1.msra.mxu0 %v550
    %625 = vmatprep.subr.mxu0 %v549
    %626 = vmatpush1.msra.mxu0 %v548
    %627 = vmatprep.subr.mxu0 %v547
    %628 = vmatpush1.msra.mxu0 %v546
    %629 = vmatprep.subr.mxu0 %v545
    %630 = vmatpush1.msra.mxu0 %v544
    %631 = vmatprep.subr.mxu0 %v543
    %632 = vmatpush1.msra.mxu0 %v542
    %633 = vmatprep.subr.mxu0 %v541
    %634 = vmatpush1.msra.mxu0 %v540
    %635 = vmatprep.subr.mxu0 %v539
    %636 = vmatpush1.msra.mxu0 %v538
    %637 = vmatprep.subr.mxu0 %v537
    %638 = vmatpush1.msra.mxu0 %v536
    %639 = vmatprep.subr.mxu0 %v535
    %640 = vmatpush1.msra.mxu0 %v534
    %641 = vmatprep.subr.mxu0 %v533
    %642 = vmatpush1.msra.mxu0 %v532
    %643 = vmatprep.subr.mxu0 %v531
    %644 = vmatpush1.msra.mxu0 %v530
    %645 = vmatprep.subr.mxu0 %v529
    %646 = vmatpush1.msra.mxu0 %v528
    %647 = vmatprep.subr.mxu0 %v527
    %648 = vmatpush1.msra.mxu0 %v526
    %649 = vmatprep.subr.mxu0 %v525
    %650 = vmatpush1.msra.mxu0 %v524
    %651 = vmatprep.subr.mxu0 0.0
    %652 = vmatpush2.msra.mxu0 0.0
    %653 = vmatprep.subr.mxu0 0.0
    %654 = vmatpush2.msra.mxu0 0.0
    %655 = vmatprep.subr.mxu0 0.0
    %656 = vmatpush2.msra.mxu0 0.0
    %657 = vmatprep.subr.mxu0 0.0
    %658 = vmatpush2.msra.mxu0 0.0
    %659 = vmatprep.subr.mxu0 0.0
    %660 = vmatpush2.msra.mxu0 0.0
    %661 = vmatprep.subr.mxu0 0.0
    %662 = vmatpush2.msra.mxu0 0.0
    %663 = vmatprep.subr.mxu0 0.0
    %664 = vmatpush2.msra.mxu0 0.0
    %665 = vmatprep.subr.mxu0 0.0
    %666 = vmatpush2.msra.mxu0 0.0
    %667 = vmatprep.subr.mxu0 0.0
    %668 = vmatpush2.msra.mxu0 0.0
    %669 = vmatprep.subr.mxu0 0.0
    %670 = vmatpush2.msra.mxu0 0.0
    %671 = vmatprep.subr.mxu0 %v567
    %672 = vmatpush2.msra.mxu0 %v566
    %673 = vmatprep.subr.mxu0 %v565
    %674 = vmatpush2.msra.mxu0 %v564
    %675 = vmatprep.subr.mxu0 %v563
    %676 = vmatpush2.msra.mxu0 %v562
    %677 = vmatprep.subr.mxu0 %v561
    %678 = vmatpush2.msra.mxu0 %v560
    %679 = vmatprep.subr.mxu0 %v559
    %680 = vmatpush2.msra.mxu0 %v558
    %681 = vmatprep.subr.mxu0 %v557
    %682 = vmatpush2.msra.mxu0 %v556
    %683 = vmatprep.mubr.f32.mxu0 %v614
    %684 = vmatmul.mubr.f32.gmra.mxu0 %v375
    %v685 = vpop.f32.mrf.mxu0
    %v686 = vadd.f32 %v384, %v685
    %v687 = vpop.f32.mrf.mxu0
    %v688 = vadd.f32 %v384, %v687
    %689 = vmatprep.mubr.f32.mxu0 %v617
    %690 = vmatmul.mubr.f32.gmra.mxu0 %v377
    %v691 = vpop.f32.mrf.mxu0
    %v692 = vadd.f32 %v389, %v691
    %v693 = vpop.f32.mrf.mxu0
    %v694 = vadd.f32 %v389, %v693
    %695 = vdwg.mxu0
    %v696 = vtanh.pop %v686
    %v697 = vtanh.pop %v688
    %v698 = vtanh.pop %v692
    %v699 = vtanh.pop %v694
    %v700 = vsel %vm91, %v696, 0.0
    %v701 = vsel %vm92, %v697, 0.0
    %v702 = vsel %vm91, %v698, 0.0
    %v703 = vsel %vm92, %v699, 0.0
    %704 = vst [vmem:[#allocation2 + $0x8] sm:$0xff] %v700
    %705 = vst [vmem:[#allocation2 + $0x10] sm:$0xff] %v701
    %706 = vst [vmem:[#allocation2 + $0x20] sm:$0xff] %v702
    %707 = vst [vmem:[#allocation2 + $0x28] sm:$0xff] %v703
    %v708 = vld [vmem:[#allocation2] sm:$0xff]
    %v709 = vld [vmem:[#allocation2 + $0x8] sm:$0xff]
    %v710 = vld [vmem:[#allocation2 + $0x10] sm:$0xff]
    %v711 = vld [vmem:[#allocation2 + $0x18] sm:$0xff]
    %v712 = vld [vmem:[#allocation2 + $0x20] sm:$0xff]
    %v713 = vld [vmem:[#allocation2 + $0x28] sm:$0xff]
    %720 = vrot.lane.b32.xlu0 %v708, 127
    %v721 = vpop.permute.xlu0 %720
    %722 = vrot.lane.b32.xlu0 %v709, 127
    %v723 = vpop.permute.xlu0 %722
    %724 = vrot.lane.b32.xlu0 %v710, 127
    %v725 = vpop.permute.xlu0 %724
    %726 = vrot.lane.b32.xlu0 %v711, 127
    %v727 = vpop.permute.xlu0 %726
    %728 = vrot.lane.b32.xlu0 %v712, 127
    %v729 = vpop.permute.xlu0 %728
    %730 = vrot.lane.b32.xlu0 %v713, 127
    %v731 = vpop.permute.xlu0 %730
    %v732 = vsel %vm223, %v721, %v723
    %v733 = vsel %vm223, %v723, %v725
    %v734 = vsel %vm223, %v727, %v729
    %v735 = vsel %vm223, %v729, %v731
    %736 = vrot.lane.b32.xlu0 %v708, 126
    %v737 = vpop.permute.xlu0 %736
    %738 = vrot.lane.b32.xlu0 %v709, 126
    %v739 = vpop.permute.xlu0 %738
    %740 = vrot.lane.b32.xlu0 %v710, 126
    %v741 = vpop.permute.xlu0 %740
    %742 = vrot.lane.b32.xlu0 %v711, 126
    %v743 = vpop.permute.xlu0 %742
    %744 = vrot.lane.b32.xlu0 %v712, 126
    %v745 = vpop.permute.xlu0 %744
    %746 = vrot.lane.b32.xlu0 %v713, 126
    %v747 = vpop.permute.xlu0 %746
    %v748 = vsel %vm240, %v737, %v739
    %v749 = vsel %vm240, %v739, %v741
    %v750 = vsel %vm240, %v743, %v745
    %v751 = vsel %vm240, %v745, %v747
    %752 = vrot.lane.b32.xlu0 %v708, 125
    %v753 = vpop.permute.xlu0 %752
    %754 = vrot.lane.b32.xlu0 %v709, 125
    %v755 = vpop.permute.xlu0 %754
    %756 = vrot.lane.b32.xlu0 %v710, 125
    %v757 = vpop.permute.xlu0 %756
    %758 = vrot.lane.b32.xlu0 %v711, 125
    %v759 = vpop.permute.xlu0 %758
    %760 = vrot.lane.b32.xlu0 %v712, 125
    %v761 = vpop.permute.xlu0 %760
    %762 = vrot.lane.b32.xlu0 %v713, 125
    %v763 = vpop.permute.xlu0 %762
    %v764 = vsel %vm257, %v753, %v755
    %v765 = vsel %vm257, %v755, %v757
    %v766 = vsel %vm257, %v759, %v761
    %v767 = vsel %vm257, %v761, %v763
    %768 = vrot.lane.b32.xlu0 %v708, 124
    %v769 = vpop.permute.xlu0 %768
    %770 = vrot.lane.b32.xlu0 %v709, 124
    %v771 = vpop.permute.xlu0 %770
    %772 = vrot.lane.b32.xlu0 %v710, 124
    %v773 = vpop.permute.xlu0 %772
    %774 = vrot.lane.b32.xlu0 %v711, 124
    %v775 = vpop.permute.xlu0 %774
    %776 = vrot.lane.b32.xlu0 %v712, 124
    %v777 = vpop.permute.xlu0 %776
    %778 = vrot.lane.b32.xlu0 %v713, 124
    %v779 = vpop.permute.xlu0 %778
    %v780 = vsel %vm274, %v769, %v771
    %v781 = vsel %vm274, %v771, %v773
    %v782 = vsel %vm274, %v775, %v777
    %v783 = vsel %vm274, %v777, %v779
    %784 = vrot.lane.b32.xlu0 %v708, 123
    %v785 = vpop.permute.xlu0 %784
    %786 = vrot.lane.b32.xlu0 %v709, 123
    %v787 = vpop.permute.xlu0 %786
    %788 = vrot.lane.b32.xlu0 %v710, 123
    %v789 = vpop.permute.xlu0 %788
    %790 = vrot.lane.b32.xlu0 %v711, 123
    %v791 = vpop.permute.xlu0 %790
    %792 = vrot.lane.b32.xlu0 %v712, 123
    %v793 = vpop.permute.xlu0 %792
    %794 = vrot.lane.b32.xlu0 %v713, 123
    %v795 = vpop.permute.xlu0 %794
    %v796 = vsel %vm291, %v785, %v787
    %v797 = vsel %vm291, %v787, %v789
    %v798 = vsel %vm291, %v791, %v793
    %v799 = vsel %vm291, %v793, %v795
    %800 = vrot.lane.b32.xlu0 %v708, 122
    %v801 = vpop.permute.xlu0 %800
    %802 = vrot.lane.b32.xlu0 %v709, 122
    %v803 = vpop.permute.xlu0 %802
    %804 = vrot.lane.b32.xlu0 %v710, 122
    %v805 = vpop.permute.xlu0 %804
    %806 = vrot.lane.b32.xlu0 %v711, 122
    %v807 = vpop.permute.xlu0 %806
    %808 = vrot.lane.b32.xlu0 %v712, 122
    %v809 = vpop.permute.xlu0 %808
    %810 = vrot.lane.b32.xlu0 %v713, 122
    %v811 = vpop.permute.xlu0 %810
    %v812 = vsel %vm308, %v801, %v803
    %v813 = vsel %vm308, %v803, %v805
    %v814 = vsel %vm308, %v807, %v809
    %v815 = vsel %vm308, %v809, %v811
    %816 = vrot.lane.b32.xlu0 %v708, 121
    %v817 = vpop.permute.xlu0 %816
    %818 = vrot.lane.b32.xlu0 %v709, 121
    %v819 = vpop.permute.xlu0 %818
    %820 = vrot.lane.b32.xlu0 %v710, 121
    %v821 = vpop.permute.xlu0 %820
    %822 = vrot.lane.b32.xlu0 %v711, 121
    %v823 = vpop.permute.xlu0 %822
    %824 = vrot.lane.b32.xlu0 %v712, 121
    %v825 = vpop.permute.xlu0 %824
    %826 = vrot.lane.b32.xlu0 %v713, 121
    %v827 = vpop.permute.xlu0 %826
    %v828 = vsel %vm325, %v817, %v819
    %v829 = vsel %vm325, %v819, %v821
    %v830 = vsel %vm325, %v823, %v825
    %v831 = vsel %vm325, %v825, %v827
    %832 = vrot.lane.b32.xlu0 %v708, 120
    %v833 = vpop.permute.xlu0 %832
    %834 = vrot.lane.b32.xlu0 %v709, 120
    %v835 = vpop.permute.xlu0 %834
    %836 = vrot.lane.b32.xlu0 %v710, 120
    %v837 = vpop.permute.xlu0 %836
    %838 = vrot.lane.b32.xlu0 %v711, 120
    %v839 = vpop.permute.xlu0 %838
    %840 = vrot.lane.b32.xlu0 %v712, 120
    %v841 = vpop.permute.xlu0 %840
    %842 = vrot.lane.b32.xlu0 %v713, 120
    %v843 = vpop.permute.xlu0 %842
    %v844 = vsel %vm342, %v833, %v835
    %v845 = vsel %vm342, %v835, %v837
    %v846 = vsel %vm342, %v839, %v841
    %v847 = vsel %vm342, %v841, %v843
    %848 = vrot.lane.b32.xlu0 %v708, 119
    %v849 = vpop.permute.xlu0 %848
    %850 = vrot.lane.b32.xlu0 %v709, 119
    %v851 = vpop.permute.xlu0 %850
    %852 = vrot.lane.b32.xlu0 %v710, 119
    %v853 = vpop.permute.xlu0 %852
    %854 = vrot.lane.b32.xlu0 %v711, 119
    %v855 = vpop.permute.xlu0 %854
    %856 = vrot.lane.b32.xlu0 %v712, 119
    %v857 = vpop.permute.xlu0 %856
    %858 = vrot.lane.b32.xlu0 %v713, 119
    %v859 = vpop.permute.xlu0 %858
    %v860 = vsel %vm359, %v849, %v851
    %v861 = vsel %vm359, %v851, %v853
    %v862 = vsel %vm359, %v855, %v857
    %v863 = vsel %vm359, %v857, %v859
    %864 = vrot.lane.b32.xlu0 %v709, 118
    %v865 = vpop.permute.xlu0 %864
    %866 = vrot.lane.b32.xlu0 %v710, 118
    %v867 = vpop.permute.xlu0 %866
    %868 = vrot.lane.b32.xlu0 %v712, 118
    %v869 = vpop.permute.xlu0 %868
    %870 = vrot.lane.b32.xlu0 %v713, 118
    %v871 = vpop.permute.xlu0 %870
    %v872 = vsel %vm372, %v865, %v867
    %v873 = vsel %vm372, %v869, %v871
    %s874 = scalar_lea.vmem [#allocation3], 32
    %v875 = vld [vmem:[%s874] sm:$0xff]
    %v876 = vld [vmem:[%s874 + $0x8] sm:$0xff]
    %v877 = vld [vmem:[%s874 + $0x10] sm:$0xff]
    %v878 = vld [vmem:[%s874 + $0x18] sm:$0xff]
    %s879 = scalar_lea.vmem %s2, 16
    %v880 = vld [vmem:[%s879] sm:$0xff]
    %v881 = vld [vmem:[%s879 + $0x8] sm:$0xff]
    %883 = vset.pattern.permute.xlu0 0
    %884 = vperm.xlu0 %883, %v880
    %v885 = vpop.permute.xlu0 %884
    %888 = vset.pattern.permute.xlu0 0
    %889 = vperm.xlu0 %888, %v881
    %v890 = vpop.permute.xlu0 %889
    %892 = vrot.lane.b32.xlu0 %v708, 10
    %v893 = vpop.permute.xlu0 %892
    %894 = vrot.lane.b32.xlu0 %v709, 10
    %v895 = vpop.permute.xlu0 %894
    %896 = vrot.lane.b32.xlu0 %v710, 10
    %v897 = vpop.permute.xlu0 %896
    %898 = vrot.lane.b32.xlu0 %v711, 10
    %v899 = vpop.permute.xlu0 %898
    %900 = vrot.lane.b32.xlu0 %v712, 10
    %v901 = vpop.permute.xlu0 %900
    %902 = vrot.lane.b32.xlu0 %v713, 10
    %v903 = vpop.permute.xlu0 %902
    %904 = vrot.lane.b32.xlu0 %v732, 10
    %v905 = vpop.permute.xlu0 %904
    %906 = vrot.lane.b32.xlu0 %v733, 10
    %v907 = vpop.permute.xlu0 %906
    %908 = vrot.lane.b32.xlu0 %v725, 10
    %v909 = vpop.permute.xlu0 %908
    %910 = vrot.lane.b32.xlu0 %v734, 10
    %v911 = vpop.permute.xlu0 %910
    %912 = vrot.lane.b32.xlu0 %v735, 10
    %v913 = vpop.permute.xlu0 %912
    %914 = vrot.lane.b32.xlu0 %v731, 10
    %v915 = vpop.permute.xlu0 %914
    %916 = vrot.lane.b32.xlu0 %v748, 10
    %v917 = vpop.permute.xlu0 %916
    %918 = vrot.lane.b32.xlu0 %v749, 10
    %v919 = vpop.permute.xlu0 %918
    %920 = vrot.lane.b32.xlu0 %v741, 10
    %v921 = vpop.permute.xlu0 %920
    %922 = vrot.lane.b32.xlu0 %v750, 10
    %v923 = vpop.permute.xlu0 %922
    %924 = vrot.lane.b32.xlu0 %v751, 10
    %v925 = vpop.permute.xlu0 %924
    %926 = vrot.lane.b32.xlu0 %v747, 10
    %v927 = vpop.permute.xlu0 %926
    %928 = vrot.lane.b32.xlu0 %v764, 10
    %v929 = vpop.permute.xlu0 %928
    %930 = vrot.lane.b32.xlu0 %v765, 10
    %v931 = vpop.permute.xlu0 %930
    %932 = vrot.lane.b32.xlu0 %v757, 10
    %v933 = vpop.permute.xlu0 %932
    %934 = vrot.lane.b32.xlu0 %v766, 10
    %v935 = vpop.permute.xlu0 %934
    %936 = vrot.lane.b32.xlu0 %v767, 10
    %v937 = vpop.permute.xlu0 %936
    %938 = vrot.lane.b32.xlu0 %v763, 10
    %v939 = vpop.permute.xlu0 %938
    %940 = vrot.lane.b32.xlu0 %v780, 10
    %v941 = vpop.permute.xlu0 %940
    %942 = vrot.lane.b32.xlu0 %v781, 10
    %v943 = vpop.permute.xlu0 %942
    %944 = vrot.lane.b32.xlu0 %v773, 10
    %v945 = vpop.permute.xlu0 %944
    %946 = vrot.lane.b32.xlu0 %v782, 10
    %v947 = vpop.permute.xlu0 %946
    %948 = vrot.lane.b32.xlu0 %v783, 10
    %v949 = vpop.permute.xlu0 %948
    %950 = vrot.lane.b32.xlu0 %v779, 10
    %v951 = vpop.permute.xlu0 %950
    %952 = vrot.lane.b32.xlu0 %v796, 10
    %v953 = vpop.permute.xlu0 %952
    %954 = vrot.lane.b32.xlu0 %v797, 10
    %v955 = vpop.permute.xlu0 %954
    %956 = vrot.lane.b32.xlu0 %v789, 10
    %v957 = vpop.permute.xlu0 %956
    %958 = vrot.lane.b32.xlu0 %v798, 10
    %v959 = vpop.permute.xlu0 %958
    %960 = vrot.lane.b32.xlu0 %v799, 10
    %v961 = vpop.permute.xlu0 %960
    %962 = vrot.lane.b32.xlu0 %v795, 10
    %v963 = vpop.permute.xlu0 %962
    %964 = vrot.lane.b32.xlu0 %v812, 10
    %v965 = vpop.permute.xlu0 %964
    %966 = vrot.lane.b32.xlu0 %v813, 10
    %v967 = vpop.permute.xlu0 %966
    %968 = vrot.lane.b32.xlu0 %v805, 10
    %v969 = vpop.permute.xlu0 %968
    %970 = vrot.lane.b32.xlu0 %v814, 10
    %v971 = vpop.permute.xlu0 %970
    %972 = vrot.lane.b32.xlu0 %v815, 10
    %v973 = vpop.permute.xlu0 %972
    %974 = vrot.lane.b32.xlu0 %v811, 10
    %v975 = vpop.permute.xlu0 %974
    %976 = vrot.lane.b32.xlu0 %v828, 10
    %v977 = vpop.permute.xlu0 %976
    %978 = vrot.lane.b32.xlu0 %v829, 10
    %v979 = vpop.permute.xlu0 %978
    %980 = vrot.lane.b32.xlu0 %v821, 10
    %v981 = vpop.permute.xlu0 %980
    %982 = vrot.lane.b32.xlu0 %v830, 10
    %v983 = vpop.permute.xlu0 %982
    %984 = vrot.lane.b32.xlu0 %v831, 10
    %v985 = vpop.permute.xlu0 %984
    %986 = vrot.lane.b32.xlu0 %v827, 10
    %v987 = vpop.permute.xlu0 %986
    %988 = vrot.lane.b32.xlu0 %v844, 10
    %v989 = vpop.permute.xlu0 %988
    %990 = vrot.lane.b32.xlu0 %v845, 10
    %v991 = vpop.permute.xlu0 %990
    %992 = vrot.lane.b32.xlu0 %v837, 10
    %v993 = vpop.permute.xlu0 %992
    %994 = vrot.lane.b32.xlu0 %v846, 10
    %v995 = vpop.permute.xlu0 %994
    %996 = vrot.lane.b32.xlu0 %v847, 10
    %v997 = vpop.permute.xlu0 %996
    %998 = vrot.lane.b32.xlu0 %v843, 10
    %v999 = vpop.permute.xlu0 %998
    %1000 = vrot.lane.b32.xlu0 %v860, 10
    %v1001 = vpop.permute.xlu0 %1000
    %1002 = vrot.lane.b32.xlu0 %v861, 10
    %v1003 = vpop.permute.xlu0 %1002
    %1004 = vrot.lane.b32.xlu0 %v853, 10
    %v1005 = vpop.permute.xlu0 %1004
    %1006 = vrot.lane.b32.xlu0 %v862, 10
    %v1007 = vpop.permute.xlu0 %1006
    %1008 = vrot.lane.b32.xlu0 %v863, 10
    %v1009 = vpop.permute.xlu0 %1008
    %1010 = vrot.lane.b32.xlu0 %v859, 10
    %v1011 = vpop.permute.xlu0 %1010
    %1012 = vrot.lane.b32.xlu0 %v865, 10
    %v1013 = vpop.permute.xlu0 %1012
    %1014 = vrot.lane.b32.xlu0 %v872, 10
    %v1015 = vpop.permute.xlu0 %1014
    %1016 = vrot.lane.b32.xlu0 %v867, 10
    %v1017 = vpop.permute.xlu0 %1016
    %1018 = vrot.lane.b32.xlu0 %v869, 10
    %v1019 = vpop.permute.xlu0 %1018
    %1020 = vrot.lane.b32.xlu0 %v873, 10
    %v1021 = vpop.permute.xlu0 %1020
    %1022 = vrot.lane.b32.xlu0 %v871, 10
    %v1023 = vpop.permute.xlu0 %1022
    %v1024 = vsel %vm523, %v893, %v895
    %v1025 = vsel %vm523, %v895, %v897
    %v1026 = vsel %vm523, %v899, %v901
    %v1027 = vsel %vm523, %v901, %v903
    %v1028 = vsel %vm523, %v905, %v907
    %v1029 = vsel %vm523, %v907, %v909
    %v1030 = vsel %vm523, %v911, %v913
    %v1031 = vsel %vm523, %v913, %v915
    %v1032 = vsel %vm523, %v917, %v919
    %v1033 = vsel %vm523, %v919, %v921
    %v1034 = vsel %vm523, %v923, %v925
    %v1035 = vsel %vm523, %v925, %v927
    %v1036 = vsel %vm523, %v929, %v931
    %v1037 = vsel %vm523, %v931, %v933
    %v1038 = vsel %vm523, %v935, %v937
    %v1039 = vsel %vm523, %v937, %v939
    %v1040 = vsel %vm523, %v941, %v943
    %v1041 = vsel %vm523, %v943, %v945
    %v1042 = vsel %vm523, %v947, %v949
    %v1043 = vsel %vm523, %v949, %v951
    %v1044 = vsel %vm523, %v953, %v955
    %v1045 = vsel %vm523, %v955, %v957
    %v1046 = vsel %vm523, %v959, %v961
    %v1047 = vsel %vm523, %v961, %v963
    %v1048 = vsel %vm523, %v965, %v967
    %v1049 = vsel %vm523, %v967, %v969
    %v1050 = vsel %vm523, %v971, %v973
    %v1051 = vsel %vm523, %v973, %v975
    %v1052 = vsel %vm523, %v977, %v979
    %v1053 = vsel %vm523, %v979, %v981
    %v1054 = vsel %vm523, %v983, %v985
    %v1055 = vsel %vm523, %v985, %v987
    %v1056 = vsel %vm523, %v989, %v991
    %v1057 = vsel %vm523, %v991, %v993
    %v1058 = vsel %vm523, %v995, %v997
    %v1059 = vsel %vm523, %v997, %v999
    %v1060 = vsel %vm523, %v1001, %v1003
    %v1061 = vsel %vm523, %v1003, %v1005
    %v1062 = vsel %vm523, %v1007, %v1009
    %v1063 = vsel %vm523, %v1009, %v1011
    %v1064 = vsel %vm523, %v1013, %v1015
    %v1065 = vsel %vm523, %v1015, %v1017
    %v1066 = vsel %vm523, %v1019, %v1021
    %v1067 = vsel %vm523, %v1021, %v1023
    %v1113 = vsel %vm612, %v876, 0
    %v1116 = vsel %vm612, %v878, 0
    %1118 = vmatprep.subr.mxu0 %v1055
    %1119 = vmatpush1.msra.mxu0 %v1054
    %1120 = vmatprep.subr.mxu0 %v1053
    %1121 = vmatpush1.msra.mxu0 %v1052
    %1122 = vmatprep.subr.mxu0 %v1051
    %1123 = vmatpush1.msra.mxu0 %v1050
    %1124 = vmatprep.subr.mxu0 %v1049
    %1125 = vmatpush1.msra.mxu0 %v1048
    %1126 = vmatprep.subr.mxu0 %v1047
    %1127 = vmatpush1.msra.mxu0 %v1046
    %1128 = vmatprep.subr.mxu0 %v1045
    %1129 = vmatpush1.msra.mxu0 %v1044
    %1130 = vmatprep.subr.mxu0 %v1043
    %1131 = vmatpush1.msra.mxu0 %v1042
    %1132 = vmatprep.subr.mxu0 %v1041
    %1133 = vmatpush1.msra.mxu0 %v1040
    %1134 = vmatprep.subr.mxu0 %v1039
    %1135 = vmatpush1.msra.mxu0 %v1038
    %1136 = vmatprep.subr.mxu0 %v1037
    %1137 = vmatpush1.msra.mxu0 %v1036
    %1138 = vmatprep.subr.mxu0 %v1035
    %1139 = vmatpush1.msra.mxu0 %v1034
    %1140 = vmatprep.subr.mxu0 %v1033
    %1141 = vmatpush1.msra.mxu0 %v1032
    %1142 = vmatprep.subr.mxu0 %v1031
    %1143 = vmatpush1.msra.mxu0 %v1030
    %1144 = vmatprep.subr.mxu0 %v1029
    %1145 = vmatpush1.msra.mxu0 %v1028
    %1146 = vmatprep.subr.mxu0 %v1027
    %1147 = vmatpush1.msra.mxu0 %v1026
    %1148 = vmatprep.subr.mxu0 %v1025
    %1149 = vmatpush1.msra.mxu0 %v1024
    %1150 = vmatprep.subr.mxu0 0.0
    %1151 = vmatpush2.msra.mxu0 0.0
    %1152 = vmatprep.subr.mxu0 0.0
    %1153 = vmatpush2.msra.mxu0 0.0
    %1154 = vmatprep.subr.mxu0 0.0
    %1155 = vmatpush2.msra.mxu0 0.0
    %1156 = vmatprep.subr.mxu0 0.0
    %1157 = vmatpush2.msra.mxu0 0.0
    %1158 = vmatprep.subr.mxu0 0.0
    %1159 = vmatpush2.msra.mxu0 0.0
    %1160 = vmatprep.subr.mxu0 0.0
    %1161 = vmatpush2.msra.mxu0 0.0
    %1162 = vmatprep.subr.mxu0 0.0
    %1163 = vmatpush2.msra.mxu0 0.0
    %1164 = vmatprep.subr.mxu0 0.0
    %1165 = vmatpush2.msra.mxu0 0.0
    %1166 = vmatprep.subr.mxu0 0.0
    %1167 = vmatpush2.msra.mxu0 0.0
    %1168 = vmatprep.subr.mxu0 0.0
    %1169 = vmatpush2.msra.mxu0 0.0
    %1170 = vmatprep.subr.mxu0 %v1067
    %1171 = vmatpush2.msra.mxu0 %v1066
    %1172 = vmatprep.subr.mxu0 %v1065
    %1173 = vmatpush2.msra.mxu0 %v1064
    %1174 = vmatprep.subr.mxu0 %v1063
    %1175 = vmatpush2.msra.mxu0 %v1062
    %1176 = vmatprep.subr.mxu0 %v1061
    %1177 = vmatpush2.msra.mxu0 %v1060
    %1178 = vmatprep.subr.mxu0 %v1059
    %1179 = vmatpush2.msra.mxu0 %v1058
    %1180 = vmatprep.subr.mxu0 %v1057
    %1181 = vmatpush2.msra.mxu0 %v1056
    %1182 = vmatprep.mubr.f32.mxu0 %v1113
    %1183 = vmatmul.mubr.f32.gmra.mxu0 %v875
    %v1184 = vpop.f32.mrf.mxu0
    %v1185 = vadd.f32 %v885, %v1184
    %v1186 = vpop.f32.mrf.mxu0
    %v1187 = vadd.f32 %v885, %v1186
    %1188 = vmatprep.mubr.f32.mxu0 %v1116
    %1189 = vmatmul.mubr.f32.gmra.mxu0 %v877
    %v1190 = vpop.f32.mrf.mxu0
    %v1191 = vadd.f32 %v890, %v1190
    %v1192 = vpop.f32.mrf.mxu0
    %v1193 = vadd.f32 %v890, %v1192
    %1194 = vdwg.mxu0
    %v1195 = vtanh.pop %v1185
    %v1196 = vtanh.pop %v1187
    %v1197 = vtanh.pop %v1191
    %v1198 = vtanh.pop %v1193
    %v1199 = vadd.f32 %v1195, %v185
    %v1200 = vadd.f32 %v1196, %v187
    %v1201 = vadd.f32 %v1197, %v191
    %v1202 = vadd.f32 %v1198, %v193
    %v1203 = vtanh.pop %v1199
    %v1204 = vtanh.pop %v1200
    %v1205 = vtanh.pop %v1201
    %v1206 = vtanh.pop %v1202
    %v1207 = vsel %vm91, %v1203, 0.0
    %v1208 = vsel %vm92, %v1204, 0.0
    %v1209 = vsel %vm91, %v1205, 0.0
    %v1210 = vsel %vm92, %v1206, 0.0
    %1211 = vst [vmem:[#allocation2 + $0x8] sm:$0xff] %v1207
    %1212 = vst [vmem:[#allocation2 + $0x10] sm:$0xff] %v1208
    %1213 = vst [vmem:[#allocation2 + $0x20] sm:$0xff] %v1209
    %1214 = vst [vmem:[#allocation2 + $0x28] sm:$0xff] %v1210
    %v1215 = vld [vmem:[#allocation2] sm:$0xff]
    %v1216 = vld [vmem:[#allocation2 + $0x8] sm:$0xff]
    %v1217 = vld [vmem:[#allocation2 + $0x10] sm:$0xff]
    %v1218 = vld [vmem:[#allocation2 + $0x18] sm:$0xff]
    %v1219 = vld [vmem:[#allocation2 + $0x20] sm:$0xff]
    %v1220 = vld [vmem:[#allocation2 + $0x28] sm:$0xff]
    %1227 = vrot.lane.b32.xlu0 %v1215, 126
    %v1228 = vpop.permute.xlu0 %1227
    %1229 = vrot.lane.b32.xlu0 %v1216, 126
    %v1230 = vpop.permute.xlu0 %1229
    %1231 = vrot.lane.b32.xlu0 %v1217, 126
    %v1232 = vpop.permute.xlu0 %1231
    %1233 = vrot.lane.b32.xlu0 %v1218, 126
    %v1234 = vpop.permute.xlu0 %1233
    %1235 = vrot.lane.b32.xlu0 %v1219, 126
    %v1236 = vpop.permute.xlu0 %1235
    %1237 = vrot.lane.b32.xlu0 %v1220, 126
    %v1238 = vpop.permute.xlu0 %1237
    %v1239 = vsel %vm240, %v1228, %v1230
    %v1240 = vsel %vm240, %v1230, %v1232
    %v1241 = vsel %vm240, %v1234, %v1236
    %v1242 = vsel %vm240, %v1236, %v1238
    %1243 = vrot.lane.b32.xlu0 %v1215, 124
    %v1244 = vpop.permute.xlu0 %1243
    %1245 = vrot.lane.b32.xlu0 %v1216, 124
    %v1246 = vpop.permute.xlu0 %1245
    %1247 = vrot.lane.b32.xlu0 %v1217, 124
    %v1248 = vpop.permute.xlu0 %1247
    %1249 = vrot.lane.b32.xlu0 %v1218, 124
    %v1250 = vpop.permute.xlu0 %1249
    %1251 = vrot.lane.b32.xlu0 %v1219, 124
    %v1252 = vpop.permute.xlu0 %1251
    %1253 = vrot.lane.b32.xlu0 %v1220, 124
    %v1254 = vpop.permute.xlu0 %1253
    %v1255 = vsel %vm274, %v1244, %v1246
    %v1256 = vsel %vm274, %v1246, %v1248
    %v1257 = vsel %vm274, %v1250, %v1252
    %v1258 = vsel %vm274, %v1252, %v1254
    %1259 = vrot.lane.b32.xlu0 %v1215, 122
    %v1260 = vpop.permute.xlu0 %1259
    %1261 = vrot.lane.b32.xlu0 %v1216, 122
    %v1262 = vpop.permute.xlu0 %1261
    %1263 = vrot.lane.b32.xlu0 %v1217, 122
    %v1264 = vpop.permute.xlu0 %1263
    %1265 = vrot.lane.b32.xlu0 %v1218, 122
    %v1266 = vpop.permute.xlu0 %1265
    %1267 = vrot.lane.b32.xlu0 %v1219, 122
    %v1268 = vpop.permute.xlu0 %1267
    %1269 = vrot.lane.b32.xlu0 %v1220, 122
    %v1270 = vpop.permute.xlu0 %1269
    %v1271 = vsel %vm308, %v1260, %v1262
    %v1272 = vsel %vm308, %v1262, %v1264
    %v1273 = vsel %vm308, %v1266, %v1268
    %v1274 = vsel %vm308, %v1268, %v1270
    %1275 = vrot.lane.b32.xlu0 %v1215, 120
    %v1276 = vpop.permute.xlu0 %1275
    %1277 = vrot.lane.b32.xlu0 %v1216, 120
    %v1278 = vpop.permute.xlu0 %1277
    %1279 = vrot.lane.b32.xlu0 %v1217, 120
    %v1280 = vpop.permute.xlu0 %1279
    %1281 = vrot.lane.b32.xlu0 %v1218, 120
    %v1282 = vpop.permute.xlu0 %1281
    %1283 = vrot.lane.b32.xlu0 %v1219, 120
    %v1284 = vpop.permute.xlu0 %1283
    %1285 = vrot.lane.b32.xlu0 %v1220, 120
    %v1286 = vpop.permute.xlu0 %1285
    %v1287 = vsel %vm342, %v1276, %v1278
    %v1288 = vsel %vm342, %v1278, %v1280
    %v1289 = vsel %vm342, %v1282, %v1284
    %v1290 = vsel %vm342, %v1284, %v1286
    %1291 = vrot.lane.b32.xlu0 %v1215, 118
    %v1292 = vpop.permute.xlu0 %1291
    %1293 = vrot.lane.b32.xlu0 %v1216, 118
    %v1294 = vpop.permute.xlu0 %1293
    %1295 = vrot.lane.b32.xlu0 %v1217, 118
    %v1296 = vpop.permute.xlu0 %1295
    %1297 = vrot.lane.b32.xlu0 %v1218, 118
    %v1298 = vpop.permute.xlu0 %1297
    %1299 = vrot.lane.b32.xlu0 %v1219, 118
    %v1300 = vpop.permute.xlu0 %1299
    %1301 = vrot.lane.b32.xlu0 %v1220, 118
    %v1302 = vpop.permute.xlu0 %1301
    %v1303 = vsel %vm372, %v1292, %v1294
    %v1304 = vsel %vm372, %v1294, %v1296
    %v1305 = vsel %vm372, %v1298, %v1300
    %v1306 = vsel %vm372, %v1300, %v1302
    %1307 = vrot.lane.b32.xlu0 %v1215, 116
    %v1308 = vpop.permute.xlu0 %1307
    %1309 = vrot.lane.b32.xlu0 %v1216, 116
    %v1310 = vpop.permute.xlu0 %1309
    %1311 = vrot.lane.b32.xlu0 %v1217, 116
    %v1312 = vpop.permute.xlu0 %1311
    %1313 = vrot.lane.b32.xlu0 %v1218, 116
    %v1314 = vpop.permute.xlu0 %1313
    %1315 = vrot.lane.b32.xlu0 %v1219, 116
    %v1316 = vpop.permute.xlu0 %1315
    %1317 = vrot.lane.b32.xlu0 %v1220, 116
    %v1318 = vpop.permute.xlu0 %1317
    %vm1319 = vcmask 949248
    %v1320 = vsel %vm1319, %v1308, %v1310
    %v1321 = vsel %vm1319, %v1310, %v1312
    %v1322 = vsel %vm1319, %v1314, %v1316
    %v1323 = vsel %vm1319, %v1316, %v1318
    %1324 = vrot.lane.b32.xlu0 %v1215, 114
    %v1325 = vpop.permute.xlu0 %1324
    %1326 = vrot.lane.b32.xlu0 %v1216, 114
    %v1327 = vpop.permute.xlu0 %1326
    %1328 = vrot.lane.b32.xlu0 %v1217, 114
    %v1329 = vpop.permute.xlu0 %1328
    %1330 = vrot.lane.b32.xlu0 %v1218, 114
    %v1331 = vpop.permute.xlu0 %1330
    %1332 = vrot.lane.b32.xlu0 %v1219, 114
    %v1333 = vpop.permute.xlu0 %1332
    %1334 = vrot.lane.b32.xlu0 %v1220, 114
    %v1335 = vpop.permute.xlu0 %1334
    %vm1336 = vcmask 932864
    %v1337 = vsel %vm1336, %v1325, %v1327
    %v1338 = vsel %vm1336, %v1327, %v1329
    %v1339 = vsel %vm1336, %v1331, %v1333
    %v1340 = vsel %vm1336, %v1333, %v1335
    %1341 = vrot.lane.b32.xlu0 %v1215, 112
    %v1342 = vpop.permute.xlu0 %1341
    %1343 = vrot.lane.b32.xlu0 %v1216, 112
    %v1344 = vpop.permute.xlu0 %1343
    %1345 = vrot.lane.b32.xlu0 %v1217, 112
    %v1346 = vpop.permute.xlu0 %1345
    %1347 = vrot.lane.b32.xlu0 %v1218, 112
    %v1348 = vpop.permute.xlu0 %1347
    %1349 = vrot.lane.b32.xlu0 %v1219, 112
    %v1350 = vpop.permute.xlu0 %1349
    %1351 = vrot.lane.b32.xlu0 %v1220, 112
    %v1352 = vpop.permute.xlu0 %1351
    %vm1353 = vcmask 916480
    %v1354 = vsel %vm1353, %v1342, %v1344
    %v1355 = vsel %vm1353, %v1344, %v1346
    %v1356 = vsel %vm1353, %v1348, %v1350
    %v1357 = vsel %vm1353, %v1350, %v1352
    %1358 = vrot.lane.b32.xlu0 %v1215, 110
    %v1359 = vpop.permute.xlu0 %1358
    %1360 = vrot.lane.b32.xlu0 %v1216, 110
    %v1361 = vpop.permute.xlu0 %1360
    %1362 = vrot.lane.b32.xlu0 %v1217, 110
    %v1363 = vpop.permute.xlu0 %1362
    %1364 = vrot.lane.b32.xlu0 %v1218, 110
    %v1365 = vpop.permute.xlu0 %1364
    %1366 = vrot.lane.b32.xlu0 %v1219, 110
    %v1367 = vpop.permute.xlu0 %1366
    %1368 = vrot.lane.b32.xlu0 %v1220, 110
    %v1369 = vpop.permute.xlu0 %1368
    %vm1370 = vcmask 900096
    %v1371 = vsel %vm1370, %v1359, %v1361
    %v1372 = vsel %vm1370, %v1361, %v1363
    %v1373 = vsel %vm1370, %v1365, %v1367
    %v1374 = vsel %vm1370, %v1367, %v1369
    %1375 = vrot.lane.b32.xlu0 %v1216, 108
    %v1376 = vpop.permute.xlu0 %1375
    %1377 = vrot.lane.b32.xlu0 %v1217, 108
    %v1378 = vpop.permute.xlu0 %1377
    %1379 = vrot.lane.b32.xlu0 %v1219, 108
    %v1380 = vpop.permute.xlu0 %1379
    %1381 = vrot.lane.b32.xlu0 %v1220, 108
    %v1382 = vpop.permute.xlu0 %1381
    %vm1383 = vcmask 883712
    %v1384 = vsel %vm1383, %v1376, %v1378
    %v1385 = vsel %vm1383, %v1380, %v1382
    %s1386 = scalar_lea.vmem [#allocation3], 64
    %v1387 = vld [vmem:[%s1386] sm:$0xff]
    %v1388 = vld [vmem:[%s1386 + $0x8] sm:$0xff]
    %v1389 = vld [vmem:[%s1386 + $0x10] sm:$0xff]
    %v1390 = vld [vmem:[%s1386 + $0x18] sm:$0xff]
    %s1391 = scalar_lea.vmem %s2, 32
    %v1392 = vld [vmem:[%s1391] sm:$0xff]
    %v1393 = vld [vmem:[%s1391 + $0x8] sm:$0xff]
    %1395 = vset.pattern.permute.xlu0 0
    %1396 = vperm.xlu0 %1395, %v1392
    %v1397 = vpop.permute.xlu0 %1396
    %1400 = vset.pattern.permute.xlu0 0
    %1401 = vperm.xlu0 %1400, %v1393
    %v1402 = vpop.permute.xlu0 %1401
    %1404 = vrot.lane.b32.xlu0 %v1215, 20
    %v1405 = vpop.permute.xlu0 %1404
    %1406 = vrot.lane.b32.xlu0 %v1216, 20
    %v1407 = vpop.permute.xlu0 %1406
    %1408 = vrot.lane.b32.xlu0 %v1217, 20
    %v1409 = vpop.permute.xlu0 %1408
    %1410 = vrot.lane.b32.xlu0 %v1218, 20
    %v1411 = vpop.permute.xlu0 %1410
    %1412 = vrot.lane.b32.xlu0 %v1219, 20
    %v1413 = vpop.permute.xlu0 %1412
    %1414 = vrot.lane.b32.xlu0 %v1220, 20
    %v1415 = vpop.permute.xlu0 %1414
    %1416 = vrot.lane.b32.xlu0 %v1239, 20
    %v1417 = vpop.permute.xlu0 %1416
    %1418 = vrot.lane.b32.xlu0 %v1240, 20
    %v1419 = vpop.permute.xlu0 %1418
    %1420 = vrot.lane.b32.xlu0 %v1232, 20
    %v1421 = vpop.permute.xlu0 %1420
    %1422 = vrot.lane.b32.xlu0 %v1241, 20
    %v1423 = vpop.permute.xlu0 %1422
    %1424 = vrot.lane.b32.xlu0 %v1242, 20
    %v1425 = vpop.permute.xlu0 %1424
    %1426 = vrot.lane.b32.xlu0 %v1238, 20
    %v1427 = vpop.permute.xlu0 %1426
    %1428 = vrot.lane.b32.xlu0 %v1255, 20
    %v1429 = vpop.permute.xlu0 %1428
    %1430 = vrot.lane.b32.xlu0 %v1256, 20
    %v1431 = vpop.permute.xlu0 %1430
    %1432 = vrot.lane.b32.xlu0 %v1248, 20
    %v1433 = vpop.permute.xlu0 %1432
    %1434 = vrot.lane.b32.xlu0 %v1257, 20
    %v1435 = vpop.permute.xlu0 %1434
    %1436 = vrot.lane.b32.xlu0 %v1258, 20
    %v1437 = vpop.permute.xlu0 %1436
    %1438 = vrot.lane.b32.xlu0 %v1254, 20
    %v1439 = vpop.permute.xlu0 %1438
    %1440 = vrot.lane.b32.xlu0 %v1271, 20
    %v1441 = vpop.permute.xlu0 %1440
    %1442 = vrot.lane.b32.xlu0 %v1272, 20
    %v1443 = vpop.permute.xlu0 %1442
    %1444 = vrot.lane.b32.xlu0 %v1264, 20
    %v1445 = vpop.permute.xlu0 %1444
    %1446 = vrot.lane.b32.xlu0 %v1273, 20
    %v1447 = vpop.permute.xlu0 %1446
    %1448 = vrot.lane.b32.xlu0 %v1274, 20
    %v1449 = vpop.permute.xlu0 %1448
    %1450 = vrot.lane.b32.xlu0 %v1270, 20
    %v1451 = vpop.permute.xlu0 %1450
    %1452 = vrot.lane.b32.xlu0 %v1287, 20
    %v1453 = vpop.permute.xlu0 %1452
    %1454 = vrot.lane.b32.xlu0 %v1288, 20
    %v1455 = vpop.permute.xlu0 %1454
    %1456 = vrot.lane.b32.xlu0 %v1280, 20
    %v1457 = vpop.permute.xlu0 %1456
    %1458 = vrot.lane.b32.xlu0 %v1289, 20
    %v1459 = vpop.permute.xlu0 %1458
    %1460 = vrot.lane.b32.xlu0 %v1290, 20
    %v1461 = vpop.permute.xlu0 %1460
    %1462 = vrot.lane.b32.xlu0 %v1286, 20
    %v1463 = vpop.permute.xlu0 %1462
    %1464 = vrot.lane.b32.xlu0 %v1303, 20
    %v1465 = vpop.permute.xlu0 %1464
    %1466 = vrot.lane.b32.xlu0 %v1304, 20
    %v1467 = vpop.permute.xlu0 %1466
    %1468 = vrot.lane.b32.xlu0 %v1296, 20
    %v1469 = vpop.permute.xlu0 %1468
    %1470 = vrot.lane.b32.xlu0 %v1305, 20
    %v1471 = vpop.permute.xlu0 %1470
    %1472 = vrot.lane.b32.xlu0 %v1306, 20
    %v1473 = vpop.permute.xlu0 %1472
    %1474 = vrot.lane.b32.xlu0 %v1302, 20
    %v1475 = vpop.permute.xlu0 %1474
    %1476 = vrot.lane.b32.xlu0 %v1320, 20
    %v1477 = vpop.permute.xlu0 %1476
    %1478 = vrot.lane.b32.xlu0 %v1321, 20
    %v1479 = vpop.permute.xlu0 %1478
    %1480 = vrot.lane.b32.xlu0 %v1312, 20
    %v1481 = vpop.permute.xlu0 %1480
    %1482 = vrot.lane.b32.xlu0 %v1322, 20
    %v1483 = vpop.permute.xlu0 %1482
    %1484 = vrot.lane.b32.xlu0 %v1323, 20
    %v1485 = vpop.permute.xlu0 %1484
    %1486 = vrot.lane.b32.xlu0 %v1318, 20
    %v1487 = vpop.permute.xlu0 %1486
    %1488 = vrot.lane.b32.xlu0 %v1337, 20
    %v1489 = vpop.permute.xlu0 %1488
    %1490 = vrot.lane.b32.xlu0 %v1338, 20
    %v1491 = vpop.permute.xlu0 %1490
    %1492 = vrot.lane.b32.xlu0 %v1329, 20
    %v1493 = vpop.permute.xlu0 %1492
    %1494 = vrot.lane.b32.xlu0 %v1339, 20
    %v1495 = vpop.permute.xlu0 %1494
    %1496 = vrot.lane.b32.xlu0 %v1340, 20
    %v1497 = vpop.permute.xlu0 %1496
    %1498 = vrot.lane.b32.xlu0 %v1335, 20
    %v1499 = vpop.permute.xlu0 %1498
    %1500 = vrot.lane.b32.xlu0 %v1354, 20
    %v1501 = vpop.permute.xlu0 %1500
    %1502 = vrot.lane.b32.xlu0 %v1355, 20
    %v1503 = vpop.permute.xlu0 %1502
    %1504 = vrot.lane.b32.xlu0 %v1346, 20
    %v1505 = vpop.permute.xlu0 %1504
    %1506 = vrot.lane.b32.xlu0 %v1356, 20
    %v1507 = vpop.permute.xlu0 %1506
    %1508 = vrot.lane.b32.xlu0 %v1357, 20
    %v1509 = vpop.permute.xlu0 %1508
    %1510 = vrot.lane.b32.xlu0 %v1352, 20
    %v1511 = vpop.permute.xlu0 %1510
    %1512 = vrot.lane.b32.xlu0 %v1371, 20
    %v1513 = vpop.permute.xlu0 %1512
    %1514 = vrot.lane.b32.xlu0 %v1372, 20
    %v1515 = vpop.permute.xlu0 %1514
    %1516 = vrot.lane.b32.xlu0 %v1363, 20
    %v1517 = vpop.permute.xlu0 %1516
    %1518 = vrot.lane.b32.xlu0 %v1373, 20
    %v1519 = vpop.permute.xlu0 %1518
    %1520 = vrot.lane.b32.xlu0 %v1374, 20
    %v1521 = vpop.permute.xlu0 %1520
    %1522 = vrot.lane.b32.xlu0 %v1369, 20
    %v1523 = vpop.permute.xlu0 %1522
    %1524 = vrot.lane.b32.xlu0 %v1376, 20
    %v1525 = vpop.permute.xlu0 %1524
    %1526 = vrot.lane.b32.xlu0 %v1384, 20
    %v1527 = vpop.permute.xlu0 %1526
    %1528 = vrot.lane.b32.xlu0 %v1378, 20
    %v1529 = vpop.permute.xlu0 %1528
    %1530 = vrot.lane.b32.xlu0 %v1380, 20
    %v1531 = vpop.permute.xlu0 %1530
    %1532 = vrot.lane.b32.xlu0 %v1385, 20
    %v1533 = vpop.permute.xlu0 %1532
    %1534 = vrot.lane.b32.xlu0 %v1382, 20
    %v1535 = vpop.permute.xlu0 %1534
    %vm1536 = vcmask 162816
    %v1537 = vsel %vm1536, %v1405, %v1407
    %v1538 = vsel %vm1536, %v1407, %v1409
    %v1539 = vsel %vm1536, %v1411, %v1413
    %v1540 = vsel %vm1536, %v1413, %v1415
    %v1541 = vsel %vm1536, %v1417, %v1419
    %v1542 = vsel %vm1536, %v1419, %v1421
    %v1543 = vsel %vm1536, %v1423, %v1425
    %v1544 = vsel %vm1536, %v1425, %v1427
    %v1545 = vsel %vm1536, %v1429, %v1431
    %v1546 = vsel %vm1536, %v1431, %v1433
    %v1547 = vsel %vm1536, %v1435, %v1437
    %v1548 = vsel %vm1536, %v1437, %v1439
    %v1549 = vsel %vm1536, %v1441, %v1443
    %v1550 = vsel %vm1536, %v1443, %v1445
    %v1551 = vsel %vm1536, %v1447, %v1449
    %v1552 = vsel %vm1536, %v1449, %v1451
    %v1553 = vsel %vm1536, %v1453, %v1455
    %v1554 = vsel %vm1536, %v1455, %v1457
    %v1555 = vsel %vm1536, %v1459, %v1461
    %v1556 = vsel %vm1536, %v1461, %v1463
    %v1557 = vsel %vm1536, %v1465, %v1467
    %v1558 = vsel %vm1536, %v1467, %v1469
    %v1559 = vsel %vm1536, %v1471, %v1473
    %v1560 = vsel %vm1536, %v1473, %v1475
    %v1561 = vsel %vm1536, %v1477, %v1479
    %v1562 = vsel %vm1536, %v1479, %v1481
    %v1563 = vsel %vm1536, %v1483, %v1485
    %v1564 = vsel %vm1536, %v1485, %v1487
    %v1565 = vsel %vm1536, %v1489, %v1491
    %v1566 = vsel %vm1536, %v1491, %v1493
    %v1567 = vsel %vm1536, %v1495, %v1497
    %v1568 = vsel %vm1536, %v1497, %v1499
    %v1569 = vsel %vm1536, %v1501, %v1503
    %v1570 = vsel %vm1536, %v1503, %v1505
    %v1571 = vsel %vm1536, %v1507, %v1509
    %v1572 = vsel %vm1536, %v1509, %v1511
    %v1573 = vsel %vm1536, %v1513, %v1515
    %v1574 = vsel %vm1536, %v1515, %v1517
    %v1575 = vsel %vm1536, %v1519, %v1521
    %v1576 = vsel %vm1536, %v1521, %v1523
    %v1577 = vsel %vm1536, %v1525, %v1527
    %v1578 = vsel %vm1536, %v1527, %v1529
    %v1579 = vsel %vm1536, %v1531, %v1533
    %v1580 = vsel %vm1536, %v1533, %v1535
    %v1626 = vsel %vm612, %v1388, 0
    %v1629 = vsel %vm612, %v1390, 0
    %1631 = vmatprep.subr.mxu0 %v1568
    %1632 = vmatpush1.msra.mxu0 %v1567
    %1633 = vmatprep.subr.mxu0 %v1566
    %1634 = vmatpush1.msra.mxu0 %v1565
    %1635 = vmatprep.subr.mxu0 %v1564
    %1636 = vmatpush1.msra.mxu0 %v1563
    %1637 = vmatprep.subr.mxu0 %v1562
    %1638 = vmatpush1.msra.mxu0 %v1561
    %1639 = vmatprep.subr.mxu0 %v1560
    %1640 = vmatpush1.msra.mxu0 %v1559
    %1641 = vmatprep.subr.mxu0 %v1558
    %1642 = vmatpush1.msra.mxu0 %v1557
    %1643 = vmatprep.subr.mxu0 %v1556
    %1644 = vmatpush1.msra.mxu0 %v1555
    %1645 = vmatprep.subr.mxu0 %v1554
    %1646 = vmatpush1.msra.mxu0 %v1553
    %1647 = vmatprep.subr.mxu0 %v1552
    %1648 = vmatpush1.msra.mxu0 %v1551
    %1649 = vmatprep.subr.mxu0 %v1550
    %1650 = vmatpush1.msra.mxu0 %v1549
    %1651 = vmatprep.subr.mxu0 %v1548
    %1652 = vmatpush1.msra.mxu0 %v1547
    %1653 = vmatprep.subr.mxu0 %v1546
    %1654 = vmatpush1.msra.mxu0 %v1545
    %1655 = vmatprep.subr.mxu0 %v1544
    %1656 = vmatpush1.msra.mxu0 %v1543
    %1657 = vmatprep.subr.mxu0 %v1542
    %1658 = vmatpush1.msra.mxu0 %v1541
    %1659 = vmatprep.subr.mxu0 %v1540
    %1660 = vmatpush1.msra.mxu0 %v1539
    %1661 = vmatprep.subr.mxu0 %v1538
    %1662 = vmatpush1.msra.mxu0 %v1537
    %1663 = vmatprep.subr.mxu0 0.0
    %1664 = vmatpush2.msra.mxu0 0.0
    %1665 = vmatprep.subr.mxu0 0.0
    %1666 = vmatpush2.msra.mxu0 0.0
    %1667 = vmatprep.subr.mxu0 0.0
    %1668 = vmatpush2.msra.mxu0 0.0
    %1669 = vmatprep.subr.mxu0 0.0
    %1670 = vmatpush2.msra.mxu0 0.0
    %1671 = vmatprep.subr.mxu0 0.0
    %1672 = vmatpush2.msra.mxu0 0.0
    %1673 = vmatprep.subr.mxu0 0.0
    %1674 = vmatpush2.msra.mxu0 0.0
    %1675 = vmatprep.subr.mxu0 0.0
    %1676 = vmatpush2.msra.mxu0 0.0
    %1677 = vmatprep.subr.mxu0 0.0
    %1678 = vmatpush2.msra.mxu0 0.0
    %1679 = vmatprep.subr.mxu0 0.0
    %1680 = vmatpush2.msra.mxu0 0.0
    %1681 = vmatprep.subr.mxu0 0.0
    %1682 = vmatpush2.msra.mxu0 0.0
    %1683 = vmatprep.subr.mxu0 %v1580
    %1684 = vmatpush2.msra.mxu0 %v1579
    %1685 = vmatprep.subr.mxu0 %v1578
    %1686 = vmatpush2.msra.mxu0 %v1577
    %1687 = vmatprep.subr.mxu0 %v1576
    %1688 = vmatpush2.msra.mxu0 %v1575
    %1689 = vmatprep.subr.mxu0 %v1574
    %1690 = vmatpush2.msra.mxu0 %v1573
    %1691 = vmatprep.subr.mxu0 %v1572
    %1692 = vmatpush2.msra.mxu0 %v1571
    %1693 = vmatprep.subr.mxu0 %v1570
    %1694 = vmatpush2.msra.mxu0 %v1569
    %1695 = vmatprep.mubr.f32.mxu0 %v1626
    %1696 = vmatmul.mubr.f32.gmra.mxu0 %v1387
    %v1697 = vpop.f32.mrf.mxu0
    %v1698 = vadd.f32 %v1397, %v1697
    %v1699 = vpop.f32.mrf.mxu0
    %v1700 = vadd.f32 %v1397, %v1699
    %1701 = vmatprep.mubr.f32.mxu0 %v1629
    %1702 = vmatmul.mubr.f32.gmra.mxu0 %v1389
    %v1703 = vpop.f32.mrf.mxu0
    %v1704 = vadd.f32 %v1402, %v1703
    %v1705 = vpop.f32.mrf.mxu0
    %v1706 = vadd.f32 %v1402, %v1705
    %1707 = vdwg.mxu0
    %v1708 = vtanh.pop %v1698
    %v1709 = vtanh.pop %v1700
    %v1710 = vtanh.pop %v1704
    %v1711 = vtanh.pop %v1706
    %v1712 = vsel %vm91, %v1708, 0.0
    %v1713 = vsel %vm92, %v1709, 0.0
    %v1714 = vsel %vm91, %v1710, 0.0
    %v1715 = vsel %vm92, %v1711, 0.0
    %1716 = vst [vmem:[#allocation2 + $0x8] sm:$0xff] %v1712
    %1717 = vst [vmem:[#allocation2 + $0x10] sm:$0xff] %v1713
    %1718 = vst [vmem:[#allocation2 + $0x20] sm:$0xff] %v1714
    %1719 = vst [vmem:[#allocation2 + $0x28] sm:$0xff] %v1715
    %v1720 = vld [vmem:[#allocation2] sm:$0xff]
    %v1721 = vld [vmem:[#allocation2 + $0x8] sm:$0xff]
    %v1722 = vld [vmem:[#allocation2 + $0x10] sm:$0xff]
    %v1723 = vld [vmem:[#allocation2 + $0x18] sm:$0xff]
    %v1724 = vld [vmem:[#allocation2 + $0x20] sm:$0xff]
    %v1725 = vld [vmem:[#allocation2 + $0x28] sm:$0xff]
    %1732 = vrot.lane.b32.xlu0 %v1720, 126
    %v1733 = vpop.permute.xlu0 %1732
    %1734 = vrot.lane.b32.xlu0 %v1721, 126
    %v1735 = vpop.permute.xlu0 %1734
    %1736 = vrot.lane.b32.xlu0 %v1722, 126
    %v1737 = vpop.permute.xlu0 %1736
    %1738 = vrot.lane.b32.xlu0 %v1723, 126
    %v1739 = vpop.permute.xlu0 %1738
    %1740 = vrot.lane.b32.xlu0 %v1724, 126
    %v1741 = vpop.permute.xlu0 %1740
    %1742 = vrot.lane.b32.xlu0 %v1725, 126
    %v1743 = vpop.permute.xlu0 %1742
    %v1744 = vsel %vm240, %v1733, %v1735
    %v1745 = vsel %vm240, %v1735, %v1737
    %v1746 = vsel %vm240, %v1739, %v1741
    %v1747 = vsel %vm240, %v1741, %v1743
    %1748 = vrot.lane.b32.xlu0 %v1720, 124
    %v1749 = vpop.permute.xlu0 %1748
    %1750 = vrot.lane.b32.xlu0 %v1721, 124
    %v1751 = vpop.permute.xlu0 %1750
    %1752 = vrot.lane.b32.xlu0 %v1722, 124
    %v1753 = vpop.permute.xlu0 %1752
    %1754 = vrot.lane.b32.xlu0 %v1723, 124
    %v1755 = vpop.permute.xlu0 %1754
    %1756 = vrot.lane.b32.xlu0 %v1724, 124
    %v1757 = vpop.permute.xlu0 %1756
    %1758 = vrot.lane.b32.xlu0 %v1725, 124
    %v1759 = vpop.permute.xlu0 %1758
    %v1760 = vsel %vm274, %v1749, %v1751
    %v1761 = vsel %vm274, %v1751, %v1753
    %v1762 = vsel %vm274, %v1755, %v1757
    %v1763 = vsel %vm274, %v1757, %v1759
    %1764 = vrot.lane.b32.xlu0 %v1720, 122
    %v1765 = vpop.permute.xlu0 %1764
    %1766 = vrot.lane.b32.xlu0 %v1721, 122
    %v1767 = vpop.permute.xlu0 %1766
    %1768 = vrot.lane.b32.xlu0 %v1722, 122
    %v1769 = vpop.permute.xlu0 %1768
    %1770 = vrot.lane.b32.xlu0 %v1723, 122
    %v1771 = vpop.permute.xlu0 %1770
    %1772 = vrot.lane.b32.xlu0 %v1724, 122
    %v1773 = vpop.permute.xlu0 %1772
    %1774 = vrot.lane.b32.xlu0 %v1725, 122
    %v1775 = vpop.permute.xlu0 %1774
    %v1776 = vsel %vm308, %v1765, %v1767
    %v1777 = vsel %vm308, %v1767, %v1769
    %v1778 = vsel %vm308, %v1771, %v1773
    %v1779 = vsel %vm308, %v1773, %v1775
    %1780 = vrot.lane.b32.xlu0 %v1720, 120
    %v1781 = vpop.permute.xlu0 %1780
    %1782 = vrot.lane.b32.xlu0 %v1721, 120
    %v1783 = vpop.permute.xlu0 %1782
    %1784 = vrot.lane.b32.xlu0 %v1722, 120
    %v1785 = vpop.permute.xlu0 %1784
    %1786 = vrot.lane.b32.xlu0 %v1723, 120
    %v1787 = vpop.permute.xlu0 %1786
    %1788 = vrot.lane.b32.xlu0 %v1724, 120
    %v1789 = vpop.permute.xlu0 %1788
    %1790 = vrot.lane.b32.xlu0 %v1725, 120
    %v1791 = vpop.permute.xlu0 %1790
    %v1792 = vsel %vm342, %v1781, %v1783
    %v1793 = vsel %vm342, %v1783, %v1785
    %v1794 = vsel %vm342, %v1787, %v1789
    %v1795 = vsel %vm342, %v1789, %v1791
    %1796 = vrot.lane.b32.xlu0 %v1720, 118
    %v1797 = vpop.permute.xlu0 %1796
    %1798 = vrot.lane.b32.xlu0 %v1721, 118
    %v1799 = vpop.permute.xlu0 %1798
    %1800 = vrot.lane.b32.xlu0 %v1722, 118
    %v1801 = vpop.permute.xlu0 %1800
    %1802 = vrot.lane.b32.xlu0 %v1723, 118
    %v1803 = vpop.permute.xlu0 %1802
    %1804 = vrot.lane.b32.xlu0 %v1724, 118
    %v1805 = vpop.permute.xlu0 %1804
    %1806 = vrot.lane.b32.xlu0 %v1725, 118
    %v1807 = vpop.permute.xlu0 %1806
    %v1808 = vsel %vm372, %v1797, %v1799
    %v1809 = vsel %vm372, %v1799, %v1801
    %v1810 = vsel %vm372, %v1803, %v1805
    %v1811 = vsel %vm372, %v1805, %v1807
    %1812 = vrot.lane.b32.xlu0 %v1720, 116
    %v1813 = vpop.permute.xlu0 %1812
    %1814 = vrot.lane.b32.xlu0 %v1721, 116
    %v1815 = vpop.permute.xlu0 %1814
    %1816 = vrot.lane.b32.xlu0 %v1722, 116
    %v1817 = vpop.permute.xlu0 %1816
    %1818 = vrot.lane.b32.xlu0 %v1723, 116
    %v1819 = vpop.permute.xlu0 %1818
    %1820 = vrot.lane.b32.xlu0 %v1724, 116
    %v1821 = vpop.permute.xlu0 %1820
    %1822 = vrot.lane.b32.xlu0 %v1725, 116
    %v1823 = vpop.permute.xlu0 %1822
    %v1824 = vsel %vm1319, %v1813, %v1815
    %v1825 = vsel %vm1319, %v1815, %v1817
    %v1826 = vsel %vm1319, %v1819, %v1821
    %v1827 = vsel %vm1319, %v1821, %v1823
    %1828 = vrot.lane.b32.xlu0 %v1720, 114
    %v1829 = vpop.permute.xlu0 %1828
    %1830 = vrot.lane.b32.xlu0 %v1721, 114
    %v1831 = vpop.permute.xlu0 %1830
    %1832 = vrot.lane.b32.xlu0 %v1722, 114
    %v1833 = vpop.permute.xlu0 %1832
    %1834 = vrot.lane.b32.xlu0 %v1723, 114
    %v1835 = vpop.permute.xlu0 %1834
    %1836 = vrot.lane.b32.xlu0 %v1724, 114
    %v1837 = vpop.permute.xlu0 %1836
    %1838 = vrot.lane.b32.xlu0 %v1725, 114
    %v1839 = vpop.permute.xlu0 %1838
    %v1840 = vsel %vm1336, %v1829, %v1831
    %v1841 = vsel %vm1336, %v1831, %v1833
    %v1842 = vsel %vm1336, %v1835, %v1837
    %v1843 = vsel %vm1336, %v1837, %v1839
    %1844 = vrot.lane.b32.xlu0 %v1720, 112
    %v1845 = vpop.permute.xlu0 %1844
    %1846 = vrot.lane.b32.xlu0 %v1721, 112
    %v1847 = vpop.permute.xlu0 %1846
    %1848 = vrot.lane.b32.xlu0 %v1722, 112
    %v1849 = vpop.permute.xlu0 %1848
    %1850 = vrot.lane.b32.xlu0 %v1723, 112
    %v1851 = vpop.permute.xlu0 %1850
    %1852 = vrot.lane.b32.xlu0 %v1724, 112
    %v1853 = vpop.permute.xlu0 %1852
    %1854 = vrot.lane.b32.xlu0 %v1725, 112
    %v1855 = vpop.permute.xlu0 %1854
    %v1856 = vsel %vm1353, %v1845, %v1847
    %v1857 = vsel %vm1353, %v1847, %v1849
    %v1858 = vsel %vm1353, %v1851, %v1853
    %v1859 = vsel %vm1353, %v1853, %v1855
    %1860 = vrot.lane.b32.xlu0 %v1720, 110
    %v1861 = vpop.permute.xlu0 %1860
    %1862 = vrot.lane.b32.xlu0 %v1721, 110
    %v1863 = vpop.permute.xlu0 %1862
    %1864 = vrot.lane.b32.xlu0 %v1722, 110
    %v1865 = vpop.permute.xlu0 %1864
    %1866 = vrot.lane.b32.xlu0 %v1723, 110
    %v1867 = vpop.permute.xlu0 %1866
    %1868 = vrot.lane.b32.xlu0 %v1724, 110
    %v1869 = vpop.permute.xlu0 %1868
    %1870 = vrot.lane.b32.xlu0 %v1725, 110
    %v1871 = vpop.permute.xlu0 %1870
    %v1872 = vsel %vm1370, %v1861, %v1863
    %v1873 = vsel %vm1370, %v1863, %v1865
    %v1874 = vsel %vm1370, %v1867, %v1869
    %v1875 = vsel %vm1370, %v1869, %v1871
    %1876 = vrot.lane.b32.xlu0 %v1721, 108
    %v1877 = vpop.permute.xlu0 %1876
    %1878 = vrot.lane.b32.xlu0 %v1722, 108
    %v1879 = vpop.permute.xlu0 %1878
    %1880 = vrot.lane.b32.xlu0 %v1724, 108
    %v1881 = vpop.permute.xlu0 %1880
    %1882 = vrot.lane.b32.xlu0 %v1725, 108
    %v1883 = vpop.permute.xlu0 %1882
    %v1884 = vsel %vm1383, %v1877, %v1879
    %v1885 = vsel %vm1383, %v1881, %v1883
    %s1886 = scalar_lea.vmem [#allocation3], 96
    %v1887 = vld [vmem:[%s1886] sm:$0xff]
    %v1888 = vld [vmem:[%s1886 + $0x8] sm:$0xff]
    %v1889 = vld [vmem:[%s1886 + $0x10] sm:$0xff]
    %v1890 = vld [vmem:[%s1886 + $0x18] sm:$0xff]
    %s1891 = scalar_lea.vmem %s2, 48
    %v1892 = vld [vmem:[%s1891] sm:$0xff]
    %v1893 = vld [vmem:[%s1891 + $0x8] sm:$0xff]
    %1895 = vset.pattern.permute.xlu0 0
    %1896 = vperm.xlu0 %1895, %v1892
    %v1897 = vpop.permute.xlu0 %1896
    %1900 = vset.pattern.permute.xlu0 0
    %1901 = vperm.xlu0 %1900, %v1893
    %v1902 = vpop.permute.xlu0 %1901
    %1904 = vrot.lane.b32.xlu0 %v1720, 20
    %v1905 = vpop.permute.xlu0 %1904
    %1906 = vrot.lane.b32.xlu0 %v1721, 20
    %v1907 = vpop.permute.xlu0 %1906
    %1908 = vrot.lane.b32.xlu0 %v1722, 20
    %v1909 = vpop.permute.xlu0 %1908
    %1910 = vrot.lane.b32.xlu0 %v1723, 20
    %v1911 = vpop.permute.xlu0 %1910
    %1912 = vrot.lane.b32.xlu0 %v1724, 20
    %v1913 = vpop.permute.xlu0 %1912
    %1914 = vrot.lane.b32.xlu0 %v1725, 20
    %v1915 = vpop.permute.xlu0 %1914
    %1916 = vrot.lane.b32.xlu0 %v1744, 20
    %v1917 = vpop.permute.xlu0 %1916
    %1918 = vrot.lane.b32.xlu0 %v1745, 20
    %v1919 = vpop.permute.xlu0 %1918
    %1920 = vrot.lane.b32.xlu0 %v1737, 20
    %v1921 = vpop.permute.xlu0 %1920
    %1922 = vrot.lane.b32.xlu0 %v1746, 20
    %v1923 = vpop.permute.xlu0 %1922
    %1924 = vrot.lane.b32.xlu0 %v1747, 20
    %v1925 = vpop.permute.xlu0 %1924
    %1926 = vrot.lane.b32.xlu0 %v1743, 20
    %v1927 = vpop.permute.xlu0 %1926
    %1928 = vrot.lane.b32.xlu0 %v1760, 20
    %v1929 = vpop.permute.xlu0 %1928
    %1930 = vrot.lane.b32.xlu0 %v1761, 20
    %v1931 = vpop.permute.xlu0 %1930
    %1932 = vrot.lane.b32.xlu0 %v1753, 20
    %v1933 = vpop.permute.xlu0 %1932
    %1934 = vrot.lane.b32.xlu0 %v1762, 20
    %v1935 = vpop.permute.xlu0 %1934
    %1936 = vrot.lane.b32.xlu0 %v1763, 20
    %v1937 = vpop.permute.xlu0 %1936
    %1938 = vrot.lane.b32.xlu0 %v1759, 20
    %v1939 = vpop.permute.xlu0 %1938
    %1940 = vrot.lane.b32.xlu0 %v1776, 20
    %v1941 = vpop.permute.xlu0 %1940
    %1942 = vrot.lane.b32.xlu0 %v1777, 20
    %v1943 = vpop.permute.xlu0 %1942
    %1944 = vrot.lane.b32.xlu0 %v1769, 20
    %v1945 = vpop.permute.xlu0 %1944
    %1946 = vrot.lane.b32.xlu0 %v1778, 20
    %v1947 = vpop.permute.xlu0 %1946
    %1948 = vrot.lane.b32.xlu0 %v1779, 20
    %v1949 = vpop.permute.xlu0 %1948
    %1950 = vrot.lane.b32.xlu0 %v1775, 20
    %v1951 = vpop.permute.xlu0 %1950
    %1952 = vrot.lane.b32.xlu0 %v1792, 20
    %v1953 = vpop.permute.xlu0 %1952
    %1954 = vrot.lane.b32.xlu0 %v1793, 20
    %v1955 = vpop.permute.xlu0 %1954
    %1956 = vrot.lane.b32.xlu0 %v1785, 20
    %v1957 = vpop.permute.xlu0 %1956
    %1958 = vrot.lane.b32.xlu0 %v1794, 20
    %v1959 = vpop.permute.xlu0 %1958
    %1960 = vrot.lane.b32.xlu0 %v1795, 20
    %v1961 = vpop.permute.xlu0 %1960
    %1962 = vrot.lane.b32.xlu0 %v1791, 20
    %v1963 = vpop.permute.xlu0 %1962
    %1964 = vrot.lane.b32.xlu0 %v1808, 20
    %v1965 = vpop.permute.xlu0 %1964
    %1966 = vrot.lane.b32.xlu0 %v1809, 20
    %v1967 = vpop.permute.xlu0 %1966
    %1968 = vrot.lane.b32.xlu0 %v1801, 20
    %v1969 = vpop.permute.xlu0 %1968
    %1970 = vrot.lane.b32.xlu0 %v1810, 20
    %v1971 = vpop.permute.xlu0 %1970
    %1972 = vrot.lane.b32.xlu0 %v1811, 20
    %v1973 = vpop.permute.xlu0 %1972
    %1974 = vrot.lane.b32.xlu0 %v1807, 20
    %v1975 = vpop.permute.xlu0 %1974
    %1976 = vrot.lane.b32.xlu0 %v1824, 20
    %v1977 = vpop.permute.xlu0 %1976
    %1978 = vrot.lane.b32.xlu0 %v1825, 20
    %v1979 = vpop.permute.xlu0 %1978
    %1980 = vrot.lane.b32.xlu0 %v1817, 20
    %v1981 = vpop.permute.xlu0 %1980
    %1982 = vrot.lane.b32.xlu0 %v1826, 20
    %v1983 = vpop.permute.xlu0 %1982
    %1984 = vrot.lane.b32.xlu0 %v1827, 20
    %v1985 = vpop.permute.xlu0 %1984
    %1986 = vrot.lane.b32.xlu0 %v1823, 20
    %v1987 = vpop.permute.xlu0 %1986
    %1988 = vrot.lane.b32.xlu0 %v1840, 20
    %v1989 = vpop.permute.xlu0 %1988
    %1990 = vrot.lane.b32.xlu0 %v1841, 20
    %v1991 = vpop.permute.xlu0 %1990
    %1992 = vrot.lane.b32.xlu0 %v1833, 20
    %v1993 = vpop.permute.xlu0 %1992
    %1994 = vrot.lane.b32.xlu0 %v1842, 20
    %v1995 = vpop.permute.xlu0 %1994
    %1996 = vrot.lane.b32.xlu0 %v1843, 20
    %v1997 = vpop.permute.xlu0 %1996
    %1998 = vrot.lane.b32.xlu0 %v1839, 20
    %v1999 = vpop.permute.xlu0 %1998
    %2000 = vrot.lane.b32.xlu0 %v1856, 20
    %v2001 = vpop.permute.xlu0 %2000
    %2002 = vrot.lane.b32.xlu0 %v1857, 20
    %v2003 = vpop.permute.xlu0 %2002
    %2004 = vrot.lane.b32.xlu0 %v1849, 20
    %v2005 = vpop.permute.xlu0 %2004
    %2006 = vrot.lane.b32.xlu0 %v1858, 20
    %v2007 = vpop.permute.xlu0 %2006
    %2008 = vrot.lane.b32.xlu0 %v1859, 20
    %v2009 = vpop.permute.xlu0 %2008
    %2010 = vrot.lane.b32.xlu0 %v1855, 20
    %v2011 = vpop.permute.xlu0 %2010
    %2012 = vrot.lane.b32.xlu0 %v1872, 20
    %v2013 = vpop.permute.xlu0 %2012
    %2014 = vrot.lane.b32.xlu0 %v1873, 20
    %v2015 = vpop.permute.xlu0 %2014
    %2016 = vrot.lane.b32.xlu0 %v1865, 20
    %v2017 = vpop.permute.xlu0 %2016
    %2018 = vrot.lane.b32.xlu0 %v1874, 20
    %v2019 = vpop.permute.xlu0 %2018
    %2020 = vrot.lane.b32.xlu0 %v1875, 20
    %v2021 = vpop.permute.xlu0 %2020
    %2022 = vrot.lane.b32.xlu0 %v1871, 20
    %v2023 = vpop.permute.xlu0 %2022
    %2024 = vrot.lane.b32.xlu0 %v1877, 20
    %v2025 = vpop.permute.xlu0 %2024
    %2026 = vrot.lane.b32.xlu0 %v1884, 20
    %v2027 = vpop.permute.xlu0 %2026
    %2028 = vrot.lane.b32.xlu0 %v1879, 20
    %v2029 = vpop.permute.xlu0 %2028
    %2030 = vrot.lane.b32.xlu0 %v1881, 20
    %v2031 = vpop.permute.xlu0 %2030
    %2032 = vrot.lane.b32.xlu0 %v1885, 20
    %v2033 = vpop.permute.xlu0 %2032
    %2034 = vrot.lane.b32.xlu0 %v1883, 20
    %v2035 = vpop.permute.xlu0 %2034
    %v2036 = vsel %vm1536, %v1905, %v1907
    %v2037 = vsel %vm1536, %v1907, %v1909
    %v2038 = vsel %vm1536, %v1911, %v1913
    %v2039 = vsel %vm1536, %v1913, %v1915
    %v2040 = vsel %vm1536, %v1917, %v1919
    %v2041 = vsel %vm1536, %v1919, %v1921
    %v2042 = vsel %vm1536, %v1923, %v1925
    %v2043 = vsel %vm1536, %v1925, %v1927
    %v2044 = vsel %vm1536, %v1929, %v1931
    %v2045 = vsel %vm1536, %v1931, %v1933
    %v2046 = vsel %vm1536, %v1935, %v1937
    %v2047 = vsel %vm1536, %v1937, %v1939
    %v2048 = vsel %vm1536, %v1941, %v1943
    %v2049 = vsel %vm1536, %v1943, %v1945
    %v2050 = vsel %vm1536, %v1947, %v1949
    %v2051 = vsel %vm1536, %v1949, %v1951
    %v2052 = vsel %vm1536, %v1953, %v1955
    %v2053 = vsel %vm1536, %v1955, %v1957
    %v2054 = vsel %vm1536, %v1959, %v1961
    %v2055 = vsel %vm1536, %v1961, %v1963
    %v2056 = vsel %vm1536, %v1965, %v1967
    %v2057 = vsel %vm1536, %v1967, %v1969
    %v2058 = vsel %vm1536, %v1971, %v1973
    %v2059 = vsel %vm1536, %v1973, %v1975
    %v2060 = vsel %vm1536, %v1977, %v1979
    %v2061 = vsel %vm1536, %v1979, %v1981
    %v2062 = vsel %vm1536, %v1983, %v1985
    %v2063 = vsel %vm1536, %v1985, %v1987
    %v2064 = vsel %vm1536, %v1989, %v1991
    %v2065 = vsel %vm1536, %v1991, %v1993
    %v2066 = vsel %vm1536, %v1995, %v1997
    %v2067 = vsel %vm1536, %v1997, %v1999
    %v2068 = vsel %vm1536, %v2001, %v2003
    %v2069 = vsel %vm1536, %v2003, %v2005
    %v2070 = vsel %vm1536, %v2007, %v2009
    %v2071 = vsel %vm1536, %v2009, %v2011
    %v2072 = vsel %vm1536, %v2013, %v2015
    %v2073 = vsel %vm1536, %v2015, %v2017
    %v2074 = vsel %vm1536, %v2019, %v2021
    %v2075 = vsel %vm1536, %v2021, %v2023
    %v2076 = vsel %vm1536, %v2025, %v2027
    %v2077 = vsel %vm1536, %v2027, %v2029
    %v2078 = vsel %vm1536, %v2031, %v2033
    %v2079 = vsel %vm1536, %v2033, %v2035
    %v2125 = vsel %vm612, %v1888, 0
    %v2128 = vsel %vm612, %v1890, 0
    %2130 = vmatprep.subr.mxu0 %v2067
    %2131 = vmatpush1.msra.mxu0 %v2066
    %2132 = vmatprep.subr.mxu0 %v2065
    %2133 = vmatpush1.msra.mxu0 %v2064
    %2134 = vmatprep.subr.mxu0 %v2063
    %2135 = vmatpush1.msra.mxu0 %v2062
    %2136 = vmatprep.subr.mxu0 %v2061
    %2137 = vmatpush1.msra.mxu0 %v2060
    %2138 = vmatprep.subr.mxu0 %v2059
    %2139 = vmatpush1.msra.mxu0 %v2058
    %2140 = vmatprep.subr.mxu0 %v2057
    %2141 = vmatpush1.msra.mxu0 %v2056
    %2142 = vmatprep.subr.mxu0 %v2055
    %2143 = vmatpush1.msra.mxu0 %v2054
    %2144 = vmatprep.subr.mxu0 %v2053
    %2145 = vmatpush1.msra.mxu0 %v2052
    %2146 = vmatprep.subr.mxu0 %v2051
    %2147 = vmatpush1.msra.mxu0 %v2050
    %2148 = vmatprep.subr.mxu0 %v2049
    %2149 = vmatpush1.msra.mxu0 %v2048
    %2150 = vmatprep.subr.mxu0 %v2047
    %2151 = vmatpush1.msra.mxu0 %v2046
    %2152 = vmatprep.subr.mxu0 %v2045
    %2153 = vmatpush1.msra.mxu0 %v2044
    %2154 = vmatprep.subr.mxu0 %v2043
    %2155 = vmatpush1.msra.mxu0 %v2042
    %2156 = vmatprep.subr.mxu0 %v2041
    %2157 = vmatpush1.msra.mxu0 %v2040
    %2158 = vmatprep.subr.mxu0 %v2039
    %2159 = vmatpush1.msra.mxu0 %v2038
    %2160 = vmatprep.subr.mxu0 %v2037
    %2161 = vmatpush1.msra.mxu0 %v2036
    %2162 = vmatprep.subr.mxu0 0.0
    %2163 = vmatpush2.msra.mxu0 0.0
    %2164 = vmatprep.subr.mxu0 0.0
    %2165 = vmatpush2.msra.mxu0 0.0
    %2166 = vmatprep.subr.mxu0 0.0
    %2167 = vmatpush2.msra.mxu0 0.0
    %2168 = vmatprep.subr.mxu0 0.0
    %2169 = vmatpush2.msra.mxu0 0.0
    %2170 = vmatprep.subr.mxu0 0.0
    %2171 = vmatpush2.msra.mxu0 0.0
    %2172 = vmatprep.subr.mxu0 0.0
    %2173 = vmatpush2.msra.mxu0 0.0
    %2174 = vmatprep.subr.mxu0 0.0
    %2175 = vmatpush2.msra.mxu0 0.0
    %2176 = vmatprep.subr.mxu0 0.0
    %2177 = vmatpush2.msra.mxu0 0.0
    %2178 = vmatprep.subr.mxu0 0.0
    %2179 = vmatpush2.msra.mxu0 0.0
    %2180 = vmatprep.subr.mxu0 0.0
    %2181 = vmatpush2.msra.mxu0 0.0
    %2182 = vmatprep.subr.mxu0 %v2079
    %2183 = vmatpush2.msra.mxu0 %v2078
    %2184 = vmatprep.subr.mxu0 %v2077
    %2185 = vmatpush2.msra.mxu0 %v2076
    %2186 = vmatprep.subr.mxu0 %v2075
    %2187 = vmatpush2.msra.mxu0 %v2074
    %2188 = vmatprep.subr.mxu0 %v2073
    %2189 = vmatpush2.msra.mxu0 %v2072
    %2190 = vmatprep.subr.mxu0 %v2071
    %2191 = vmatpush2.msra.mxu0 %v2070
    %2192 = vmatprep.subr.mxu0 %v2069
    %2193 = vmatpush2.msra.mxu0 %v2068
    %2194 = vmatprep.mubr.f32.mxu0 %v2125
    %2195 = vmatmul.mubr.f32.gmra.mxu0 %v1887
    %v2196 = vpop.f32.mrf.mxu0
    %v2197 = vadd.f32 %v1897, %v2196
    %v2198 = vpop.f32.mrf.mxu0
    %v2199 = vadd.f32 %v1897, %v2198
    %2200 = vmatprep.mubr.f32.mxu0 %v2128
    %2201 = vmatmul.mubr.f32.gmra.mxu0 %v1889
    %v2202 = vpop.f32.mrf.mxu0
    %v2203 = vadd.f32 %v1902, %v2202
    %v2204 = vpop.f32.mrf.mxu0
    %v2205 = vadd.f32 %v1902, %v2204
    %2206 = vdwg.mxu0
    %v2207 = vtanh.pop %v2197
    %v2208 = vtanh.pop %v2199
    %v2209 = vtanh.pop %v2203
    %v2210 = vtanh.pop %v2205
    %v2211 = vadd.f32 %v2207, %v1207
    %v2212 = vadd.f32 %v2208, %v1208
    %v2213 = vadd.f32 %v2209, %v1209
    %v2214 = vadd.f32 %v2210, %v1210
    %v2215 = vtanh.pop %v2211
    %v2216 = vtanh.pop %v2212
    %v2217 = vtanh.pop %v2213
    %v2218 = vtanh.pop %v2214
    %v2219 = vsel %vm91, %v2215, 0.0
    %v2220 = vsel %vm92, %v2216, 0.0
    %v2221 = vsel %vm91, %v2217, 0.0
    %v2222 = vsel %vm92, %v2218, 0.0
    %2223 = vst [vmem:[#allocation2 + $0x8] sm:$0xff] %v2219
    %2224 = vst [vmem:[#allocation2 + $0x10] sm:$0xff] %v2220
    %2225 = vst [vmem:[#allocation2 + $0x20] sm:$0xff] %v2221
    %2226 = vst [vmem:[#allocation2 + $0x28] sm:$0xff] %v2222
    %v2227 = vld [vmem:[#allocation2] sm:$0xff]
    %v2228 = vld [vmem:[#allocation2 + $0x8] sm:$0xff]
    %v2229 = vld [vmem:[#allocation2 + $0x10] sm:$0xff]
    %v2230 = vld [vmem:[#allocation2 + $0x18] sm:$0xff]
    %v2231 = vld [vmem:[#allocation2 + $0x20] sm:$0xff]
    %v2232 = vld [vmem:[#allocation2 + $0x28] sm:$0xff]
    %2239 = vrot.lane.b32.xlu0 %v2227, 124
    %v2240 = vpop.permute.xlu0 %2239
    %2241 = vrot.lane.b32.xlu0 %v2228, 124
    %v2242 = vpop.permute.xlu0 %2241
    %2243 = vrot.lane.b32.xlu0 %v2229, 124
    %v2244 = vpop.permute.xlu0 %2243
    %2245 = vrot.lane.b32.xlu0 %v2230, 124
    %v2246 = vpop.permute.xlu0 %2245
    %2247 = vrot.lane.b32.xlu0 %v2231, 124
    %v2248 = vpop.permute.xlu0 %2247
    %2249 = vrot.lane.b32.xlu0 %v2232, 124
    %v2250 = vpop.permute.xlu0 %2249
    %v2251 = vsel %vm274, %v2240, %v2242
    %v2252 = vsel %vm274, %v2242, %v2244
    %v2253 = vsel %vm274, %v2246, %v2248
    %v2254 = vsel %vm274, %v2248, %v2250
    %2255 = vrot.lane.b32.xlu0 %v2227, 120
    %v2256 = vpop.permute.xlu0 %2255
    %2257 = vrot.lane.b32.xlu0 %v2228, 120
    %v2258 = vpop.permute.xlu0 %2257
    %2259 = vrot.lane.b32.xlu0 %v2229, 120
    %v2260 = vpop.permute.xlu0 %2259
    %2261 = vrot.lane.b32.xlu0 %v2230, 120
    %v2262 = vpop.permute.xlu0 %2261
    %2263 = vrot.lane.b32.xlu0 %v2231, 120
    %v2264 = vpop.permute.xlu0 %2263
    %2265 = vrot.lane.b32.xlu0 %v2232, 120
    %v2266 = vpop.permute.xlu0 %2265
    %v2267 = vsel %vm342, %v2256, %v2258
    %v2268 = vsel %vm342, %v2258, %v2260
    %v2269 = vsel %vm342, %v2262, %v2264
    %v2270 = vsel %vm342, %v2264, %v2266
    %2271 = vrot.lane.b32.xlu0 %v2227, 116
    %v2272 = vpop.permute.xlu0 %2271
    %2273 = vrot.lane.b32.xlu0 %v2228, 116
    %v2274 = vpop.permute.xlu0 %2273
    %2275 = vrot.lane.b32.xlu0 %v2229, 116
    %v2276 = vpop.permute.xlu0 %2275
    %2277 = vrot.lane.b32.xlu0 %v2230, 116
    %v2278 = vpop.permute.xlu0 %2277
    %2279 = vrot.lane.b32.xlu0 %v2231, 116
    %v2280 = vpop.permute.xlu0 %2279
    %2281 = vrot.lane.b32.xlu0 %v2232, 116
    %v2282 = vpop.permute.xlu0 %2281
    %v2283 = vsel %vm1319, %v2272, %v2274
    %v2284 = vsel %vm1319, %v2274, %v2276
    %v2285 = vsel %vm1319, %v2278, %v2280
    %v2286 = vsel %vm1319, %v2280, %v2282
    %2287 = vrot.lane.b32.xlu0 %v2227, 112
    %v2288 = vpop.permute.xlu0 %2287
    %2289 = vrot.lane.b32.xlu0 %v2228, 112
    %v2290 = vpop.permute.xlu0 %2289
    %2291 = vrot.lane.b32.xlu0 %v2229, 112
    %v2292 = vpop.permute.xlu0 %2291
    %2293 = vrot.lane.b32.xlu0 %v2230, 112
    %v2294 = vpop.permute.xlu0 %2293
    %2295 = vrot.lane.b32.xlu0 %v2231, 112
    %v2296 = vpop.permute.xlu0 %2295
    %2297 = vrot.lane.b32.xlu0 %v2232, 112
    %v2298 = vpop.permute.xlu0 %2297
    %v2299 = vsel %vm1353, %v2288, %v2290
    %v2300 = vsel %vm1353, %v2290, %v2292
    %v2301 = vsel %vm1353, %v2294, %v2296
    %v2302 = vsel %vm1353, %v2296, %v2298
    %2303 = vrot.lane.b32.xlu0 %v2227, 108
    %v2304 = vpop.permute.xlu0 %2303
    %2305 = vrot.lane.b32.xlu0 %v2228, 108
    %v2306 = vpop.permute.xlu0 %2305
    %2307 = vrot.lane.b32.xlu0 %v2229, 108
    %v2308 = vpop.permute.xlu0 %2307
    %2309 = vrot.lane.b32.xlu0 %v2230, 108
    %v2310 = vpop.permute.xlu0 %2309
    %2311 = vrot.lane.b32.xlu0 %v2231, 108
    %v2312 = vpop.permute.xlu0 %2311
    %2313 = vrot.lane.b32.xlu0 %v2232, 108
    %v2314 = vpop.permute.xlu0 %2313
    %v2315 = vsel %vm1383, %v2304, %v2306
    %v2316 = vsel %vm1383, %v2306, %v2308
    %v2317 = vsel %vm1383, %v2310, %v2312
    %v2318 = vsel %vm1383, %v2312, %v2314
    %2319 = vrot.lane.b32.xlu0 %v2227, 104
    %v2320 = vpop.permute.xlu0 %2319
    %2321 = vrot.lane.b32.xlu0 %v2228, 104
    %v2322 = vpop.permute.xlu0 %2321
    %2323 = vrot.lane.b32.xlu0 %v2229, 104
    %v2324 = vpop.permute.xlu0 %2323
    %2325 = vrot.lane.b32.xlu0 %v2230, 104
    %v2326 = vpop.permute.xlu0 %2325
    %2327 = vrot.lane.b32.xlu0 %v2231, 104
    %v2328 = vpop.permute.xlu0 %2327
    %2329 = vrot.lane.b32.xlu0 %v2232, 104
    %v2330 = vpop.permute.xlu0 %2329
    %vm2331 = vcmask 850944
    %v2332 = vsel %vm2331, %v2320, %v2322
    %v2333 = vsel %vm2331, %v2322, %v2324
    %v2334 = vsel %vm2331, %v2326, %v2328
    %v2335 = vsel %vm2331, %v2328, %v2330
    %2336 = vrot.lane.b32.xlu0 %v2227, 100
    %v2337 = vpop.permute.xlu0 %2336
    %2338 = vrot.lane.b32.xlu0 %v2228, 100
    %v2339 = vpop.permute.xlu0 %2338
    %2340 = vrot.lane.b32.xlu0 %v2229, 100
    %v2341 = vpop.permute.xlu0 %2340
    %2342 = vrot.lane.b32.xlu0 %v2230, 100
    %v2343 = vpop.permute.xlu0 %2342
    %2344 = vrot.lane.b32.xlu0 %v2231, 100
    %v2345 = vpop.permute.xlu0 %2344
    %2346 = vrot.lane.b32.xlu0 %v2232, 100
    %v2347 = vpop.permute.xlu0 %2346
    %vm2348 = vcmask 818176
    %v2349 = vsel %vm2348, %v2337, %v2339
    %v2350 = vsel %vm2348, %v2339, %v2341
    %v2351 = vsel %vm2348, %v2343, %v2345
    %v2352 = vsel %vm2348, %v2345, %v2347
    %2353 = vrot.lane.b32.xlu0 %v2227, 96
    %v2354 = vpop.permute.xlu0 %2353
    %2355 = vrot.lane.b32.xlu0 %v2228, 96
    %v2356 = vpop.permute.xlu0 %2355
    %2357 = vrot.lane.b32.xlu0 %v2229, 96
    %v2358 = vpop.permute.xlu0 %2357
    %2359 = vrot.lane.b32.xlu0 %v2230, 96
    %v2360 = vpop.permute.xlu0 %2359
    %2361 = vrot.lane.b32.xlu0 %v2231, 96
    %v2362 = vpop.permute.xlu0 %2361
    %2363 = vrot.lane.b32.xlu0 %v2232, 96
    %v2364 = vpop.permute.xlu0 %2363
    %vm2365 = vcmask 785408
    %v2366 = vsel %vm2365, %v2354, %v2356
    %v2367 = vsel %vm2365, %v2356, %v2358
    %v2368 = vsel %vm2365, %v2360, %v2362
    %v2369 = vsel %vm2365, %v2362, %v2364
    %2370 = vrot.lane.b32.xlu0 %v2227, 92
    %v2371 = vpop.permute.xlu0 %2370
    %2372 = vrot.lane.b32.xlu0 %v2228, 92
    %v2373 = vpop.permute.xlu0 %2372
    %2374 = vrot.lane.b32.xlu0 %v2229, 92
    %v2375 = vpop.permute.xlu0 %2374
    %2376 = vrot.lane.b32.xlu0 %v2230, 92
    %v2377 = vpop.permute.xlu0 %2376
    %2378 = vrot.lane.b32.xlu0 %v2231, 92
    %v2379 = vpop.permute.xlu0 %2378
    %2380 = vrot.lane.b32.xlu0 %v2232, 92
    %v2381 = vpop.permute.xlu0 %2380
    %vm2382 = vcmask 752640
    %v2383 = vsel %vm2382, %v2371, %v2373
    %v2384 = vsel %vm2382, %v2373, %v2375
    %v2385 = vsel %vm2382, %v2377, %v2379
    %v2386 = vsel %vm2382, %v2379, %v2381
    %2387 = vrot.lane.b32.xlu0 %v2228, 88
    %v2388 = vpop.permute.xlu0 %2387
    %2389 = vrot.lane.b32.xlu0 %v2229, 88
    %v2390 = vpop.permute.xlu0 %2389
    %2391 = vrot.lane.b32.xlu0 %v2231, 88
    %v2392 = vpop.permute.xlu0 %2391
    %2393 = vrot.lane.b32.xlu0 %v2232, 88
    %v2394 = vpop.permute.xlu0 %2393
    %vm2395 = vcmask 719872
    %v2396 = vsel %vm2395, %v2388, %v2390
    %v2397 = vsel %vm2395, %v2392, %v2394
    %s2398 = scalar_lea.vmem [#allocation3], 128
    %v2399 = vld [vmem:[%s2398] sm:$0xff]
    %v2400 = vld [vmem:[%s2398 + $0x8] sm:$0xff]
    %v2401 = vld [vmem:[%s2398 + $0x10] sm:$0xff]
    %v2402 = vld [vmem:[%s2398 + $0x18] sm:$0xff]
    %s2403 = scalar_lea.vmem %s2, 64
    %v2404 = vld [vmem:[%s2403] sm:$0xff]
    %v2405 = vld [vmem:[%s2403 + $0x8] sm:$0xff]
    %2407 = vset.pattern.permute.xlu0 0
    %2408 = vperm.xlu0 %2407, %v2404
    %v2409 = vpop.permute.xlu0 %2408
    %2412 = vset.pattern.permute.xlu0 0
    %2413 = vperm.xlu0 %2412, %v2405
    %v2414 = vpop.permute.xlu0 %2413
    %2416 = vrot.lane.b32.xlu0 %v2227, 40
    %v2417 = vpop.permute.xlu0 %2416
    %2418 = vrot.lane.b32.xlu0 %v2228, 40
    %v2419 = vpop.permute.xlu0 %2418
    %2420 = vrot.lane.b32.xlu0 %v2229, 40
    %v2421 = vpop.permute.xlu0 %2420
    %2422 = vrot.lane.b32.xlu0 %v2230, 40
    %v2423 = vpop.permute.xlu0 %2422
    %2424 = vrot.lane.b32.xlu0 %v2231, 40
    %v2425 = vpop.permute.xlu0 %2424
    %2426 = vrot.lane.b32.xlu0 %v2232, 40
    %v2427 = vpop.permute.xlu0 %2426
    %2428 = vrot.lane.b32.xlu0 %v2251, 40
    %v2429 = vpop.permute.xlu0 %2428
    %2430 = vrot.lane.b32.xlu0 %v2252, 40
    %v2431 = vpop.permute.xlu0 %2430
    %2432 = vrot.lane.b32.xlu0 %v2244, 40
    %v2433 = vpop.permute.xlu0 %2432
    %2434 = vrot.lane.b32.xlu0 %v2253, 40
    %v2435 = vpop.permute.xlu0 %2434
    %2436 = vrot.lane.b32.xlu0 %v2254, 40
    %v2437 = vpop.permute.xlu0 %2436
    %2438 = vrot.lane.b32.xlu0 %v2250, 40
    %v2439 = vpop.permute.xlu0 %2438
    %2440 = vrot.lane.b32.xlu0 %v2267, 40
    %v2441 = vpop.permute.xlu0 %2440
    %2442 = vrot.lane.b32.xlu0 %v2268, 40
    %v2443 = vpop.permute.xlu0 %2442
    %2444 = vrot.lane.b32.xlu0 %v2260, 40
    %v2445 = vpop.permute.xlu0 %2444
    %2446 = vrot.lane.b32.xlu0 %v2269, 40
    %v2447 = vpop.permute.xlu0 %2446
    %2448 = vrot.lane.b32.xlu0 %v2270, 40
    %v2449 = vpop.permute.xlu0 %2448
    %2450 = vrot.lane.b32.xlu0 %v2266, 40
    %v2451 = vpop.permute.xlu0 %2450
    %2452 = vrot.lane.b32.xlu0 %v2283, 40
    %v2453 = vpop.permute.xlu0 %2452
    %2454 = vrot.lane.b32.xlu0 %v2284, 40
    %v2455 = vpop.permute.xlu0 %2454
    %2456 = vrot.lane.b32.xlu0 %v2276, 40
    %v2457 = vpop.permute.xlu0 %2456
    %2458 = vrot.lane.b32.xlu0 %v2285, 40
    %v2459 = vpop.permute.xlu0 %2458
    %2460 = vrot.lane.b32.xlu0 %v2286, 40
    %v2461 = vpop.permute.xlu0 %2460
    %2462 = vrot.lane.b32.xlu0 %v2282, 40
    %v2463 = vpop.permute.xlu0 %2462
    %2464 = vrot.lane.b32.xlu0 %v2299, 40
    %v2465 = vpop.permute.xlu0 %2464
    %2466 = vrot.lane.b32.xlu0 %v2300, 40
    %v2467 = vpop.permute.xlu0 %2466
    %2468 = vrot.lane.b32.xlu0 %v2292, 40
    %v2469 = vpop.permute.xlu0 %2468
    %2470 = vrot.lane.b32.xlu0 %v2301, 40
    %v2471 = vpop.permute.xlu0 %2470
    %2472 = vrot.lane.b32.xlu0 %v2302, 40
    %v2473 = vpop.permute.xlu0 %2472
    %2474 = vrot.lane.b32.xlu0 %v2298, 40
    %v2475 = vpop.permute.xlu0 %2474
    %2476 = vrot.lane.b32.xlu0 %v2315, 40
    %v2477 = vpop.permute.xlu0 %2476
    %2478 = vrot.lane.b32.xlu0 %v2316, 40
    %v2479 = vpop.permute.xlu0 %2478
    %2480 = vrot.lane.b32.xlu0 %v2308, 40
    %v2481 = vpop.permute.xlu0 %2480
    %2482 = vrot.lane.b32.xlu0 %v2317, 40
    %v2483 = vpop.permute.xlu0 %2482
    %2484 = vrot.lane.b32.xlu0 %v2318, 40
    %v2485 = vpop.permute.xlu0 %2484
    %2486 = vrot.lane.b32.xlu0 %v2314, 40
    %v2487 = vpop.permute.xlu0 %2486
    %2488 = vrot.lane.b32.xlu0 %v2332, 40
    %v2489 = vpop.permute.xlu0 %2488
    %2490 = vrot.lane.b32.xlu0 %v2333, 40
    %v2491 = vpop.permute.xlu0 %2490
    %2492 = vrot.lane.b32.xlu0 %v2324, 40
    %v2493 = vpop.permute.xlu0 %2492
    %2494 = vrot.lane.b32.xlu0 %v2334, 40
    %v2495 = vpop.permute.xlu0 %2494
    %2496 = vrot.lane.b32.xlu0 %v2335, 40
    %v2497 = vpop.permute.xlu0 %2496
    %2498 = vrot.lane.b32.xlu0 %v2330, 40
    %v2499 = vpop.permute.xlu0 %2498
    %2500 = vrot.lane.b32.xlu0 %v2349, 40
    %v2501 = vpop.permute.xlu0 %2500
    %2502 = vrot.lane.b32.xlu0 %v2350, 40
    %v2503 = vpop.permute.xlu0 %2502
    %2504 = vrot.lane.b32.xlu0 %v2341, 40
    %v2505 = vpop.permute.xlu0 %2504
    %2506 = vrot.lane.b32.xlu0 %v2351, 40
    %v2507 = vpop.permute.xlu0 %2506
    %2508 = vrot.lane.b32.xlu0 %v2352, 40
    %v2509 = vpop.permute.xlu0 %2508
    %2510 = vrot.lane.b32.xlu0 %v2347, 40
    %v2511 = vpop.permute.xlu0 %2510
    %2512 = vrot.lane.b32.xlu0 %v2366, 40
    %v2513 = vpop.permute.xlu0 %2512
    %2514 = vrot.lane.b32.xlu0 %v2367, 40
    %v2515 = vpop.permute.xlu0 %2514
    %2516 = vrot.lane.b32.xlu0 %v2358, 40
    %v2517 = vpop.permute.xlu0 %2516
    %2518 = vrot.lane.b32.xlu0 %v2368, 40
    %v2519 = vpop.permute.xlu0 %2518
    %2520 = vrot.lane.b32.xlu0 %v2369, 40
    %v2521 = vpop.permute.xlu0 %2520
    %2522 = vrot.lane.b32.xlu0 %v2364, 40
    %v2523 = vpop.permute.xlu0 %2522
    %2524 = vrot.lane.b32.xlu0 %v2383, 40
    %v2525 = vpop.permute.xlu0 %2524
    %2526 = vrot.lane.b32.xlu0 %v2384, 40
    %v2527 = vpop.permute.xlu0 %2526
    %2528 = vrot.lane.b32.xlu0 %v2375, 40
    %v2529 = vpop.permute.xlu0 %2528
    %2530 = vrot.lane.b32.xlu0 %v2385, 40
    %v2531 = vpop.permute.xlu0 %2530
    %2532 = vrot.lane.b32.xlu0 %v2386, 40
    %v2533 = vpop.permute.xlu0 %2532
    %2534 = vrot.lane.b32.xlu0 %v2381, 40
    %v2535 = vpop.permute.xlu0 %2534
    %2536 = vrot.lane.b32.xlu0 %v2388, 40
    %v2537 = vpop.permute.xlu0 %2536
    %2538 = vrot.lane.b32.xlu0 %v2396, 40
    %v2539 = vpop.permute.xlu0 %2538
    %2540 = vrot.lane.b32.xlu0 %v2390, 40
    %v2541 = vpop.permute.xlu0 %2540
    %2542 = vrot.lane.b32.xlu0 %v2392, 40
    %v2543 = vpop.permute.xlu0 %2542
    %2544 = vrot.lane.b32.xlu0 %v2397, 40
    %v2545 = vpop.permute.xlu0 %2544
    %2546 = vrot.lane.b32.xlu0 %v2394, 40
    %v2547 = vpop.permute.xlu0 %2546
    %vm2548 = vcmask 326656
    %v2549 = vsel %vm2548, %v2417, %v2419
    %v2550 = vsel %vm2548, %v2419, %v2421
    %v2551 = vsel %vm2548, %v2423, %v2425
    %v2552 = vsel %vm2548, %v2425, %v2427
    %v2553 = vsel %vm2548, %v2429, %v2431
    %v2554 = vsel %vm2548, %v2431, %v2433
    %v2555 = vsel %vm2548, %v2435, %v2437
    %v2556 = vsel %vm2548, %v2437, %v2439
    %v2557 = vsel %vm2548, %v2441, %v2443
    %v2558 = vsel %vm2548, %v2443, %v2445
    %v2559 = vsel %vm2548, %v2447, %v2449
    %v2560 = vsel %vm2548, %v2449, %v2451
    %v2561 = vsel %vm2548, %v2453, %v2455
    %v2562 = vsel %vm2548, %v2455, %v2457
    %v2563 = vsel %vm2548, %v2459, %v2461
    %v2564 = vsel %vm2548, %v2461, %v2463
    %v2565 = vsel %vm2548, %v2465, %v2467
    %v2566 = vsel %vm2548, %v2467, %v2469
    %v2567 = vsel %vm2548, %v2471, %v2473
    %v2568 = vsel %vm2548, %v2473, %v2475
    %v2569 = vsel %vm2548, %v2477, %v2479
    %v2570 = vsel %vm2548, %v2479, %v2481
    %v2571 = vsel %vm2548, %v2483, %v2485
    %v2572 = vsel %vm2548, %v2485, %v2487
    %v2573 = vsel %vm2548, %v2489, %v2491
    %v2574 = vsel %vm2548, %v2491, %v2493
    %v2575 = vsel %vm2548, %v2495, %v2497
    %v2576 = vsel %vm2548, %v2497, %v2499
    %v2577 = vsel %vm2548, %v2501, %v2503
    %v2578 = vsel %vm2548, %v2503, %v2505
    %v2579 = vsel %vm2548, %v2507, %v2509
    %v2580 = vsel %vm2548, %v2509, %v2511
    %v2581 = vsel %vm2548, %v2513, %v2515
    %v2582 = vsel %vm2548, %v2515, %v2517
    %v2583 = vsel %vm2548, %v2519, %v2521
    %v2584 = vsel %vm2548, %v2521, %v2523
    %v2585 = vsel %vm2548, %v2525, %v2527
    %v2586 = vsel %vm2548, %v2527, %v2529
    %v2587 = vsel %vm2548, %v2531, %v2533
    %v2588 = vsel %vm2548, %v2533, %v2535
    %v2589 = vsel %vm2548, %v2537, %v2539
    %v2590 = vsel %vm2548, %v2539, %v2541
    %v2591 = vsel %vm2548, %v2543, %v2545
    %v2592 = vsel %vm2548, %v2545, %v2547
    %v2638 = vsel %vm612, %v2400, 0
    %v2641 = vsel %vm612, %v2402, 0
    %2643 = vmatprep.subr.mxu0 %v2580
    %2644 = vmatpush1.msra.mxu0 %v2579
    %2645 = vmatprep.subr.mxu0 %v2578
    %2646 = vmatpush1.msra.mxu0 %v2577
    %2647 = vmatprep.subr.mxu0 %v2576
    %2648 = vmatpush1.msra.mxu0 %v2575
    %2649 = vmatprep.subr.mxu0 %v2574
    %2650 = vmatpush1.msra.mxu0 %v2573
    %2651 = vmatprep.subr.mxu0 %v2572
    %2652 = vmatpush1.msra.mxu0 %v2571
    %2653 = vmatprep.subr.mxu0 %v2570
    %2654 = vmatpush1.msra.mxu0 %v2569
    %2655 = vmatprep.subr.mxu0 %v2568
    %2656 = vmatpush1.msra.mxu0 %v2567
    %2657 = vmatprep.subr.mxu0 %v2566
    %2658 = vmatpush1.msra.mxu0 %v2565
    %2659 = vmatprep.subr.mxu0 %v2564
    %2660 = vmatpush1.msra.mxu0 %v2563
    %2661 = vmatprep.subr.mxu0 %v2562
    %2662 = vmatpush1.msra.mxu0 %v2561
    %2663 = vmatprep.subr.mxu0 %v2560
    %2664 = vmatpush1.msra.mxu0 %v2559
    %2665 = vmatprep.subr.mxu0 %v2558
    %2666 = vmatpush1.msra.mxu0 %v2557
    %2667 = vmatprep.subr.mxu0 %v2556
    %2668 = vmatpush1.msra.mxu0 %v2555
    %2669 = vmatprep.subr.mxu0 %v2554
    %2670 = vmatpush1.msra.mxu0 %v2553
    %2671 = vmatprep.subr.mxu0 %v2552
    %2672 = vmatpush1.msra.mxu0 %v2551
    %2673 = vmatprep.subr.mxu0 %v2550
    %2674 = vmatpush1.msra.mxu0 %v2549
    %2675 = vmatprep.subr.mxu0 0.0
    %2676 = vmatpush2.msra.mxu0 0.0
    %2677 = vmatprep.subr.mxu0 0.0
    %2678 = vmatpush2.msra.mxu0 0.0
    %2679 = vmatprep.subr.mxu0 0.0
    %2680 = vmatpush2.msra.mxu0 0.0
    %2681 = vmatprep.subr.mxu0 0.0
    %2682 = vmatpush2.msra.mxu0 0.0
    %2683 = vmatprep.subr.mxu0 0.0
    %2684 = vmatpush2.msra.mxu0 0.0
    %2685 = vmatprep.subr.mxu0 0.0
    %2686 = vmatpush2.msra.mxu0 0.0
    %2687 = vmatprep.subr.mxu0 0.0
    %2688 = vmatpush2.msra.mxu0 0.0
    %2689 = vmatprep.subr.mxu0 0.0
    %2690 = vmatpush2.msra.mxu0 0.0
    %2691 = vmatprep.subr.mxu0 0.0
    %2692 = vmatpush2.msra.mxu0 0.0
    %2693 = vmatprep.subr.mxu0 0.0
    %2694 = vmatpush2.msra.mxu0 0.0
    %2695 = vmatprep.subr.mxu0 %v2592
    %2696 = vmatpush2.msra.mxu0 %v2591
    %2697 = vmatprep.subr.mxu0 %v2590
    %2698 = vmatpush2.msra.mxu0 %v2589
    %2699 = vmatprep.subr.mxu0 %v2588
    %2700 = vmatpush2.msra.mxu0 %v2587
    %2701 = vmatprep.subr.mxu0 %v2586
    %2702 = vmatpush2.msra.mxu0 %v2585
    %2703 = vmatprep.subr.mxu0 %v2584
    %2704 = vmatpush2.msra.mxu0 %v2583
    %2705 = vmatprep.subr.mxu0 %v2582
    %2706 = vmatpush2.msra.mxu0 %v2581
    %2707 = vmatprep.mubr.f32.mxu0 %v2638
    %2708 = vmatmul.mubr.f32.gmra.mxu0 %v2399
    %v2709 = vpop.f32.mrf.mxu0
    %v2710 = vadd.f32 %v2409, %v2709
    %v2711 = vpop.f32.mrf.mxu0
    %v2712 = vadd.f32 %v2409, %v2711
    %2713 = vmatprep.mubr.f32.mxu0 %v2641
    %2714 = vmatmul.mubr.f32.gmra.mxu0 %v2401
    %v2715 = vpop.f32.mrf.mxu0
    %v2716 = vadd.f32 %v2414, %v2715
    %v2717 = vpop.f32.mrf.mxu0
    %v2718 = vadd.f32 %v2414, %v2717
    %2719 = vdwg.mxu0
    %v2720 = vtanh.pop %v2710
    %v2721 = vtanh.pop %v2712
    %v2722 = vtanh.pop %v2716
    %v2723 = vtanh.pop %v2718
    %v2724 = vsel %vm91, %v2720, 0.0
    %v2725 = vsel %vm92, %v2721, 0.0
    %v2726 = vsel %vm91, %v2722, 0.0
    %v2727 = vsel %vm92, %v2723, 0.0
    %2728 = vst [vmem:[#allocation2 + $0x8] sm:$0xff] %v2724
    %2729 = vst [vmem:[#allocation2 + $0x10] sm:$0xff] %v2725
    %2730 = vst [vmem:[#allocation2 + $0x20] sm:$0xff] %v2726
    %2731 = vst [vmem:[#allocation2 + $0x28] sm:$0xff] %v2727
    %v2732 = vld [vmem:[#allocation2] sm:$0xff]
    %v2733 = vld [vmem:[#allocation2 + $0x8] sm:$0xff]
    %v2734 = vld [vmem:[#allocation2 + $0x10] sm:$0xff]
    %v2735 = vld [vmem:[#allocation2 + $0x18] sm:$0xff]
    %v2736 = vld [vmem:[#allocation2 + $0x20] sm:$0xff]
    %v2737 = vld [vmem:[#allocation2 + $0x28] sm:$0xff]
    %2744 = vrot.lane.b32.xlu0 %v2732, 124
    %v2745 = vpop.permute.xlu0 %2744
    %2746 = vrot.lane.b32.xlu0 %v2733, 124
    %v2747 = vpop.permute.xlu0 %2746
    %2748 = vrot.lane.b32.xlu0 %v2734, 124
    %v2749 = vpop.permute.xlu0 %2748
    %2750 = vrot.lane.b32.xlu0 %v2735, 124
    %v2751 = vpop.permute.xlu0 %2750
    %2752 = vrot.lane.b32.xlu0 %v2736, 124
    %v2753 = vpop.permute.xlu0 %2752
    %2754 = vrot.lane.b32.xlu0 %v2737, 124
    %v2755 = vpop.permute.xlu0 %2754
    %v2756 = vsel %vm274, %v2745, %v2747
    %v2757 = vsel %vm274, %v2747, %v2749
    %v2758 = vsel %vm274, %v2751, %v2753
    %v2759 = vsel %vm274, %v2753, %v2755
    %2760 = vrot.lane.b32.xlu0 %v2732, 120
    %v2761 = vpop.permute.xlu0 %2760
    %2762 = vrot.lane.b32.xlu0 %v2733, 120
    %v2763 = vpop.permute.xlu0 %2762
    %2764 = vrot.lane.b32.xlu0 %v2734, 120
    %v2765 = vpop.permute.xlu0 %2764
    %2766 = vrot.lane.b32.xlu0 %v2735, 120
    %v2767 = vpop.permute.xlu0 %2766
    %2768 = vrot.lane.b32.xlu0 %v2736, 120
    %v2769 = vpop.permute.xlu0 %2768
    %2770 = vrot.lane.b32.xlu0 %v2737, 120
    %v2771 = vpop.permute.xlu0 %2770
    %v2772 = vsel %vm342, %v2761, %v2763
    %v2773 = vsel %vm342, %v2763, %v2765
    %v2774 = vsel %vm342, %v2767, %v2769
    %v2775 = vsel %vm342, %v2769, %v2771
    %2776 = vrot.lane.b32.xlu0 %v2732, 116
    %v2777 = vpop.permute.xlu0 %2776
    %2778 = vrot.lane.b32.xlu0 %v2733, 116
    %v2779 = vpop.permute.xlu0 %2778
    %2780 = vrot.lane.b32.xlu0 %v2734, 116
    %v2781 = vpop.permute.xlu0 %2780
    %2782 = vrot.lane.b32.xlu0 %v2735, 116
    %v2783 = vpop.permute.xlu0 %2782
    %2784 = vrot.lane.b32.xlu0 %v2736, 116
    %v2785 = vpop.permute.xlu0 %2784
    %2786 = vrot.lane.b32.xlu0 %v2737, 116
    %v2787 = vpop.permute.xlu0 %2786
    %v2788 = vsel %vm1319, %v2777, %v2779
    %v2789 = vsel %vm1319, %v2779, %v2781
    %v2790 = vsel %vm1319, %v2783, %v2785
    %v2791 = vsel %vm1319, %v2785, %v2787
    %2792 = vrot.lane.b32.xlu0 %v2732, 112
    %v2793 = vpop.permute.xlu0 %2792
    %2794 = vrot.lane.b32.xlu0 %v2733, 112
    %v2795 = vpop.permute.xlu0 %2794
    %2796 = vrot.lane.b32.xlu0 %v2734, 112
    %v2797 = vpop.permute.xlu0 %2796
    %2798 = vrot.lane.b32.xlu0 %v2735, 112
    %v2799 = vpop.permute.xlu0 %2798
    %2800 = vrot.lane.b32.xlu0 %v2736, 112
    %v2801 = vpop.permute.xlu0 %2800
    %2802 = vrot.lane.b32.xlu0 %v2737, 112
    %v2803 = vpop.permute.xlu0 %2802
    %v2804 = vsel %vm1353, %v2793, %v2795
    %v2805 = vsel %vm1353, %v2795, %v2797
    %v2806 = vsel %vm1353, %v2799, %v2801
    %v2807 = vsel %vm1353, %v2801, %v2803
    %2808 = vrot.lane.b32.xlu0 %v2732, 108
    %v2809 = vpop.permute.xlu0 %2808
    %2810 = vrot.lane.b32.xlu0 %v2733, 108
    %v2811 = vpop.permute.xlu0 %2810
    %2812 = vrot.lane.b32.xlu0 %v2734, 108
    %v2813 = vpop.permute.xlu0 %2812
    %2814 = vrot.lane.b32.xlu0 %v2735, 108
    %v2815 = vpop.permute.xlu0 %2814
    %2816 = vrot.lane.b32.xlu0 %v2736, 108
    %v2817 = vpop.permute.xlu0 %2816
    %2818 = vrot.lane.b32.xlu0 %v2737, 108
    %v2819 = vpop.permute.xlu0 %2818
    %v2820 = vsel %vm1383, %v2809, %v2811
    %v2821 = vsel %vm1383, %v2811, %v2813
    %v2822 = vsel %vm1383, %v2815, %v2817
    %v2823 = vsel %vm1383, %v2817, %v2819
    %2824 = vrot.lane.b32.xlu0 %v2732, 104
    %v2825 = vpop.permute.xlu0 %2824
    %2826 = vrot.lane.b32.xlu0 %v2733, 104
    %v2827 = vpop.permute.xlu0 %2826
    %2828 = vrot.lane.b32.xlu0 %v2734, 104
    %v2829 = vpop.permute.xlu0 %2828
    %2830 = vrot.lane.b32.xlu0 %v2735, 104
    %v2831 = vpop.permute.xlu0 %2830
    %2832 = vrot.lane.b32.xlu0 %v2736, 104
    %v2833 = vpop.permute.xlu0 %2832
    %2834 = vrot.lane.b32.xlu0 %v2737, 104
    %v2835 = vpop.permute.xlu0 %2834
    %v2836 = vsel %vm2331, %v2825, %v2827
    %v2837 = vsel %vm2331, %v2827, %v2829
    %v2838 = vsel %vm2331, %v2831, %v2833
    %v2839 = vsel %vm2331, %v2833, %v2835
    %2840 = vrot.lane.b32.xlu0 %v2732, 100
    %v2841 = vpop.permute.xlu0 %2840
    %2842 = vrot.lane.b32.xlu0 %v2733, 100
    %v2843 = vpop.permute.xlu0 %2842
    %2844 = vrot.lane.b32.xlu0 %v2734, 100
    %v2845 = vpop.permute.xlu0 %2844
    %2846 = vrot.lane.b32.xlu0 %v2735, 100
    %v2847 = vpop.permute.xlu0 %2846
    %2848 = vrot.lane.b32.xlu0 %v2736, 100
    %v2849 = vpop.permute.xlu0 %2848
    %2850 = vrot.lane.b32.xlu0 %v2737, 100
    %v2851 = vpop.permute.xlu0 %2850
    %v2852 = vsel %vm2348, %v2841, %v2843
    %v2853 = vsel %vm2348, %v2843, %v2845
    %v2854 = vsel %vm2348, %v2847, %v2849
    %v2855 = vsel %vm2348, %v2849, %v2851
    %2856 = vrot.lane.b32.xlu0 %v2732, 96
    %v2857 = vpop.permute.xlu0 %2856
    %2858 = vrot.lane.b32.xlu0 %v2733, 96
    %v2859 = vpop.permute.xlu0 %2858
    %2860 = vrot.lane.b32.xlu0 %v2734, 96
    %v2861 = vpop.permute.xlu0 %2860
    %2862 = vrot.lane.b32.xlu0 %v2735, 96
    %v2863 = vpop.permute.xlu0 %2862
    %2864 = vrot.lane.b32.xlu0 %v2736, 96
    %v2865 = vpop.permute.xlu0 %2864
    %2866 = vrot.lane.b32.xlu0 %v2737, 96
    %v2867 = vpop.permute.xlu0 %2866
    %v2868 = vsel %vm2365, %v2857, %v2859
    %v2869 = vsel %vm2365, %v2859, %v2861
    %v2870 = vsel %vm2365, %v2863, %v2865
    %v2871 = vsel %vm2365, %v2865, %v2867
    %2872 = vrot.lane.b32.xlu0 %v2732, 92
    %v2873 = vpop.permute.xlu0 %2872
    %2874 = vrot.lane.b32.xlu0 %v2733, 92
    %v2875 = vpop.permute.xlu0 %2874
    %2876 = vrot.lane.b32.xlu0 %v2734, 92
    %v2877 = vpop.permute.xlu0 %2876
    %2878 = vrot.lane.b32.xlu0 %v2735, 92
    %v2879 = vpop.permute.xlu0 %2878
    %2880 = vrot.lane.b32.xlu0 %v2736, 92
    %v2881 = vpop.permute.xlu0 %2880
    %2882 = vrot.lane.b32.xlu0 %v2737, 92
    %v2883 = vpop.permute.xlu0 %2882
    %v2884 = vsel %vm2382, %v2873, %v2875
    %v2885 = vsel %vm2382, %v2875, %v2877
    %v2886 = vsel %vm2382, %v2879, %v2881
    %v2887 = vsel %vm2382, %v2881, %v2883
    %2888 = vrot.lane.b32.xlu0 %v2733, 88
    %v2889 = vpop.permute.xlu0 %2888
    %2890 = vrot.lane.b32.xlu0 %v2734, 88
    %v2891 = vpop.permute.xlu0 %2890
    %2892 = vrot.lane.b32.xlu0 %v2736, 88
    %v2893 = vpop.permute.xlu0 %2892
    %2894 = vrot.lane.b32.xlu0 %v2737, 88
    %v2895 = vpop.permute.xlu0 %2894
    %v2896 = vsel %vm2395, %v2889, %v2891
    %v2897 = vsel %vm2395, %v2893, %v2895
    %s2898 = scalar_lea.vmem [#allocation3], 160
    %v2899 = vld [vmem:[%s2898] sm:$0xff]
    %v2900 = vld [vmem:[%s2898 + $0x8] sm:$0xff]
    %v2901 = vld [vmem:[%s2898 + $0x10] sm:$0xff]
    %v2902 = vld [vmem:[%s2898 + $0x18] sm:$0xff]
    %s2903 = scalar_lea.vmem %s2, 80
    %v2904 = vld [vmem:[%s2903] sm:$0xff]
    %v2905 = vld [vmem:[%s2903 + $0x8] sm:$0xff]
    %2907 = vset.pattern.permute.xlu0 0
    %2908 = vperm.xlu0 %2907, %v2904
    %v2909 = vpop.permute.xlu0 %2908
    %2912 = vset.pattern.permute.xlu0 0
    %2913 = vperm.xlu0 %2912, %v2905
    %v2914 = vpop.permute.xlu0 %2913
    %2916 = vrot.lane.b32.xlu0 %v2732, 40
    %v2917 = vpop.permute.xlu0 %2916
    %2918 = vrot.lane.b32.xlu0 %v2733, 40
    %v2919 = vpop.permute.xlu0 %2918
    %2920 = vrot.lane.b32.xlu0 %v2734, 40
    %v2921 = vpop.permute.xlu0 %2920
    %2922 = vrot.lane.b32.xlu0 %v2735, 40
    %v2923 = vpop.permute.xlu0 %2922
    %2924 = vrot.lane.b32.xlu0 %v2736, 40
    %v2925 = vpop.permute.xlu0 %2924
    %2926 = vrot.lane.b32.xlu0 %v2737, 40
    %v2927 = vpop.permute.xlu0 %2926
    %2928 = vrot.lane.b32.xlu0 %v2756, 40
    %v2929 = vpop.permute.xlu0 %2928
    %2930 = vrot.lane.b32.xlu0 %v2757, 40
    %v2931 = vpop.permute.xlu0 %2930
    %2932 = vrot.lane.b32.xlu0 %v2749, 40
    %v2933 = vpop.permute.xlu0 %2932
    %2934 = vrot.lane.b32.xlu0 %v2758, 40
    %v2935 = vpop.permute.xlu0 %2934
    %2936 = vrot.lane.b32.xlu0 %v2759, 40
    %v2937 = vpop.permute.xlu0 %2936
    %2938 = vrot.lane.b32.xlu0 %v2755, 40
    %v2939 = vpop.permute.xlu0 %2938
    %2940 = vrot.lane.b32.xlu0 %v2772, 40
    %v2941 = vpop.permute.xlu0 %2940
    %2942 = vrot.lane.b32.xlu0 %v2773, 40
    %v2943 = vpop.permute.xlu0 %2942
    %2944 = vrot.lane.b32.xlu0 %v2765, 40
    %v2945 = vpop.permute.xlu0 %2944
    %2946 = vrot.lane.b32.xlu0 %v2774, 40
    %v2947 = vpop.permute.xlu0 %2946
    %2948 = vrot.lane.b32.xlu0 %v2775, 40
    %v2949 = vpop.permute.xlu0 %2948
    %2950 = vrot.lane.b32.xlu0 %v2771, 40
    %v2951 = vpop.permute.xlu0 %2950
    %2952 = vrot.lane.b32.xlu0 %v2788, 40
    %v2953 = vpop.permute.xlu0 %2952
    %2954 = vrot.lane.b32.xlu0 %v2789, 40
    %v2955 = vpop.permute.xlu0 %2954
    %2956 = vrot.lane.b32.xlu0 %v2781, 40
    %v2957 = vpop.permute.xlu0 %2956
    %2958 = vrot.lane.b32.xlu0 %v2790, 40
    %v2959 = vpop.permute.xlu0 %2958
    %2960 = vrot.lane.b32.xlu0 %v2791, 40
    %v2961 = vpop.permute.xlu0 %2960
    %2962 = vrot.lane.b32.xlu0 %v2787, 40
    %v2963 = vpop.permute.xlu0 %2962
    %2964 = vrot.lane.b32.xlu0 %v2804, 40
    %v2965 = vpop.permute.xlu0 %2964
    %2966 = vrot.lane.b32.xlu0 %v2805, 40
    %v2967 = vpop.permute.xlu0 %2966
    %2968 = vrot.lane.b32.xlu0 %v2797, 40
    %v2969 = vpop.permute.xlu0 %2968
    %2970 = vrot.lane.b32.xlu0 %v2806, 40
    %v2971 = vpop.permute.xlu0 %2970
    %2972 = vrot.lane.b32.xlu0 %v2807, 40
    %v2973 = vpop.permute.xlu0 %2972
    %2974 = vrot.lane.b32.xlu0 %v2803, 40
    %v2975 = vpop.permute.xlu0 %2974
    %2976 = vrot.lane.b32.xlu0 %v2820, 40
    %v2977 = vpop.permute.xlu0 %2976
    %2978 = vrot.lane.b32.xlu0 %v2821, 40
    %v2979 = vpop.permute.xlu0 %2978
    %2980 = vrot.lane.b32.xlu0 %v2813, 40
    %v2981 = vpop.permute.xlu0 %2980
    %2982 = vrot.lane.b32.xlu0 %v2822, 40
    %v2983 = vpop.permute.xlu0 %2982
    %2984 = vrot.lane.b32.xlu0 %v2823, 40
    %v2985 = vpop.permute.xlu0 %2984
    %2986 = vrot.lane.b32.xlu0 %v2819, 40
    %v2987 = vpop.permute.xlu0 %2986
    %2988 = vrot.lane.b32.xlu0 %v2836, 40
    %v2989 = vpop.permute.xlu0 %2988
    %2990 = vrot.lane.b32.xlu0 %v2837, 40
    %v2991 = vpop.permute.xlu0 %2990
    %2992 = vrot.lane.b32.xlu0 %v2829, 40
    %v2993 = vpop.permute.xlu0 %2992
    %2994 = vrot.lane.b32.xlu0 %v2838, 40
    %v2995 = vpop.permute.xlu0 %2994
    %2996 = vrot.lane.b32.xlu0 %v2839, 40
    %v2997 = vpop.permute.xlu0 %2996
    %2998 = vrot.lane.b32.xlu0 %v2835, 40
    %v2999 = vpop.permute.xlu0 %2998
    %3000 = vrot.lane.b32.xlu0 %v2852, 40
    %v3001 = vpop.permute.xlu0 %3000
    %3002 = vrot.lane.b32.xlu0 %v2853, 40
    %v3003 = vpop.permute.xlu0 %3002
    %3004 = vrot.lane.b32.xlu0 %v2845, 40
    %v3005 = vpop.permute.xlu0 %3004
    %3006 = vrot.lane.b32.xlu0 %v2854, 40
    %v3007 = vpop.permute.xlu0 %3006
    %3008 = vrot.lane.b32.xlu0 %v2855, 40
    %v3009 = vpop.permute.xlu0 %3008
    %3010 = vrot.lane.b32.xlu0 %v2851, 40
    %v3011 = vpop.permute.xlu0 %3010
    %3012 = vrot.lane.b32.xlu0 %v2868, 40
    %v3013 = vpop.permute.xlu0 %3012
    %3014 = vrot.lane.b32.xlu0 %v2869, 40
    %v3015 = vpop.permute.xlu0 %3014
    %3016 = vrot.lane.b32.xlu0 %v2861, 40
    %v3017 = vpop.permute.xlu0 %3016
    %3018 = vrot.lane.b32.xlu0 %v2870, 40
    %v3019 = vpop.permute.xlu0 %3018
    %3020 = vrot.lane.b32.xlu0 %v2871, 40
    %v3021 = vpop.permute.xlu0 %3020
    %3022 = vrot.lane.b32.xlu0 %v2867, 40
    %v3023 = vpop.permute.xlu0 %3022
    %3024 = vrot.lane.b32.xlu0 %v2884, 40
    %v3025 = vpop.permute.xlu0 %3024
    %3026 = vrot.lane.b32.xlu0 %v2885, 40
    %v3027 = vpop.permute.xlu0 %3026
    %3028 = vrot.lane.b32.xlu0 %v2877, 40
    %v3029 = vpop.permute.xlu0 %3028
    %3030 = vrot.lane.b32.xlu0 %v2886, 40
    %v3031 = vpop.permute.xlu0 %3030
    %3032 = vrot.lane.b32.xlu0 %v2887, 40
    %v3033 = vpop.permute.xlu0 %3032
    %3034 = vrot.lane.b32.xlu0 %v2883, 40
    %v3035 = vpop.permute.xlu0 %3034
    %3036 = vrot.lane.b32.xlu0 %v2889, 40
    %v3037 = vpop.permute.xlu0 %3036
    %3038 = vrot.lane.b32.xlu0 %v2896, 40
    %v3039 = vpop.permute.xlu0 %3038
    %3040 = vrot.lane.b32.xlu0 %v2891, 40
    %v3041 = vpop.permute.xlu0 %3040
    %3042 = vrot.lane.b32.xlu0 %v2893, 40
    %v3043 = vpop.permute.xlu0 %3042
    %3044 = vrot.lane.b32.xlu0 %v2897, 40
    %v3045 = vpop.permute.xlu0 %3044
    %3046 = vrot.lane.b32.xlu0 %v2895, 40
    %v3047 = vpop.permute.xlu0 %3046
    %v3048 = vsel %vm2548, %v2917, %v2919
    %v3049 = vsel %vm2548, %v2919, %v2921
    %v3050 = vsel %vm2548, %v2923, %v2925
    %v3051 = vsel %vm2548, %v2925, %v2927
    %v3052 = vsel %vm2548, %v2929, %v2931
    %v3053 = vsel %vm2548, %v2931, %v2933
    %v3054 = vsel %vm2548, %v2935, %v2937
    %v3055 = vsel %vm2548, %v2937, %v2939
    %v3056 = vsel %vm2548, %v2941, %v2943
    %v3057 = vsel %vm2548, %v2943, %v2945
    %v3058 = vsel %vm2548, %v2947, %v2949
    %v3059 = vsel %vm2548, %v2949, %v2951
    %v3060 = vsel %vm2548, %v2953, %v2955
    %v3061 = vsel %vm2548, %v2955, %v2957
    %v3062 = vsel %vm2548, %v2959, %v2961
    %v3063 = vsel %vm2548, %v2961, %v2963
    %v3064 = vsel %vm2548, %v2965, %v2967
    %v3065 = vsel %vm2548, %v2967, %v2969
    %v3066 = vsel %vm2548, %v2971, %v2973
    %v3067 = vsel %vm2548, %v2973, %v2975
    %v3068 = vsel %vm2548, %v2977, %v2979
    %v3069 = vsel %vm2548, %v2979, %v2981
    %v3070 = vsel %vm2548, %v2983, %v2985
    %v3071 = vsel %vm2548, %v2985, %v2987
    %v3072 = vsel %vm2548, %v2989, %v2991
    %v3073 = vsel %vm2548, %v2991, %v2993
    %v3074 = vsel %vm2548, %v2995, %v2997
    %v3075 = vsel %vm2548, %v2997, %v2999
    %v3076 = vsel %vm2548, %v3001, %v3003
    %v3077 = vsel %vm2548, %v3003, %v3005
    %v3078 = vsel %vm2548, %v3007, %v3009
    %v3079 = vsel %vm2548, %v3009, %v3011
    %v3080 = vsel %vm2548, %v3013, %v3015
    %v3081 = vsel %vm2548, %v3015, %v3017
    %v3082 = vsel %vm2548, %v3019, %v3021
    %v3083 = vsel %vm2548, %v3021, %v3023
    %v3084 = vsel %vm2548, %v3025, %v3027
    %v3085 = vsel %vm2548, %v3027, %v3029
    %v3086 = vsel %vm2548, %v3031, %v3033
    %v3087 = vsel %vm2548, %v3033, %v3035
    %v3088 = vsel %vm2548, %v3037, %v3039
    %v3089 = vsel %vm2548, %v3039, %v3041
    %v3090 = vsel %vm2548, %v3043, %v3045
    %v3091 = vsel %vm2548, %v3045, %v3047
    %v3137 = vsel %vm612, %v2900, 0
    %v3140 = vsel %vm612, %v2902, 0
    %3142 = vmatprep.subr.mxu0 %v3079
    %3143 = vmatpush1.msra.mxu0 %v3078
    %3144 = vmatprep.subr.mxu0 %v3077
    %3145 = vmatpush1.msra.mxu0 %v3076
    %3146 = vmatprep.subr.mxu0 %v3075
    %3147 = vmatpush1.msra.mxu0 %v3074
    %3148 = vmatprep.subr.mxu0 %v3073
    %3149 = vmatpush1.msra.mxu0 %v3072
    %3150 = vmatprep.subr.mxu0 %v3071
    %3151 = vmatpush1.msra.mxu0 %v3070
    %3152 = vmatprep.subr.mxu0 %v3069
    %3153 = vmatpush1.msra.mxu0 %v3068
    %3154 = vmatprep.subr.mxu0 %v3067
    %3155 = vmatpush1.msra.mxu0 %v3066
    %3156 = vmatprep.subr.mxu0 %v3065
    %3157 = vmatpush1.msra.mxu0 %v3064
    %3158 = vmatprep.subr.mxu0 %v3063
    %3159 = vmatpush1.msra.mxu0 %v3062
    %3160 = vmatprep.subr.mxu0 %v3061
    %3161 = vmatpush1.msra.mxu0 %v3060
    %3162 = vmatprep.subr.mxu0 %v3059
    %3163 = vmatpush1.msra.mxu0 %v3058
    %3164 = vmatprep.subr.mxu0 %v3057
    %3165 = vmatpush1.msra.mxu0 %v3056
    %3166 = vmatprep.subr.mxu0 %v3055
    %3167 = vmatpush1.msra.mxu0 %v3054
    %3168 = vmatprep.subr.mxu0 %v3053
    %3169 = vmatpush1.msra.mxu0 %v3052
    %3170 = vmatprep.subr.mxu0 %v3051
    %3171 = vmatpush1.msra.mxu0 %v3050
    %3172 = vmatprep.subr.mxu0 %v3049
    %3173 = vmatpush1.msra.mxu0 %v3048
    %3174 = vmatprep.subr.mxu0 0.0
    %3175 = vmatpush2.msra.mxu0 0.0
    %3176 = vmatprep.subr.mxu0 0.0
    %3177 = vmatpush2.msra.mxu0 0.0
    %3178 = vmatprep.subr.mxu0 0.0
    %3179 = vmatpush2.msra.mxu0 0.0
    %3180 = vmatprep.subr.mxu0 0.0
    %3181 = vmatpush2.msra.mxu0 0.0
    %3182 = vmatprep.subr.mxu0 0.0
    %3183 = vmatpush2.msra.mxu0 0.0
    %3184 = vmatprep.subr.mxu0 0.0
    %3185 = vmatpush2.msra.mxu0 0.0
    %3186 = vmatprep.subr.mxu0 0.0
    %3187 = vmatpush2.msra.mxu0 0.0
    %3188 = vmatprep.subr.mxu0 0.0
    %3189 = vmatpush2.msra.mxu0 0.0
    %3190 = vmatprep.subr.mxu0 0.0
    %3191 = vmatpush2.msra.mxu0 0.0
    %3192 = vmatprep.subr.mxu0 0.0
    %3193 = vmatpush2.msra.mxu0 0.0
    %3194 = vmatprep.subr.mxu0 %v3091
    %3195 = vmatpush2.msra.mxu0 %v3090
    %3196 = vmatprep.subr.mxu0 %v3089
    %3197 = vmatpush2.msra.mxu0 %v3088
    %3198 = vmatprep.subr.mxu0 %v3087
    %3199 = vmatpush2.msra.mxu0 %v3086
    %3200 = vmatprep.subr.mxu0 %v3085
    %3201 = vmatpush2.msra.mxu0 %v3084
    %3202 = vmatprep.subr.mxu0 %v3083
    %3203 = vmatpush2.msra.mxu0 %v3082
    %3204 = vmatprep.subr.mxu0 %v3081
    %3205 = vmatpush2.msra.mxu0 %v3080
    %3206 = vmatprep.mubr.f32.mxu0 %v3137
    %3207 = vmatmul.mubr.f32.gmra.mxu0 %v2899
    %v3208 = vpop.f32.mrf.mxu0
    %v3209 = vadd.f32 %v2909, %v3208
    %v3210 = vpop.f32.mrf.mxu0
    %v3211 = vadd.f32 %v2909, %v3210
    %3212 = vmatprep.mubr.f32.mxu0 %v3140
    %3213 = vmatmul.mubr.f32.gmra.mxu0 %v2901
    %v3214 = vpop.f32.mrf.mxu0
    %v3215 = vadd.f32 %v2914, %v3214
    %v3216 = vpop.f32.mrf.mxu0
    %v3217 = vadd.f32 %v2914, %v3216
    %3218 = vdwg.mxu0
    %v3219 = vtanh.pop %v3209
    %v3220 = vtanh.pop %v3211
    %v3221 = vtanh.pop %v3215
    %v3222 = vtanh.pop %v3217
    %v3223 = vadd.f32 %v3219, %v2219
    %v3224 = vadd.f32 %v3220, %v2220
    %v3225 = vadd.f32 %v3221, %v2221
    %v3226 = vadd.f32 %v3222, %v2222
    %v3227 = vtanh.pop %v3223
    %v3228 = vtanh.pop %v3224
    %v3229 = vtanh.pop %v3225
    %v3230 = vtanh.pop %v3226
    %v3231 = vsel %vm91, %v3227, 0.0
    %v3232 = vsel %vm92, %v3228, 0.0
    %v3233 = vsel %vm91, %v3229, 0.0
    %v3234 = vsel %vm92, %v3230, 0.0
    %3235 = vst [vmem:[#allocation2 + $0x8] sm:$0xff] %v3231
    %3236 = vst [vmem:[#allocation2 + $0x10] sm:$0xff] %v3232
    %3237 = vst [vmem:[#allocation2 + $0x20] sm:$0xff] %v3233
    %3238 = vst [vmem:[#allocation2 + $0x28] sm:$0xff] %v3234
    %v3239 = vld [vmem:[#allocation2] sm:$0xff]
    %v3240 = vld [vmem:[#allocation2 + $0x8] sm:$0xff]
    %v3241 = vld [vmem:[#allocation2 + $0x10] sm:$0xff]
    %v3242 = vld [vmem:[#allocation2 + $0x18] sm:$0xff]
    %v3243 = vld [vmem:[#allocation2 + $0x20] sm:$0xff]
    %v3244 = vld [vmem:[#allocation2 + $0x28] sm:$0xff]
    %3251 = vrot.lane.b32.xlu0 %v3239, 120
    %v3252 = vpop.permute.xlu0 %3251
    %3253 = vrot.lane.b32.xlu0 %v3240, 120
    %v3254 = vpop.permute.xlu0 %3253
    %3255 = vrot.lane.b32.xlu0 %v3241, 120
    %v3256 = vpop.permute.xlu0 %3255
    %3257 = vrot.lane.b32.xlu0 %v3242, 120
    %v3258 = vpop.permute.xlu0 %3257
    %3259 = vrot.lane.b32.xlu0 %v3243, 120
    %v3260 = vpop.permute.xlu0 %3259
    %3261 = vrot.lane.b32.xlu0 %v3244, 120
    %v3262 = vpop.permute.xlu0 %3261
    %v3263 = vsel %vm342, %v3252, %v3254
    %v3264 = vsel %vm342, %v3254, %v3256
    %v3265 = vsel %vm342, %v3258, %v3260
    %v3266 = vsel %vm342, %v3260, %v3262
    %3267 = vrot.lane.b32.xlu0 %v3239, 112
    %v3268 = vpop.permute.xlu0 %3267
    %3269 = vrot.lane.b32.xlu0 %v3240, 112
    %v3270 = vpop.permute.xlu0 %3269
    %3271 = vrot.lane.b32.xlu0 %v3241, 112
    %v3272 = vpop.permute.xlu0 %3271
    %3273 = vrot.lane.b32.xlu0 %v3242, 112
    %v3274 = vpop.permute.xlu0 %3273
    %3275 = vrot.lane.b32.xlu0 %v3243, 112
    %v3276 = vpop.permute.xlu0 %3275
    %3277 = vrot.lane.b32.xlu0 %v3244, 112
    %v3278 = vpop.permute.xlu0 %3277
    %v3279 = vsel %vm1353, %v3268, %v3270
    %v3280 = vsel %vm1353, %v3270, %v3272
    %v3281 = vsel %vm1353, %v3274, %v3276
    %v3282 = vsel %vm1353, %v3276, %v3278
    %3283 = vrot.lane.b32.xlu0 %v3239, 104
    %v3284 = vpop.permute.xlu0 %3283
    %3285 = vrot.lane.b32.xlu0 %v3240, 104
    %v3286 = vpop.permute.xlu0 %3285
    %3287 = vrot.lane.b32.xlu0 %v3241, 104
    %v3288 = vpop.permute.xlu0 %3287
    %3289 = vrot.lane.b32.xlu0 %v3242, 104
    %v3290 = vpop.permute.xlu0 %3289
    %3291 = vrot.lane.b32.xlu0 %v3243, 104
    %v3292 = vpop.permute.xlu0 %3291
    %3293 = vrot.lane.b32.xlu0 %v3244, 104
    %v3294 = vpop.permute.xlu0 %3293
    %v3295 = vsel %vm2331, %v3284, %v3286
    %v3296 = vsel %vm2331, %v3286, %v3288
    %v3297 = vsel %vm2331, %v3290, %v3292
    %v3298 = vsel %vm2331, %v3292, %v3294
    %3299 = vrot.lane.b32.xlu0 %v3239, 96
    %v3300 = vpop.permute.xlu0 %3299
    %3301 = vrot.lane.b32.xlu0 %v3240, 96
    %v3302 = vpop.permute.xlu0 %3301
    %3303 = vrot.lane.b32.xlu0 %v3241, 96
    %v3304 = vpop.permute.xlu0 %3303
    %3305 = vrot.lane.b32.xlu0 %v3242, 96
    %v3306 = vpop.permute.xlu0 %3305
    %3307 = vrot.lane.b32.xlu0 %v3243, 96
    %v3308 = vpop.permute.xlu0 %3307
    %3309 = vrot.lane.b32.xlu0 %v3244, 96
    %v3310 = vpop.permute.xlu0 %3309
    %v3311 = vsel %vm2365, %v3300, %v3302
    %v3312 = vsel %vm2365, %v3302, %v3304
    %v3313 = vsel %vm2365, %v3306, %v3308
    %v3314 = vsel %vm2365, %v3308, %v3310
    %3315 = vrot.lane.b32.xlu0 %v3239, 88
    %v3316 = vpop.permute.xlu0 %3315
    %3317 = vrot.lane.b32.xlu0 %v3240, 88
    %v3318 = vpop.permute.xlu0 %3317
    %3319 = vrot.lane.b32.xlu0 %v3241, 88
    %v3320 = vpop.permute.xlu0 %3319
    %3321 = vrot.lane.b32.xlu0 %v3242, 88
    %v3322 = vpop.permute.xlu0 %3321
    %3323 = vrot.lane.b32.xlu0 %v3243, 88
    %v3324 = vpop.permute.xlu0 %3323
    %3325 = vrot.lane.b32.xlu0 %v3244, 88
    %v3326 = vpop.permute.xlu0 %3325
    %v3327 = vsel %vm2395, %v3316, %v3318
    %v3328 = vsel %vm2395, %v3318, %v3320
    %v3329 = vsel %vm2395, %v3322, %v3324
    %v3330 = vsel %vm2395, %v3324, %v3326
    %3331 = vrot.lane.b32.xlu0 %v3239, 80
    %v3332 = vpop.permute.xlu0 %3331
    %3333 = vrot.lane.b32.xlu0 %v3240, 80
    %v3334 = vpop.permute.xlu0 %3333
    %3335 = vrot.lane.b32.xlu0 %v3241, 80
    %v3336 = vpop.permute.xlu0 %3335
    %3337 = vrot.lane.b32.xlu0 %v3242, 80
    %v3338 = vpop.permute.xlu0 %3337
    %3339 = vrot.lane.b32.xlu0 %v3243, 80
    %v3340 = vpop.permute.xlu0 %3339
    %3341 = vrot.lane.b32.xlu0 %v3244, 80
    %v3342 = vpop.permute.xlu0 %3341
    %vm3343 = vcmask 654336
    %v3344 = vsel %vm3343, %v3332, %v3334
    %v3345 = vsel %vm3343, %v3334, %v3336
    %v3346 = vsel %vm3343, %v3338, %v3340
    %v3347 = vsel %vm3343, %v3340, %v3342
    %3348 = vrot.lane.b32.xlu0 %v3239, 72
    %v3349 = vpop.permute.xlu0 %3348
    %3350 = vrot.lane.b32.xlu0 %v3240, 72
    %v3351 = vpop.permute.xlu0 %3350
    %3352 = vrot.lane.b32.xlu0 %v3241, 72
    %v3353 = vpop.permute.xlu0 %3352
    %3354 = vrot.lane.b32.xlu0 %v3242, 72
    %v3355 = vpop.permute.xlu0 %3354
    %3356 = vrot.lane.b32.xlu0 %v3243, 72
    %v3357 = vpop.permute.xlu0 %3356
    %3358 = vrot.lane.b32.xlu0 %v3244, 72
    %v3359 = vpop.permute.xlu0 %3358
    %vm3360 = vcmask 588800
    %v3361 = vsel %vm3360, %v3349, %v3351
    %v3362 = vsel %vm3360, %v3351, %v3353
    %v3363 = vsel %vm3360, %v3355, %v3357
    %v3364 = vsel %vm3360, %v3357, %v3359
    %3365 = vrot.lane.b32.xlu0 %v3239, 64
    %v3366 = vpop.permute.xlu0 %3365
    %3367 = vrot.lane.b32.xlu0 %v3240, 64
    %v3368 = vpop.permute.xlu0 %3367
    %3369 = vrot.lane.b32.xlu0 %v3241, 64
    %v3370 = vpop.permute.xlu0 %3369
    %3371 = vrot.lane.b32.xlu0 %v3242, 64
    %v3372 = vpop.permute.xlu0 %3371
    %3373 = vrot.lane.b32.xlu0 %v3243, 64
    %v3374 = vpop.permute.xlu0 %3373
    %3375 = vrot.lane.b32.xlu0 %v3244, 64
    %v3376 = vpop.permute.xlu0 %3375
    %vm3377 = vcmask 523264
    %v3378 = vsel %vm3377, %v3366, %v3368
    %v3379 = vsel %vm3377, %v3368, %v3370
    %v3380 = vsel %vm3377, %v3372, %v3374
    %v3381 = vsel %vm3377, %v3374, %v3376
    %3382 = vrot.lane.b32.xlu0 %v3239, 56
    %v3383 = vpop.permute.xlu0 %3382
    %3384 = vrot.lane.b32.xlu0 %v3240, 56
    %v3385 = vpop.permute.xlu0 %3384
    %3386 = vrot.lane.b32.xlu0 %v3241, 56
    %v3387 = vpop.permute.xlu0 %3386
    %3388 = vrot.lane.b32.xlu0 %v3242, 56
    %v3389 = vpop.permute.xlu0 %3388
    %3390 = vrot.lane.b32.xlu0 %v3243, 56
    %v3391 = vpop.permute.xlu0 %3390
    %3392 = vrot.lane.b32.xlu0 %v3244, 56
    %v3393 = vpop.permute.xlu0 %3392
    %vm3394 = vcmask 457728
    %v3395 = vsel %vm3394, %v3383, %v3385
    %v3396 = vsel %vm3394, %v3385, %v3387
    %v3397 = vsel %vm3394, %v3389, %v3391
    %v3398 = vsel %vm3394, %v3391, %v3393
    %3399 = vrot.lane.b32.xlu0 %v3240, 48
    %v3400 = vpop.permute.xlu0 %3399
    %3401 = vrot.lane.b32.xlu0 %v3241, 48
    %v3402 = vpop.permute.xlu0 %3401
    %3403 = vrot.lane.b32.xlu0 %v3243, 48
    %v3404 = vpop.permute.xlu0 %3403
    %3405 = vrot.lane.b32.xlu0 %v3244, 48
    %v3406 = vpop.permute.xlu0 %3405
    %v3407 = vsel %vm612, %v3400, %v3402
    %v3408 = vsel %vm612, %v3404, %v3406
    %s3409 = scalar_lea.vmem [#allocation3], 192
    %v3410 = vld [vmem:[%s3409] sm:$0xff]
    %v3411 = vld [vmem:[%s3409 + $0x8] sm:$0xff]
    %v3412 = vld [vmem:[%s3409 + $0x10] sm:$0xff]
    %v3413 = vld [vmem:[%s3409 + $0x18] sm:$0xff]
    %s3414 = scalar_lea.vmem %s2, 96
    %v3415 = vld [vmem:[%s3414] sm:$0xff]
    %v3416 = vld [vmem:[%s3414 + $0x8] sm:$0xff]
    %3418 = vset.pattern.permute.xlu0 0
    %3419 = vperm.xlu0 %3418, %v3415
    %v3420 = vpop.permute.xlu0 %3419
    %3423 = vset.pattern.permute.xlu0 0
    %3424 = vperm.xlu0 %3423, %v3416
    %v3425 = vpop.permute.xlu0 %3424
    %3427 = vrot.lane.b32.xlu0 %v3263, 80
    %v3428 = vpop.permute.xlu0 %3427
    %3429 = vrot.lane.b32.xlu0 %v3264, 80
    %v3430 = vpop.permute.xlu0 %3429
    %3431 = vrot.lane.b32.xlu0 %v3256, 80
    %v3432 = vpop.permute.xlu0 %3431
    %3433 = vrot.lane.b32.xlu0 %v3265, 80
    %v3434 = vpop.permute.xlu0 %3433
    %3435 = vrot.lane.b32.xlu0 %v3266, 80
    %v3436 = vpop.permute.xlu0 %3435
    %3437 = vrot.lane.b32.xlu0 %v3262, 80
    %v3438 = vpop.permute.xlu0 %3437
    %3439 = vrot.lane.b32.xlu0 %v3279, 80
    %v3440 = vpop.permute.xlu0 %3439
    %3441 = vrot.lane.b32.xlu0 %v3280, 80
    %v3442 = vpop.permute.xlu0 %3441
    %3443 = vrot.lane.b32.xlu0 %v3272, 80
    %v3444 = vpop.permute.xlu0 %3443
    %3445 = vrot.lane.b32.xlu0 %v3281, 80
    %v3446 = vpop.permute.xlu0 %3445
    %3447 = vrot.lane.b32.xlu0 %v3282, 80
    %v3448 = vpop.permute.xlu0 %3447
    %3449 = vrot.lane.b32.xlu0 %v3278, 80
    %v3450 = vpop.permute.xlu0 %3449
    %3451 = vrot.lane.b32.xlu0 %v3295, 80
    %v3452 = vpop.permute.xlu0 %3451
    %3453 = vrot.lane.b32.xlu0 %v3296, 80
    %v3454 = vpop.permute.xlu0 %3453
    %3455 = vrot.lane.b32.xlu0 %v3288, 80
    %v3456 = vpop.permute.xlu0 %3455
    %3457 = vrot.lane.b32.xlu0 %v3297, 80
    %v3458 = vpop.permute.xlu0 %3457
    %3459 = vrot.lane.b32.xlu0 %v3298, 80
    %v3460 = vpop.permute.xlu0 %3459
    %3461 = vrot.lane.b32.xlu0 %v3294, 80
    %v3462 = vpop.permute.xlu0 %3461
    %3463 = vrot.lane.b32.xlu0 %v3311, 80
    %v3464 = vpop.permute.xlu0 %3463
    %3465 = vrot.lane.b32.xlu0 %v3312, 80
    %v3466 = vpop.permute.xlu0 %3465
    %3467 = vrot.lane.b32.xlu0 %v3304, 80
    %v3468 = vpop.permute.xlu0 %3467
    %3469 = vrot.lane.b32.xlu0 %v3313, 80
    %v3470 = vpop.permute.xlu0 %3469
    %3471 = vrot.lane.b32.xlu0 %v3314, 80
    %v3472 = vpop.permute.xlu0 %3471
    %3473 = vrot.lane.b32.xlu0 %v3310, 80
    %v3474 = vpop.permute.xlu0 %3473
    %3475 = vrot.lane.b32.xlu0 %v3327, 80
    %v3476 = vpop.permute.xlu0 %3475
    %3477 = vrot.lane.b32.xlu0 %v3328, 80
    %v3478 = vpop.permute.xlu0 %3477
    %3479 = vrot.lane.b32.xlu0 %v3320, 80
    %v3480 = vpop.permute.xlu0 %3479
    %3481 = vrot.lane.b32.xlu0 %v3329, 80
    %v3482 = vpop.permute.xlu0 %3481
    %3483 = vrot.lane.b32.xlu0 %v3330, 80
    %v3484 = vpop.permute.xlu0 %3483
    %3485 = vrot.lane.b32.xlu0 %v3326, 80
    %v3486 = vpop.permute.xlu0 %3485
    %3487 = vrot.lane.b32.xlu0 %v3344, 80
    %v3488 = vpop.permute.xlu0 %3487
    %3489 = vrot.lane.b32.xlu0 %v3345, 80
    %v3490 = vpop.permute.xlu0 %3489
    %3491 = vrot.lane.b32.xlu0 %v3336, 80
    %v3492 = vpop.permute.xlu0 %3491
    %3493 = vrot.lane.b32.xlu0 %v3346, 80
    %v3494 = vpop.permute.xlu0 %3493
    %3495 = vrot.lane.b32.xlu0 %v3347, 80
    %v3496 = vpop.permute.xlu0 %3495
    %3497 = vrot.lane.b32.xlu0 %v3342, 80
    %v3498 = vpop.permute.xlu0 %3497
    %3499 = vrot.lane.b32.xlu0 %v3361, 80
    %v3500 = vpop.permute.xlu0 %3499
    %3501 = vrot.lane.b32.xlu0 %v3362, 80
    %v3502 = vpop.permute.xlu0 %3501
    %3503 = vrot.lane.b32.xlu0 %v3353, 80
    %v3504 = vpop.permute.xlu0 %3503
    %3505 = vrot.lane.b32.xlu0 %v3363, 80
    %v3506 = vpop.permute.xlu0 %3505
    %3507 = vrot.lane.b32.xlu0 %v3364, 80
    %v3508 = vpop.permute.xlu0 %3507
    %3509 = vrot.lane.b32.xlu0 %v3359, 80
    %v3510 = vpop.permute.xlu0 %3509
    %3511 = vrot.lane.b32.xlu0 %v3378, 80
    %v3512 = vpop.permute.xlu0 %3511
    %3513 = vrot.lane.b32.xlu0 %v3379, 80
    %v3514 = vpop.permute.xlu0 %3513
    %3515 = vrot.lane.b32.xlu0 %v3370, 80
    %v3516 = vpop.permute.xlu0 %3515
    %3517 = vrot.lane.b32.xlu0 %v3380, 80
    %v3518 = vpop.permute.xlu0 %3517
    %3519 = vrot.lane.b32.xlu0 %v3381, 80
    %v3520 = vpop.permute.xlu0 %3519
    %3521 = vrot.lane.b32.xlu0 %v3376, 80
    %v3522 = vpop.permute.xlu0 %3521
    %3523 = vrot.lane.b32.xlu0 %v3395, 80
    %v3524 = vpop.permute.xlu0 %3523
    %3525 = vrot.lane.b32.xlu0 %v3396, 80
    %v3526 = vpop.permute.xlu0 %3525
    %3527 = vrot.lane.b32.xlu0 %v3387, 80
    %v3528 = vpop.permute.xlu0 %3527
    %3529 = vrot.lane.b32.xlu0 %v3397, 80
    %v3530 = vpop.permute.xlu0 %3529
    %3531 = vrot.lane.b32.xlu0 %v3398, 80
    %v3532 = vpop.permute.xlu0 %3531
    %3533 = vrot.lane.b32.xlu0 %v3393, 80
    %v3534 = vpop.permute.xlu0 %3533
    %3535 = vrot.lane.b32.xlu0 %v3400, 80
    %v3536 = vpop.permute.xlu0 %3535
    %3537 = vrot.lane.b32.xlu0 %v3407, 80
    %v3538 = vpop.permute.xlu0 %3537
    %3539 = vrot.lane.b32.xlu0 %v3402, 80
    %v3540 = vpop.permute.xlu0 %3539
    %3541 = vrot.lane.b32.xlu0 %v3404, 80
    %v3542 = vpop.permute.xlu0 %3541
    %3543 = vrot.lane.b32.xlu0 %v3408, 80
    %v3544 = vpop.permute.xlu0 %3543
    %3545 = vrot.lane.b32.xlu0 %v3406, 80
    %v3546 = vpop.permute.xlu0 %3545
    %v3547 = vsel %vm3343, %v3428, %v3430
    %v3548 = vsel %vm3343, %v3430, %v3432
    %v3549 = vsel %vm3343, %v3434, %v3436
    %v3550 = vsel %vm3343, %v3436, %v3438
    %v3551 = vsel %vm3343, %v3440, %v3442
    %v3552 = vsel %vm3343, %v3442, %v3444
    %v3553 = vsel %vm3343, %v3446, %v3448
    %v3554 = vsel %vm3343, %v3448, %v3450
    %v3555 = vsel %vm3343, %v3452, %v3454
    %v3556 = vsel %vm3343, %v3454, %v3456
    %v3557 = vsel %vm3343, %v3458, %v3460
    %v3558 = vsel %vm3343, %v3460, %v3462
    %v3559 = vsel %vm3343, %v3464, %v3466
    %v3560 = vsel %vm3343, %v3466, %v3468
    %v3561 = vsel %vm3343, %v3470, %v3472
    %v3562 = vsel %vm3343, %v3472, %v3474
    %v3563 = vsel %vm3343, %v3476, %v3478
    %v3564 = vsel %vm3343, %v3478, %v3480
    %v3565 = vsel %vm3343, %v3482, %v3484
    %v3566 = vsel %vm3343, %v3484, %v3486
    %v3567 = vsel %vm3343, %v3488, %v3490
    %v3568 = vsel %vm3343, %v3490, %v3492
    %v3569 = vsel %vm3343, %v3494, %v3496
    %v3570 = vsel %vm3343, %v3496, %v3498
    %v3571 = vsel %vm3343, %v3500, %v3502
    %v3572 = vsel %vm3343, %v3502, %v3504
    %v3573 = vsel %vm3343, %v3506, %v3508
    %v3574 = vsel %vm3343, %v3508, %v3510
    %v3575 = vsel %vm3343, %v3512, %v3514
    %v3576 = vsel %vm3343, %v3514, %v3516
    %v3577 = vsel %vm3343, %v3518, %v3520
    %v3578 = vsel %vm3343, %v3520, %v3522
    %v3579 = vsel %vm3343, %v3524, %v3526
    %v3580 = vsel %vm3343, %v3526, %v3528
    %v3581 = vsel %vm3343, %v3530, %v3532
    %v3582 = vsel %vm3343, %v3532, %v3534
    %v3583 = vsel %vm3343, %v3536, %v3538
    %v3584 = vsel %vm3343, %v3538, %v3540
    %v3585 = vsel %vm3343, %v3542, %v3544
    %v3586 = vsel %vm3343, %v3544, %v3546
    %v3632 = vsel %vm612, %v3411, 0
    %v3635 = vsel %vm612, %v3413, 0
    %3637 = vmatprep.subr.mxu0 %v3574
    %3638 = vmatpush1.msra.mxu0 %v3573
    %3639 = vmatprep.subr.mxu0 %v3572
    %3640 = vmatpush1.msra.mxu0 %v3571
    %3641 = vmatprep.subr.mxu0 %v3570
    %3642 = vmatpush1.msra.mxu0 %v3569
    %3643 = vmatprep.subr.mxu0 %v3568
    %3644 = vmatpush1.msra.mxu0 %v3567
    %3645 = vmatprep.subr.mxu0 %v3566
    %3646 = vmatpush1.msra.mxu0 %v3565
    %3647 = vmatprep.subr.mxu0 %v3564
    %3648 = vmatpush1.msra.mxu0 %v3563
    %3649 = vmatprep.subr.mxu0 %v3562
    %3650 = vmatpush1.msra.mxu0 %v3561
    %3651 = vmatprep.subr.mxu0 %v3560
    %3652 = vmatpush1.msra.mxu0 %v3559
    %3653 = vmatprep.subr.mxu0 %v3558
    %3654 = vmatpush1.msra.mxu0 %v3557
    %3655 = vmatprep.subr.mxu0 %v3556
    %3656 = vmatpush1.msra.mxu0 %v3555
    %3657 = vmatprep.subr.mxu0 %v3554
    %3658 = vmatpush1.msra.mxu0 %v3553
    %3659 = vmatprep.subr.mxu0 %v3552
    %3660 = vmatpush1.msra.mxu0 %v3551
    %3661 = vmatprep.subr.mxu0 %v3550
    %3662 = vmatpush1.msra.mxu0 %v3549
    %3663 = vmatprep.subr.mxu0 %v3548
    %3664 = vmatpush1.msra.mxu0 %v3547
    %3665 = vmatprep.subr.mxu0 %v3347
    %3666 = vmatpush1.msra.mxu0 %v3346
    %3667 = vmatprep.subr.mxu0 %v3345
    %3668 = vmatpush1.msra.mxu0 %v3344
    %3669 = vmatprep.subr.mxu0 0.0
    %3670 = vmatpush2.msra.mxu0 0.0
    %3671 = vmatprep.subr.mxu0 0.0
    %3672 = vmatpush2.msra.mxu0 0.0
    %3673 = vmatprep.subr.mxu0 0.0
    %3674 = vmatpush2.msra.mxu0 0.0
    %3675 = vmatprep.subr.mxu0 0.0
    %3676 = vmatpush2.msra.mxu0 0.0
    %3677 = vmatprep.subr.mxu0 0.0
    %3678 = vmatpush2.msra.mxu0 0.0
    %3679 = vmatprep.subr.mxu0 0.0
    %3680 = vmatpush2.msra.mxu0 0.0
    %3681 = vmatprep.subr.mxu0 0.0
    %3682 = vmatpush2.msra.mxu0 0.0
    %3683 = vmatprep.subr.mxu0 0.0
    %3684 = vmatpush2.msra.mxu0 0.0
    %3685 = vmatprep.subr.mxu0 0.0
    %3686 = vmatpush2.msra.mxu0 0.0
    %3687 = vmatprep.subr.mxu0 0.0
    %3688 = vmatpush2.msra.mxu0 0.0
    %3689 = vmatprep.subr.mxu0 %v3586
    %3690 = vmatpush2.msra.mxu0 %v3585
    %3691 = vmatprep.subr.mxu0 %v3584
    %3692 = vmatpush2.msra.mxu0 %v3583
    %3693 = vmatprep.subr.mxu0 %v3582
    %3694 = vmatpush2.msra.mxu0 %v3581
    %3695 = vmatprep.subr.mxu0 %v3580
    %3696 = vmatpush2.msra.mxu0 %v3579
    %3697 = vmatprep.subr.mxu0 %v3578
    %3698 = vmatpush2.msra.mxu0 %v3577
    %3699 = vmatprep.subr.mxu0 %v3576
    %3700 = vmatpush2.msra.mxu0 %v3575
    %3701 = vmatprep.mubr.f32.mxu0 %v3632
    %3702 = vmatmul.mubr.f32.gmra.mxu0 %v3410
    %v3703 = vpop.f32.mrf.mxu0
    %v3704 = vadd.f32 %v3420, %v3703
    %v3705 = vpop.f32.mrf.mxu0
    %v3706 = vadd.f32 %v3420, %v3705
    %3707 = vmatprep.mubr.f32.mxu0 %v3635
    %3708 = vmatmul.mubr.f32.gmra.mxu0 %v3412
    %v3709 = vpop.f32.mrf.mxu0
    %v3710 = vadd.f32 %v3425, %v3709
    %v3711 = vpop.f32.mrf.mxu0
    %v3712 = vadd.f32 %v3425, %v3711
    %3713 = vdwg.mxu0
    %v3714 = vtanh.pop %v3704
    %v3715 = vtanh.pop %v3706
    %v3716 = vtanh.pop %v3710
    %v3717 = vtanh.pop %v3712
    %v3718 = vsel %vm91, %v3714, 0.0
    %v3719 = vsel %vm92, %v3715, 0.0
    %v3720 = vsel %vm91, %v3716, 0.0
    %v3721 = vsel %vm92, %v3717, 0.0
    %3722 = vst [vmem:[#allocation2 + $0x8] sm:$0xff] %v3718
    %3723 = vst [vmem:[#allocation2 + $0x10] sm:$0xff] %v3719
    %3724 = vst [vmem:[#allocation2 + $0x20] sm:$0xff] %v3720
    %3725 = vst [vmem:[#allocation2 + $0x28] sm:$0xff] %v3721
    %v3726 = vld [vmem:[#allocation2] sm:$0xff]
    %v3727 = vld [vmem:[#allocation2 + $0x8] sm:$0xff]
    %v3728 = vld [vmem:[#allocation2 + $0x10] sm:$0xff]
    %v3729 = vld [vmem:[#allocation2 + $0x18] sm:$0xff]
    %v3730 = vld [vmem:[#allocation2 + $0x20] sm:$0xff]
    %v3731 = vld [vmem:[#allocation2 + $0x28] sm:$0xff]
    %3738 = vrot.lane.b32.xlu0 %v3726, 120
    %v3739 = vpop.permute.xlu0 %3738
    %3740 = vrot.lane.b32.xlu0 %v3727, 120
    %v3741 = vpop.permute.xlu0 %3740
    %3742 = vrot.lane.b32.xlu0 %v3728, 120
    %v3743 = vpop.permute.xlu0 %3742
    %3744 = vrot.lane.b32.xlu0 %v3729, 120
    %v3745 = vpop.permute.xlu0 %3744
    %3746 = vrot.lane.b32.xlu0 %v3730, 120
    %v3747 = vpop.permute.xlu0 %3746
    %3748 = vrot.lane.b32.xlu0 %v3731, 120
    %v3749 = vpop.permute.xlu0 %3748
    %v3750 = vsel %vm342, %v3739, %v3741
    %v3751 = vsel %vm342, %v3741, %v3743
    %v3752 = vsel %vm342, %v3745, %v3747
    %v3753 = vsel %vm342, %v3747, %v3749
    %3754 = vrot.lane.b32.xlu0 %v3726, 112
    %v3755 = vpop.permute.xlu0 %3754
    %3756 = vrot.lane.b32.xlu0 %v3727, 112
    %v3757 = vpop.permute.xlu0 %3756
    %3758 = vrot.lane.b32.xlu0 %v3728, 112
    %v3759 = vpop.permute.xlu0 %3758
    %3760 = vrot.lane.b32.xlu0 %v3729, 112
    %v3761 = vpop.permute.xlu0 %3760
    %3762 = vrot.lane.b32.xlu0 %v3730, 112
    %v3763 = vpop.permute.xlu0 %3762
    %3764 = vrot.lane.b32.xlu0 %v3731, 112
    %v3765 = vpop.permute.xlu0 %3764
    %v3766 = vsel %vm1353, %v3755, %v3757
    %v3767 = vsel %vm1353, %v3757, %v3759
    %v3768 = vsel %vm1353, %v3761, %v3763
    %v3769 = vsel %vm1353, %v3763, %v3765
    %3770 = vrot.lane.b32.xlu0 %v3726, 104
    %v3771 = vpop.permute.xlu0 %3770
    %3772 = vrot.lane.b32.xlu0 %v3727, 104
    %v3773 = vpop.permute.xlu0 %3772
    %3774 = vrot.lane.b32.xlu0 %v3728, 104
    %v3775 = vpop.permute.xlu0 %3774
    %3776 = vrot.lane.b32.xlu0 %v3729, 104
    %v3777 = vpop.permute.xlu0 %3776
    %3778 = vrot.lane.b32.xlu0 %v3730, 104
    %v3779 = vpop.permute.xlu0 %3778
    %3780 = vrot.lane.b32.xlu0 %v3731, 104
    %v3781 = vpop.permute.xlu0 %3780
    %v3782 = vsel %vm2331, %v3771, %v3773
    %v3783 = vsel %vm2331, %v3773, %v3775
    %v3784 = vsel %vm2331, %v3777, %v3779
    %v3785 = vsel %vm2331, %v3779, %v3781
    %3786 = vrot.lane.b32.xlu0 %v3726, 96
    %v3787 = vpop.permute.xlu0 %3786
    %3788 = vrot.lane.b32.xlu0 %v3727, 96
    %v3789 = vpop.permute.xlu0 %3788
    %3790 = vrot.lane.b32.xlu0 %v3728, 96
    %v3791 = vpop.permute.xlu0 %3790
    %3792 = vrot.lane.b32.xlu0 %v3729, 96
    %v3793 = vpop.permute.xlu0 %3792
    %3794 = vrot.lane.b32.xlu0 %v3730, 96
    %v3795 = vpop.permute.xlu0 %3794
    %3796 = vrot.lane.b32.xlu0 %v3731, 96
    %v3797 = vpop.permute.xlu0 %3796
    %v3798 = vsel %vm2365, %v3787, %v3789
    %v3799 = vsel %vm2365, %v3789, %v3791
    %v3800 = vsel %vm2365, %v3793, %v3795
    %v3801 = vsel %vm2365, %v3795, %v3797
    %3802 = vrot.lane.b32.xlu0 %v3726, 88
    %v3803 = vpop.permute.xlu0 %3802
    %3804 = vrot.lane.b32.xlu0 %v3727, 88
    %v3805 = vpop.permute.xlu0 %3804
    %3806 = vrot.lane.b32.xlu0 %v3728, 88
    %v3807 = vpop.permute.xlu0 %3806
    %3808 = vrot.lane.b32.xlu0 %v3729, 88
    %v3809 = vpop.permute.xlu0 %3808
    %3810 = vrot.lane.b32.xlu0 %v3730, 88
    %v3811 = vpop.permute.xlu0 %3810
    %3812 = vrot.lane.b32.xlu0 %v3731, 88
    %v3813 = vpop.permute.xlu0 %3812
    %v3814 = vsel %vm2395, %v3803, %v3805
    %v3815 = vsel %vm2395, %v3805, %v3807
    %v3816 = vsel %vm2395, %v3809, %v3811
    %v3817 = vsel %vm2395, %v3811, %v3813
    %3818 = vrot.lane.b32.xlu0 %v3726, 80
    %v3819 = vpop.permute.xlu0 %3818
    %3820 = vrot.lane.b32.xlu0 %v3727, 80
    %v3821 = vpop.permute.xlu0 %3820
    %3822 = vrot.lane.b32.xlu0 %v3728, 80
    %v3823 = vpop.permute.xlu0 %3822
    %3824 = vrot.lane.b32.xlu0 %v3729, 80
    %v3825 = vpop.permute.xlu0 %3824
    %3826 = vrot.lane.b32.xlu0 %v3730, 80
    %v3827 = vpop.permute.xlu0 %3826
    %3828 = vrot.lane.b32.xlu0 %v3731, 80
    %v3829 = vpop.permute.xlu0 %3828
    %v3830 = vsel %vm3343, %v3819, %v3821
    %v3831 = vsel %vm3343, %v3821, %v3823
    %v3832 = vsel %vm3343, %v3825, %v3827
    %v3833 = vsel %vm3343, %v3827, %v3829
    %3834 = vrot.lane.b32.xlu0 %v3726, 72
    %v3835 = vpop.permute.xlu0 %3834
    %3836 = vrot.lane.b32.xlu0 %v3727, 72
    %v3837 = vpop.permute.xlu0 %3836
    %3838 = vrot.lane.b32.xlu0 %v3728, 72
    %v3839 = vpop.permute.xlu0 %3838
    %3840 = vrot.lane.b32.xlu0 %v3729, 72
    %v3841 = vpop.permute.xlu0 %3840
    %3842 = vrot.lane.b32.xlu0 %v3730, 72
    %v3843 = vpop.permute.xlu0 %3842
    %3844 = vrot.lane.b32.xlu0 %v3731, 72
    %v3845 = vpop.permute.xlu0 %3844
    %v3846 = vsel %vm3360, %v3835, %v3837
    %v3847 = vsel %vm3360, %v3837, %v3839
    %v3848 = vsel %vm3360, %v3841, %v3843
    %v3849 = vsel %vm3360, %v3843, %v3845
    %3850 = vrot.lane.b32.xlu0 %v3726, 64
    %v3851 = vpop.permute.xlu0 %3850
    %3852 = vrot.lane.b32.xlu0 %v3727, 64
    %v3853 = vpop.permute.xlu0 %3852
    %3854 = vrot.lane.b32.xlu0 %v3728, 64
    %v3855 = vpop.permute.xlu0 %3854
    %3856 = vrot.lane.b32.xlu0 %v3729, 64
    %v3857 = vpop.permute.xlu0 %3856
    %3858 = vrot.lane.b32.xlu0 %v3730, 64
    %v3859 = vpop.permute.xlu0 %3858
    %3860 = vrot.lane.b32.xlu0 %v3731, 64
    %v3861 = vpop.permute.xlu0 %3860
    %v3862 = vsel %vm3377, %v3851, %v3853
    %v3863 = vsel %vm3377, %v3853, %v3855
    %v3864 = vsel %vm3377, %v3857, %v3859
    %v3865 = vsel %vm3377, %v3859, %v3861
    %3866 = vrot.lane.b32.xlu0 %v3726, 56
    %v3867 = vpop.permute.xlu0 %3866
    %3868 = vrot.lane.b32.xlu0 %v3727, 56
    %v3869 = vpop.permute.xlu0 %3868
    %3870 = vrot.lane.b32.xlu0 %v3728, 56
    %v3871 = vpop.permute.xlu0 %3870
    %3872 = vrot.lane.b32.xlu0 %v3729, 56
    %v3873 = vpop.permute.xlu0 %3872
    %3874 = vrot.lane.b32.xlu0 %v3730, 56
    %v3875 = vpop.permute.xlu0 %3874
    %3876 = vrot.lane.b32.xlu0 %v3731, 56
    %v3877 = vpop.permute.xlu0 %3876
    %v3878 = vsel %vm3394, %v3867, %v3869
    %v3879 = vsel %vm3394, %v3869, %v3871
    %v3880 = vsel %vm3394, %v3873, %v3875
    %v3881 = vsel %vm3394, %v3875, %v3877
    %3882 = vrot.lane.b32.xlu0 %v3727, 48
    %v3883 = vpop.permute.xlu0 %3882
    %3884 = vrot.lane.b32.xlu0 %v3728, 48
    %v3885 = vpop.permute.xlu0 %3884
    %3886 = vrot.lane.b32.xlu0 %v3730, 48
    %v3887 = vpop.permute.xlu0 %3886
    %3888 = vrot.lane.b32.xlu0 %v3731, 48
    %v3889 = vpop.permute.xlu0 %3888
    %v3890 = vsel %vm612, %v3883, %v3885
    %v3891 = vsel %vm612, %v3887, %v3889
    %s3892 = scalar_lea.vmem [#allocation3], 224
    %v3893 = vld [vmem:[%s3892] sm:$0xff]
    %v3894 = vld [vmem:[%s3892 + $0x8] sm:$0xff]
    %v3895 = vld [vmem:[%s3892 + $0x10] sm:$0xff]
    %v3896 = vld [vmem:[%s3892 + $0x18] sm:$0xff]
    %s3897 = scalar_lea.vmem %s2, 112
    %v3898 = vld [vmem:[%s3897] sm:$0xff]
    %v3899 = vld [vmem:[%s3897 + $0x8] sm:$0xff]
    %3901 = vset.pattern.permute.xlu0 0
    %3902 = vperm.xlu0 %3901, %v3898
    %v3903 = vpop.permute.xlu0 %3902
    %3906 = vset.pattern.permute.xlu0 0
    %3907 = vperm.xlu0 %3906, %v3899
    %v3908 = vpop.permute.xlu0 %3907
    %3910 = vrot.lane.b32.xlu0 %v3750, 80
    %v3911 = vpop.permute.xlu0 %3910
    %3912 = vrot.lane.b32.xlu0 %v3751, 80
    %v3913 = vpop.permute.xlu0 %3912
    %3914 = vrot.lane.b32.xlu0 %v3743, 80
    %v3915 = vpop.permute.xlu0 %3914
    %3916 = vrot.lane.b32.xlu0 %v3752, 80
    %v3917 = vpop.permute.xlu0 %3916
    %3918 = vrot.lane.b32.xlu0 %v3753, 80
    %v3919 = vpop.permute.xlu0 %3918
    %3920 = vrot.lane.b32.xlu0 %v3749, 80
    %v3921 = vpop.permute.xlu0 %3920
    %3922 = vrot.lane.b32.xlu0 %v3766, 80
    %v3923 = vpop.permute.xlu0 %3922
    %3924 = vrot.lane.b32.xlu0 %v3767, 80
    %v3925 = vpop.permute.xlu0 %3924
    %3926 = vrot.lane.b32.xlu0 %v3759, 80
    %v3927 = vpop.permute.xlu0 %3926
    %3928 = vrot.lane.b32.xlu0 %v3768, 80
    %v3929 = vpop.permute.xlu0 %3928
    %3930 = vrot.lane.b32.xlu0 %v3769, 80
    %v3931 = vpop.permute.xlu0 %3930
    %3932 = vrot.lane.b32.xlu0 %v3765, 80
    %v3933 = vpop.permute.xlu0 %3932
    %3934 = vrot.lane.b32.xlu0 %v3782, 80
    %v3935 = vpop.permute.xlu0 %3934
    %3936 = vrot.lane.b32.xlu0 %v3783, 80
    %v3937 = vpop.permute.xlu0 %3936
    %3938 = vrot.lane.b32.xlu0 %v3775, 80
    %v3939 = vpop.permute.xlu0 %3938
    %3940 = vrot.lane.b32.xlu0 %v3784, 80
    %v3941 = vpop.permute.xlu0 %3940
    %3942 = vrot.lane.b32.xlu0 %v3785, 80
    %v3943 = vpop.permute.xlu0 %3942
    %3944 = vrot.lane.b32.xlu0 %v3781, 80
    %v3945 = vpop.permute.xlu0 %3944
    %3946 = vrot.lane.b32.xlu0 %v3798, 80
    %v3947 = vpop.permute.xlu0 %3946
    %3948 = vrot.lane.b32.xlu0 %v3799, 80
    %v3949 = vpop.permute.xlu0 %3948
    %3950 = vrot.lane.b32.xlu0 %v3791, 80
    %v3951 = vpop.permute.xlu0 %3950
    %3952 = vrot.lane.b32.xlu0 %v3800, 80
    %v3953 = vpop.permute.xlu0 %3952
    %3954 = vrot.lane.b32.xlu0 %v3801, 80
    %v3955 = vpop.permute.xlu0 %3954
    %3956 = vrot.lane.b32.xlu0 %v3797, 80
    %v3957 = vpop.permute.xlu0 %3956
    %3958 = vrot.lane.b32.xlu0 %v3814, 80
    %v3959 = vpop.permute.xlu0 %3958
    %3960 = vrot.lane.b32.xlu0 %v3815, 80
    %v3961 = vpop.permute.xlu0 %3960
    %3962 = vrot.lane.b32.xlu0 %v3807, 80
    %v3963 = vpop.permute.xlu0 %3962
    %3964 = vrot.lane.b32.xlu0 %v3816, 80
    %v3965 = vpop.permute.xlu0 %3964
    %3966 = vrot.lane.b32.xlu0 %v3817, 80
    %v3967 = vpop.permute.xlu0 %3966
    %3968 = vrot.lane.b32.xlu0 %v3813, 80
    %v3969 = vpop.permute.xlu0 %3968
    %3970 = vrot.lane.b32.xlu0 %v3830, 80
    %v3971 = vpop.permute.xlu0 %3970
    %3972 = vrot.lane.b32.xlu0 %v3831, 80
    %v3973 = vpop.permute.xlu0 %3972
    %3974 = vrot.lane.b32.xlu0 %v3823, 80
    %v3975 = vpop.permute.xlu0 %3974
    %3976 = vrot.lane.b32.xlu0 %v3832, 80
    %v3977 = vpop.permute.xlu0 %3976
    %3978 = vrot.lane.b32.xlu0 %v3833, 80
    %v3979 = vpop.permute.xlu0 %3978
    %3980 = vrot.lane.b32.xlu0 %v3829, 80
    %v3981 = vpop.permute.xlu0 %3980
    %3982 = vrot.lane.b32.xlu0 %v3846, 80
    %v3983 = vpop.permute.xlu0 %3982
    %3984 = vrot.lane.b32.xlu0 %v3847, 80
    %v3985 = vpop.permute.xlu0 %3984
    %3986 = vrot.lane.b32.xlu0 %v3839, 80
    %v3987 = vpop.permute.xlu0 %3986
    %3988 = vrot.lane.b32.xlu0 %v3848, 80
    %v3989 = vpop.permute.xlu0 %3988
    %3990 = vrot.lane.b32.xlu0 %v3849, 80
    %v3991 = vpop.permute.xlu0 %3990
    %3992 = vrot.lane.b32.xlu0 %v3845, 80
    %v3993 = vpop.permute.xlu0 %3992
    %3994 = vrot.lane.b32.xlu0 %v3862, 80
    %v3995 = vpop.permute.xlu0 %3994
    %3996 = vrot.lane.b32.xlu0 %v3863, 80
    %v3997 = vpop.permute.xlu0 %3996
    %3998 = vrot.lane.b32.xlu0 %v3855, 80
    %v3999 = vpop.permute.xlu0 %3998
    %4000 = vrot.lane.b32.xlu0 %v3864, 80
    %v4001 = vpop.permute.xlu0 %4000
    %4002 = vrot.lane.b32.xlu0 %v3865, 80
    %v4003 = vpop.permute.xlu0 %4002
    %4004 = vrot.lane.b32.xlu0 %v3861, 80
    %v4005 = vpop.permute.xlu0 %4004
    %4006 = vrot.lane.b32.xlu0 %v3878, 80
    %v4007 = vpop.permute.xlu0 %4006
    %4008 = vrot.lane.b32.xlu0 %v3879, 80
    %v4009 = vpop.permute.xlu0 %4008
    %4010 = vrot.lane.b32.xlu0 %v3871, 80
    %v4011 = vpop.permute.xlu0 %4010
    %4012 = vrot.lane.b32.xlu0 %v3880, 80
    %v4013 = vpop.permute.xlu0 %4012
    %4014 = vrot.lane.b32.xlu0 %v3881, 80
    %v4015 = vpop.permute.xlu0 %4014
    %4016 = vrot.lane.b32.xlu0 %v3877, 80
    %v4017 = vpop.permute.xlu0 %4016
    %4018 = vrot.lane.b32.xlu0 %v3883, 80
    %v4019 = vpop.permute.xlu0 %4018
    %4020 = vrot.lane.b32.xlu0 %v3890, 80
    %v4021 = vpop.permute.xlu0 %4020
    %4022 = vrot.lane.b32.xlu0 %v3885, 80
    %v4023 = vpop.permute.xlu0 %4022
    %4024 = vrot.lane.b32.xlu0 %v3887, 80
    %v4025 = vpop.permute.xlu0 %4024
    %4026 = vrot.lane.b32.xlu0 %v3891, 80
    %v4027 = vpop.permute.xlu0 %4026
    %4028 = vrot.lane.b32.xlu0 %v3889, 80
    %v4029 = vpop.permute.xlu0 %4028
    %v4030 = vsel %vm3343, %v3911, %v3913
    %v4031 = vsel %vm3343, %v3913, %v3915
    %v4032 = vsel %vm3343, %v3917, %v3919
    %v4033 = vsel %vm3343, %v3919, %v3921
    %v4034 = vsel %vm3343, %v3923, %v3925
    %v4035 = vsel %vm3343, %v3925, %v3927
    %v4036 = vsel %vm3343, %v3929, %v3931
    %v4037 = vsel %vm3343, %v3931, %v3933
    %v4038 = vsel %vm3343, %v3935, %v3937
    %v4039 = vsel %vm3343, %v3937, %v3939
    %v4040 = vsel %vm3343, %v3941, %v3943
    %v4041 = vsel %vm3343, %v3943, %v3945
    %v4042 = vsel %vm3343, %v3947, %v3949
    %v4043 = vsel %vm3343, %v3949, %v3951
    %v4044 = vsel %vm3343, %v3953, %v3955
    %v4045 = vsel %vm3343, %v3955, %v3957
    %v4046 = vsel %vm3343, %v3959, %v3961
    %v4047 = vsel %vm3343, %v3961, %v3963
    %v4048 = vsel %vm3343, %v3965, %v3967
    %v4049 = vsel %vm3343, %v3967, %v3969
    %v4050 = vsel %vm3343, %v3971, %v3973
    %v4051 = vsel %vm3343, %v3973, %v3975
    %v4052 = vsel %vm3343, %v3977, %v3979
    %v4053 = vsel %vm3343, %v3979, %v3981
    %v4054 = vsel %vm3343, %v3983, %v3985
    %v4055 = vsel %vm3343, %v3985, %v3987
    %v4056 = vsel %vm3343, %v3989, %v3991
    %v4057 = vsel %vm3343, %v3991, %v3993
    %v4058 = vsel %vm3343, %v3995, %v3997
    %v4059 = vsel %vm3343, %v3997, %v3999
    %v4060 = vsel %vm3343, %v4001, %v4003
    %v4061 = vsel %vm3343, %v4003, %v4005
    %v4062 = vsel %vm3343, %v4007, %v4009
    %v4063 = vsel %vm3343, %v4009, %v4011
    %v4064 = vsel %vm3343, %v4013, %v4015
    %v4065 = vsel %vm3343, %v4015, %v4017
    %v4066 = vsel %vm3343, %v4019, %v4021
    %v4067 = vsel %vm3343, %v4021, %v4023
    %v4068 = vsel %vm3343, %v4025, %v4027
    %v4069 = vsel %vm3343, %v4027, %v4029
    %v4115 = vsel %vm612, %v3894, 0
    %v4118 = vsel %vm612, %v3896, 0
    %4120 = vmatprep.subr.mxu0 %v4057
    %4121 = vmatpush1.msra.mxu0 %v4056
    %4122 = vmatprep.subr.mxu0 %v4055
    %4123 = vmatpush1.msra.mxu0 %v4054
    %4124 = vmatprep.subr.mxu0 %v4053
    %4125 = vmatpush1.msra.mxu0 %v4052
    %4126 = vmatprep.subr.mxu0 %v4051
    %4127 = vmatpush1.msra.mxu0 %v4050
    %4128 = vmatprep.subr.mxu0 %v4049
    %4129 = vmatpush1.msra.mxu0 %v4048
    %4130 = vmatprep.subr.mxu0 %v4047
    %4131 = vmatpush1.msra.mxu0 %v4046
    %4132 = vmatprep.subr.mxu0 %v4045
    %4133 = vmatpush1.msra.mxu0 %v4044
    %4134 = vmatprep.subr.mxu0 %v4043
    %4135 = vmatpush1.msra.mxu0 %v4042
    %4136 = vmatprep.subr.mxu0 %v4041
    %4137 = vmatpush1.msra.mxu0 %v4040
    %4138 = vmatprep.subr.mxu0 %v4039
    %4139 = vmatpush1.msra.mxu0 %v4038
    %4140 = vmatprep.subr.mxu0 %v4037
    %4141 = vmatpush1.msra.mxu0 %v4036
    %4142 = vmatprep.subr.mxu0 %v4035
    %4143 = vmatpush1.msra.mxu0 %v4034
    %4144 = vmatprep.subr.mxu0 %v4033
    %4145 = vmatpush1.msra.mxu0 %v4032
    %4146 = vmatprep.subr.mxu0 %v4031
    %4147 = vmatpush1.msra.mxu0 %v4030
    %4148 = vmatprep.subr.mxu0 %v3833
    %4149 = vmatpush1.msra.mxu0 %v3832
    %4150 = vmatprep.subr.mxu0 %v3831
    %4151 = vmatpush1.msra.mxu0 %v3830
    %4152 = vmatprep.subr.mxu0 0.0
    %4153 = vmatpush2.msra.mxu0 0.0
    %4154 = vmatprep.subr.mxu0 0.0
    %4155 = vmatpush2.msra.mxu0 0.0
    %4156 = vmatprep.subr.mxu0 0.0
    %4157 = vmatpush2.msra.mxu0 0.0
    %4158 = vmatprep.subr.mxu0 0.0
    %4159 = vmatpush2.msra.mxu0 0.0
    %4160 = vmatprep.subr.mxu0 0.0
    %4161 = vmatpush2.msra.mxu0 0.0
    %4162 = vmatprep.subr.mxu0 0.0
    %4163 = vmatpush2.msra.mxu0 0.0
    %4164 = vmatprep.subr.mxu0 0.0
    %4165 = vmatpush2.msra.mxu0 0.0
    %4166 = vmatprep.subr.mxu0 0.0
    %4167 = vmatpush2.msra.mxu0 0.0
    %4168 = vmatprep.subr.mxu0 0.0
    %4169 = vmatpush2.msra.mxu0 0.0
    %4170 = vmatprep.subr.mxu0 0.0
    %4171 = vmatpush2.msra.mxu0 0.0
    %4172 = vmatprep.subr.mxu0 %v4069
    %4173 = vmatpush2.msra.mxu0 %v4068
    %4174 = vmatprep.subr.mxu0 %v4067
    %4175 = vmatpush2.msra.mxu0 %v4066
    %4176 = vmatprep.subr.mxu0 %v4065
    %4177 = vmatpush2.msra.mxu0 %v4064
    %4178 = vmatprep.subr.mxu0 %v4063
    %4179 = vmatpush2.msra.mxu0 %v4062
    %4180 = vmatprep.subr.mxu0 %v4061
    %4181 = vmatpush2.msra.mxu0 %v4060
    %4182 = vmatprep.subr.mxu0 %v4059
    %4183 = vmatpush2.msra.mxu0 %v4058
    %4184 = vmatprep.mubr.f32.mxu0 %v4115
    %4185 = vmatmul.mubr.f32.gmra.mxu0 %v3893
    %v4186 = vpop.f32.mrf.mxu0
    %v4187 = vadd.f32 %v3903, %v4186
    %v4188 = vpop.f32.mrf.mxu0
    %v4189 = vadd.f32 %v3903, %v4188
    %4190 = vmatprep.mubr.f32.mxu0 %v4118
    %4191 = vmatmul.mubr.f32.gmra.mxu0 %v3895
    %v4192 = vpop.f32.mrf.mxu0
    %v4193 = vadd.f32 %v3908, %v4192
    %v4194 = vpop.f32.mrf.mxu0
    %v4195 = vadd.f32 %v3908, %v4194
    %4196 = vdwg.mxu0
    %v4197 = vtanh.pop %v4187
    %v4198 = vtanh.pop %v4189
    %v4199 = vtanh.pop %v4193
    %v4200 = vtanh.pop %v4195
    %v4201 = vadd.f32 %v4197, %v3231
    %v4202 = vadd.f32 %v4198, %v3232
    %v4203 = vadd.f32 %v4199, %v3233
    %v4204 = vadd.f32 %v4200, %v3234
    %v4205 = vtanh.pop %v4201
    %v4206 = vtanh.pop %v4202
    %v4207 = vtanh.pop %v4203
    %v4208 = vtanh.pop %v4204
    %v4209 = vsel %vm91, %v4205, 0.0
    %v4210 = vsel %vm92, %v4206, 0.0
    %v4211 = vsel %vm91, %v4207, 0.0
    %v4212 = vsel %vm92, %v4208, 0.0
    %4213 = vst [vmem:[#allocation2 + $0x8] sm:$0xff] %v4209
    %4214 = vst [vmem:[#allocation2 + $0x10] sm:$0xff] %v4210
    %4215 = vst [vmem:[#allocation2 + $0x20] sm:$0xff] %v4211
    %4216 = vst [vmem:[#allocation2 + $0x28] sm:$0xff] %v4212
    %v4217 = vld [vmem:[#allocation2] sm:$0xff]
    %v4218 = vld [vmem:[#allocation2 + $0x8] sm:$0xff]
    %v4219 = vld [vmem:[#allocation2 + $0x10] sm:$0xff]
    %v4220 = vld [vmem:[#allocation2 + $0x18] sm:$0xff]
    %v4221 = vld [vmem:[#allocation2 + $0x20] sm:$0xff]
    %v4222 = vld [vmem:[#allocation2 + $0x28] sm:$0xff]
    %4229 = vrot.lane.b32.xlu0 %v4217, 127
    %v4230 = vpop.permute.xlu0 %4229
    %4231 = vrot.lane.b32.xlu0 %v4218, 127
    %v4232 = vpop.permute.xlu0 %4231
    %4233 = vrot.lane.b32.xlu0 %v4219, 127
    %v4234 = vpop.permute.xlu0 %4233
    %4235 = vrot.lane.b32.xlu0 %v4220, 127
    %v4236 = vpop.permute.xlu0 %4235
    %4237 = vrot.lane.b32.xlu0 %v4221, 127
    %v4238 = vpop.permute.xlu0 %4237
    %4239 = vrot.lane.b32.xlu0 %v4222, 127
    %v4240 = vpop.permute.xlu0 %4239
    %v4241 = vsel %vm223, %v4230, %v4232
    %v4242 = vsel %vm223, %v4232, %v4234
    %v4243 = vsel %vm223, %v4236, %v4238
    %v4244 = vsel %vm223, %v4238, %v4240
    %4245 = vrot.lane.b32.xlu0 %v4217, 126
    %v4246 = vpop.permute.xlu0 %4245
    %4247 = vrot.lane.b32.xlu0 %v4218, 126
    %v4248 = vpop.permute.xlu0 %4247
    %4249 = vrot.lane.b32.xlu0 %v4219, 126
    %v4250 = vpop.permute.xlu0 %4249
    %4251 = vrot.lane.b32.xlu0 %v4220, 126
    %v4252 = vpop.permute.xlu0 %4251
    %4253 = vrot.lane.b32.xlu0 %v4221, 126
    %v4254 = vpop.permute.xlu0 %4253
    %4255 = vrot.lane.b32.xlu0 %v4222, 126
    %v4256 = vpop.permute.xlu0 %4255
    %v4257 = vsel %vm240, %v4246, %v4248
    %v4258 = vsel %vm240, %v4248, %v4250
    %v4259 = vsel %vm240, %v4252, %v4254
    %v4260 = vsel %vm240, %v4254, %v4256
    %4261 = vrot.lane.b32.xlu0 %v4217, 125
    %v4262 = vpop.permute.xlu0 %4261
    %4263 = vrot.lane.b32.xlu0 %v4218, 125
    %v4264 = vpop.permute.xlu0 %4263
    %4265 = vrot.lane.b32.xlu0 %v4219, 125
    %v4266 = vpop.permute.xlu0 %4265
    %4267 = vrot.lane.b32.xlu0 %v4220, 125
    %v4268 = vpop.permute.xlu0 %4267
    %4269 = vrot.lane.b32.xlu0 %v4221, 125
    %v4270 = vpop.permute.xlu0 %4269
    %4271 = vrot.lane.b32.xlu0 %v4222, 125
    %v4272 = vpop.permute.xlu0 %4271
    %v4273 = vsel %vm257, %v4262, %v4264
    %v4274 = vsel %vm257, %v4264, %v4266
    %v4275 = vsel %vm257, %v4268, %v4270
    %v4276 = vsel %vm257, %v4270, %v4272
    %4277 = vrot.lane.b32.xlu0 %v4217, 124
    %v4278 = vpop.permute.xlu0 %4277
    %4279 = vrot.lane.b32.xlu0 %v4218, 124
    %v4280 = vpop.permute.xlu0 %4279
    %4281 = vrot.lane.b32.xlu0 %v4219, 124
    %v4282 = vpop.permute.xlu0 %4281
    %4283 = vrot.lane.b32.xlu0 %v4220, 124
    %v4284 = vpop.permute.xlu0 %4283
    %4285 = vrot.lane.b32.xlu0 %v4221, 124
    %v4286 = vpop.permute.xlu0 %4285
    %4287 = vrot.lane.b32.xlu0 %v4222, 124
    %v4288 = vpop.permute.xlu0 %4287
    %v4289 = vsel %vm274, %v4278, %v4280
    %v4290 = vsel %vm274, %v4280, %v4282
    %v4291 = vsel %vm274, %v4284, %v4286
    %v4292 = vsel %vm274, %v4286, %v4288
    %4293 = vrot.lane.b32.xlu0 %v4217, 123
    %v4294 = vpop.permute.xlu0 %4293
    %4295 = vrot.lane.b32.xlu0 %v4218, 123
    %v4296 = vpop.permute.xlu0 %4295
    %4297 = vrot.lane.b32.xlu0 %v4219, 123
    %v4298 = vpop.permute.xlu0 %4297
    %4299 = vrot.lane.b32.xlu0 %v4220, 123
    %v4300 = vpop.permute.xlu0 %4299
    %4301 = vrot.lane.b32.xlu0 %v4221, 123
    %v4302 = vpop.permute.xlu0 %4301
    %4303 = vrot.lane.b32.xlu0 %v4222, 123
    %v4304 = vpop.permute.xlu0 %4303
    %v4305 = vsel %vm291, %v4294, %v4296
    %v4306 = vsel %vm291, %v4296, %v4298
    %v4307 = vsel %vm291, %v4300, %v4302
    %v4308 = vsel %vm291, %v4302, %v4304
    %4309 = vrot.lane.b32.xlu0 %v4217, 122
    %v4310 = vpop.permute.xlu0 %4309
    %4311 = vrot.lane.b32.xlu0 %v4218, 122
    %v4312 = vpop.permute.xlu0 %4311
    %4313 = vrot.lane.b32.xlu0 %v4219, 122
    %v4314 = vpop.permute.xlu0 %4313
    %4315 = vrot.lane.b32.xlu0 %v4220, 122
    %v4316 = vpop.permute.xlu0 %4315
    %4317 = vrot.lane.b32.xlu0 %v4221, 122
    %v4318 = vpop.permute.xlu0 %4317
    %4319 = vrot.lane.b32.xlu0 %v4222, 122
    %v4320 = vpop.permute.xlu0 %4319
    %v4321 = vsel %vm308, %v4310, %v4312
    %v4322 = vsel %vm308, %v4312, %v4314
    %v4323 = vsel %vm308, %v4316, %v4318
    %v4324 = vsel %vm308, %v4318, %v4320
    %4325 = vrot.lane.b32.xlu0 %v4217, 121
    %v4326 = vpop.permute.xlu0 %4325
    %4327 = vrot.lane.b32.xlu0 %v4218, 121
    %v4328 = vpop.permute.xlu0 %4327
    %4329 = vrot.lane.b32.xlu0 %v4219, 121
    %v4330 = vpop.permute.xlu0 %4329
    %4331 = vrot.lane.b32.xlu0 %v4220, 121
    %v4332 = vpop.permute.xlu0 %4331
    %4333 = vrot.lane.b32.xlu0 %v4221, 121
    %v4334 = vpop.permute.xlu0 %4333
    %4335 = vrot.lane.b32.xlu0 %v4222, 121
    %v4336 = vpop.permute.xlu0 %4335
    %v4337 = vsel %vm325, %v4326, %v4328
    %v4338 = vsel %vm325, %v4328, %v4330
    %v4339 = vsel %vm325, %v4332, %v4334
    %v4340 = vsel %vm325, %v4334, %v4336
    %4341 = vrot.lane.b32.xlu0 %v4217, 120
    %v4342 = vpop.permute.xlu0 %4341
    %4343 = vrot.lane.b32.xlu0 %v4218, 120
    %v4344 = vpop.permute.xlu0 %4343
    %4345 = vrot.lane.b32.xlu0 %v4219, 120
    %v4346 = vpop.permute.xlu0 %4345
    %4347 = vrot.lane.b32.xlu0 %v4220, 120
    %v4348 = vpop.permute.xlu0 %4347
    %4349 = vrot.lane.b32.xlu0 %v4221, 120
    %v4350 = vpop.permute.xlu0 %4349
    %4351 = vrot.lane.b32.xlu0 %v4222, 120
    %v4352 = vpop.permute.xlu0 %4351
    %v4353 = vsel %vm342, %v4342, %v4344
    %v4354 = vsel %vm342, %v4344, %v4346
    %v4355 = vsel %vm342, %v4348, %v4350
    %v4356 = vsel %vm342, %v4350, %v4352
    %4357 = vrot.lane.b32.xlu0 %v4217, 119
    %v4358 = vpop.permute.xlu0 %4357
    %4359 = vrot.lane.b32.xlu0 %v4218, 119
    %v4360 = vpop.permute.xlu0 %4359
    %4361 = vrot.lane.b32.xlu0 %v4219, 119
    %v4362 = vpop.permute.xlu0 %4361
    %4363 = vrot.lane.b32.xlu0 %v4220, 119
    %v4364 = vpop.permute.xlu0 %4363
    %4365 = vrot.lane.b32.xlu0 %v4221, 119
    %v4366 = vpop.permute.xlu0 %4365
    %4367 = vrot.lane.b32.xlu0 %v4222, 119
    %v4368 = vpop.permute.xlu0 %4367
    %v4369 = vsel %vm359, %v4358, %v4360
    %v4370 = vsel %vm359, %v4360, %v4362
    %v4371 = vsel %vm359, %v4364, %v4366
    %v4372 = vsel %vm359, %v4366, %v4368
    %4373 = vrot.lane.b32.xlu0 %v4218, 118
    %v4374 = vpop.permute.xlu0 %4373
    %4375 = vrot.lane.b32.xlu0 %v4219, 118
    %v4376 = vpop.permute.xlu0 %4375
    %4377 = vrot.lane.b32.xlu0 %v4221, 118
    %v4378 = vpop.permute.xlu0 %4377
    %4379 = vrot.lane.b32.xlu0 %v4222, 118
    %v4380 = vpop.permute.xlu0 %4379
    %v4381 = vsel %vm372, %v4374, %v4376
    %v4382 = vsel %vm372, %v4378, %v4380
    %s4383 = scalar_lea.vmem [#allocation3], 256
    %v4384 = vld [vmem:[%s4383] sm:$0xff]
    %v4385 = vld [vmem:[%s4383 + $0x8] sm:$0xff]
    %v4386 = vld [vmem:[%s4383 + $0x10] sm:$0xff]
    %v4387 = vld [vmem:[%s4383 + $0x18] sm:$0xff]
    %s4388 = scalar_lea.vmem %s2, 128
    %v4389 = vld [vmem:[%s4388] sm:$0xff]
    %v4390 = vld [vmem:[%s4388 + $0x8] sm:$0xff]
    %4392 = vset.pattern.permute.xlu0 0
    %4393 = vperm.xlu0 %4392, %v4389
    %v4394 = vpop.permute.xlu0 %4393
    %4397 = vset.pattern.permute.xlu0 0
    %4398 = vperm.xlu0 %4397, %v4390
    %v4399 = vpop.permute.xlu0 %4398
    %4401 = vrot.lane.b32.xlu0 %v4217, 10
    %v4402 = vpop.permute.xlu0 %4401
    %4403 = vrot.lane.b32.xlu0 %v4218, 10
    %v4404 = vpop.permute.xlu0 %4403
    %4405 = vrot.lane.b32.xlu0 %v4219, 10
    %v4406 = vpop.permute.xlu0 %4405
    %4407 = vrot.lane.b32.xlu0 %v4220, 10
    %v4408 = vpop.permute.xlu0 %4407
    %4409 = vrot.lane.b32.xlu0 %v4221, 10
    %v4410 = vpop.permute.xlu0 %4409
    %4411 = vrot.lane.b32.xlu0 %v4222, 10
    %v4412 = vpop.permute.xlu0 %4411
    %4413 = vrot.lane.b32.xlu0 %v4241, 10
    %v4414 = vpop.permute.xlu0 %4413
    %4415 = vrot.lane.b32.xlu0 %v4242, 10
    %v4416 = vpop.permute.xlu0 %4415
    %4417 = vrot.lane.b32.xlu0 %v4234, 10
    %v4418 = vpop.permute.xlu0 %4417
    %4419 = vrot.lane.b32.xlu0 %v4243, 10
    %v4420 = vpop.permute.xlu0 %4419
    %4421 = vrot.lane.b32.xlu0 %v4244, 10
    %v4422 = vpop.permute.xlu0 %4421
    %4423 = vrot.lane.b32.xlu0 %v4240, 10
    %v4424 = vpop.permute.xlu0 %4423
    %4425 = vrot.lane.b32.xlu0 %v4257, 10
    %v4426 = vpop.permute.xlu0 %4425
    %4427 = vrot.lane.b32.xlu0 %v4258, 10
    %v4428 = vpop.permute.xlu0 %4427
    %4429 = vrot.lane.b32.xlu0 %v4250, 10
    %v4430 = vpop.permute.xlu0 %4429
    %4431 = vrot.lane.b32.xlu0 %v4259, 10
    %v4432 = vpop.permute.xlu0 %4431
    %4433 = vrot.lane.b32.xlu0 %v4260, 10
    %v4434 = vpop.permute.xlu0 %4433
    %4435 = vrot.lane.b32.xlu0 %v4256, 10
    %v4436 = vpop.permute.xlu0 %4435
    %4437 = vrot.lane.b32.xlu0 %v4273, 10
    %v4438 = vpop.permute.xlu0 %4437
    %4439 = vrot.lane.b32.xlu0 %v4274, 10
    %v4440 = vpop.permute.xlu0 %4439
    %4441 = vrot.lane.b32.xlu0 %v4266, 10
    %v4442 = vpop.permute.xlu0 %4441
    %4443 = vrot.lane.b32.xlu0 %v4275, 10
    %v4444 = vpop.permute.xlu0 %4443
    %4445 = vrot.lane.b32.xlu0 %v4276, 10
    %v4446 = vpop.permute.xlu0 %4445
    %4447 = vrot.lane.b32.xlu0 %v4272, 10
    %v4448 = vpop.permute.xlu0 %4447
    %4449 = vrot.lane.b32.xlu0 %v4289, 10
    %v4450 = vpop.permute.xlu0 %4449
    %4451 = vrot.lane.b32.xlu0 %v4290, 10
    %v4452 = vpop.permute.xlu0 %4451
    %4453 = vrot.lane.b32.xlu0 %v4282, 10
    %v4454 = vpop.permute.xlu0 %4453
    %4455 = vrot.lane.b32.xlu0 %v4291, 10
    %v4456 = vpop.permute.xlu0 %4455
    %4457 = vrot.lane.b32.xlu0 %v4292, 10
    %v4458 = vpop.permute.xlu0 %4457
    %4459 = vrot.lane.b32.xlu0 %v4288, 10
    %v4460 = vpop.permute.xlu0 %4459
    %4461 = vrot.lane.b32.xlu0 %v4305, 10
    %v4462 = vpop.permute.xlu0 %4461
    %4463 = vrot.lane.b32.xlu0 %v4306, 10
    %v4464 = vpop.permute.xlu0 %4463
    %4465 = vrot.lane.b32.xlu0 %v4298, 10
    %v4466 = vpop.permute.xlu0 %4465
    %4467 = vrot.lane.b32.xlu0 %v4307, 10
    %v4468 = vpop.permute.xlu0 %4467
    %4469 = vrot.lane.b32.xlu0 %v4308, 10
    %v4470 = vpop.permute.xlu0 %4469
    %4471 = vrot.lane.b32.xlu0 %v4304, 10
    %v4472 = vpop.permute.xlu0 %4471
    %4473 = vrot.lane.b32.xlu0 %v4321, 10
    %v4474 = vpop.permute.xlu0 %4473
    %4475 = vrot.lane.b32.xlu0 %v4322, 10
    %v4476 = vpop.permute.xlu0 %4475
    %4477 = vrot.lane.b32.xlu0 %v4314, 10
    %v4478 = vpop.permute.xlu0 %4477
    %4479 = vrot.lane.b32.xlu0 %v4323, 10
    %v4480 = vpop.permute.xlu0 %4479
    %4481 = vrot.lane.b32.xlu0 %v4324, 10
    %v4482 = vpop.permute.xlu0 %4481
    %4483 = vrot.lane.b32.xlu0 %v4320, 10
    %v4484 = vpop.permute.xlu0 %4483
    %4485 = vrot.lane.b32.xlu0 %v4337, 10
    %v4486 = vpop.permute.xlu0 %4485
    %4487 = vrot.lane.b32.xlu0 %v4338, 10
    %v4488 = vpop.permute.xlu0 %4487
    %4489 = vrot.lane.b32.xlu0 %v4330, 10
    %v4490 = vpop.permute.xlu0 %4489
    %4491 = vrot.lane.b32.xlu0 %v4339, 10
    %v4492 = vpop.permute.xlu0 %4491
    %4493 = vrot.lane.b32.xlu0 %v4340, 10
    %v4494 = vpop.permute.xlu0 %4493
    %4495 = vrot.lane.b32.xlu0 %v4336, 10
    %v4496 = vpop.permute.xlu0 %4495
    %4497 = vrot.lane.b32.xlu0 %v4353, 10
    %v4498 = vpop.permute.xlu0 %4497
    %4499 = vrot.lane.b32.xlu0 %v4354, 10
    %v4500 = vpop.permute.xlu0 %4499
    %4501 = vrot.lane.b32.xlu0 %v4346, 10
    %v4502 = vpop.permute.xlu0 %4501
    %4503 = vrot.lane.b32.xlu0 %v4355, 10
    %v4504 = vpop.permute.xlu0 %4503
    %4505 = vrot.lane.b32.xlu0 %v4356, 10
    %v4506 = vpop.permute.xlu0 %4505
    %4507 = vrot.lane.b32.xlu0 %v4352, 10
    %v4508 = vpop.permute.xlu0 %4507
    %4509 = vrot.lane.b32.xlu0 %v4369, 10
    %v4510 = vpop.permute.xlu0 %4509
    %4511 = vrot.lane.b32.xlu0 %v4370, 10
    %v4512 = vpop.permute.xlu0 %4511
    %4513 = vrot.lane.b32.xlu0 %v4362, 10
    %v4514 = vpop.permute.xlu0 %4513
    %4515 = vrot.lane.b32.xlu0 %v4371, 10
    %v4516 = vpop.permute.xlu0 %4515
    %4517 = vrot.lane.b32.xlu0 %v4372, 10
    %v4518 = vpop.permute.xlu0 %4517
    %4519 = vrot.lane.b32.xlu0 %v4368, 10
    %v4520 = vpop.permute.xlu0 %4519
    %4521 = vrot.lane.b32.xlu0 %v4374, 10
    %v4522 = vpop.permute.xlu0 %4521
    %4523 = vrot.lane.b32.xlu0 %v4381, 10
    %v4524 = vpop.permute.xlu0 %4523
    %4525 = vrot.lane.b32.xlu0 %v4376, 10
    %v4526 = vpop.permute.xlu0 %4525
    %4527 = vrot.lane.b32.xlu0 %v4378, 10
    %v4528 = vpop.permute.xlu0 %4527
    %4529 = vrot.lane.b32.xlu0 %v4382, 10
    %v4530 = vpop.permute.xlu0 %4529
    %4531 = vrot.lane.b32.xlu0 %v4380, 10
    %v4532 = vpop.permute.xlu0 %4531
    %v4533 = vsel %vm523, %v4402, %v4404
    %v4534 = vsel %vm523, %v4404, %v4406
    %v4535 = vsel %vm523, %v4408, %v4410
    %v4536 = vsel %vm523, %v4410, %v4412
    %v4537 = vsel %vm523, %v4414, %v4416
    %v4538 = vsel %vm523, %v4416, %v4418
    %v4539 = vsel %vm523, %v4420, %v4422
    %v4540 = vsel %vm523, %v4422, %v4424
    %v4541 = vsel %vm523, %v4426, %v4428
    %v4542 = vsel %vm523, %v4428, %v4430
    %v4543 = vsel %vm523, %v4432, %v4434
    %v4544 = vsel %vm523, %v4434, %v4436
    %v4545 = vsel %vm523, %v4438, %v4440
    %v4546 = vsel %vm523, %v4440, %v4442
    %v4547 = vsel %vm523, %v4444, %v4446
    %v4548 = vsel %vm523, %v4446, %v4448
    %v4549 = vsel %vm523, %v4450, %v4452
    %v4550 = vsel %vm523, %v4452, %v4454
    %v4551 = vsel %vm523, %v4456, %v4458
    %v4552 = vsel %vm523, %v4458, %v4460
    %v4553 = vsel %vm523, %v4462, %v4464
    %v4554 = vsel %vm523, %v4464, %v4466
    %v4555 = vsel %vm523, %v4468, %v4470
    %v4556 = vsel %vm523, %v4470, %v4472
    %v4557 = vsel %vm523, %v4474, %v4476
    %v4558 = vsel %vm523, %v4476, %v4478
    %v4559 = vsel %vm523, %v4480, %v4482
    %v4560 = vsel %vm523, %v4482, %v4484
    %v4561 = vsel %vm523, %v4486, %v4488
    %v4562 = vsel %vm523, %v4488, %v4490
    %v4563 = vsel %vm523, %v4492, %v4494
    %v4564 = vsel %vm523, %v4494, %v4496
    %v4565 = vsel %vm523, %v4498, %v4500
    %v4566 = vsel %vm523, %v4500, %v4502
    %v4567 = vsel %vm523, %v4504, %v4506
    %v4568 = vsel %vm523, %v4506, %v4508
    %v4569 = vsel %vm523, %v4510, %v4512
    %v4570 = vsel %vm523, %v4512, %v4514
    %v4571 = vsel %vm523, %v4516, %v4518
    %v4572 = vsel %vm523, %v4518, %v4520
    %v4573 = vsel %vm523, %v4522, %v4524
    %v4574 = vsel %vm523, %v4524, %v4526
    %v4575 = vsel %vm523, %v4528, %v4530
    %v4576 = vsel %vm523, %v4530, %v4532
    %v4622 = vsel %vm612, %v4385, 0
    %v4625 = vsel %vm612, %v4387, 0
    %4627 = vmatprep.subr.mxu0 %v4564
    %4628 = vmatpush1.msra.mxu0 %v4563
    %4629 = vmatprep.subr.mxu0 %v4562
    %4630 = vmatpush1.msra.mxu0 %v4561
    %4631 = vmatprep.subr.mxu0 %v4560
    %4632 = vmatpush1.msra.mxu0 %v4559
    %4633 = vmatprep.subr.mxu0 %v4558
    %4634 = vmatpush1.msra.mxu0 %v4557
    %4635 = vmatprep.subr.mxu0 %v4556
    %4636 = vmatpush1.msra.mxu0 %v4555
    %4637 = vmatprep.subr.mxu0 %v4554
    %4638 = vmatpush1.msra.mxu0 %v4553
    %4639 = vmatprep.subr.mxu0 %v4552
    %4640 = vmatpush1.msra.mxu0 %v4551
    %4641 = vmatprep.subr.mxu0 %v4550
    %4642 = vmatpush1.msra.mxu0 %v4549
    %4643 = vmatprep.subr.mxu0 %v4548
    %4644 = vmatpush1.msra.mxu0 %v4547
    %4645 = vmatprep.subr.mxu0 %v4546
    %4646 = vmatpush1.msra.mxu0 %v4545
    %4647 = vmatprep.subr.mxu0 %v4544
    %4648 = vmatpush1.msra.mxu0 %v4543
    %4649 = vmatprep.subr.mxu0 %v4542
    %4650 = vmatpush1.msra.mxu0 %v4541
    %4651 = vmatprep.subr.mxu0 %v4540
    %4652 = vmatpush1.msra.mxu0 %v4539
    %4653 = vmatprep.subr.mxu0 %v4538
    %4654 = vmatpush1.msra.mxu0 %v4537
    %4655 = vmatprep.subr.mxu0 %v4536
    %4656 = vmatpush1.msra.mxu0 %v4535
    %4657 = vmatprep.subr.mxu0 %v4534
    %4658 = vmatpush1.msra.mxu0 %v4533
    %4659 = vmatprep.subr.mxu0 0.0
    %4660 = vmatpush2.msra.mxu0 0.0
    %4661 = vmatprep.subr.mxu0 0.0
    %4662 = vmatpush2.msra.mxu0 0.0
    %4663 = vmatprep.subr.mxu0 0.0
    %4664 = vmatpush2.msra.mxu0 0.0
    %4665 = vmatprep.subr.mxu0 0.0
    %4666 = vmatpush2.msra.mxu0 0.0
    %4667 = vmatprep.subr.mxu0 0.0
    %4668 = vmatpush2.msra.mxu0 0.0
    %4669 = vmatprep.subr.mxu0 0.0
    %4670 = vmatpush2.msra.mxu0 0.0
    %4671 = vmatprep.subr.mxu0 0.0
    %4672 = vmatpush2.msra.mxu0 0.0
    %4673 = vmatprep.subr.mxu0 0.0
    %4674 = vmatpush2.msra.mxu0 0.0
    %4675 = vmatprep.subr.mxu0 0.0
    %4676 = vmatpush2.msra.mxu0 0.0
    %4677 = vmatprep.subr.mxu0 0.0
    %4678 = vmatpush2.msra.mxu0 0.0
    %4679 = vmatprep.subr.mxu0 %v4576
    %4680 = vmatpush2.msra.mxu0 %v4575
    %4681 = vmatprep.subr.mxu0 %v4574
    %4682 = vmatpush2.msra.mxu0 %v4573
    %4683 = vmatprep.subr.mxu0 %v4572
    %4684 = vmatpush2.msra.mxu0 %v4571
    %4685 = vmatprep.subr.mxu0 %v4570
    %4686 = vmatpush2.msra.mxu0 %v4569
    %4687 = vmatprep.subr.mxu0 %v4568
    %4688 = vmatpush2.msra.mxu0 %v4567
    %4689 = vmatprep.subr.mxu0 %v4566
    %4690 = vmatpush2.msra.mxu0 %v4565
    %4691 = vmatprep.mubr.f32.mxu0 %v4622
    %4692 = vmatmul.mubr.f32.gmra.mxu0 %v4384
    %v4693 = vpop.f32.mrf.mxu0
    %v4694 = vadd.f32 %v4394, %v4693
    %v4695 = vpop.f32.mrf.mxu0
    %v4696 = vadd.f32 %v4394, %v4695
    %4697 = vmatprep.mubr.f32.mxu0 %v4625
    %4698 = vmatmul.mubr.f32.gmra.mxu0 %v4386
    %v4699 = vpop.f32.mrf.mxu0
    %v4700 = vadd.f32 %v4399, %v4699
    %v4701 = vpop.f32.mrf.mxu0
    %v4702 = vadd.f32 %v4399, %v4701
    %4703 = vdwg.mxu0
    %v4704 = vtanh.pop %v4694
    %v4705 = vtanh.pop %v4696
    %v4706 = vtanh.pop %v4700
    %v4707 = vtanh.pop %v4702
    %v4708 = vsel %vm91, %v4704, 0.0
    %v4709 = vsel %vm92, %v4705, 0.0
    %v4710 = vsel %vm91, %v4706, 0.0
    %v4711 = vsel %vm92, %v4707, 0.0
    %4712 = vst [vmem:[#allocation2 + $0x8] sm:$0xff] %v4708
    %4713 = vst [vmem:[#allocation2 + $0x10] sm:$0xff] %v4709
    %4714 = vst [vmem:[#allocation2 + $0x20] sm:$0xff] %v4710
    %4715 = vst [vmem:[#allocation2 + $0x28] sm:$0xff] %v4711
    %v4716 = vld [vmem:[#allocation2] sm:$0xff]
    %v4717 = vld [vmem:[#allocation2 + $0x8] sm:$0xff]
    %v4718 = vld [vmem:[#allocation2 + $0x10] sm:$0xff]
    %v4719 = vld [vmem:[#allocation2 + $0x18] sm:$0xff]
    %v4720 = vld [vmem:[#allocation2 + $0x20] sm:$0xff]
    %v4721 = vld [vmem:[#allocation2 + $0x28] sm:$0xff]
    %4728 = vrot.lane.b32.xlu0 %v4716, 127
    %v4729 = vpop.permute.xlu0 %4728
    %4730 = vrot.lane.b32.xlu0 %v4717, 127
    %v4731 = vpop.permute.xlu0 %4730
    %4732 = vrot.lane.b32.xlu0 %v4718, 127
    %v4733 = vpop.permute.xlu0 %4732
    %4734 = vrot.lane.b32.xlu0 %v4719, 127
    %v4735 = vpop.permute.xlu0 %4734
    %4736 = vrot.lane.b32.xlu0 %v4720, 127
    %v4737 = vpop.permute.xlu0 %4736
    %4738 = vrot.lane.b32.xlu0 %v4721, 127
    %v4739 = vpop.permute.xlu0 %4738
    %v4740 = vsel %vm223, %v4729, %v4731
    %v4741 = vsel %vm223, %v4731, %v4733
    %v4742 = vsel %vm223, %v4735, %v4737
    %v4743 = vsel %vm223, %v4737, %v4739
    %4744 = vrot.lane.b32.xlu0 %v4716, 126
    %v4745 = vpop.permute.xlu0 %4744
    %4746 = vrot.lane.b32.xlu0 %v4717, 126
    %v4747 = vpop.permute.xlu0 %4746
    %4748 = vrot.lane.b32.xlu0 %v4718, 126
    %v4749 = vpop.permute.xlu0 %4748
    %4750 = vrot.lane.b32.xlu0 %v4719, 126
    %v4751 = vpop.permute.xlu0 %4750
    %4752 = vrot.lane.b32.xlu0 %v4720, 126
    %v4753 = vpop.permute.xlu0 %4752
    %4754 = vrot.lane.b32.xlu0 %v4721, 126
    %v4755 = vpop.permute.xlu0 %4754
    %v4756 = vsel %vm240, %v4745, %v4747
    %v4757 = vsel %vm240, %v4747, %v4749
    %v4758 = vsel %vm240, %v4751, %v4753
    %v4759 = vsel %vm240, %v4753, %v4755
    %4760 = vrot.lane.b32.xlu0 %v4716, 125
    %v4761 = vpop.permute.xlu0 %4760
    %4762 = vrot.lane.b32.xlu0 %v4717, 125
    %v4763 = vpop.permute.xlu0 %4762
    %4764 = vrot.lane.b32.xlu0 %v4718, 125
    %v4765 = vpop.permute.xlu0 %4764
    %4766 = vrot.lane.b32.xlu0 %v4719, 125
    %v4767 = vpop.permute.xlu0 %4766
    %4768 = vrot.lane.b32.xlu0 %v4720, 125
    %v4769 = vpop.permute.xlu0 %4768
    %4770 = vrot.lane.b32.xlu0 %v4721, 125
    %v4771 = vpop.permute.xlu0 %4770
    %v4772 = vsel %vm257, %v4761, %v4763
    %v4773 = vsel %vm257, %v4763, %v4765
    %v4774 = vsel %vm257, %v4767, %v4769
    %v4775 = vsel %vm257, %v4769, %v4771
    %4776 = vrot.lane.b32.xlu0 %v4716, 124
    %v4777 = vpop.permute.xlu0 %4776
    %4778 = vrot.lane.b32.xlu0 %v4717, 124
    %v4779 = vpop.permute.xlu0 %4778
    %4780 = vrot.lane.b32.xlu0 %v4718, 124
    %v4781 = vpop.permute.xlu0 %4780
    %4782 = vrot.lane.b32.xlu0 %v4719, 124
    %v4783 = vpop.permute.xlu0 %4782
    %4784 = vrot.lane.b32.xlu0 %v4720, 124
    %v4785 = vpop.permute.xlu0 %4784
    %4786 = vrot.lane.b32.xlu0 %v4721, 124
    %v4787 = vpop.permute.xlu0 %4786
    %v4788 = vsel %vm274, %v4777, %v4779
    %v4789 = vsel %vm274, %v4779, %v4781
    %v4790 = vsel %vm274, %v4783, %v4785
    %v4791 = vsel %vm274, %v4785, %v4787
    %4792 = vrot.lane.b32.xlu0 %v4716, 123
    %v4793 = vpop.permute.xlu0 %4792
    %4794 = vrot.lane.b32.xlu0 %v4717, 123
    %v4795 = vpop.permute.xlu0 %4794
    %4796 = vrot.lane.b32.xlu0 %v4718, 123
    %v4797 = vpop.permute.xlu0 %4796
    %4798 = vrot.lane.b32.xlu0 %v4719, 123
    %v4799 = vpop.permute.xlu0 %4798
    %4800 = vrot.lane.b32.xlu0 %v4720, 123
    %v4801 = vpop.permute.xlu0 %4800
    %4802 = vrot.lane.b32.xlu0 %v4721, 123
    %v4803 = vpop.permute.xlu0 %4802
    %v4804 = vsel %vm291, %v4793, %v4795
    %v4805 = vsel %vm291, %v4795, %v4797
    %v4806 = vsel %vm291, %v4799, %v4801
    %v4807 = vsel %vm291, %v4801, %v4803
    %4808 = vrot.lane.b32.xlu0 %v4716, 122
    %v4809 = vpop.permute.xlu0 %4808
    %4810 = vrot.lane.b32.xlu0 %v4717, 122
    %v4811 = vpop.permute.xlu0 %4810
    %4812 = vrot.lane.b32.xlu0 %v4718, 122
    %v4813 = vpop.permute.xlu0 %4812
    %4814 = vrot.lane.b32.xlu0 %v4719, 122
    %v4815 = vpop.permute.xlu0 %4814
    %4816 = vrot.lane.b32.xlu0 %v4720, 122
    %v4817 = vpop.permute.xlu0 %4816
    %4818 = vrot.lane.b32.xlu0 %v4721, 122
    %v4819 = vpop.permute.xlu0 %4818
    %v4820 = vsel %vm308, %v4809, %v4811
    %v4821 = vsel %vm308, %v4811, %v4813
    %v4822 = vsel %vm308, %v4815, %v4817
    %v4823 = vsel %vm308, %v4817, %v4819
    %4824 = vrot.lane.b32.xlu0 %v4716, 121
    %v4825 = vpop.permute.xlu0 %4824
    %4826 = vrot.lane.b32.xlu0 %v4717, 121
    %v4827 = vpop.permute.xlu0 %4826
    %4828 = vrot.lane.b32.xlu0 %v4718, 121
    %v4829 = vpop.permute.xlu0 %4828
    %4830 = vrot.lane.b32.xlu0 %v4719, 121
    %v4831 = vpop.permute.xlu0 %4830
    %4832 = vrot.lane.b32.xlu0 %v4720, 121
    %v4833 = vpop.permute.xlu0 %4832
    %4834 = vrot.lane.b32.xlu0 %v4721, 121
    %v4835 = vpop.permute.xlu0 %4834
    %v4836 = vsel %vm325, %v4825, %v4827
    %v4837 = vsel %vm325, %v4827, %v4829
    %v4838 = vsel %vm325, %v4831, %v4833
    %v4839 = vsel %vm325, %v4833, %v4835
    %4840 = vrot.lane.b32.xlu0 %v4716, 120
    %v4841 = vpop.permute.xlu0 %4840
    %4842 = vrot.lane.b32.xlu0 %v4717, 120
    %v4843 = vpop.permute.xlu0 %4842
    %4844 = vrot.lane.b32.xlu0 %v4718, 120
    %v4845 = vpop.permute.xlu0 %4844
    %4846 = vrot.lane.b32.xlu0 %v4719, 120
    %v4847 = vpop.permute.xlu0 %4846
    %4848 = vrot.lane.b32.xlu0 %v4720, 120
    %v4849 = vpop.permute.xlu0 %4848
    %4850 = vrot.lane.b32.xlu0 %v4721, 120
    %v4851 = vpop.permute.xlu0 %4850
    %v4852 = vsel %vm342, %v4841, %v4843
    %v4853 = vsel %vm342, %v4843, %v4845
    %v4854 = vsel %vm342, %v4847, %v4849
    %v4855 = vsel %vm342, %v4849, %v4851
    %4856 = vrot.lane.b32.xlu0 %v4716, 119
    %v4857 = vpop.permute.xlu0 %4856
    %4858 = vrot.lane.b32.xlu0 %v4717, 119
    %v4859 = vpop.permute.xlu0 %4858
    %4860 = vrot.lane.b32.xlu0 %v4718, 119
    %v4861 = vpop.permute.xlu0 %4860
    %4862 = vrot.lane.b32.xlu0 %v4719, 119
    %v4863 = vpop.permute.xlu0 %4862
    %4864 = vrot.lane.b32.xlu0 %v4720, 119
    %v4865 = vpop.permute.xlu0 %4864
    %4866 = vrot.lane.b32.xlu0 %v4721, 119
    %v4867 = vpop.permute.xlu0 %4866
    %v4868 = vsel %vm359, %v4857, %v4859
    %v4869 = vsel %vm359, %v4859, %v4861
    %v4870 = vsel %vm359, %v4863, %v4865
    %v4871 = vsel %vm359, %v4865, %v4867
    %4872 = vrot.lane.b32.xlu0 %v4717, 118
    %v4873 = vpop.permute.xlu0 %4872
    %4874 = vrot.lane.b32.xlu0 %v4718, 118
    %v4875 = vpop.permute.xlu0 %4874
    %4876 = vrot.lane.b32.xlu0 %v4720, 118
    %v4877 = vpop.permute.xlu0 %4876
    %4878 = vrot.lane.b32.xlu0 %v4721, 118
    %v4879 = vpop.permute.xlu0 %4878
    %v4880 = vsel %vm372, %v4873, %v4875
    %v4881 = vsel %vm372, %v4877, %v4879
    %s4882 = scalar_lea.vmem [#allocation3], 288
    %v4883 = vld [vmem:[%s4882] sm:$0xff]
    %v4884 = vld [vmem:[%s4882 + $0x8] sm:$0xff]
    %v4885 = vld [vmem:[%s4882 + $0x10] sm:$0xff]
    %v4886 = vld [vmem:[%s4882 + $0x18] sm:$0xff]
    %s4887 = scalar_lea.vmem %s2, 144
    %v4888 = vld [vmem:[%s4887] sm:$0xff]
    %v4889 = vld [vmem:[%s4887 + $0x8] sm:$0xff]
    %4891 = vset.pattern.permute.xlu0 0
    %4892 = vperm.xlu0 %4891, %v4888
    %v4893 = vpop.permute.xlu0 %4892
    %4896 = vset.pattern.permute.xlu0 0
    %4897 = vperm.xlu0 %4896, %v4889
    %v4898 = vpop.permute.xlu0 %4897
    %4900 = vrot.lane.b32.xlu0 %v4716, 10
    %v4901 = vpop.permute.xlu0 %4900
    %4902 = vrot.lane.b32.xlu0 %v4717, 10
    %v4903 = vpop.permute.xlu0 %4902
    %4904 = vrot.lane.b32.xlu0 %v4718, 10
    %v4905 = vpop.permute.xlu0 %4904
    %4906 = vrot.lane.b32.xlu0 %v4719, 10
    %v4907 = vpop.permute.xlu0 %4906
    %4908 = vrot.lane.b32.xlu0 %v4720, 10
    %v4909 = vpop.permute.xlu0 %4908
    %4910 = vrot.lane.b32.xlu0 %v4721, 10
    %v4911 = vpop.permute.xlu0 %4910
    %4912 = vrot.lane.b32.xlu0 %v4740, 10
    %v4913 = vpop.permute.xlu0 %4912
    %4914 = vrot.lane.b32.xlu0 %v4741, 10
    %v4915 = vpop.permute.xlu0 %4914
    %4916 = vrot.lane.b32.xlu0 %v4733, 10
    %v4917 = vpop.permute.xlu0 %4916
    %4918 = vrot.lane.b32.xlu0 %v4742, 10
    %v4919 = vpop.permute.xlu0 %4918
    %4920 = vrot.lane.b32.xlu0 %v4743, 10
    %v4921 = vpop.permute.xlu0 %4920
    %4922 = vrot.lane.b32.xlu0 %v4739, 10
    %v4923 = vpop.permute.xlu0 %4922
    %4924 = vrot.lane.b32.xlu0 %v4756, 10
    %v4925 = vpop.permute.xlu0 %4924
    %4926 = vrot.lane.b32.xlu0 %v4757, 10
    %v4927 = vpop.permute.xlu0 %4926
    %4928 = vrot.lane.b32.xlu0 %v4749, 10
    %v4929 = vpop.permute.xlu0 %4928
    %4930 = vrot.lane.b32.xlu0 %v4758, 10
    %v4931 = vpop.permute.xlu0 %4930
    %4932 = vrot.lane.b32.xlu0 %v4759, 10
    %v4933 = vpop.permute.xlu0 %4932
    %4934 = vrot.lane.b32.xlu0 %v4755, 10
    %v4935 = vpop.permute.xlu0 %4934
    %4936 = vrot.lane.b32.xlu0 %v4772, 10
    %v4937 = vpop.permute.xlu0 %4936
    %4938 = vrot.lane.b32.xlu0 %v4773, 10
    %v4939 = vpop.permute.xlu0 %4938
    %4940 = vrot.lane.b32.xlu0 %v4765, 10
    %v4941 = vpop.permute.xlu0 %4940
    %4942 = vrot.lane.b32.xlu0 %v4774, 10
    %v4943 = vpop.permute.xlu0 %4942
    %4944 = vrot.lane.b32.xlu0 %v4775, 10
    %v4945 = vpop.permute.xlu0 %4944
    %4946 = vrot.lane.b32.xlu0 %v4771, 10
    %v4947 = vpop.permute.xlu0 %4946
    %4948 = vrot.lane.b32.xlu0 %v4788, 10
    %v4949 = vpop.permute.xlu0 %4948
    %4950 = vrot.lane.b32.xlu0 %v4789, 10
    %v4951 = vpop.permute.xlu0 %4950
    %4952 = vrot.lane.b32.xlu0 %v4781, 10
    %v4953 = vpop.permute.xlu0 %4952
    %4954 = vrot.lane.b32.xlu0 %v4790, 10
    %v4955 = vpop.permute.xlu0 %4954
    %4956 = vrot.lane.b32.xlu0 %v4791, 10
    %v4957 = vpop.permute.xlu0 %4956
    %4958 = vrot.lane.b32.xlu0 %v4787, 10
    %v4959 = vpop.permute.xlu0 %4958
    %4960 = vrot.lane.b32.xlu0 %v4804, 10
    %v4961 = vpop.permute.xlu0 %4960
    %4962 = vrot.lane.b32.xlu0 %v4805, 10
    %v4963 = vpop.permute.xlu0 %4962
    %4964 = vrot.lane.b32.xlu0 %v4797, 10
    %v4965 = vpop.permute.xlu0 %4964
    %4966 = vrot.lane.b32.xlu0 %v4806, 10
    %v4967 = vpop.permute.xlu0 %4966
    %4968 = vrot.lane.b32.xlu0 %v4807, 10
    %v4969 = vpop.permute.xlu0 %4968
    %4970 = vrot.lane.b32.xlu0 %v4803, 10
    %v4971 = vpop.permute.xlu0 %4970
    %4972 = vrot.lane.b32.xlu0 %v4820, 10
    %v4973 = vpop.permute.xlu0 %4972
    %4974 = vrot.lane.b32.xlu0 %v4821, 10
    %v4975 = vpop.permute.xlu0 %4974
    %4976 = vrot.lane.b32.xlu0 %v4813, 10
    %v4977 = vpop.permute.xlu0 %4976
    %4978 = vrot.lane.b32.xlu0 %v4822, 10
    %v4979 = vpop.permute.xlu0 %4978
    %4980 = vrot.lane.b32.xlu0 %v4823, 10
    %v4981 = vpop.permute.xlu0 %4980
    %4982 = vrot.lane.b32.xlu0 %v4819, 10
    %v4983 = vpop.permute.xlu0 %4982
    %4984 = vrot.lane.b32.xlu0 %v4836, 10
    %v4985 = vpop.permute.xlu0 %4984
    %4986 = vrot.lane.b32.xlu0 %v4837, 10
    %v4987 = vpop.permute.xlu0 %4986
    %4988 = vrot.lane.b32.xlu0 %v4829, 10
    %v4989 = vpop.permute.xlu0 %4988
    %4990 = vrot.lane.b32.xlu0 %v4838, 10
    %v4991 = vpop.permute.xlu0 %4990
    %4992 = vrot.lane.b32.xlu0 %v4839, 10
    %v4993 = vpop.permute.xlu0 %4992
    %4994 = vrot.lane.b32.xlu0 %v4835, 10
    %v4995 = vpop.permute.xlu0 %4994
    %4996 = vrot.lane.b32.xlu0 %v4852, 10
    %v4997 = vpop.permute.xlu0 %4996
    %4998 = vrot.lane.b32.xlu0 %v4853, 10
    %v4999 = vpop.permute.xlu0 %4998
    %5000 = vrot.lane.b32.xlu0 %v4845, 10
    %v5001 = vpop.permute.xlu0 %5000
    %5002 = vrot.lane.b32.xlu0 %v4854, 10
    %v5003 = vpop.permute.xlu0 %5002
    %5004 = vrot.lane.b32.xlu0 %v4855, 10
    %v5005 = vpop.permute.xlu0 %5004
    %5006 = vrot.lane.b32.xlu0 %v4851, 10
    %v5007 = vpop.permute.xlu0 %5006
    %5008 = vrot.lane.b32.xlu0 %v4868, 10
    %v5009 = vpop.permute.xlu0 %5008
    %5010 = vrot.lane.b32.xlu0 %v4869, 10
    %v5011 = vpop.permute.xlu0 %5010
    %5012 = vrot.lane.b32.xlu0 %v4861, 10
    %v5013 = vpop.permute.xlu0 %5012
    %5014 = vrot.lane.b32.xlu0 %v4870, 10
    %v5015 = vpop.permute.xlu0 %5014
    %5016 = vrot.lane.b32.xlu0 %v4871, 10
    %v5017 = vpop.permute.xlu0 %5016
    %5018 = vrot.lane.b32.xlu0 %v4867, 10
    %v5019 = vpop.permute.xlu0 %5018
    %5020 = vrot.lane.b32.xlu0 %v4873, 10
    %v5021 = vpop.permute.xlu0 %5020
    %5022 = vrot.lane.b32.xlu0 %v4880, 10
    %v5023 = vpop.permute.xlu0 %5022
    %5024 = vrot.lane.b32.xlu0 %v4875, 10
    %v5025 = vpop.permute.xlu0 %5024
    %5026 = vrot.lane.b32.xlu0 %v4877, 10
    %v5027 = vpop.permute.xlu0 %5026
    %5028 = vrot.lane.b32.xlu0 %v4881, 10
    %v5029 = vpop.permute.xlu0 %5028
    %5030 = vrot.lane.b32.xlu0 %v4879, 10
    %v5031 = vpop.permute.xlu0 %5030
    %v5032 = vsel %vm523, %v4901, %v4903
    %v5033 = vsel %vm523, %v4903, %v4905
    %v5034 = vsel %vm523, %v4907, %v4909
    %v5035 = vsel %vm523, %v4909, %v4911
    %v5036 = vsel %vm523, %v4913, %v4915
    %v5037 = vsel %vm523, %v4915, %v4917
    %v5038 = vsel %vm523, %v4919, %v4921
    %v5039 = vsel %vm523, %v4921, %v4923
    %v5040 = vsel %vm523, %v4925, %v4927
    %v5041 = vsel %vm523, %v4927, %v4929
    %v5042 = vsel %vm523, %v4931, %v4933
    %v5043 = vsel %vm523, %v4933, %v4935
    %v5044 = vsel %vm523, %v4937, %v4939
    %v5045 = vsel %vm523, %v4939, %v4941
    %v5046 = vsel %vm523, %v4943, %v4945
    %v5047 = vsel %vm523, %v4945, %v4947
    %v5048 = vsel %vm523, %v4949, %v4951
    %v5049 = vsel %vm523, %v4951, %v4953
    %v5050 = vsel %vm523, %v4955, %v4957
    %v5051 = vsel %vm523, %v4957, %v4959
    %v5052 = vsel %vm523, %v4961, %v4963
    %v5053 = vsel %vm523, %v4963, %v4965
    %v5054 = vsel %vm523, %v4967, %v4969
    %v5055 = vsel %vm523, %v4969, %v4971
    %v5056 = vsel %vm523, %v4973, %v4975
    %v5057 = vsel %vm523, %v4975, %v4977
    %v5058 = vsel %vm523, %v4979, %v4981
    %v5059 = vsel %vm523, %v4981, %v4983
    %v5060 = vsel %vm523, %v4985, %v4987
    %v5061 = vsel %vm523, %v4987, %v4989
    %v5062 = vsel %vm523, %v4991, %v4993
    %v5063 = vsel %vm523, %v4993, %v4995
    %v5064 = vsel %vm523, %v4997, %v4999
    %v5065 = vsel %vm523, %v4999, %v5001
    %v5066 = vsel %vm523, %v5003, %v5005
    %v5067 = vsel %vm523, %v5005, %v5007
    %v5068 = vsel %vm523, %v5009, %v5011
    %v5069 = vsel %vm523, %v5011, %v5013
    %v5070 = vsel %vm523, %v5015, %v5017
    %v5071 = vsel %vm523, %v5017, %v5019
    %v5072 = vsel %vm523, %v5021, %v5023
    %v5073 = vsel %vm523, %v5023, %v5025
    %v5074 = vsel %vm523, %v5027, %v5029
    %v5075 = vsel %vm523, %v5029, %v5031
    %v5121 = vsel %vm612, %v4884, 0
    %v5124 = vsel %vm612, %v4886, 0
    %5126 = vmatprep.subr.mxu0 %v5063
    %5127 = vmatpush1.msra.mxu0 %v5062
    %5128 = vmatprep.subr.mxu0 %v5061
    %5129 = vmatpush1.msra.mxu0 %v5060
    %5130 = vmatprep.subr.mxu0 %v5059
    %5131 = vmatpush1.msra.mxu0 %v5058
    %5132 = vmatprep.subr.mxu0 %v5057
    %5133 = vmatpush1.msra.mxu0 %v5056
    %5134 = vmatprep.subr.mxu0 %v5055
    %5135 = vmatpush1.msra.mxu0 %v5054
    %5136 = vmatprep.subr.mxu0 %v5053
    %5137 = vmatpush1.msra.mxu0 %v5052
    %5138 = vmatprep.subr.mxu0 %v5051
    %5139 = vmatpush1.msra.mxu0 %v5050
    %5140 = vmatprep.subr.mxu0 %v5049
    %5141 = vmatpush1.msra.mxu0 %v5048
    %5142 = vmatprep.subr.mxu0 %v5047
    %5143 = vmatpush1.msra.mxu0 %v5046
    %5144 = vmatprep.subr.mxu0 %v5045
    %5145 = vmatpush1.msra.mxu0 %v5044
    %5146 = vmatprep.subr.mxu0 %v5043
    %5147 = vmatpush1.msra.mxu0 %v5042
    %5148 = vmatprep.subr.mxu0 %v5041
    %5149 = vmatpush1.msra.mxu0 %v5040
    %5150 = vmatprep.subr.mxu0 %v5039
    %5151 = vmatpush1.msra.mxu0 %v5038
    %5152 = vmatprep.subr.mxu0 %v5037
    %5153 = vmatpush1.msra.mxu0 %v5036
    %5154 = vmatprep.subr.mxu0 %v5035
    %5155 = vmatpush1.msra.mxu0 %v5034
    %5156 = vmatprep.subr.mxu0 %v5033
    %5157 = vmatpush1.msra.mxu0 %v5032
    %5158 = vmatprep.subr.mxu0 0.0
    %5159 = vmatpush2.msra.mxu0 0.0
    %5160 = vmatprep.subr.mxu0 0.0
    %5161 = vmatpush2.msra.mxu0 0.0
    %5162 = vmatprep.subr.mxu0 0.0
    %5163 = vmatpush2.msra.mxu0 0.0
    %5164 = vmatprep.subr.mxu0 0.0
    %5165 = vmatpush2.msra.mxu0 0.0
    %5166 = vmatprep.subr.mxu0 0.0
    %5167 = vmatpush2.msra.mxu0 0.0
    %5168 = vmatprep.subr.mxu0 0.0
    %5169 = vmatpush2.msra.mxu0 0.0
    %5170 = vmatprep.subr.mxu0 0.0
    %5171 = vmatpush2.msra.mxu0 0.0
    %5172 = vmatprep.subr.mxu0 0.0
    %5173 = vmatpush2.msra.mxu0 0.0
    %5174 = vmatprep.subr.mxu0 0.0
    %5175 = vmatpush2.msra.mxu0 0.0
    %5176 = vmatprep.subr.mxu0 0.0
    %5177 = vmatpush2.msra.mxu0 0.0
    %5178 = vmatprep.subr.mxu0 %v5075
    %5179 = vmatpush2.msra.mxu0 %v5074
    %5180 = vmatprep.subr.mxu0 %v5073
    %5181 = vmatpush2.msra.mxu0 %v5072
    %5182 = vmatprep.subr.mxu0 %v5071
    %5183 = vmatpush2.msra.mxu0 %v5070
    %5184 = vmatprep.subr.mxu0 %v5069
    %5185 = vmatpush2.msra.mxu0 %v5068
    %5186 = vmatprep.subr.mxu0 %v5067
    %5187 = vmatpush2.msra.mxu0 %v5066
    %5188 = vmatprep.subr.mxu0 %v5065
    %5189 = vmatpush2.msra.mxu0 %v5064
    %5190 = vmatprep.mubr.f32.mxu0 %v5121
    %5191 = vmatmul.mubr.f32.gmra.mxu0 %v4883
    %v5192 = vpop.f32.mrf.mxu0
    %v5193 = vadd.f32 %v4893, %v5192
    %v5194 = vpop.f32.mrf.mxu0
    %v5195 = vadd.f32 %v4893, %v5194
    %5196 = vmatprep.mubr.f32.mxu0 %v5124
    %5197 = vmatmul.mubr.f32.gmra.mxu0 %v4885
    %v5198 = vpop.f32.mrf.mxu0
    %v5199 = vadd.f32 %v4898, %v5198
    %v5200 = vpop.f32.mrf.mxu0
    %v5201 = vadd.f32 %v4898, %v5200
    %5202 = vdwg.mxu0
    %v5203 = vtanh.pop %v5193
    %v5204 = vtanh.pop %v5195
    %v5205 = vtanh.pop %v5199
    %v5206 = vtanh.pop %v5201
    %v5207 = vadd.f32 %v5203, %v4209
    %v5208 = vadd.f32 %v5204, %v4210
    %v5209 = vadd.f32 %v5205, %v4211
    %v5210 = vadd.f32 %v5206, %v4212
    %v5211 = vtanh.pop %v5207
    %v5212 = vtanh.pop %v5208
    %v5213 = vtanh.pop %v5209
    %v5214 = vtanh.pop %v5210
    %v5215 = vsel %vm91, %v5211, 0.0
    %v5216 = vsel %vm92, %v5212, 0.0
    %v5217 = vsel %vm91, %v5213, 0.0
    %v5218 = vsel %vm92, %v5214, 0.0
    %5219 = vst [vmem:[#allocation2 + $0x8] sm:$0xff] %v5215
    %5220 = vst [vmem:[#allocation2 + $0x10] sm:$0xff] %v5216
    %5221 = vst [vmem:[#allocation2 + $0x20] sm:$0xff] %v5217
    %5222 = vst [vmem:[#allocation2 + $0x28] sm:$0xff] %v5218
    %v5223 = vld [vmem:[#allocation2] sm:$0xff]
    %v5224 = vld [vmem:[#allocation2 + $0x8] sm:$0xff]
    %v5225 = vld [vmem:[#allocation2 + $0x10] sm:$0xff]
    %v5226 = vld [vmem:[#allocation2 + $0x18] sm:$0xff]
    %v5227 = vld [vmem:[#allocation2 + $0x20] sm:$0xff]
    %v5228 = vld [vmem:[#allocation2 + $0x28] sm:$0xff]
    %5235 = vrot.lane.b32.xlu0 %v5223, 126
    %v5236 = vpop.permute.xlu0 %5235
    %5237 = vrot.lane.b32.xlu0 %v5224, 126
    %v5238 = vpop.permute.xlu0 %5237
    %5239 = vrot.lane.b32.xlu0 %v5225, 126
    %v5240 = vpop.permute.xlu0 %5239
    %5241 = vrot.lane.b32.xlu0 %v5226, 126
    %v5242 = vpop.permute.xlu0 %5241
    %5243 = vrot.lane.b32.xlu0 %v5227, 126
    %v5244 = vpop.permute.xlu0 %5243
    %5245 = vrot.lane.b32.xlu0 %v5228, 126
    %v5246 = vpop.permute.xlu0 %5245
    %v5247 = vsel %vm240, %v5236, %v5238
    %v5248 = vsel %vm240, %v5238, %v5240
    %v5249 = vsel %vm240, %v5242, %v5244
    %v5250 = vsel %vm240, %v5244, %v5246
    %5251 = vrot.lane.b32.xlu0 %v5223, 124
    %v5252 = vpop.permute.xlu0 %5251
    %5253 = vrot.lane.b32.xlu0 %v5224, 124
    %v5254 = vpop.permute.xlu0 %5253
    %5255 = vrot.lane.b32.xlu0 %v5225, 124
    %v5256 = vpop.permute.xlu0 %5255
    %5257 = vrot.lane.b32.xlu0 %v5226, 124
    %v5258 = vpop.permute.xlu0 %5257
    %5259 = vrot.lane.b32.xlu0 %v5227, 124
    %v5260 = vpop.permute.xlu0 %5259
    %5261 = vrot.lane.b32.xlu0 %v5228, 124
    %v5262 = vpop.permute.xlu0 %5261
    %v5263 = vsel %vm274, %v5252, %v5254
    %v5264 = vsel %vm274, %v5254, %v5256
    %v5265 = vsel %vm274, %v5258, %v5260
    %v5266 = vsel %vm274, %v5260, %v5262
    %5267 = vrot.lane.b32.xlu0 %v5223, 122
    %v5268 = vpop.permute.xlu0 %5267
    %5269 = vrot.lane.b32.xlu0 %v5224, 122
    %v5270 = vpop.permute.xlu0 %5269
    %5271 = vrot.lane.b32.xlu0 %v5225, 122
    %v5272 = vpop.permute.xlu0 %5271
    %5273 = vrot.lane.b32.xlu0 %v5226, 122
    %v5274 = vpop.permute.xlu0 %5273
    %5275 = vrot.lane.b32.xlu0 %v5227, 122
    %v5276 = vpop.permute.xlu0 %5275
    %5277 = vrot.lane.b32.xlu0 %v5228, 122
    %v5278 = vpop.permute.xlu0 %5277
    %v5279 = vsel %vm308, %v5268, %v5270
    %v5280 = vsel %vm308, %v5270, %v5272
    %v5281 = vsel %vm308, %v5274, %v5276
    %v5282 = vsel %vm308, %v5276, %v5278
    %5283 = vrot.lane.b32.xlu0 %v5223, 120
    %v5284 = vpop.permute.xlu0 %5283
    %5285 = vrot.lane.b32.xlu0 %v5224, 120
    %v5286 = vpop.permute.xlu0 %5285
    %5287 = vrot.lane.b32.xlu0 %v5225, 120
    %v5288 = vpop.permute.xlu0 %5287
    %5289 = vrot.lane.b32.xlu0 %v5226, 120
    %v5290 = vpop.permute.xlu0 %5289
    %5291 = vrot.lane.b32.xlu0 %v5227, 120
    %v5292 = vpop.permute.xlu0 %5291
    %5293 = vrot.lane.b32.xlu0 %v5228, 120
    %v5294 = vpop.permute.xlu0 %5293
    %v5295 = vsel %vm342, %v5284, %v5286
    %v5296 = vsel %vm342, %v5286, %v5288
    %v5297 = vsel %vm342, %v5290, %v5292
    %v5298 = vsel %vm342, %v5292, %v5294
    %5299 = vrot.lane.b32.xlu0 %v5223, 118
    %v5300 = vpop.permute.xlu0 %5299
    %5301 = vrot.lane.b32.xlu0 %v5224, 118
    %v5302 = vpop.permute.xlu0 %5301
    %5303 = vrot.lane.b32.xlu0 %v5225, 118
    %v5304 = vpop.permute.xlu0 %5303
    %5305 = vrot.lane.b32.xlu0 %v5226, 118
    %v5306 = vpop.permute.xlu0 %5305
    %5307 = vrot.lane.b32.xlu0 %v5227, 118
    %v5308 = vpop.permute.xlu0 %5307
    %5309 = vrot.lane.b32.xlu0 %v5228, 118
    %v5310 = vpop.permute.xlu0 %5309
    %v5311 = vsel %vm372, %v5300, %v5302
    %v5312 = vsel %vm372, %v5302, %v5304
    %v5313 = vsel %vm372, %v5306, %v5308
    %v5314 = vsel %vm372, %v5308, %v5310
    %5315 = vrot.lane.b32.xlu0 %v5223, 116
    %v5316 = vpop.permute.xlu0 %5315
    %5317 = vrot.lane.b32.xlu0 %v5224, 116
    %v5318 = vpop.permute.xlu0 %5317
    %5319 = vrot.lane.b32.xlu0 %v5225, 116
    %v5320 = vpop.permute.xlu0 %5319
    %5321 = vrot.lane.b32.xlu0 %v5226, 116
    %v5322 = vpop.permute.xlu0 %5321
    %5323 = vrot.lane.b32.xlu0 %v5227, 116
    %v5324 = vpop.permute.xlu0 %5323
    %5325 = vrot.lane.b32.xlu0 %v5228, 116
    %v5326 = vpop.permute.xlu0 %5325
    %v5327 = vsel %vm1319, %v5316, %v5318
    %v5328 = vsel %vm1319, %v5318, %v5320
    %v5329 = vsel %vm1319, %v5322, %v5324
    %v5330 = vsel %vm1319, %v5324, %v5326
    %5331 = vrot.lane.b32.xlu0 %v5223, 114
    %v5332 = vpop.permute.xlu0 %5331
    %5333 = vrot.lane.b32.xlu0 %v5224, 114
    %v5334 = vpop.permute.xlu0 %5333
    %5335 = vrot.lane.b32.xlu0 %v5225, 114
    %v5336 = vpop.permute.xlu0 %5335
    %5337 = vrot.lane.b32.xlu0 %v5226, 114
    %v5338 = vpop.permute.xlu0 %5337
    %5339 = vrot.lane.b32.xlu0 %v5227, 114
    %v5340 = vpop.permute.xlu0 %5339
    %5341 = vrot.lane.b32.xlu0 %v5228, 114
    %v5342 = vpop.permute.xlu0 %5341
    %v5343 = vsel %vm1336, %v5332, %v5334
    %v5344 = vsel %vm1336, %v5334, %v5336
    %v5345 = vsel %vm1336, %v5338, %v5340
    %v5346 = vsel %vm1336, %v5340, %v5342
    %5347 = vrot.lane.b32.xlu0 %v5223, 112
    %v5348 = vpop.permute.xlu0 %5347
    %5349 = vrot.lane.b32.xlu0 %v5224, 112
    %v5350 = vpop.permute.xlu0 %5349
    %5351 = vrot.lane.b32.xlu0 %v5225, 112
    %v5352 = vpop.permute.xlu0 %5351
    %5353 = vrot.lane.b32.xlu0 %v5226, 112
    %v5354 = vpop.permute.xlu0 %5353
    %5355 = vrot.lane.b32.xlu0 %v5227, 112
    %v5356 = vpop.permute.xlu0 %5355
    %5357 = vrot.lane.b32.xlu0 %v5228, 112
    %v5358 = vpop.permute.xlu0 %5357
    %v5359 = vsel %vm1353, %v5348, %v5350
    %v5360 = vsel %vm1353, %v5350, %v5352
    %v5361 = vsel %vm1353, %v5354, %v5356
    %v5362 = vsel %vm1353, %v5356, %v5358
    %5363 = vrot.lane.b32.xlu0 %v5223, 110
    %v5364 = vpop.permute.xlu0 %5363
    %5365 = vrot.lane.b32.xlu0 %v5224, 110
    %v5366 = vpop.permute.xlu0 %5365
    %5367 = vrot.lane.b32.xlu0 %v5225, 110
    %v5368 = vpop.permute.xlu0 %5367
    %5369 = vrot.lane.b32.xlu0 %v5226, 110
    %v5370 = vpop.permute.xlu0 %5369
    %5371 = vrot.lane.b32.xlu0 %v5227, 110
    %v5372 = vpop.permute.xlu0 %5371
    %5373 = vrot.lane.b32.xlu0 %v5228, 110
    %v5374 = vpop.permute.xlu0 %5373
    %v5375 = vsel %vm1370, %v5364, %v5366
    %v5376 = vsel %vm1370, %v5366, %v5368
    %v5377 = vsel %vm1370, %v5370, %v5372
    %v5378 = vsel %vm1370, %v5372, %v5374
    %5379 = vrot.lane.b32.xlu0 %v5224, 108
    %v5380 = vpop.permute.xlu0 %5379
    %5381 = vrot.lane.b32.xlu0 %v5225, 108
    %v5382 = vpop.permute.xlu0 %5381
    %5383 = vrot.lane.b32.xlu0 %v5227, 108
    %v5384 = vpop.permute.xlu0 %5383
    %5385 = vrot.lane.b32.xlu0 %v5228, 108
    %v5386 = vpop.permute.xlu0 %5385
    %v5387 = vsel %vm1383, %v5380, %v5382
    %v5388 = vsel %vm1383, %v5384, %v5386
    %s5389 = scalar_lea.vmem [#allocation3], 320
    %v5390 = vld [vmem:[%s5389] sm:$0xff]
    %v5391 = vld [vmem:[%s5389 + $0x8] sm:$0xff]
    %v5392 = vld [vmem:[%s5389 + $0x10] sm:$0xff]
    %v5393 = vld [vmem:[%s5389 + $0x18] sm:$0xff]
    %s5394 = scalar_lea.vmem %s2, 160
    %v5395 = vld [vmem:[%s5394] sm:$0xff]
    %v5396 = vld [vmem:[%s5394 + $0x8] sm:$0xff]
    %5398 = vset.pattern.permute.xlu0 0
    %5399 = vperm.xlu0 %5398, %v5395
    %v5400 = vpop.permute.xlu0 %5399
    %5403 = vset.pattern.permute.xlu0 0
    %5404 = vperm.xlu0 %5403, %v5396
    %v5405 = vpop.permute.xlu0 %5404
    %5407 = vrot.lane.b32.xlu0 %v5223, 20
    %v5408 = vpop.permute.xlu0 %5407
    %5409 = vrot.lane.b32.xlu0 %v5224, 20
    %v5410 = vpop.permute.xlu0 %5409
    %5411 = vrot.lane.b32.xlu0 %v5225, 20
    %v5412 = vpop.permute.xlu0 %5411
    %5413 = vrot.lane.b32.xlu0 %v5226, 20
    %v5414 = vpop.permute.xlu0 %5413
    %5415 = vrot.lane.b32.xlu0 %v5227, 20
    %v5416 = vpop.permute.xlu0 %5415
    %5417 = vrot.lane.b32.xlu0 %v5228, 20
    %v5418 = vpop.permute.xlu0 %5417
    %5419 = vrot.lane.b32.xlu0 %v5247, 20
    %v5420 = vpop.permute.xlu0 %5419
    %5421 = vrot.lane.b32.xlu0 %v5248, 20
    %v5422 = vpop.permute.xlu0 %5421
    %5423 = vrot.lane.b32.xlu0 %v5240, 20
    %v5424 = vpop.permute.xlu0 %5423
    %5425 = vrot.lane.b32.xlu0 %v5249, 20
    %v5426 = vpop.permute.xlu0 %5425
    %5427 = vrot.lane.b32.xlu0 %v5250, 20
    %v5428 = vpop.permute.xlu0 %5427
    %5429 = vrot.lane.b32.xlu0 %v5246, 20
    %v5430 = vpop.permute.xlu0 %5429
    %5431 = vrot.lane.b32.xlu0 %v5263, 20
    %v5432 = vpop.permute.xlu0 %5431
    %5433 = vrot.lane.b32.xlu0 %v5264, 20
    %v5434 = vpop.permute.xlu0 %5433
    %5435 = vrot.lane.b32.xlu0 %v5256, 20
    %v5436 = vpop.permute.xlu0 %5435
    %5437 = vrot.lane.b32.xlu0 %v5265, 20
    %v5438 = vpop.permute.xlu0 %5437
    %5439 = vrot.lane.b32.xlu0 %v5266, 20
    %v5440 = vpop.permute.xlu0 %5439
    %5441 = vrot.lane.b32.xlu0 %v5262, 20
    %v5442 = vpop.permute.xlu0 %5441
    %5443 = vrot.lane.b32.xlu0 %v5279, 20
    %v5444 = vpop.permute.xlu0 %5443
    %5445 = vrot.lane.b32.xlu0 %v5280, 20
    %v5446 = vpop.permute.xlu0 %5445
    %5447 = vrot.lane.b32.xlu0 %v5272, 20
    %v5448 = vpop.permute.xlu0 %5447
    %5449 = vrot.lane.b32.xlu0 %v5281, 20
    %v5450 = vpop.permute.xlu0 %5449
    %5451 = vrot.lane.b32.xlu0 %v5282, 20
    %v5452 = vpop.permute.xlu0 %5451
    %5453 = vrot.lane.b32.xlu0 %v5278, 20
    %v5454 = vpop.permute.xlu0 %5453
    %5455 = vrot.lane.b32.xlu0 %v5295, 20
    %v5456 = vpop.permute.xlu0 %5455
    %5457 = vrot.lane.b32.xlu0 %v5296, 20
    %v5458 = vpop.permute.xlu0 %5457
    %5459 = vrot.lane.b32.xlu0 %v5288, 20
    %v5460 = vpop.permute.xlu0 %5459
    %5461 = vrot.lane.b32.xlu0 %v5297, 20
    %v5462 = vpop.permute.xlu0 %5461
    %5463 = vrot.lane.b32.xlu0 %v5298, 20
    %v5464 = vpop.permute.xlu0 %5463
    %5465 = vrot.lane.b32.xlu0 %v5294, 20
    %v5466 = vpop.permute.xlu0 %5465
    %5467 = vrot.lane.b32.xlu0 %v5311, 20
    %v5468 = vpop.permute.xlu0 %5467
    %5469 = vrot.lane.b32.xlu0 %v5312, 20
    %v5470 = vpop.permute.xlu0 %5469
    %5471 = vrot.lane.b32.xlu0 %v5304, 20
    %v5472 = vpop.permute.xlu0 %5471
    %5473 = vrot.lane.b32.xlu0 %v5313, 20
    %v5474 = vpop.permute.xlu0 %5473
    %5475 = vrot.lane.b32.xlu0 %v5314, 20
    %v5476 = vpop.permute.xlu0 %5475
    %5477 = vrot.lane.b32.xlu0 %v5310, 20
    %v5478 = vpop.permute.xlu0 %5477
    %5479 = vrot.lane.b32.xlu0 %v5327, 20
    %v5480 = vpop.permute.xlu0 %5479
    %5481 = vrot.lane.b32.xlu0 %v5328, 20
    %v5482 = vpop.permute.xlu0 %5481
    %5483 = vrot.lane.b32.xlu0 %v5320, 20
    %v5484 = vpop.permute.xlu0 %5483
    %5485 = vrot.lane.b32.xlu0 %v5329, 20
    %v5486 = vpop.permute.xlu0 %5485
    %5487 = vrot.lane.b32.xlu0 %v5330, 20
    %v5488 = vpop.permute.xlu0 %5487
    %5489 = vrot.lane.b32.xlu0 %v5326, 20
    %v5490 = vpop.permute.xlu0 %5489
    %5491 = vrot.lane.b32.xlu0 %v5343, 20
    %v5492 = vpop.permute.xlu0 %5491
    %5493 = vrot.lane.b32.xlu0 %v5344, 20
    %v5494 = vpop.permute.xlu0 %5493
    %5495 = vrot.lane.b32.xlu0 %v5336, 20
    %v5496 = vpop.permute.xlu0 %5495
    %5497 = vrot.lane.b32.xlu0 %v5345, 20
    %v5498 = vpop.permute.xlu0 %5497
    %5499 = vrot.lane.b32.xlu0 %v5346, 20
    %v5500 = vpop.permute.xlu0 %5499
    %5501 = vrot.lane.b32.xlu0 %v5342, 20
    %v5502 = vpop.permute.xlu0 %5501
    %5503 = vrot.lane.b32.xlu0 %v5359, 20
    %v5504 = vpop.permute.xlu0 %5503
    %5505 = vrot.lane.b32.xlu0 %v5360, 20
    %v5506 = vpop.permute.xlu0 %5505
    %5507 = vrot.lane.b32.xlu0 %v5352, 20
    %v5508 = vpop.permute.xlu0 %5507
    %5509 = vrot.lane.b32.xlu0 %v5361, 20
    %v5510 = vpop.permute.xlu0 %5509
    %5511 = vrot.lane.b32.xlu0 %v5362, 20
    %v5512 = vpop.permute.xlu0 %5511
    %5513 = vrot.lane.b32.xlu0 %v5358, 20
    %v5514 = vpop.permute.xlu0 %5513
    %5515 = vrot.lane.b32.xlu0 %v5375, 20
    %v5516 = vpop.permute.xlu0 %5515
    %5517 = vrot.lane.b32.xlu0 %v5376, 20
    %v5518 = vpop.permute.xlu0 %5517
    %5519 = vrot.lane.b32.xlu0 %v5368, 20
    %v5520 = vpop.permute.xlu0 %5519
    %5521 = vrot.lane.b32.xlu0 %v5377, 20
    %v5522 = vpop.permute.xlu0 %5521
    %5523 = vrot.lane.b32.xlu0 %v5378, 20
    %v5524 = vpop.permute.xlu0 %5523
    %5525 = vrot.lane.b32.xlu0 %v5374, 20
    %v5526 = vpop.permute.xlu0 %5525
    %5527 = vrot.lane.b32.xlu0 %v5380, 20
    %v5528 = vpop.permute.xlu0 %5527
    %5529 = vrot.lane.b32.xlu0 %v5387, 20
    %v5530 = vpop.permute.xlu0 %5529
    %5531 = vrot.lane.b32.xlu0 %v5382, 20
    %v5532 = vpop.permute.xlu0 %5531
    %5533 = vrot.lane.b32.xlu0 %v5384, 20
    %v5534 = vpop.permute.xlu0 %5533
    %5535 = vrot.lane.b32.xlu0 %v5388, 20
    %v5536 = vpop.permute.xlu0 %5535
    %5537 = vrot.lane.b32.xlu0 %v5386, 20
    %v5538 = vpop.permute.xlu0 %5537
    %v5539 = vsel %vm1536, %v5408, %v5410
    %v5540 = vsel %vm1536, %v5410, %v5412
    %v5541 = vsel %vm1536, %v5414, %v5416
    %v5542 = vsel %vm1536, %v5416, %v5418
    %v5543 = vsel %vm1536, %v5420, %v5422
    %v5544 = vsel %vm1536, %v5422, %v5424
    %v5545 = vsel %vm1536, %v5426, %v5428
    %v5546 = vsel %vm1536, %v5428, %v5430
    %v5547 = vsel %vm1536, %v5432, %v5434
    %v5548 = vsel %vm1536, %v5434, %v5436
    %v5549 = vsel %vm1536, %v5438, %v5440
    %v5550 = vsel %vm1536, %v5440, %v5442
    %v5551 = vsel %vm1536, %v5444, %v5446
    %v5552 = vsel %vm1536, %v5446, %v5448
    %v5553 = vsel %vm1536, %v5450, %v5452
    %v5554 = vsel %vm1536, %v5452, %v5454
    %v5555 = vsel %vm1536, %v5456, %v5458
    %v5556 = vsel %vm1536, %v5458, %v5460
    %v5557 = vsel %vm1536, %v5462, %v5464
    %v5558 = vsel %vm1536, %v5464, %v5466
    %v5559 = vsel %vm1536, %v5468, %v5470
    %v5560 = vsel %vm1536, %v5470, %v5472
    %v5561 = vsel %vm1536, %v5474, %v5476
    %v5562 = vsel %vm1536, %v5476, %v5478
    %v5563 = vsel %vm1536, %v5480, %v5482
    %v5564 = vsel %vm1536, %v5482, %v5484
    %v5565 = vsel %vm1536, %v5486, %v5488
    %v5566 = vsel %vm1536, %v5488, %v5490
    %v5567 = vsel %vm1536, %v5492, %v5494
    %v5568 = vsel %vm1536, %v5494, %v5496
    %v5569 = vsel %vm1536, %v5498, %v5500
    %v5570 = vsel %vm1536, %v5500, %v5502
    %v5571 = vsel %vm1536, %v5504, %v5506
    %v5572 = vsel %vm1536, %v5506, %v5508
    %v5573 = vsel %vm1536, %v5510, %v5512
    %v5574 = vsel %vm1536, %v5512, %v5514
    %v5575 = vsel %vm1536, %v5516, %v5518
    %v5576 = vsel %vm1536, %v5518, %v5520
    %v5577 = vsel %vm1536, %v5522, %v5524
    %v5578 = vsel %vm1536, %v5524, %v5526
    %v5579 = vsel %vm1536, %v5528, %v5530
    %v5580 = vsel %vm1536, %v5530, %v5532
    %v5581 = vsel %vm1536, %v5534, %v5536
    %v5582 = vsel %vm1536, %v5536, %v5538
    %v5628 = vsel %vm612, %v5391, 0
    %v5631 = vsel %vm612, %v5393, 0
    %5633 = vmatprep.subr.mxu0 %v5570
    %5634 = vmatpush1.msra.mxu0 %v5569
    %5635 = vmatprep.subr.mxu0 %v5568
    %5636 = vmatpush1.msra.mxu0 %v5567
    %5637 = vmatprep.subr.mxu0 %v5566
    %5638 = vmatpush1.msra.mxu0 %v5565
    %5639 = vmatprep.subr.mxu0 %v5564
    %5640 = vmatpush1.msra.mxu0 %v5563
    %5641 = vmatprep.subr.mxu0 %v5562
    %5642 = vmatpush1.msra.mxu0 %v5561
    %5643 = vmatprep.subr.mxu0 %v5560
    %5644 = vmatpush1.msra.mxu0 %v5559
    %5645 = vmatprep.subr.mxu0 %v5558
    %5646 = vmatpush1.msra.mxu0 %v5557
    %5647 = vmatprep.subr.mxu0 %v5556
    %5648 = vmatpush1.msra.mxu0 %v5555
    %5649 = vmatprep.subr.mxu0 %v5554
    %5650 = vmatpush1.msra.mxu0 %v5553
    %5651 = vmatprep.subr.mxu0 %v5552
    %5652 = vmatpush1.msra.mxu0 %v5551
    %5653 = vmatprep.subr.mxu0 %v5550
    %5654 = vmatpush1.msra.mxu0 %v5549
    %5655 = vmatprep.subr.mxu0 %v5548
    %5656 = vmatpush1.msra.mxu0 %v5547
    %5657 = vmatprep.subr.mxu0 %v5546
    %5658 = vmatpush1.msra.mxu0 %v5545
    %5659 = vmatprep.subr.mxu0 %v5544
    %5660 = vmatpush1.msra.mxu0 %v5543
    %5661 = vmatprep.subr.mxu0 %v5542
    %5662 = vmatpush1.msra.mxu0 %v5541
    %5663 = vmatprep.subr.mxu0 %v5540
    %5664 = vmatpush1.msra.mxu0 %v5539
    %5665 = vmatprep.subr.mxu0 0.0
    %5666 = vmatpush2.msra.mxu0 0.0
    %5667 = vmatprep.subr.mxu0 0.0
    %5668 = vmatpush2.msra.mxu0 0.0
    %5669 = vmatprep.subr.mxu0 0.0
    %5670 = vmatpush2.msra.mxu0 0.0
    %5671 = vmatprep.subr.mxu0 0.0
    %5672 = vmatpush2.msra.mxu0 0.0
    %5673 = vmatprep.subr.mxu0 0.0
    %5674 = vmatpush2.msra.mxu0 0.0
    %5675 = vmatprep.subr.mxu0 0.0
    %5676 = vmatpush2.msra.mxu0 0.0
    %5677 = vmatprep.subr.mxu0 0.0
    %5678 = vmatpush2.msra.mxu0 0.0
    %5679 = vmatprep.subr.mxu0 0.0
    %5680 = vmatpush2.msra.mxu0 0.0
    %5681 = vmatprep.subr.mxu0 0.0
    %5682 = vmatpush2.msra.mxu0 0.0
    %5683 = vmatprep.subr.mxu0 0.0
    %5684 = vmatpush2.msra.mxu0 0.0
    %5685 = vmatprep.subr.mxu0 %v5582
    %5686 = vmatpush2.msra.mxu0 %v5581
    %5687 = vmatprep.subr.mxu0 %v5580
    %5688 = vmatpush2.msra.mxu0 %v5579
    %5689 = vmatprep.subr.mxu0 %v5578
    %5690 = vmatpush2.msra.mxu0 %v5577
    %5691 = vmatprep.subr.mxu0 %v5576
    %5692 = vmatpush2.msra.mxu0 %v5575
    %5693 = vmatprep.subr.mxu0 %v5574
    %5694 = vmatpush2.msra.mxu0 %v5573
    %5695 = vmatprep.subr.mxu0 %v5572
    %5696 = vmatpush2.msra.mxu0 %v5571
    %5697 = vmatprep.mubr.f32.mxu0 %v5628
    %5698 = vmatmul.mubr.f32.gmra.mxu0 %v5390
    %v5699 = vpop.f32.mrf.mxu0
    %v5700 = vadd.f32 %v5400, %v5699
    %v5701 = vpop.f32.mrf.mxu0
    %v5702 = vadd.f32 %v5400, %v5701
    %5703 = vmatprep.mubr.f32.mxu0 %v5631
    %5704 = vmatmul.mubr.f32.gmra.mxu0 %v5392
    %v5705 = vpop.f32.mrf.mxu0
    %v5706 = vadd.f32 %v5405, %v5705
    %v5707 = vpop.f32.mrf.mxu0
    %v5708 = vadd.f32 %v5405, %v5707
    %5709 = vdwg.mxu0
    %v5710 = vtanh.pop %v5700
    %v5711 = vtanh.pop %v5702
    %v5712 = vtanh.pop %v5706
    %v5713 = vtanh.pop %v5708
    %v5714 = vsel %vm91, %v5710, 0.0
    %v5715 = vsel %vm92, %v5711, 0.0
    %v5716 = vsel %vm91, %v5712, 0.0
    %v5717 = vsel %vm92, %v5713, 0.0
    %5718 = vst [vmem:[#allocation2 + $0x8] sm:$0xff] %v5714
    %5719 = vst [vmem:[#allocation2 + $0x10] sm:$0xff] %v5715
    %5720 = vst [vmem:[#allocation2 + $0x20] sm:$0xff] %v5716
    %5721 = vst [vmem:[#allocation2 + $0x28] sm:$0xff] %v5717
    %v5722 = vld [vmem:[#allocation2] sm:$0xff]
    %v5723 = vld [vmem:[#allocation2 + $0x8] sm:$0xff]
    %v5724 = vld [vmem:[#allocation2 + $0x10] sm:$0xff]
    %v5725 = vld [vmem:[#allocation2 + $0x18] sm:$0xff]
    %v5726 = vld [vmem:[#allocation2 + $0x20] sm:$0xff]
    %v5727 = vld [vmem:[#allocation2 + $0x28] sm:$0xff]
    %5734 = vrot.lane.b32.xlu0 %v5722, 126
    %v5735 = vpop.permute.xlu0 %5734
    %5736 = vrot.lane.b32.xlu0 %v5723, 126
    %v5737 = vpop.permute.xlu0 %5736
    %5738 = vrot.lane.b32.xlu0 %v5724, 126
    %v5739 = vpop.permute.xlu0 %5738
    %5740 = vrot.lane.b32.xlu0 %v5725, 126
    %v5741 = vpop.permute.xlu0 %5740
    %5742 = vrot.lane.b32.xlu0 %v5726, 126
    %v5743 = vpop.permute.xlu0 %5742
    %5744 = vrot.lane.b32.xlu0 %v5727, 126
    %v5745 = vpop.permute.xlu0 %5744
    %v5746 = vsel %vm240, %v5735, %v5737
    %v5747 = vsel %vm240, %v5737, %v5739
    %v5748 = vsel %vm240, %v5741, %v5743
    %v5749 = vsel %vm240, %v5743, %v5745
    %5750 = vrot.lane.b32.xlu0 %v5722, 124
    %v5751 = vpop.permute.xlu0 %5750
    %5752 = vrot.lane.b32.xlu0 %v5723, 124
    %v5753 = vpop.permute.xlu0 %5752
    %5754 = vrot.lane.b32.xlu0 %v5724, 124
    %v5755 = vpop.permute.xlu0 %5754
    %5756 = vrot.lane.b32.xlu0 %v5725, 124
    %v5757 = vpop.permute.xlu0 %5756
    %5758 = vrot.lane.b32.xlu0 %v5726, 124
    %v5759 = vpop.permute.xlu0 %5758
    %5760 = vrot.lane.b32.xlu0 %v5727, 124
    %v5761 = vpop.permute.xlu0 %5760
    %v5762 = vsel %vm274, %v5751, %v5753
    %v5763 = vsel %vm274, %v5753, %v5755
    %v5764 = vsel %vm274, %v5757, %v5759
    %v5765 = vsel %vm274, %v5759, %v5761
    %5766 = vrot.lane.b32.xlu0 %v5722, 122
    %v5767 = vpop.permute.xlu0 %5766
    %5768 = vrot.lane.b32.xlu0 %v5723, 122
    %v5769 = vpop.permute.xlu0 %5768
    %5770 = vrot.lane.b32.xlu0 %v5724, 122
    %v5771 = vpop.permute.xlu0 %5770
    %5772 = vrot.lane.b32.xlu0 %v5725, 122
    %v5773 = vpop.permute.xlu0 %5772
    %5774 = vrot.lane.b32.xlu0 %v5726, 122
    %v5775 = vpop.permute.xlu0 %5774
    %5776 = vrot.lane.b32.xlu0 %v5727, 122
    %v5777 = vpop.permute.xlu0 %5776
    %v5778 = vsel %vm308, %v5767, %v5769
    %v5779 = vsel %vm308, %v5769, %v5771
    %v5780 = vsel %vm308, %v5773, %v5775
    %v5781 = vsel %vm308, %v5775, %v5777
    %5782 = vrot.lane.b32.xlu0 %v5722, 120
    %v5783 = vpop.permute.xlu0 %5782
    %5784 = vrot.lane.b32.xlu0 %v5723, 120
    %v5785 = vpop.permute.xlu0 %5784
    %5786 = vrot.lane.b32.xlu0 %v5724, 120
    %v5787 = vpop.permute.xlu0 %5786
    %5788 = vrot.lane.b32.xlu0 %v5725, 120
    %v5789 = vpop.permute.xlu0 %5788
    %5790 = vrot.lane.b32.xlu0 %v5726, 120
    %v5791 = vpop.permute.xlu0 %5790
    %5792 = vrot.lane.b32.xlu0 %v5727, 120
    %v5793 = vpop.permute.xlu0 %5792
    %v5794 = vsel %vm342, %v5783, %v5785
    %v5795 = vsel %vm342, %v5785, %v5787
    %v5796 = vsel %vm342, %v5789, %v5791
    %v5797 = vsel %vm342, %v5791, %v5793
    %5798 = vrot.lane.b32.xlu0 %v5722, 118
    %v5799 = vpop.permute.xlu0 %5798
    %5800 = vrot.lane.b32.xlu0 %v5723, 118
    %v5801 = vpop.permute.xlu0 %5800
    %5802 = vrot.lane.b32.xlu0 %v5724, 118
    %v5803 = vpop.permute.xlu0 %5802
    %5804 = vrot.lane.b32.xlu0 %v5725, 118
    %v5805 = vpop.permute.xlu0 %5804
    %5806 = vrot.lane.b32.xlu0 %v5726, 118
    %v5807 = vpop.permute.xlu0 %5806
    %5808 = vrot.lane.b32.xlu0 %v5727, 118
    %v5809 = vpop.permute.xlu0 %5808
    %v5810 = vsel %vm372, %v5799, %v5801
    %v5811 = vsel %vm372, %v5801, %v5803
    %v5812 = vsel %vm372, %v5805, %v5807
    %v5813 = vsel %vm372, %v5807, %v5809
    %5814 = vrot.lane.b32.xlu0 %v5722, 116
    %v5815 = vpop.permute.xlu0 %5814
    %5816 = vrot.lane.b32.xlu0 %v5723, 116
    %v5817 = vpop.permute.xlu0 %5816
    %5818 = vrot.lane.b32.xlu0 %v5724, 116
    %v5819 = vpop.permute.xlu0 %5818
    %5820 = vrot.lane.b32.xlu0 %v5725, 116
    %v5821 = vpop.permute.xlu0 %5820
    %5822 = vrot.lane.b32.xlu0 %v5726, 116
    %v5823 = vpop.permute.xlu0 %5822
    %5824 = vrot.lane.b32.xlu0 %v5727, 116
    %v5825 = vpop.permute.xlu0 %5824
    %v5826 = vsel %vm1319, %v5815, %v5817
    %v5827 = vsel %vm1319, %v5817, %v5819
    %v5828 = vsel %vm1319, %v5821, %v5823
    %v5829 = vsel %vm1319, %v5823, %v5825
    %5830 = vrot.lane.b32.xlu0 %v5722, 114
    %v5831 = vpop.permute.xlu0 %5830
    %5832 = vrot.lane.b32.xlu0 %v5723, 114
    %v5833 = vpop.permute.xlu0 %5832
    %5834 = vrot.lane.b32.xlu0 %v5724, 114
    %v5835 = vpop.permute.xlu0 %5834
    %5836 = vrot.lane.b32.xlu0 %v5725, 114
    %v5837 = vpop.permute.xlu0 %5836
    %5838 = vrot.lane.b32.xlu0 %v5726, 114
    %v5839 = vpop.permute.xlu0 %5838
    %5840 = vrot.lane.b32.xlu0 %v5727, 114
    %v5841 = vpop.permute.xlu0 %5840
    %v5842 = vsel %vm1336, %v5831, %v5833
    %v5843 = vsel %vm1336, %v5833, %v5835
    %v5844 = vsel %vm1336, %v5837, %v5839
    %v5845 = vsel %vm1336, %v5839, %v5841
    %5846 = vrot.lane.b32.xlu0 %v5722, 112
    %v5847 = vpop.permute.xlu0 %5846
    %5848 = vrot.lane.b32.xlu0 %v5723, 112
    %v5849 = vpop.permute.xlu0 %5848
    %5850 = vrot.lane.b32.xlu0 %v5724, 112
    %v5851 = vpop.permute.xlu0 %5850
    %5852 = vrot.lane.b32.xlu0 %v5725, 112
    %v5853 = vpop.permute.xlu0 %5852
    %5854 = vrot.lane.b32.xlu0 %v5726, 112
    %v5855 = vpop.permute.xlu0 %5854
    %5856 = vrot.lane.b32.xlu0 %v5727, 112
    %v5857 = vpop.permute.xlu0 %5856
    %v5858 = vsel %vm1353, %v5847, %v5849
    %v5859 = vsel %vm1353, %v5849, %v5851
    %v5860 = vsel %vm1353, %v5853, %v5855
    %v5861 = vsel %vm1353, %v5855, %v5857
    %5862 = vrot.lane.b32.xlu0 %v5722, 110
    %v5863 = vpop.permute.xlu0 %5862
    %5864 = vrot.lane.b32.xlu0 %v5723, 110
    %v5865 = vpop.permute.xlu0 %5864
    %5866 = vrot.lane.b32.xlu0 %v5724, 110
    %v5867 = vpop.permute.xlu0 %5866
    %5868 = vrot.lane.b32.xlu0 %v5725, 110
    %v5869 = vpop.permute.xlu0 %5868
    %5870 = vrot.lane.b32.xlu0 %v5726, 110
    %v5871 = vpop.permute.xlu0 %5870
    %5872 = vrot.lane.b32.xlu0 %v5727, 110
    %v5873 = vpop.permute.xlu0 %5872
    %v5874 = vsel %vm1370, %v5863, %v5865
    %v5875 = vsel %vm1370, %v5865, %v5867
    %v5876 = vsel %vm1370, %v5869, %v5871
    %v5877 = vsel %vm1370, %v5871, %v5873
    %5878 = vrot.lane.b32.xlu0 %v5723, 108
    %v5879 = vpop.permute.xlu0 %5878
    %5880 = vrot.lane.b32.xlu0 %v5724, 108
    %v5881 = vpop.permute.xlu0 %5880
    %5882 = vrot.lane.b32.xlu0 %v5726, 108
    %v5883 = vpop.permute.xlu0 %5882
    %5884 = vrot.lane.b32.xlu0 %v5727, 108
    %v5885 = vpop.permute.xlu0 %5884
    %v5886 = vsel %vm1383, %v5879, %v5881
    %v5887 = vsel %vm1383, %v5883, %v5885
    %s5888 = scalar_lea.vmem [#allocation3], 352
    %v5889 = vld [vmem:[%s5888] sm:$0xff]
    %v5890 = vld [vmem:[%s5888 + $0x8] sm:$0xff]
    %v5891 = vld [vmem:[%s5888 + $0x10] sm:$0xff]
    %v5892 = vld [vmem:[%s5888 + $0x18] sm:$0xff]
    %s5893 = scalar_lea.vmem %s2, 176
    %v5894 = vld [vmem:[%s5893] sm:$0xff]
    %v5895 = vld [vmem:[%s5893 + $0x8] sm:$0xff]
    %5897 = vset.pattern.permute.xlu0 0
    %5898 = vperm.xlu0 %5897, %v5894
    %v5899 = vpop.permute.xlu0 %5898
    %5902 = vset.pattern.permute.xlu0 0
    %5903 = vperm.xlu0 %5902, %v5895
    %v5904 = vpop.permute.xlu0 %5903
    %5906 = vrot.lane.b32.xlu0 %v5722, 20
    %v5907 = vpop.permute.xlu0 %5906
    %5908 = vrot.lane.b32.xlu0 %v5723, 20
    %v5909 = vpop.permute.xlu0 %5908
    %5910 = vrot.lane.b32.xlu0 %v5724, 20
    %v5911 = vpop.permute.xlu0 %5910
    %5912 = vrot.lane.b32.xlu0 %v5725, 20
    %v5913 = vpop.permute.xlu0 %5912
    %5914 = vrot.lane.b32.xlu0 %v5726, 20
    %v5915 = vpop.permute.xlu0 %5914
    %5916 = vrot.lane.b32.xlu0 %v5727, 20
    %v5917 = vpop.permute.xlu0 %5916
    %5918 = vrot.lane.b32.xlu0 %v5746, 20
    %v5919 = vpop.permute.xlu0 %5918
    %5920 = vrot.lane.b32.xlu0 %v5747, 20
    %v5921 = vpop.permute.xlu0 %5920
    %5922 = vrot.lane.b32.xlu0 %v5739, 20
    %v5923 = vpop.permute.xlu0 %5922
    %5924 = vrot.lane.b32.xlu0 %v5748, 20
    %v5925 = vpop.permute.xlu0 %5924
    %5926 = vrot.lane.b32.xlu0 %v5749, 20
    %v5927 = vpop.permute.xlu0 %5926
    %5928 = vrot.lane.b32.xlu0 %v5745, 20
    %v5929 = vpop.permute.xlu0 %5928
    %5930 = vrot.lane.b32.xlu0 %v5762, 20
    %v5931 = vpop.permute.xlu0 %5930
    %5932 = vrot.lane.b32.xlu0 %v5763, 20
    %v5933 = vpop.permute.xlu0 %5932
    %5934 = vrot.lane.b32.xlu0 %v5755, 20
    %v5935 = vpop.permute.xlu0 %5934
    %5936 = vrot.lane.b32.xlu0 %v5764, 20
    %v5937 = vpop.permute.xlu0 %5936
    %5938 = vrot.lane.b32.xlu0 %v5765, 20
    %v5939 = vpop.permute.xlu0 %5938
    %5940 = vrot.lane.b32.xlu0 %v5761, 20
    %v5941 = vpop.permute.xlu0 %5940
    %5942 = vrot.lane.b32.xlu0 %v5778, 20
    %v5943 = vpop.permute.xlu0 %5942
    %5944 = vrot.lane.b32.xlu0 %v5779, 20
    %v5945 = vpop.permute.xlu0 %5944
    %5946 = vrot.lane.b32.xlu0 %v5771, 20
    %v5947 = vpop.permute.xlu0 %5946
    %5948 = vrot.lane.b32.xlu0 %v5780, 20
    %v5949 = vpop.permute.xlu0 %5948
    %5950 = vrot.lane.b32.xlu0 %v5781, 20
    %v5951 = vpop.permute.xlu0 %5950
    %5952 = vrot.lane.b32.xlu0 %v5777, 20
    %v5953 = vpop.permute.xlu0 %5952
    %5954 = vrot.lane.b32.xlu0 %v5794, 20
    %v5955 = vpop.permute.xlu0 %5954
    %5956 = vrot.lane.b32.xlu0 %v5795, 20
    %v5957 = vpop.permute.xlu0 %5956
    %5958 = vrot.lane.b32.xlu0 %v5787, 20
    %v5959 = vpop.permute.xlu0 %5958
    %5960 = vrot.lane.b32.xlu0 %v5796, 20
    %v5961 = vpop.permute.xlu0 %5960
    %5962 = vrot.lane.b32.xlu0 %v5797, 20
    %v5963 = vpop.permute.xlu0 %5962
    %5964 = vrot.lane.b32.xlu0 %v5793, 20
    %v5965 = vpop.permute.xlu0 %5964
    %5966 = vrot.lane.b32.xlu0 %v5810, 20
    %v5967 = vpop.permute.xlu0 %5966
    %5968 = vrot.lane.b32.xlu0 %v5811, 20
    %v5969 = vpop.permute.xlu0 %5968
    %5970 = vrot.lane.b32.xlu0 %v5803, 20
    %v5971 = vpop.permute.xlu0 %5970
    %5972 = vrot.lane.b32.xlu0 %v5812, 20
    %v5973 = vpop.permute.xlu0 %5972
    %5974 = vrot.lane.b32.xlu0 %v5813, 20
    %v5975 = vpop.permute.xlu0 %5974
    %5976 = vrot.lane.b32.xlu0 %v5809, 20
    %v5977 = vpop.permute.xlu0 %5976
    %5978 = vrot.lane.b32.xlu0 %v5826, 20
    %v5979 = vpop.permute.xlu0 %5978
    %5980 = vrot.lane.b32.xlu0 %v5827, 20
    %v5981 = vpop.permute.xlu0 %5980
    %5982 = vrot.lane.b32.xlu0 %v5819, 20
    %v5983 = vpop.permute.xlu0 %5982
    %5984 = vrot.lane.b32.xlu0 %v5828, 20
    %v5985 = vpop.permute.xlu0 %5984
    %5986 = vrot.lane.b32.xlu0 %v5829, 20
    %v5987 = vpop.permute.xlu0 %5986
    %5988 = vrot.lane.b32.xlu0 %v5825, 20
    %v5989 = vpop.permute.xlu0 %5988
    %5990 = vrot.lane.b32.xlu0 %v5842, 20
    %v5991 = vpop.permute.xlu0 %5990
    %5992 = vrot.lane.b32.xlu0 %v5843, 20
    %v5993 = vpop.permute.xlu0 %5992
    %5994 = vrot.lane.b32.xlu0 %v5835, 20
    %v5995 = vpop.permute.xlu0 %5994
    %5996 = vrot.lane.b32.xlu0 %v5844, 20
    %v5997 = vpop.permute.xlu0 %5996
    %5998 = vrot.lane.b32.xlu0 %v5845, 20
    %v5999 = vpop.permute.xlu0 %5998
    %6000 = vrot.lane.b32.xlu0 %v5841, 20
    %v6001 = vpop.permute.xlu0 %6000
    %6002 = vrot.lane.b32.xlu0 %v5858, 20
    %v6003 = vpop.permute.xlu0 %6002
    %6004 = vrot.lane.b32.xlu0 %v5859, 20
    %v6005 = vpop.permute.xlu0 %6004
    %6006 = vrot.lane.b32.xlu0 %v5851, 20
    %v6007 = vpop.permute.xlu0 %6006
    %6008 = vrot.lane.b32.xlu0 %v5860, 20
    %v6009 = vpop.permute.xlu0 %6008
    %6010 = vrot.lane.b32.xlu0 %v5861, 20
    %v6011 = vpop.permute.xlu0 %6010
    %6012 = vrot.lane.b32.xlu0 %v5857, 20
    %v6013 = vpop.permute.xlu0 %6012
    %6014 = vrot.lane.b32.xlu0 %v5874, 20
    %v6015 = vpop.permute.xlu0 %6014
    %6016 = vrot.lane.b32.xlu0 %v5875, 20
    %v6017 = vpop.permute.xlu0 %6016
    %6018 = vrot.lane.b32.xlu0 %v5867, 20
    %v6019 = vpop.permute.xlu0 %6018
    %6020 = vrot.lane.b32.xlu0 %v5876, 20
    %v6021 = vpop.permute.xlu0 %6020
    %6022 = vrot.lane.b32.xlu0 %v5877, 20
    %v6023 = vpop.permute.xlu0 %6022
    %6024 = vrot.lane.b32.xlu0 %v5873, 20
    %v6025 = vpop.permute.xlu0 %6024
    %6026 = vrot.lane.b32.xlu0 %v5879, 20
    %v6027 = vpop.permute.xlu0 %6026
    %6028 = vrot.lane.b32.xlu0 %v5886, 20
    %v6029 = vpop.permute.xlu0 %6028
    %6030 = vrot.lane.b32.xlu0 %v5881, 20
    %v6031 = vpop.permute.xlu0 %6030
    %6032 = vrot.lane.b32.xlu0 %v5883, 20
    %v6033 = vpop.permute.xlu0 %6032
    %6034 = vrot.lane.b32.xlu0 %v5887, 20
    %v6035 = vpop.permute.xlu0 %6034
    %6036 = vrot.lane.b32.xlu0 %v5885, 20
    %v6037 = vpop.permute.xlu0 %6036
    %v6038 = vsel %vm1536, %v5907, %v5909
    %v6039 = vsel %vm1536, %v5909, %v5911
    %v6040 = vsel %vm1536, %v5913, %v5915
    %v6041 = vsel %vm1536, %v5915, %v5917
    %v6042 = vsel %vm1536, %v5919, %v5921
    %v6043 = vsel %vm1536, %v5921, %v5923
    %v6044 = vsel %vm1536, %v5925, %v5927
    %v6045 = vsel %vm1536, %v5927, %v5929
    %v6046 = vsel %vm1536, %v5931, %v5933
    %v6047 = vsel %vm1536, %v5933, %v5935
    %v6048 = vsel %vm1536, %v5937, %v5939
    %v6049 = vsel %vm1536, %v5939, %v5941
    %v6050 = vsel %vm1536, %v5943, %v5945
    %v6051 = vsel %vm1536, %v5945, %v5947
    %v6052 = vsel %vm1536, %v5949, %v5951
    %v6053 = vsel %vm1536, %v5951, %v5953
    %v6054 = vsel %vm1536, %v5955, %v5957
    %v6055 = vsel %vm1536, %v5957, %v5959
    %v6056 = vsel %vm1536, %v5961, %v5963
    %v6057 = vsel %vm1536, %v5963, %v5965
    %v6058 = vsel %vm1536, %v5967, %v5969
    %v6059 = vsel %vm1536, %v5969, %v5971
    %v6060 = vsel %vm1536, %v5973, %v5975
    %v6061 = vsel %vm1536, %v5975, %v5977
    %v6062 = vsel %vm1536, %v5979, %v5981
    %v6063 = vsel %vm1536, %v5981, %v5983
    %v6064 = vsel %vm1536, %v5985, %v5987
    %v6065 = vsel %vm1536, %v5987, %v5989
    %v6066 = vsel %vm1536, %v5991, %v5993
    %v6067 = vsel %vm1536, %v5993, %v5995
    %v6068 = vsel %vm1536, %v5997, %v5999
    %v6069 = vsel %vm1536, %v5999, %v6001
    %v6070 = vsel %vm1536, %v6003, %v6005
    %v6071 = vsel %vm1536, %v6005, %v6007
    %v6072 = vsel %vm1536, %v6009, %v6011
    %v6073 = vsel %vm1536, %v6011, %v6013
    %v6074 = vsel %vm1536, %v6015, %v6017
    %v6075 = vsel %vm1536, %v6017, %v6019
    %v6076 = vsel %vm1536, %v6021, %v6023
    %v6077 = vsel %vm1536, %v6023, %v6025
    %v6078 = vsel %vm1536, %v6027, %v6029
    %v6079 = vsel %vm1536, %v6029, %v6031
    %v6080 = vsel %vm1536, %v6033, %v6035
    %v6081 = vsel %vm1536, %v6035, %v6037
    %v6127 = vsel %vm612, %v5890, 0
    %v6130 = vsel %vm612, %v5892, 0
    %6132 = vmatprep.subr.mxu0 %v6069
    %6133 = vmatpush1.msra.mxu0 %v6068
    %6134 = vmatprep.subr.mxu0 %v6067
    %6135 = vmatpush1.msra.mxu0 %v6066
    %6136 = vmatprep.subr.mxu0 %v6065
    %6137 = vmatpush1.msra.mxu0 %v6064
    %6138 = vmatprep.subr.mxu0 %v6063
    %6139 = vmatpush1.msra.mxu0 %v6062
    %6140 = vmatprep.subr.mxu0 %v6061
    %6141 = vmatpush1.msra.mxu0 %v6060
    %6142 = vmatprep.subr.mxu0 %v6059
    %6143 = vmatpush1.msra.mxu0 %v6058
    %6144 = vmatprep.subr.mxu0 %v6057
    %6145 = vmatpush1.msra.mxu0 %v6056
    %6146 = vmatprep.subr.mxu0 %v6055
    %6147 = vmatpush1.msra.mxu0 %v6054
    %6148 = vmatprep.subr.mxu0 %v6053
    %6149 = vmatpush1.msra.mxu0 %v6052
    %6150 = vmatprep.subr.mxu0 %v6051
    %6151 = vmatpush1.msra.mxu0 %v6050
    %6152 = vmatprep.subr.mxu0 %v6049
    %6153 = vmatpush1.msra.mxu0 %v6048
    %6154 = vmatprep.subr.mxu0 %v6047
    %6155 = vmatpush1.msra.mxu0 %v6046
    %6156 = vmatprep.subr.mxu0 %v6045
    %6157 = vmatpush1.msra.mxu0 %v6044
    %6158 = vmatprep.subr.mxu0 %v6043
    %6159 = vmatpush1.msra.mxu0 %v6042
    %6160 = vmatprep.subr.mxu0 %v6041
    %6161 = vmatpush1.msra.mxu0 %v6040
    %6162 = vmatprep.subr.mxu0 %v6039
    %6163 = vmatpush1.msra.mxu0 %v6038
    %6164 = vmatprep.subr.mxu0 0.0
    %6165 = vmatpush2.msra.mxu0 0.0
    %6166 = vmatprep.subr.mxu0 0.0
    %6167 = vmatpush2.msra.mxu0 0.0
    %6168 = vmatprep.subr.mxu0 0.0
    %6169 = vmatpush2.msra.mxu0 0.0
    %6170 = vmatprep.subr.mxu0 0.0
    %6171 = vmatpush2.msra.mxu0 0.0
    %6172 = vmatprep.subr.mxu0 0.0
    %6173 = vmatpush2.msra.mxu0 0.0
    %6174 = vmatprep.subr.mxu0 0.0
    %6175 = vmatpush2.msra.mxu0 0.0
    %6176 = vmatprep.subr.mxu0 0.0
    %6177 = vmatpush2.msra.mxu0 0.0
    %6178 = vmatprep.subr.mxu0 0.0
    %6179 = vmatpush2.msra.mxu0 0.0
    %6180 = vmatprep.subr.mxu0 0.0
    %6181 = vmatpush2.msra.mxu0 0.0
    %6182 = vmatprep.subr.mxu0 0.0
    %6183 = vmatpush2.msra.mxu0 0.0
    %6184 = vmatprep.subr.mxu0 %v6081
    %6185 = vmatpush2.msra.mxu0 %v6080
    %6186 = vmatprep.subr.mxu0 %v6079
    %6187 = vmatpush2.msra.mxu0 %v6078
    %6188 = vmatprep.subr.mxu0 %v6077
    %6189 = vmatpush2.msra.mxu0 %v6076
    %6190 = vmatprep.subr.mxu0 %v6075
    %6191 = vmatpush2.msra.mxu0 %v6074
    %6192 = vmatprep.subr.mxu0 %v6073
    %6193 = vmatpush2.msra.mxu0 %v6072
    %6194 = vmatprep.subr.mxu0 %v6071
    %6195 = vmatpush2.msra.mxu0 %v6070
    %6196 = vmatprep.mubr.f32.mxu0 %v6127
    %6197 = vmatmul.mubr.f32.gmra.mxu0 %v5889
    %v6198 = vpop.f32.mrf.mxu0
    %v6199 = vadd.f32 %v5899, %v6198
    %v6200 = vpop.f32.mrf.mxu0
    %v6201 = vadd.f32 %v5899, %v6200
    %6202 = vmatprep.mubr.f32.mxu0 %v6130
    %6203 = vmatmul.mubr.f32.gmra.mxu0 %v5891
    %v6204 = vpop.f32.mrf.mxu0
    %v6205 = vadd.f32 %v5904, %v6204
    %v6206 = vpop.f32.mrf.mxu0
    %v6207 = vadd.f32 %v5904, %v6206
    %6208 = vdwg.mxu0
    %v6209 = vtanh.pop %v6199
    %v6210 = vtanh.pop %v6201
    %v6211 = vtanh.pop %v6205
    %v6212 = vtanh.pop %v6207
    %v6213 = vadd.f32 %v6209, %v5215
    %v6214 = vadd.f32 %v6210, %v5216
    %v6215 = vadd.f32 %v6211, %v5217
    %v6216 = vadd.f32 %v6212, %v5218
    %v6217 = vtanh.pop %v6213
    %v6218 = vtanh.pop %v6214
    %v6219 = vtanh.pop %v6215
    %v6220 = vtanh.pop %v6216
    %v6221 = vsel %vm91, %v6217, 0.0
    %v6222 = vsel %vm92, %v6218, 0.0
    %v6223 = vsel %vm91, %v6219, 0.0
    %v6224 = vsel %vm92, %v6220, 0.0
    %6225 = vst [vmem:[#allocation2 + $0x8] sm:$0xff] %v6221
    %6226 = vst [vmem:[#allocation2 + $0x10] sm:$0xff] %v6222
    %6227 = vst [vmem:[#allocation2 + $0x20] sm:$0xff] %v6223
    %6228 = vst [vmem:[#allocation2 + $0x28] sm:$0xff] %v6224
    %v6229 = vld [vmem:[#allocation2] sm:$0xff]
    %v6230 = vld [vmem:[#allocation2 + $0x8] sm:$0xff]
    %v6231 = vld [vmem:[#allocation2 + $0x10] sm:$0xff]
    %v6232 = vld [vmem:[#allocation2 + $0x18] sm:$0xff]
    %v6233 = vld [vmem:[#allocation2 + $0x20] sm:$0xff]
    %v6234 = vld [vmem:[#allocation2 + $0x28] sm:$0xff]
    %6241 = vrot.lane.b32.xlu0 %v6229, 124
    %v6242 = vpop.permute.xlu0 %6241
    %6243 = vrot.lane.b32.xlu0 %v6230, 124
    %v6244 = vpop.permute.xlu0 %6243
    %6245 = vrot.lane.b32.xlu0 %v6231, 124
    %v6246 = vpop.permute.xlu0 %6245
    %6247 = vrot.lane.b32.xlu0 %v6232, 124
    %v6248 = vpop.permute.xlu0 %6247
    %6249 = vrot.lane.b32.xlu0 %v6233, 124
    %v6250 = vpop.permute.xlu0 %6249
    %6251 = vrot.lane.b32.xlu0 %v6234, 124
    %v6252 = vpop.permute.xlu0 %6251
    %v6253 = vsel %vm274, %v6242, %v6244
    %v6254 = vsel %vm274, %v6244, %v6246
    %v6255 = vsel %vm274, %v6248, %v6250
    %v6256 = vsel %vm274, %v6250, %v6252
    %6257 = vrot.lane.b32.xlu0 %v6229, 120
    %v6258 = vpop.permute.xlu0 %6257
    %6259 = vrot.lane.b32.xlu0 %v6230, 120
    %v6260 = vpop.permute.xlu0 %6259
    %6261 = vrot.lane.b32.xlu0 %v6231, 120
    %v6262 = vpop.permute.xlu0 %6261
    %6263 = vrot.lane.b32.xlu0 %v6232, 120
    %v6264 = vpop.permute.xlu0 %6263
    %6265 = vrot.lane.b32.xlu0 %v6233, 120
    %v6266 = vpop.permute.xlu0 %6265
    %6267 = vrot.lane.b32.xlu0 %v6234, 120
    %v6268 = vpop.permute.xlu0 %6267
    %v6269 = vsel %vm342, %v6258, %v6260
    %v6270 = vsel %vm342, %v6260, %v6262
    %v6271 = vsel %vm342, %v6264, %v6266
    %v6272 = vsel %vm342, %v6266, %v6268
    %6273 = vrot.lane.b32.xlu0 %v6229, 116
    %v6274 = vpop.permute.xlu0 %6273
    %6275 = vrot.lane.b32.xlu0 %v6230, 116
    %v6276 = vpop.permute.xlu0 %6275
    %6277 = vrot.lane.b32.xlu0 %v6231, 116
    %v6278 = vpop.permute.xlu0 %6277
    %6279 = vrot.lane.b32.xlu0 %v6232, 116
    %v6280 = vpop.permute.xlu0 %6279
    %6281 = vrot.lane.b32.xlu0 %v6233, 116
    %v6282 = vpop.permute.xlu0 %6281
    %6283 = vrot.lane.b32.xlu0 %v6234, 116
    %v6284 = vpop.permute.xlu0 %6283
    %v6285 = vsel %vm1319, %v6274, %v6276
    %v6286 = vsel %vm1319, %v6276, %v6278
    %v6287 = vsel %vm1319, %v6280, %v6282
    %v6288 = vsel %vm1319, %v6282, %v6284
    %6289 = vrot.lane.b32.xlu0 %v6229, 112
    %v6290 = vpop.permute.xlu0 %6289
    %6291 = vrot.lane.b32.xlu0 %v6230, 112
    %v6292 = vpop.permute.xlu0 %6291
    %6293 = vrot.lane.b32.xlu0 %v6231, 112
    %v6294 = vpop.permute.xlu0 %6293
    %6295 = vrot.lane.b32.xlu0 %v6232, 112
    %v6296 = vpop.permute.xlu0 %6295
    %6297 = vrot.lane.b32.xlu0 %v6233, 112
    %v6298 = vpop.permute.xlu0 %6297
    %6299 = vrot.lane.b32.xlu0 %v6234, 112
    %v6300 = vpop.permute.xlu0 %6299
    %v6301 = vsel %vm1353, %v6290, %v6292
    %v6302 = vsel %vm1353, %v6292, %v6294
    %v6303 = vsel %vm1353, %v6296, %v6298
    %v6304 = vsel %vm1353, %v6298, %v6300
    %6305 = vrot.lane.b32.xlu0 %v6229, 108
    %v6306 = vpop.permute.xlu0 %6305
    %6307 = vrot.lane.b32.xlu0 %v6230, 108
    %v6308 = vpop.permute.xlu0 %6307
    %6309 = vrot.lane.b32.xlu0 %v6231, 108
    %v6310 = vpop.permute.xlu0 %6309
    %6311 = vrot.lane.b32.xlu0 %v6232, 108
    %v6312 = vpop.permute.xlu0 %6311
    %6313 = vrot.lane.b32.xlu0 %v6233, 108
    %v6314 = vpop.permute.xlu0 %6313
    %6315 = vrot.lane.b32.xlu0 %v6234, 108
    %v6316 = vpop.permute.xlu0 %6315
    %v6317 = vsel %vm1383, %v6306, %v6308
    %v6318 = vsel %vm1383, %v6308, %v6310
    %v6319 = vsel %vm1383, %v6312, %v6314
    %v6320 = vsel %vm1383, %v6314, %v6316
    %6321 = vrot.lane.b32.xlu0 %v6229, 104
    %v6322 = vpop.permute.xlu0 %6321
    %6323 = vrot.lane.b32.xlu0 %v6230, 104
    %v6324 = vpop.permute.xlu0 %6323
    %6325 = vrot.lane.b32.xlu0 %v6231, 104
    %v6326 = vpop.permute.xlu0 %6325
    %6327 = vrot.lane.b32.xlu0 %v6232, 104
    %v6328 = vpop.permute.xlu0 %6327
    %6329 = vrot.lane.b32.xlu0 %v6233, 104
    %v6330 = vpop.permute.xlu0 %6329
    %6331 = vrot.lane.b32.xlu0 %v6234, 104
    %v6332 = vpop.permute.xlu0 %6331
    %v6333 = vsel %vm2331, %v6322, %v6324
    %v6334 = vsel %vm2331, %v6324, %v6326
    %v6335 = vsel %vm2331, %v6328, %v6330
    %v6336 = vsel %vm2331, %v6330, %v6332
    %6337 = vrot.lane.b32.xlu0 %v6229, 100
    %v6338 = vpop.permute.xlu0 %6337
    %6339 = vrot.lane.b32.xlu0 %v6230, 100
    %v6340 = vpop.permute.xlu0 %6339
    %6341 = vrot.lane.b32.xlu0 %v6231, 100
    %v6342 = vpop.permute.xlu0 %6341
    %6343 = vrot.lane.b32.xlu0 %v6232, 100
    %v6344 = vpop.permute.xlu0 %6343
    %6345 = vrot.lane.b32.xlu0 %v6233, 100
    %v6346 = vpop.permute.xlu0 %6345
    %6347 = vrot.lane.b32.xlu0 %v6234, 100
    %v6348 = vpop.permute.xlu0 %6347
    %v6349 = vsel %vm2348, %v6338, %v6340
    %v6350 = vsel %vm2348, %v6340, %v6342
    %v6351 = vsel %vm2348, %v6344, %v6346
    %v6352 = vsel %vm2348, %v6346, %v6348
    %6353 = vrot.lane.b32.xlu0 %v6229, 96
    %v6354 = vpop.permute.xlu0 %6353
    %6355 = vrot.lane.b32.xlu0 %v6230, 96
    %v6356 = vpop.permute.xlu0 %6355
    %6357 = vrot.lane.b32.xlu0 %v6231, 96
    %v6358 = vpop.permute.xlu0 %6357
    %6359 = vrot.lane.b32.xlu0 %v6232, 96
    %v6360 = vpop.permute.xlu0 %6359
    %6361 = vrot.lane.b32.xlu0 %v6233, 96
    %v6362 = vpop.permute.xlu0 %6361
    %6363 = vrot.lane.b32.xlu0 %v6234, 96
    %v6364 = vpop.permute.xlu0 %6363
    %v6365 = vsel %vm2365, %v6354, %v6356
    %v6366 = vsel %vm2365, %v6356, %v6358
    %v6367 = vsel %vm2365, %v6360, %v6362
    %v6368 = vsel %vm2365, %v6362, %v6364
    %6369 = vrot.lane.b32.xlu0 %v6229, 92
    %v6370 = vpop.permute.xlu0 %6369
    %6371 = vrot.lane.b32.xlu0 %v6230, 92
    %v6372 = vpop.permute.xlu0 %6371
    %6373 = vrot.lane.b32.xlu0 %v6231, 92
    %v6374 = vpop.permute.xlu0 %6373
    %6375 = vrot.lane.b32.xlu0 %v6232, 92
    %v6376 = vpop.permute.xlu0 %6375
    %6377 = vrot.lane.b32.xlu0 %v6233, 92
    %v6378 = vpop.permute.xlu0 %6377
    %6379 = vrot.lane.b32.xlu0 %v6234, 92
    %v6380 = vpop.permute.xlu0 %6379
    %v6381 = vsel %vm2382, %v6370, %v6372
    %v6382 = vsel %vm2382, %v6372, %v6374
    %v6383 = vsel %vm2382, %v6376, %v6378
    %v6384 = vsel %vm2382, %v6378, %v6380
    %6385 = vrot.lane.b32.xlu0 %v6230, 88
    %v6386 = vpop.permute.xlu0 %6385
    %6387 = vrot.lane.b32.xlu0 %v6231, 88
    %v6388 = vpop.permute.xlu0 %6387
    %6389 = vrot.lane.b32.xlu0 %v6233, 88
    %v6390 = vpop.permute.xlu0 %6389
    %6391 = vrot.lane.b32.xlu0 %v6234, 88
    %v6392 = vpop.permute.xlu0 %6391
    %v6393 = vsel %vm2395, %v6386, %v6388
    %v6394 = vsel %vm2395, %v6390, %v6392
    %s6395 = scalar_lea.vmem [#allocation3], 384
    %v6396 = vld [vmem:[%s6395] sm:$0xff]
    %v6397 = vld [vmem:[%s6395 + $0x8] sm:$0xff]
    %v6398 = vld [vmem:[%s6395 + $0x10] sm:$0xff]
    %v6399 = vld [vmem:[%s6395 + $0x18] sm:$0xff]
    %s6400 = scalar_lea.vmem %s2, 192
    %v6401 = vld [vmem:[%s6400] sm:$0xff]
    %v6402 = vld [vmem:[%s6400 + $0x8] sm:$0xff]
    %6404 = vset.pattern.permute.xlu0 0
    %6405 = vperm.xlu0 %6404, %v6401
    %v6406 = vpop.permute.xlu0 %6405
    %6409 = vset.pattern.permute.xlu0 0
    %6410 = vperm.xlu0 %6409, %v6402
    %v6411 = vpop.permute.xlu0 %6410
    %6413 = vrot.lane.b32.xlu0 %v6229, 40
    %v6414 = vpop.permute.xlu0 %6413
    %6415 = vrot.lane.b32.xlu0 %v6230, 40
    %v6416 = vpop.permute.xlu0 %6415
    %6417 = vrot.lane.b32.xlu0 %v6231, 40
    %v6418 = vpop.permute.xlu0 %6417
    %6419 = vrot.lane.b32.xlu0 %v6232, 40
    %v6420 = vpop.permute.xlu0 %6419
    %6421 = vrot.lane.b32.xlu0 %v6233, 40
    %v6422 = vpop.permute.xlu0 %6421
    %6423 = vrot.lane.b32.xlu0 %v6234, 40
    %v6424 = vpop.permute.xlu0 %6423
    %6425 = vrot.lane.b32.xlu0 %v6253, 40
    %v6426 = vpop.permute.xlu0 %6425
    %6427 = vrot.lane.b32.xlu0 %v6254, 40
    %v6428 = vpop.permute.xlu0 %6427
    %6429 = vrot.lane.b32.xlu0 %v6246, 40
    %v6430 = vpop.permute.xlu0 %6429
    %6431 = vrot.lane.b32.xlu0 %v6255, 40
    %v6432 = vpop.permute.xlu0 %6431
    %6433 = vrot.lane.b32.xlu0 %v6256, 40
    %v6434 = vpop.permute.xlu0 %6433
    %6435 = vrot.lane.b32.xlu0 %v6252, 40
    %v6436 = vpop.permute.xlu0 %6435
    %6437 = vrot.lane.b32.xlu0 %v6269, 40
    %v6438 = vpop.permute.xlu0 %6437
    %6439 = vrot.lane.b32.xlu0 %v6270, 40
    %v6440 = vpop.permute.xlu0 %6439
    %6441 = vrot.lane.b32.xlu0 %v6262, 40
    %v6442 = vpop.permute.xlu0 %6441
    %6443 = vrot.lane.b32.xlu0 %v6271, 40
    %v6444 = vpop.permute.xlu0 %6443
    %6445 = vrot.lane.b32.xlu0 %v6272, 40
    %v6446 = vpop.permute.xlu0 %6445
    %6447 = vrot.lane.b32.xlu0 %v6268, 40
    %v6448 = vpop.permute.xlu0 %6447
    %6449 = vrot.lane.b32.xlu0 %v6285, 40
    %v6450 = vpop.permute.xlu0 %6449
    %6451 = vrot.lane.b32.xlu0 %v6286, 40
    %v6452 = vpop.permute.xlu0 %6451
    %6453 = vrot.lane.b32.xlu0 %v6278, 40
    %v6454 = vpop.permute.xlu0 %6453
    %6455 = vrot.lane.b32.xlu0 %v6287, 40
    %v6456 = vpop.permute.xlu0 %6455
    %6457 = vrot.lane.b32.xlu0 %v6288, 40
    %v6458 = vpop.permute.xlu0 %6457
    %6459 = vrot.lane.b32.xlu0 %v6284, 40
    %v6460 = vpop.permute.xlu0 %6459
    %6461 = vrot.lane.b32.xlu0 %v6301, 40
    %v6462 = vpop.permute.xlu0 %6461
    %6463 = vrot.lane.b32.xlu0 %v6302, 40
    %v6464 = vpop.permute.xlu0 %6463
    %6465 = vrot.lane.b32.xlu0 %v6294, 40
    %v6466 = vpop.permute.xlu0 %6465
    %6467 = vrot.lane.b32.xlu0 %v6303, 40
    %v6468 = vpop.permute.xlu0 %6467
    %6469 = vrot.lane.b32.xlu0 %v6304, 40
    %v6470 = vpop.permute.xlu0 %6469
    %6471 = vrot.lane.b32.xlu0 %v6300, 40
    %v6472 = vpop.permute.xlu0 %6471
    %6473 = vrot.lane.b32.xlu0 %v6317, 40
    %v6474 = vpop.permute.xlu0 %6473
    %6475 = vrot.lane.b32.xlu0 %v6318, 40
    %v6476 = vpop.permute.xlu0 %6475
    %6477 = vrot.lane.b32.xlu0 %v6310, 40
    %v6478 = vpop.permute.xlu0 %6477
    %6479 = vrot.lane.b32.xlu0 %v6319, 40
    %v6480 = vpop.permute.xlu0 %6479
    %6481 = vrot.lane.b32.xlu0 %v6320, 40
    %v6482 = vpop.permute.xlu0 %6481
    %6483 = vrot.lane.b32.xlu0 %v6316, 40
    %v6484 = vpop.permute.xlu0 %6483
    %6485 = vrot.lane.b32.xlu0 %v6333, 40
    %v6486 = vpop.permute.xlu0 %6485
    %6487 = vrot.lane.b32.xlu0 %v6334, 40
    %v6488 = vpop.permute.xlu0 %6487
    %6489 = vrot.lane.b32.xlu0 %v6326, 40
    %v6490 = vpop.permute.xlu0 %6489
    %6491 = vrot.lane.b32.xlu0 %v6335, 40
    %v6492 = vpop.permute.xlu0 %6491
    %6493 = vrot.lane.b32.xlu0 %v6336, 40
    %v6494 = vpop.permute.xlu0 %6493
    %6495 = vrot.lane.b32.xlu0 %v6332, 40
    %v6496 = vpop.permute.xlu0 %6495
    %6497 = vrot.lane.b32.xlu0 %v6349, 40
    %v6498 = vpop.permute.xlu0 %6497
    %6499 = vrot.lane.b32.xlu0 %v6350, 40
    %v6500 = vpop.permute.xlu0 %6499
    %6501 = vrot.lane.b32.xlu0 %v6342, 40
    %v6502 = vpop.permute.xlu0 %6501
    %6503 = vrot.lane.b32.xlu0 %v6351, 40
    %v6504 = vpop.permute.xlu0 %6503
    %6505 = vrot.lane.b32.xlu0 %v6352, 40
    %v6506 = vpop.permute.xlu0 %6505
    %6507 = vrot.lane.b32.xlu0 %v6348, 40
    %v6508 = vpop.permute.xlu0 %6507
    %6509 = vrot.lane.b32.xlu0 %v6365, 40
    %v6510 = vpop.permute.xlu0 %6509
    %6511 = vrot.lane.b32.xlu0 %v6366, 40
    %v6512 = vpop.permute.xlu0 %6511
    %6513 = vrot.lane.b32.xlu0 %v6358, 40
    %v6514 = vpop.permute.xlu0 %6513
    %6515 = vrot.lane.b32.xlu0 %v6367, 40
    %v6516 = vpop.permute.xlu0 %6515
    %6517 = vrot.lane.b32.xlu0 %v6368, 40
    %v6518 = vpop.permute.xlu0 %6517
    %6519 = vrot.lane.b32.xlu0 %v6364, 40
    %v6520 = vpop.permute.xlu0 %6519
    %6521 = vrot.lane.b32.xlu0 %v6381, 40
    %v6522 = vpop.permute.xlu0 %6521
    %6523 = vrot.lane.b32.xlu0 %v6382, 40
    %v6524 = vpop.permute.xlu0 %6523
    %6525 = vrot.lane.b32.xlu0 %v6374, 40
    %v6526 = vpop.permute.xlu0 %6525
    %6527 = vrot.lane.b32.xlu0 %v6383, 40
    %v6528 = vpop.permute.xlu0 %6527
    %6529 = vrot.lane.b32.xlu0 %v6384, 40
    %v6530 = vpop.permute.xlu0 %6529
    %6531 = vrot.lane.b32.xlu0 %v6380, 40
    %v6532 = vpop.permute.xlu0 %6531
    %6533 = vrot.lane.b32.xlu0 %v6386, 40
    %v6534 = vpop.permute.xlu0 %6533
    %6535 = vrot.lane.b32.xlu0 %v6393, 40
    %v6536 = vpop.permute.xlu0 %6535
    %6537 = vrot.lane.b32.xlu0 %v6388, 40
    %v6538 = vpop.permute.xlu0 %6537
    %6539 = vrot.lane.b32.xlu0 %v6390, 40
    %v6540 = vpop.permute.xlu0 %6539
    %6541 = vrot.lane.b32.xlu0 %v6394, 40
    %v6542 = vpop.permute.xlu0 %6541
    %6543 = vrot.lane.b32.xlu0 %v6392, 40
    %v6544 = vpop.permute.xlu0 %6543
    %v6545 = vsel %vm2548, %v6414, %v6416
    %v6546 = vsel %vm2548, %v6416, %v6418
    %v6547 = vsel %vm2548, %v6420, %v6422
    %v6548 = vsel %vm2548, %v6422, %v6424
    %v6549 = vsel %vm2548, %v6426, %v6428
    %v6550 = vsel %vm2548, %v6428, %v6430
    %v6551 = vsel %vm2548, %v6432, %v6434
    %v6552 = vsel %vm2548, %v6434, %v6436
    %v6553 = vsel %vm2548, %v6438, %v6440
    %v6554 = vsel %vm2548, %v6440, %v6442
    %v6555 = vsel %vm2548, %v6444, %v6446
    %v6556 = vsel %vm2548, %v6446, %v6448
    %v6557 = vsel %vm2548, %v6450, %v6452
    %v6558 = vsel %vm2548, %v6452, %v6454
    %v6559 = vsel %vm2548, %v6456, %v6458
    %v6560 = vsel %vm2548, %v6458, %v6460
    %v6561 = vsel %vm2548, %v6462, %v6464
    %v6562 = vsel %vm2548, %v6464, %v6466
    %v6563 = vsel %vm2548, %v6468, %v6470
    %v6564 = vsel %vm2548, %v6470, %v6472
    %v6565 = vsel %vm2548, %v6474, %v6476
    %v6566 = vsel %vm2548, %v6476, %v6478
    %v6567 = vsel %vm2548, %v6480, %v6482
    %v6568 = vsel %vm2548, %v6482, %v6484
    %v6569 = vsel %vm2548, %v6486, %v6488
    %v6570 = vsel %vm2548, %v6488, %v6490
    %v6571 = vsel %vm2548, %v6492, %v6494
    %v6572 = vsel %vm2548, %v6494, %v6496
    %v6573 = vsel %vm2548, %v6498, %v6500
    %v6574 = vsel %vm2548, %v6500, %v6502
    %v6575 = vsel %vm2548, %v6504, %v6506
    %v6576 = vsel %vm2548, %v6506, %v6508
    %v6577 = vsel %vm2548, %v6510, %v6512
    %v6578 = vsel %vm2548, %v6512, %v6514
    %v6579 = vsel %vm2548, %v6516, %v6518
    %v6580 = vsel %vm2548, %v6518, %v6520
    %v6581 = vsel %vm2548, %v6522, %v6524
    %v6582 = vsel %vm2548, %v6524, %v6526
    %v6583 = vsel %vm2548, %v6528, %v6530
    %v6584 = vsel %vm2548, %v6530, %v6532
    %v6585 = vsel %vm2548, %v6534, %v6536
    %v6586 = vsel %vm2548, %v6536, %v6538
    %v6587 = vsel %vm2548, %v6540, %v6542
    %v6588 = vsel %vm2548, %v6542, %v6544
    %v6634 = vsel %vm612, %v6397, 0
    %v6637 = vsel %vm612, %v6399, 0
    %6639 = vmatprep.subr.mxu0 %v6576
    %6640 = vmatpush1.msra.mxu0 %v6575
    %6641 = vmatprep.subr.mxu0 %v6574
    %6642 = vmatpush1.msra.mxu0 %v6573
    %6643 = vmatprep.subr.mxu0 %v6572
    %6644 = vmatpush1.msra.mxu0 %v6571
    %6645 = vmatprep.subr.mxu0 %v6570
    %6646 = vmatpush1.msra.mxu0 %v6569
    %6647 = vmatprep.subr.mxu0 %v6568
    %6648 = vmatpush1.msra.mxu0 %v6567
    %6649 = vmatprep.subr.mxu0 %v6566
    %6650 = vmatpush1.msra.mxu0 %v6565
    %6651 = vmatprep.subr.mxu0 %v6564
    %6652 = vmatpush1.msra.mxu0 %v6563
    %6653 = vmatprep.subr.mxu0 %v6562
    %6654 = vmatpush1.msra.mxu0 %v6561
    %6655 = vmatprep.subr.mxu0 %v6560
    %6656 = vmatpush1.msra.mxu0 %v6559
    %6657 = vmatprep.subr.mxu0 %v6558
    %6658 = vmatpush1.msra.mxu0 %v6557
    %6659 = vmatprep.subr.mxu0 %v6556
    %6660 = vmatpush1.msra.mxu0 %v6555
    %6661 = vmatprep.subr.mxu0 %v6554
    %6662 = vmatpush1.msra.mxu0 %v6553
    %6663 = vmatprep.subr.mxu0 %v6552
    %6664 = vmatpush1.msra.mxu0 %v6551
    %6665 = vmatprep.subr.mxu0 %v6550
    %6666 = vmatpush1.msra.mxu0 %v6549
    %6667 = vmatprep.subr.mxu0 %v6548
    %6668 = vmatpush1.msra.mxu0 %v6547
    %6669 = vmatprep.subr.mxu0 %v6546
    %6670 = vmatpush1.msra.mxu0 %v6545
    %6671 = vmatprep.subr.mxu0 0.0
    %6672 = vmatpush2.msra.mxu0 0.0
    %6673 = vmatprep.subr.mxu0 0.0
    %6674 = vmatpush2.msra.mxu0 0.0
    %6675 = vmatprep.subr.mxu0 0.0
    %6676 = vmatpush2.msra.mxu0 0.0
    %6677 = vmatprep.subr.mxu0 0.0
    %6678 = vmatpush2.msra.mxu0 0.0
    %6679 = vmatprep.subr.mxu0 0.0
    %6680 = vmatpush2.msra.mxu0 0.0
    %6681 = vmatprep.subr.mxu0 0.0
    %6682 = vmatpush2.msra.mxu0 0.0
    %6683 = vmatprep.subr.mxu0 0.0
    %6684 = vmatpush2.msra.mxu0 0.0
    %6685 = vmatprep.subr.mxu0 0.0
    %6686 = vmatpush2.msra.mxu0 0.0
    %6687 = vmatprep.subr.mxu0 0.0
    %6688 = vmatpush2.msra.mxu0 0.0
    %6689 = vmatprep.subr.mxu0 0.0
    %6690 = vmatpush2.msra.mxu0 0.0
    %6691 = vmatprep.subr.mxu0 %v6588
    %6692 = vmatpush2.msra.mxu0 %v6587
    %6693 = vmatprep.subr.mxu0 %v6586
    %6694 = vmatpush2.msra.mxu0 %v6585
    %6695 = vmatprep.subr.mxu0 %v6584
    %6696 = vmatpush2.msra.mxu0 %v6583
    %6697 = vmatprep.subr.mxu0 %v6582
    %6698 = vmatpush2.msra.mxu0 %v6581
    %6699 = vmatprep.subr.mxu0 %v6580
    %6700 = vmatpush2.msra.mxu0 %v6579
    %6701 = vmatprep.subr.mxu0 %v6578
    %6702 = vmatpush2.msra.mxu0 %v6577
    %6703 = vmatprep.mubr.f32.mxu0 %v6634
    %6704 = vmatmul.mubr.f32.gmra.mxu0 %v6396
    %v6705 = vpop.f32.mrf.mxu0
    %v6706 = vadd.f32 %v6406, %v6705
    %v6707 = vpop.f32.mrf.mxu0
    %v6708 = vadd.f32 %v6406, %v6707
    %6709 = vmatprep.mubr.f32.mxu0 %v6637
    %6710 = vmatmul.mubr.f32.gmra.mxu0 %v6398
    %v6711 = vpop.f32.mrf.mxu0
    %v6712 = vadd.f32 %v6411, %v6711
    %v6713 = vpop.f32.mrf.mxu0
    %v6714 = vadd.f32 %v6411, %v6713
    %6715 = vdwg.mxu0
    %v6716 = vtanh.pop %v6706
    %v6717 = vtanh.pop %v6708
    %v6718 = vtanh.pop %v6712
    %v6719 = vtanh.pop %v6714
    %v6720 = vsel %vm91, %v6716, 0.0
    %v6721 = vsel %vm92, %v6717, 0.0
    %v6722 = vsel %vm91, %v6718, 0.0
    %v6723 = vsel %vm92, %v6719, 0.0
    %6724 = vst [vmem:[#allocation2 + $0x8] sm:$0xff] %v6720
    %6725 = vst [vmem:[#allocation2 + $0x10] sm:$0xff] %v6721
    %6726 = vst [vmem:[#allocation2 + $0x20] sm:$0xff] %v6722
    %6727 = vst [vmem:[#allocation2 + $0x28] sm:$0xff] %v6723
    %v6728 = vld [vmem:[#allocation2] sm:$0xff]
    %v6729 = vld [vmem:[#allocation2 + $0x8] sm:$0xff]
    %v6730 = vld [vmem:[#allocation2 + $0x10] sm:$0xff]
    %v6731 = vld [vmem:[#allocation2 + $0x18] sm:$0xff]
    %v6732 = vld [vmem:[#allocation2 + $0x20] sm:$0xff]
    %v6733 = vld [vmem:[#allocation2 + $0x28] sm:$0xff]
    %6740 = vrot.lane.b32.xlu0 %v6728, 124
    %v6741 = vpop.permute.xlu0 %6740
    %6742 = vrot.lane.b32.xlu0 %v6729, 124
    %v6743 = vpop.permute.xlu0 %6742
    %6744 = vrot.lane.b32.xlu0 %v6730, 124
    %v6745 = vpop.permute.xlu0 %6744
    %6746 = vrot.lane.b32.xlu0 %v6731, 124
    %v6747 = vpop.permute.xlu0 %6746
    %6748 = vrot.lane.b32.xlu0 %v6732, 124
    %v6749 = vpop.permute.xlu0 %6748
    %6750 = vrot.lane.b32.xlu0 %v6733, 124
    %v6751 = vpop.permute.xlu0 %6750
    %v6752 = vsel %vm274, %v6741, %v6743
    %v6753 = vsel %vm274, %v6743, %v6745
    %v6754 = vsel %vm274, %v6747, %v6749
    %v6755 = vsel %vm274, %v6749, %v6751
    %6756 = vrot.lane.b32.xlu0 %v6728, 120
    %v6757 = vpop.permute.xlu0 %6756
    %6758 = vrot.lane.b32.xlu0 %v6729, 120
    %v6759 = vpop.permute.xlu0 %6758
    %6760 = vrot.lane.b32.xlu0 %v6730, 120
    %v6761 = vpop.permute.xlu0 %6760
    %6762 = vrot.lane.b32.xlu0 %v6731, 120
    %v6763 = vpop.permute.xlu0 %6762
    %6764 = vrot.lane.b32.xlu0 %v6732, 120
    %v6765 = vpop.permute.xlu0 %6764
    %6766 = vrot.lane.b32.xlu0 %v6733, 120
    %v6767 = vpop.permute.xlu0 %6766
    %v6768 = vsel %vm342, %v6757, %v6759
    %v6769 = vsel %vm342, %v6759, %v6761
    %v6770 = vsel %vm342, %v6763, %v6765
    %v6771 = vsel %vm342, %v6765, %v6767
    %6772 = vrot.lane.b32.xlu0 %v6728, 116
    %v6773 = vpop.permute.xlu0 %6772
    %6774 = vrot.lane.b32.xlu0 %v6729, 116
    %v6775 = vpop.permute.xlu0 %6774
    %6776 = vrot.lane.b32.xlu0 %v6730, 116
    %v6777 = vpop.permute.xlu0 %6776
    %6778 = vrot.lane.b32.xlu0 %v6731, 116
    %v6779 = vpop.permute.xlu0 %6778
    %6780 = vrot.lane.b32.xlu0 %v6732, 116
    %v6781 = vpop.permute.xlu0 %6780
    %6782 = vrot.lane.b32.xlu0 %v6733, 116
    %v6783 = vpop.permute.xlu0 %6782
    %v6784 = vsel %vm1319, %v6773, %v6775
    %v6785 = vsel %vm1319, %v6775, %v6777
    %v6786 = vsel %vm1319, %v6779, %v6781
    %v6787 = vsel %vm1319, %v6781, %v6783
    %6788 = vrot.lane.b32.xlu0 %v6728, 112
    %v6789 = vpop.permute.xlu0 %6788
    %6790 = vrot.lane.b32.xlu0 %v6729, 112
    %v6791 = vpop.permute.xlu0 %6790
    %6792 = vrot.lane.b32.xlu0 %v6730, 112
    %v6793 = vpop.permute.xlu0 %6792
    %6794 = vrot.lane.b32.xlu0 %v6731, 112
    %v6795 = vpop.permute.xlu0 %6794
    %6796 = vrot.lane.b32.xlu0 %v6732, 112
    %v6797 = vpop.permute.xlu0 %6796
    %6798 = vrot.lane.b32.xlu0 %v6733, 112
    %v6799 = vpop.permute.xlu0 %6798
    %v6800 = vsel %vm1353, %v6789, %v6791
    %v6801 = vsel %vm1353, %v6791, %v6793
    %v6802 = vsel %vm1353, %v6795, %v6797
    %v6803 = vsel %vm1353, %v6797, %v6799
    %6804 = vrot.lane.b32.xlu0 %v6728, 108
    %v6805 = vpop.permute.xlu0 %6804
    %6806 = vrot.lane.b32.xlu0 %v6729, 108
    %v6807 = vpop.permute.xlu0 %6806
    %6808 = vrot.lane.b32.xlu0 %v6730, 108
    %v6809 = vpop.permute.xlu0 %6808
    %6810 = vrot.lane.b32.xlu0 %v6731, 108
    %v6811 = vpop.permute.xlu0 %6810
    %6812 = vrot.lane.b32.xlu0 %v6732, 108
    %v6813 = vpop.permute.xlu0 %6812
    %6814 = vrot.lane.b32.xlu0 %v6733, 108
    %v6815 = vpop.permute.xlu0 %6814
    %v6816 = vsel %vm1383, %v6805, %v6807
    %v6817 = vsel %vm1383, %v6807, %v6809
    %v6818 = vsel %vm1383, %v6811, %v6813
    %v6819 = vsel %vm1383, %v6813, %v6815
    %6820 = vrot.lane.b32.xlu0 %v6728, 104
    %v6821 = vpop.permute.xlu0 %6820
    %6822 = vrot.lane.b32.xlu0 %v6729, 104
    %v6823 = vpop.permute.xlu0 %6822
    %6824 = vrot.lane.b32.xlu0 %v6730, 104
    %v6825 = vpop.permute.xlu0 %6824
    %6826 = vrot.lane.b32.xlu0 %v6731, 104
    %v6827 = vpop.permute.xlu0 %6826
    %6828 = vrot.lane.b32.xlu0 %v6732, 104
    %v6829 = vpop.permute.xlu0 %6828
    %6830 = vrot.lane.b32.xlu0 %v6733, 104
    %v6831 = vpop.permute.xlu0 %6830
    %v6832 = vsel %vm2331, %v6821, %v6823
    %v6833 = vsel %vm2331, %v6823, %v6825
    %v6834 = vsel %vm2331, %v6827, %v6829
    %v6835 = vsel %vm2331, %v6829, %v6831
    %6836 = vrot.lane.b32.xlu0 %v6728, 100
    %v6837 = vpop.permute.xlu0 %6836
    %6838 = vrot.lane.b32.xlu0 %v6729, 100
    %v6839 = vpop.permute.xlu0 %6838
    %6840 = vrot.lane.b32.xlu0 %v6730, 100
    %v6841 = vpop.permute.xlu0 %6840
    %6842 = vrot.lane.b32.xlu0 %v6731, 100
    %v6843 = vpop.permute.xlu0 %6842
    %6844 = vrot.lane.b32.xlu0 %v6732, 100
    %v6845 = vpop.permute.xlu0 %6844
    %6846 = vrot.lane.b32.xlu0 %v6733, 100
    %v6847 = vpop.permute.xlu0 %6846
    %v6848 = vsel %vm2348, %v6837, %v6839
    %v6849 = vsel %vm2348, %v6839, %v6841
    %v6850 = vsel %vm2348, %v6843, %v6845
    %v6851 = vsel %vm2348, %v6845, %v6847
    %6852 = vrot.lane.b32.xlu0 %v6728, 96
    %v6853 = vpop.permute.xlu0 %6852
    %6854 = vrot.lane.b32.xlu0 %v6729, 96
    %v6855 = vpop.permute.xlu0 %6854
    %6856 = vrot.lane.b32.xlu0 %v6730, 96
    %v6857 = vpop.permute.xlu0 %6856
    %6858 = vrot.lane.b32.xlu0 %v6731, 96
    %v6859 = vpop.permute.xlu0 %6858
    %6860 = vrot.lane.b32.xlu0 %v6732, 96
    %v6861 = vpop.permute.xlu0 %6860
    %6862 = vrot.lane.b32.xlu0 %v6733, 96
    %v6863 = vpop.permute.xlu0 %6862
    %v6864 = vsel %vm2365, %v6853, %v6855
    %v6865 = vsel %vm2365, %v6855, %v6857
    %v6866 = vsel %vm2365, %v6859, %v6861
    %v6867 = vsel %vm2365, %v6861, %v6863
    %6868 = vrot.lane.b32.xlu0 %v6728, 92
    %v6869 = vpop.permute.xlu0 %6868
    %6870 = vrot.lane.b32.xlu0 %v6729, 92
    %v6871 = vpop.permute.xlu0 %6870
    %6872 = vrot.lane.b32.xlu0 %v6730, 92
    %v6873 = vpop.permute.xlu0 %6872
    %6874 = vrot.lane.b32.xlu0 %v6731, 92
    %v6875 = vpop.permute.xlu0 %6874
    %6876 = vrot.lane.b32.xlu0 %v6732, 92
    %v6877 = vpop.permute.xlu0 %6876
    %6878 = vrot.lane.b32.xlu0 %v6733, 92
    %v6879 = vpop.permute.xlu0 %6878
    %v6880 = vsel %vm2382, %v6869, %v6871
    %v6881 = vsel %vm2382, %v6871, %v6873
    %v6882 = vsel %vm2382, %v6875, %v6877
    %v6883 = vsel %vm2382, %v6877, %v6879
    %6884 = vrot.lane.b32.xlu0 %v6729, 88
    %v6885 = vpop.permute.xlu0 %6884
    %6886 = vrot.lane.b32.xlu0 %v6730, 88
    %v6887 = vpop.permute.xlu0 %6886
    %6888 = vrot.lane.b32.xlu0 %v6732, 88
    %v6889 = vpop.permute.xlu0 %6888
    %6890 = vrot.lane.b32.xlu0 %v6733, 88
    %v6891 = vpop.permute.xlu0 %6890
    %v6892 = vsel %vm2395, %v6885, %v6887
    %v6893 = vsel %vm2395, %v6889, %v6891
    %s6894 = scalar_lea.vmem [#allocation3], 416
    %v6895 = vld [vmem:[%s6894] sm:$0xff]
    %v6896 = vld [vmem:[%s6894 + $0x8] sm:$0xff]
    %v6897 = vld [vmem:[%s6894 + $0x10] sm:$0xff]
    %v6898 = vld [vmem:[%s6894 + $0x18] sm:$0xff]
    %s6899 = scalar_lea.vmem %s2, 208
    %v6900 = vld [vmem:[%s6899] sm:$0xff]
    %v6901 = vld [vmem:[%s6899 + $0x8] sm:$0xff]
    %6903 = vset.pattern.permute.xlu0 0
    %6904 = vperm.xlu0 %6903, %v6900
    %v6905 = vpop.permute.xlu0 %6904
    %6908 = vset.pattern.permute.xlu0 0
    %6909 = vperm.xlu0 %6908, %v6901
    %v6910 = vpop.permute.xlu0 %6909
    %6912 = vrot.lane.b32.xlu0 %v6728, 40
    %v6913 = vpop.permute.xlu0 %6912
    %6914 = vrot.lane.b32.xlu0 %v6729, 40
    %v6915 = vpop.permute.xlu0 %6914
    %6916 = vrot.lane.b32.xlu0 %v6730, 40
    %v6917 = vpop.permute.xlu0 %6916
    %6918 = vrot.lane.b32.xlu0 %v6731, 40
    %v6919 = vpop.permute.xlu0 %6918
    %6920 = vrot.lane.b32.xlu0 %v6732, 40
    %v6921 = vpop.permute.xlu0 %6920
    %6922 = vrot.lane.b32.xlu0 %v6733, 40
    %v6923 = vpop.permute.xlu0 %6922
    %6924 = vrot.lane.b32.xlu0 %v6752, 40
    %v6925 = vpop.permute.xlu0 %6924
    %6926 = vrot.lane.b32.xlu0 %v6753, 40
    %v6927 = vpop.permute.xlu0 %6926
    %6928 = vrot.lane.b32.xlu0 %v6745, 40
    %v6929 = vpop.permute.xlu0 %6928
    %6930 = vrot.lane.b32.xlu0 %v6754, 40
    %v6931 = vpop.permute.xlu0 %6930
    %6932 = vrot.lane.b32.xlu0 %v6755, 40
    %v6933 = vpop.permute.xlu0 %6932
    %6934 = vrot.lane.b32.xlu0 %v6751, 40
    %v6935 = vpop.permute.xlu0 %6934
    %6936 = vrot.lane.b32.xlu0 %v6768, 40
    %v6937 = vpop.permute.xlu0 %6936
    %6938 = vrot.lane.b32.xlu0 %v6769, 40
    %v6939 = vpop.permute.xlu0 %6938
    %6940 = vrot.lane.b32.xlu0 %v6761, 40
    %v6941 = vpop.permute.xlu0 %6940
    %6942 = vrot.lane.b32.xlu0 %v6770, 40
    %v6943 = vpop.permute.xlu0 %6942
    %6944 = vrot.lane.b32.xlu0 %v6771, 40
    %v6945 = vpop.permute.xlu0 %6944
    %6946 = vrot.lane.b32.xlu0 %v6767, 40
    %v6947 = vpop.permute.xlu0 %6946
    %6948 = vrot.lane.b32.xlu0 %v6784, 40
    %v6949 = vpop.permute.xlu0 %6948
    %6950 = vrot.lane.b32.xlu0 %v6785, 40
    %v6951 = vpop.permute.xlu0 %6950
    %6952 = vrot.lane.b32.xlu0 %v6777, 40
    %v6953 = vpop.permute.xlu0 %6952
    %6954 = vrot.lane.b32.xlu0 %v6786, 40
    %v6955 = vpop.permute.xlu0 %6954
    %6956 = vrot.lane.b32.xlu0 %v6787, 40
    %v6957 = vpop.permute.xlu0 %6956
    %6958 = vrot.lane.b32.xlu0 %v6783, 40
    %v6959 = vpop.permute.xlu0 %6958
    %6960 = vrot.lane.b32.xlu0 %v6800, 40
    %v6961 = vpop.permute.xlu0 %6960
    %6962 = vrot.lane.b32.xlu0 %v6801, 40
    %v6963 = vpop.permute.xlu0 %6962
    %6964 = vrot.lane.b32.xlu0 %v6793, 40
    %v6965 = vpop.permute.xlu0 %6964
    %6966 = vrot.lane.b32.xlu0 %v6802, 40
    %v6967 = vpop.permute.xlu0 %6966
    %6968 = vrot.lane.b32.xlu0 %v6803, 40
    %v6969 = vpop.permute.xlu0 %6968
    %6970 = vrot.lane.b32.xlu0 %v6799, 40
    %v6971 = vpop.permute.xlu0 %6970
    %6972 = vrot.lane.b32.xlu0 %v6816, 40
    %v6973 = vpop.permute.xlu0 %6972
    %6974 = vrot.lane.b32.xlu0 %v6817, 40
    %v6975 = vpop.permute.xlu0 %6974
    %6976 = vrot.lane.b32.xlu0 %v6809, 40
    %v6977 = vpop.permute.xlu0 %6976
    %6978 = vrot.lane.b32.xlu0 %v6818, 40
    %v6979 = vpop.permute.xlu0 %6978
    %6980 = vrot.lane.b32.xlu0 %v6819, 40
    %v6981 = vpop.permute.xlu0 %6980
    %6982 = vrot.lane.b32.xlu0 %v6815, 40
    %v6983 = vpop.permute.xlu0 %6982
    %6984 = vrot.lane.b32.xlu0 %v6832, 40
    %v6985 = vpop.permute.xlu0 %6984
    %6986 = vrot.lane.b32.xlu0 %v6833, 40
    %v6987 = vpop.permute.xlu0 %6986
    %6988 = vrot.lane.b32.xlu0 %v6825, 40
    %v6989 = vpop.permute.xlu0 %6988
    %6990 = vrot.lane.b32.xlu0 %v6834, 40
    %v6991 = vpop.permute.xlu0 %6990
    %6992 = vrot.lane.b32.xlu0 %v6835, 40
    %v6993 = vpop.permute.xlu0 %6992
    %6994 = vrot.lane.b32.xlu0 %v6831, 40
    %v6995 = vpop.permute.xlu0 %6994
    %6996 = vrot.lane.b32.xlu0 %v6848, 40
    %v6997 = vpop.permute.xlu0 %6996
    %6998 = vrot.lane.b32.xlu0 %v6849, 40
    %v6999 = vpop.permute.xlu0 %6998
    %7000 = vrot.lane.b32.xlu0 %v6841, 40
    %v7001 = vpop.permute.xlu0 %7000
    %7002 = vrot.lane.b32.xlu0 %v6850, 40
    %v7003 = vpop.permute.xlu0 %7002
    %7004 = vrot.lane.b32.xlu0 %v6851, 40
    %v7005 = vpop.permute.xlu0 %7004
    %7006 = vrot.lane.b32.xlu0 %v6847, 40
    %v7007 = vpop.permute.xlu0 %7006
    %7008 = vrot.lane.b32.xlu0 %v6864, 40
    %v7009 = vpop.permute.xlu0 %7008
    %7010 = vrot.lane.b32.xlu0 %v6865, 40
    %v7011 = vpop.permute.xlu0 %7010
    %7012 = vrot.lane.b32.xlu0 %v6857, 40
    %v7013 = vpop.permute.xlu0 %7012
    %7014 = vrot.lane.b32.xlu0 %v6866, 40
    %v7015 = vpop.permute.xlu0 %7014
    %7016 = vrot.lane.b32.xlu0 %v6867, 40
    %v7017 = vpop.permute.xlu0 %7016
    %7018 = vrot.lane.b32.xlu0 %v6863, 40
    %v7019 = vpop.permute.xlu0 %7018
    %7020 = vrot.lane.b32.xlu0 %v6880, 40
    %v7021 = vpop.permute.xlu0 %7020
    %7022 = vrot.lane.b32.xlu0 %v6881, 40
    %v7023 = vpop.permute.xlu0 %7022
    %7024 = vrot.lane.b32.xlu0 %v6873, 40
    %v7025 = vpop.permute.xlu0 %7024
    %7026 = vrot.lane.b32.xlu0 %v6882, 40
    %v7027 = vpop.permute.xlu0 %7026
    %7028 = vrot.lane.b32.xlu0 %v6883, 40
    %v7029 = vpop.permute.xlu0 %7028
    %7030 = vrot.lane.b32.xlu0 %v6879, 40
    %v7031 = vpop.permute.xlu0 %7030
    %7032 = vrot.lane.b32.xlu0 %v6885, 40
    %v7033 = vpop.permute.xlu0 %7032
    %7034 = vrot.lane.b32.xlu0 %v6892, 40
    %v7035 = vpop.permute.xlu0 %7034
    %7036 = vrot.lane.b32.xlu0 %v6887, 40
    %v7037 = vpop.permute.xlu0 %7036
    %7038 = vrot.lane.b32.xlu0 %v6889, 40
    %v7039 = vpop.permute.xlu0 %7038
    %7040 = vrot.lane.b32.xlu0 %v6893, 40
    %v7041 = vpop.permute.xlu0 %7040
    %7042 = vrot.lane.b32.xlu0 %v6891, 40
    %v7043 = vpop.permute.xlu0 %7042
    %v7044 = vsel %vm2548, %v6913, %v6915
    %v7045 = vsel %vm2548, %v6915, %v6917
    %v7046 = vsel %vm2548, %v6919, %v6921
    %v7047 = vsel %vm2548, %v6921, %v6923
    %v7048 = vsel %vm2548, %v6925, %v6927
    %v7049 = vsel %vm2548, %v6927, %v6929
    %v7050 = vsel %vm2548, %v6931, %v6933
    %v7051 = vsel %vm2548, %v6933, %v6935
    %v7052 = vsel %vm2548, %v6937, %v6939
    %v7053 = vsel %vm2548, %v6939, %v6941
    %v7054 = vsel %vm2548, %v6943, %v6945
    %v7055 = vsel %vm2548, %v6945, %v6947
    %v7056 = vsel %vm2548, %v6949, %v6951
    %v7057 = vsel %vm2548, %v6951, %v6953
    %v7058 = vsel %vm2548, %v6955, %v6957
    %v7059 = vsel %vm2548, %v6957, %v6959
    %v7060 = vsel %vm2548, %v6961, %v6963
    %v7061 = vsel %vm2548, %v6963, %v6965
    %v7062 = vsel %vm2548, %v6967, %v6969
    %v7063 = vsel %vm2548, %v6969, %v6971
    %v7064 = vsel %vm2548, %v6973, %v6975
    %v7065 = vsel %vm2548, %v6975, %v6977
    %v7066 = vsel %vm2548, %v6979, %v6981
    %v7067 = vsel %vm2548, %v6981, %v6983
    %v7068 = vsel %vm2548, %v6985, %v6987
    %v7069 = vsel %vm2548, %v6987, %v6989
    %v7070 = vsel %vm2548, %v6991, %v6993
    %v7071 = vsel %vm2548, %v6993, %v6995
    %v7072 = vsel %vm2548, %v6997, %v6999
    %v7073 = vsel %vm2548, %v6999, %v7001
    %v7074 = vsel %vm2548, %v7003, %v7005
    %v7075 = vsel %vm2548, %v7005, %v7007
    %v7076 = vsel %vm2548, %v7009, %v7011
    %v7077 = vsel %vm2548, %v7011, %v7013
    %v7078 = vsel %vm2548, %v7015, %v7017
    %v7079 = vsel %vm2548, %v7017, %v7019
    %v7080 = vsel %vm2548, %v7021, %v7023
    %v7081 = vsel %vm2548, %v7023, %v7025
    %v7082 = vsel %vm2548, %v7027, %v7029
    %v7083 = vsel %vm2548, %v7029, %v7031
    %v7084 = vsel %vm2548, %v7033, %v7035
    %v7085 = vsel %vm2548, %v7035, %v7037
    %v7086 = vsel %vm2548, %v7039, %v7041
    %v7087 = vsel %vm2548, %v7041, %v7043
    %v7133 = vsel %vm612, %v6896, 0
    %v7136 = vsel %vm612, %v6898, 0
    %7138 = vmatprep.subr.mxu0 %v7075
    %7139 = vmatpush1.msra.mxu0 %v7074
    %7140 = vmatprep.subr.mxu0 %v7073
    %7141 = vmatpush1.msra.mxu0 %v7072
    %7142 = vmatprep.subr.mxu0 %v7071
    %7143 = vmatpush1.msra.mxu0 %v7070
    %7144 = vmatprep.subr.mxu0 %v7069
    %7145 = vmatpush1.msra.mxu0 %v7068
    %7146 = vmatprep.subr.mxu0 %v7067
    %7147 = vmatpush1.msra.mxu0 %v7066
    %7148 = vmatprep.subr.mxu0 %v7065
    %7149 = vmatpush1.msra.mxu0 %v7064
    %7150 = vmatprep.subr.mxu0 %v7063
    %7151 = vmatpush1.msra.mxu0 %v7062
    %7152 = vmatprep.subr.mxu0 %v7061
    %7153 = vmatpush1.msra.mxu0 %v7060
    %7154 = vmatprep.subr.mxu0 %v7059
    %7155 = vmatpush1.msra.mxu0 %v7058
    %7156 = vmatprep.subr.mxu0 %v7057
    %7157 = vmatpush1.msra.mxu0 %v7056
    %7158 = vmatprep.subr.mxu0 %v7055
    %7159 = vmatpush1.msra.mxu0 %v7054
    %7160 = vmatprep.subr.mxu0 %v7053
    %7161 = vmatpush1.msra.mxu0 %v7052
    %7162 = vmatprep.subr.mxu0 %v7051
    %7163 = vmatpush1.msra.mxu0 %v7050
    %7164 = vmatprep.subr.mxu0 %v7049
    %7165 = vmatpush1.msra.mxu0 %v7048
    %7166 = vmatprep.subr.mxu0 %v7047
    %7167 = vmatpush1.msra.mxu0 %v7046
    %7168 = vmatprep.subr.mxu0 %v7045
    %7169 = vmatpush1.msra.mxu0 %v7044
    %7170 = vmatprep.subr.mxu0 0.0
    %7171 = vmatpush2.msra.mxu0 0.0
    %7172 = vmatprep.subr.mxu0 0.0
    %7173 = vmatpush2.msra.mxu0 0.0
    %7174 = vmatprep.subr.mxu0 0.0
    %7175 = vmatpush2.msra.mxu0 0.0
    %7176 = vmatprep.subr.mxu0 0.0
    %7177 = vmatpush2.msra.mxu0 0.0
    %7178 = vmatprep.subr.mxu0 0.0
    %7179 = vmatpush2.msra.mxu0 0.0
    %7180 = vmatprep.subr.mxu0 0.0
    %7181 = vmatpush2.msra.mxu0 0.0
    %7182 = vmatprep.subr.mxu0 0.0
    %7183 = vmatpush2.msra.mxu0 0.0
    %7184 = vmatprep.subr.mxu0 0.0
    %7185 = vmatpush2.msra.mxu0 0.0
    %7186 = vmatprep.subr.mxu0 0.0
    %7187 = vmatpush2.msra.mxu0 0.0
    %7188 = vmatprep.subr.mxu0 0.0
    %7189 = vmatpush2.msra.mxu0 0.0
    %7190 = vmatprep.subr.mxu0 %v7087
    %7191 = vmatpush2.msra.mxu0 %v7086
    %7192 = vmatprep.subr.mxu0 %v7085
    %7193 = vmatpush2.msra.mxu0 %v7084
    %7194 = vmatprep.subr.mxu0 %v7083
    %7195 = vmatpush2.msra.mxu0 %v7082
    %7196 = vmatprep.subr.mxu0 %v7081
    %7197 = vmatpush2.msra.mxu0 %v7080
    %7198 = vmatprep.subr.mxu0 %v7079
    %7199 = vmatpush2.msra.mxu0 %v7078
    %7200 = vmatprep.subr.mxu0 %v7077
    %7201 = vmatpush2.msra.mxu0 %v7076
    %7202 = vmatprep.mubr.f32.mxu0 %v7133
    %7203 = vmatmul.mubr.f32.gmra.mxu0 %v6895
    %v7204 = vpop.f32.mrf.mxu0
    %v7205 = vadd.f32 %v6905, %v7204
    %v7206 = vpop.f32.mrf.mxu0
    %v7207 = vadd.f32 %v6905, %v7206
    %7208 = vmatprep.mubr.f32.mxu0 %v7136
    %7209 = vmatmul.mubr.f32.gmra.mxu0 %v6897
    %v7210 = vpop.f32.mrf.mxu0
    %v7211 = vadd.f32 %v6910, %v7210
    %v7212 = vpop.f32.mrf.mxu0
    %v7213 = vadd.f32 %v6910, %v7212
    %7214 = vdwg.mxu0
    %v7215 = vtanh.pop %v7205
    %v7216 = vtanh.pop %v7207
    %v7217 = vtanh.pop %v7211
    %v7218 = vtanh.pop %v7213
    %v7219 = vadd.f32 %v7215, %v6221
    %v7220 = vadd.f32 %v7216, %v6222
    %v7221 = vadd.f32 %v7217, %v6223
    %v7222 = vadd.f32 %v7218, %v6224
    %v7223 = vtanh.pop %v7219
    %v7224 = vtanh.pop %v7220
    %v7225 = vtanh.pop %v7221
    %v7226 = vtanh.pop %v7222
    %v7227 = vsel %vm91, %v7223, 0.0
    %v7228 = vsel %vm92, %v7224, 0.0
    %v7229 = vsel %vm91, %v7225, 0.0
    %v7230 = vsel %vm92, %v7226, 0.0
    %7231 = vst [vmem:[#allocation2 + $0x8] sm:$0xff] %v7227
    %7232 = vst [vmem:[#allocation2 + $0x10] sm:$0xff] %v7228
    %7233 = vst [vmem:[#allocation2 + $0x20] sm:$0xff] %v7229
    %7234 = vst [vmem:[#allocation2 + $0x28] sm:$0xff] %v7230
    %v7235 = vld [vmem:[#allocation2] sm:$0xff]
    %v7236 = vld [vmem:[#allocation2 + $0x8] sm:$0xff]
    %v7237 = vld [vmem:[#allocation2 + $0x10] sm:$0xff]
    %v7238 = vld [vmem:[#allocation2 + $0x18] sm:$0xff]
    %v7239 = vld [vmem:[#allocation2 + $0x20] sm:$0xff]
    %v7240 = vld [vmem:[#allocation2 + $0x28] sm:$0xff]
    %7247 = vrot.lane.b32.xlu0 %v7235, 120
    %v7248 = vpop.permute.xlu0 %7247
    %7249 = vrot.lane.b32.xlu0 %v7236, 120
    %v7250 = vpop.permute.xlu0 %7249
    %7251 = vrot.lane.b32.xlu0 %v7237, 120
    %v7252 = vpop.permute.xlu0 %7251
    %7253 = vrot.lane.b32.xlu0 %v7238, 120
    %v7254 = vpop.permute.xlu0 %7253
    %7255 = vrot.lane.b32.xlu0 %v7239, 120
    %v7256 = vpop.permute.xlu0 %7255
    %7257 = vrot.lane.b32.xlu0 %v7240, 120
    %v7258 = vpop.permute.xlu0 %7257
    %v7259 = vsel %vm342, %v7248, %v7250
    %v7260 = vsel %vm342, %v7250, %v7252
    %v7261 = vsel %vm342, %v7254, %v7256
    %v7262 = vsel %vm342, %v7256, %v7258
    %7263 = vrot.lane.b32.xlu0 %v7235, 112
    %v7264 = vpop.permute.xlu0 %7263
    %7265 = vrot.lane.b32.xlu0 %v7236, 112
    %v7266 = vpop.permute.xlu0 %7265
    %7267 = vrot.lane.b32.xlu0 %v7237, 112
    %v7268 = vpop.permute.xlu0 %7267
    %7269 = vrot.lane.b32.xlu0 %v7238, 112
    %v7270 = vpop.permute.xlu0 %7269
    %7271 = vrot.lane.b32.xlu0 %v7239, 112
    %v7272 = vpop.permute.xlu0 %7271
    %7273 = vrot.lane.b32.xlu0 %v7240, 112
    %v7274 = vpop.permute.xlu0 %7273
    %v7275 = vsel %vm1353, %v7264, %v7266
    %v7276 = vsel %vm1353, %v7266, %v7268
    %v7277 = vsel %vm1353, %v7270, %v7272
    %v7278 = vsel %vm1353, %v7272, %v7274
    %7279 = vrot.lane.b32.xlu0 %v7235, 104
    %v7280 = vpop.permute.xlu0 %7279
    %7281 = vrot.lane.b32.xlu0 %v7236, 104
    %v7282 = vpop.permute.xlu0 %7281
    %7283 = vrot.lane.b32.xlu0 %v7237, 104
    %v7284 = vpop.permute.xlu0 %7283
    %7285 = vrot.lane.b32.xlu0 %v7238, 104
    %v7286 = vpop.permute.xlu0 %7285
    %7287 = vrot.lane.b32.xlu0 %v7239, 104
    %v7288 = vpop.permute.xlu0 %7287
    %7289 = vrot.lane.b32.xlu0 %v7240, 104
    %v7290 = vpop.permute.xlu0 %7289
    %v7291 = vsel %vm2331, %v7280, %v7282
    %v7292 = vsel %vm2331, %v7282, %v7284
    %v7293 = vsel %vm2331, %v7286, %v7288
    %v7294 = vsel %vm2331, %v7288, %v7290
    %7295 = vrot.lane.b32.xlu0 %v7235, 96
    %v7296 = vpop.permute.xlu0 %7295
    %7297 = vrot.lane.b32.xlu0 %v7236, 96
    %v7298 = vpop.permute.xlu0 %7297
    %7299 = vrot.lane.b32.xlu0 %v7237, 96
    %v7300 = vpop.permute.xlu0 %7299
    %7301 = vrot.lane.b32.xlu0 %v7238, 96
    %v7302 = vpop.permute.xlu0 %7301
    %7303 = vrot.lane.b32.xlu0 %v7239, 96
    %v7304 = vpop.permute.xlu0 %7303
    %7305 = vrot.lane.b32.xlu0 %v7240, 96
    %v7306 = vpop.permute.xlu0 %7305
    %v7307 = vsel %vm2365, %v7296, %v7298
    %v7308 = vsel %vm2365, %v7298, %v7300
    %v7309 = vsel %vm2365, %v7302, %v7304
    %v7310 = vsel %vm2365, %v7304, %v7306
    %7311 = vrot.lane.b32.xlu0 %v7235, 88
    %v7312 = vpop.permute.xlu0 %7311
    %7313 = vrot.lane.b32.xlu0 %v7236, 88
    %v7314 = vpop.permute.xlu0 %7313
    %7315 = vrot.lane.b32.xlu0 %v7237, 88
    %v7316 = vpop.permute.xlu0 %7315
    %7317 = vrot.lane.b32.xlu0 %v7238, 88
    %v7318 = vpop.permute.xlu0 %7317
    %7319 = vrot.lane.b32.xlu0 %v7239, 88
    %v7320 = vpop.permute.xlu0 %7319
    %7321 = vrot.lane.b32.xlu0 %v7240, 88
    %v7322 = vpop.permute.xlu0 %7321
    %v7323 = vsel %vm2395, %v7312, %v7314
    %v7324 = vsel %vm2395, %v7314, %v7316
    %v7325 = vsel %vm2395, %v7318, %v7320
    %v7326 = vsel %vm2395, %v7320, %v7322
    %7327 = vrot.lane.b32.xlu0 %v7235, 80
    %v7328 = vpop.permute.xlu0 %7327
    %7329 = vrot.lane.b32.xlu0 %v7236, 80
    %v7330 = vpop.permute.xlu0 %7329
    %7331 = vrot.lane.b32.xlu0 %v7237, 80
    %v7332 = vpop.permute.xlu0 %7331
    %7333 = vrot.lane.b32.xlu0 %v7238, 80
    %v7334 = vpop.permute.xlu0 %7333
    %7335 = vrot.lane.b32.xlu0 %v7239, 80
    %v7336 = vpop.permute.xlu0 %7335
    %7337 = vrot.lane.b32.xlu0 %v7240, 80
    %v7338 = vpop.permute.xlu0 %7337
    %v7339 = vsel %vm3343, %v7328, %v7330
    %v7340 = vsel %vm3343, %v7330, %v7332
    %v7341 = vsel %vm3343, %v7334, %v7336
    %v7342 = vsel %vm3343, %v7336, %v7338
    %7343 = vrot.lane.b32.xlu0 %v7235, 72
    %v7344 = vpop.permute.xlu0 %7343
    %7345 = vrot.lane.b32.xlu0 %v7236, 72
    %v7346 = vpop.permute.xlu0 %7345
    %7347 = vrot.lane.b32.xlu0 %v7237, 72
    %v7348 = vpop.permute.xlu0 %7347
    %7349 = vrot.lane.b32.xlu0 %v7238, 72
    %v7350 = vpop.permute.xlu0 %7349
    %7351 = vrot.lane.b32.xlu0 %v7239, 72
    %v7352 = vpop.permute.xlu0 %7351
    %7353 = vrot.lane.b32.xlu0 %v7240, 72
    %v7354 = vpop.permute.xlu0 %7353
    %v7355 = vsel %vm3360, %v7344, %v7346
    %v7356 = vsel %vm3360, %v7346, %v7348
    %v7357 = vsel %vm3360, %v7350, %v7352
    %v7358 = vsel %vm3360, %v7352, %v7354
    %7359 = vrot.lane.b32.xlu0 %v7235, 64
    %v7360 = vpop.permute.xlu0 %7359
    %7361 = vrot.lane.b32.xlu0 %v7236, 64
    %v7362 = vpop.permute.xlu0 %7361
    %7363 = vrot.lane.b32.xlu0 %v7237, 64
    %v7364 = vpop.permute.xlu0 %7363
    %7365 = vrot.lane.b32.xlu0 %v7238, 64
    %v7366 = vpop.permute.xlu0 %7365
    %7367 = vrot.lane.b32.xlu0 %v7239, 64
    %v7368 = vpop.permute.xlu0 %7367
    %7369 = vrot.lane.b32.xlu0 %v7240, 64
    %v7370 = vpop.permute.xlu0 %7369
    %v7371 = vsel %vm3377, %v7360, %v7362
    %v7372 = vsel %vm3377, %v7362, %v7364
    %v7373 = vsel %vm3377, %v7366, %v7368
    %v7374 = vsel %vm3377, %v7368, %v7370
    %7375 = vrot.lane.b32.xlu0 %v7235, 56
    %v7376 = vpop.permute.xlu0 %7375
    %7377 = vrot.lane.b32.xlu0 %v7236, 56
    %v7378 = vpop.permute.xlu0 %7377
    %7379 = vrot.lane.b32.xlu0 %v7237, 56
    %v7380 = vpop.permute.xlu0 %7379
    %7381 = vrot.lane.b32.xlu0 %v7238, 56
    %v7382 = vpop.permute.xlu0 %7381
    %7383 = vrot.lane.b32.xlu0 %v7239, 56
    %v7384 = vpop.permute.xlu0 %7383
    %7385 = vrot.lane.b32.xlu0 %v7240, 56
    %v7386 = vpop.permute.xlu0 %7385
    %v7387 = vsel %vm3394, %v7376, %v7378
    %v7388 = vsel %vm3394, %v7378, %v7380
    %v7389 = vsel %vm3394, %v7382, %v7384
    %v7390 = vsel %vm3394, %v7384, %v7386
    %7391 = vrot.lane.b32.xlu0 %v7236, 48
    %v7392 = vpop.permute.xlu0 %7391
    %7393 = vrot.lane.b32.xlu0 %v7237, 48
    %v7394 = vpop.permute.xlu0 %7393
    %7395 = vrot.lane.b32.xlu0 %v7239, 48
    %v7396 = vpop.permute.xlu0 %7395
    %7397 = vrot.lane.b32.xlu0 %v7240, 48
    %v7398 = vpop.permute.xlu0 %7397
    %v7399 = vsel %vm612, %v7392, %v7394
    %v7400 = vsel %vm612, %v7396, %v7398
    %s7401 = scalar_lea.vmem [#allocation3], 448
    %v7402 = vld [vmem:[%s7401] sm:$0xff]
    %v7403 = vld [vmem:[%s7401 + $0x8] sm:$0xff]
    %v7404 = vld [vmem:[%s7401 + $0x10] sm:$0xff]
    %v7405 = vld [vmem:[%s7401 + $0x18] sm:$0xff]
    %s7406 = scalar_lea.vmem %s2, 224
    %v7407 = vld [vmem:[%s7406] sm:$0xff]
    %v7408 = vld [vmem:[%s7406 + $0x8] sm:$0xff]
    %7410 = vset.pattern.permute.xlu0 0
    %7411 = vperm.xlu0 %7410, %v7407
    %v7412 = vpop.permute.xlu0 %7411
    %7415 = vset.pattern.permute.xlu0 0
    %7416 = vperm.xlu0 %7415, %v7408
    %v7417 = vpop.permute.xlu0 %7416
    %7419 = vrot.lane.b32.xlu0 %v7259, 80
    %v7420 = vpop.permute.xlu0 %7419
    %7421 = vrot.lane.b32.xlu0 %v7260, 80
    %v7422 = vpop.permute.xlu0 %7421
    %7423 = vrot.lane.b32.xlu0 %v7252, 80
    %v7424 = vpop.permute.xlu0 %7423
    %7425 = vrot.lane.b32.xlu0 %v7261, 80
    %v7426 = vpop.permute.xlu0 %7425
    %7427 = vrot.lane.b32.xlu0 %v7262, 80
    %v7428 = vpop.permute.xlu0 %7427
    %7429 = vrot.lane.b32.xlu0 %v7258, 80
    %v7430 = vpop.permute.xlu0 %7429
    %7431 = vrot.lane.b32.xlu0 %v7275, 80
    %v7432 = vpop.permute.xlu0 %7431
    %7433 = vrot.lane.b32.xlu0 %v7276, 80
    %v7434 = vpop.permute.xlu0 %7433
    %7435 = vrot.lane.b32.xlu0 %v7268, 80
    %v7436 = vpop.permute.xlu0 %7435
    %7437 = vrot.lane.b32.xlu0 %v7277, 80
    %v7438 = vpop.permute.xlu0 %7437
    %7439 = vrot.lane.b32.xlu0 %v7278, 80
    %v7440 = vpop.permute.xlu0 %7439
    %7441 = vrot.lane.b32.xlu0 %v7274, 80
    %v7442 = vpop.permute.xlu0 %7441
    %7443 = vrot.lane.b32.xlu0 %v7291, 80
    %v7444 = vpop.permute.xlu0 %7443
    %7445 = vrot.lane.b32.xlu0 %v7292, 80
    %v7446 = vpop.permute.xlu0 %7445
    %7447 = vrot.lane.b32.xlu0 %v7284, 80
    %v7448 = vpop.permute.xlu0 %7447
    %7449 = vrot.lane.b32.xlu0 %v7293, 80
    %v7450 = vpop.permute.xlu0 %7449
    %7451 = vrot.lane.b32.xlu0 %v7294, 80
    %v7452 = vpop.permute.xlu0 %7451
    %7453 = vrot.lane.b32.xlu0 %v7290, 80
    %v7454 = vpop.permute.xlu0 %7453
    %7455 = vrot.lane.b32.xlu0 %v7307, 80
    %v7456 = vpop.permute.xlu0 %7455
    %7457 = vrot.lane.b32.xlu0 %v7308, 80
    %v7458 = vpop.permute.xlu0 %7457
    %7459 = vrot.lane.b32.xlu0 %v7300, 80
    %v7460 = vpop.permute.xlu0 %7459
    %7461 = vrot.lane.b32.xlu0 %v7309, 80
    %v7462 = vpop.permute.xlu0 %7461
    %7463 = vrot.lane.b32.xlu0 %v7310, 80
    %v7464 = vpop.permute.xlu0 %7463
    %7465 = vrot.lane.b32.xlu0 %v7306, 80
    %v7466 = vpop.permute.xlu0 %7465
    %7467 = vrot.lane.b32.xlu0 %v7323, 80
    %v7468 = vpop.permute.xlu0 %7467
    %7469 = vrot.lane.b32.xlu0 %v7324, 80
    %v7470 = vpop.permute.xlu0 %7469
    %7471 = vrot.lane.b32.xlu0 %v7316, 80
    %v7472 = vpop.permute.xlu0 %7471
    %7473 = vrot.lane.b32.xlu0 %v7325, 80
    %v7474 = vpop.permute.xlu0 %7473
    %7475 = vrot.lane.b32.xlu0 %v7326, 80
    %v7476 = vpop.permute.xlu0 %7475
    %7477 = vrot.lane.b32.xlu0 %v7322, 80
    %v7478 = vpop.permute.xlu0 %7477
    %7479 = vrot.lane.b32.xlu0 %v7339, 80
    %v7480 = vpop.permute.xlu0 %7479
    %7481 = vrot.lane.b32.xlu0 %v7340, 80
    %v7482 = vpop.permute.xlu0 %7481
    %7483 = vrot.lane.b32.xlu0 %v7332, 80
    %v7484 = vpop.permute.xlu0 %7483
    %7485 = vrot.lane.b32.xlu0 %v7341, 80
    %v7486 = vpop.permute.xlu0 %7485
    %7487 = vrot.lane.b32.xlu0 %v7342, 80
    %v7488 = vpop.permute.xlu0 %7487
    %7489 = vrot.lane.b32.xlu0 %v7338, 80
    %v7490 = vpop.permute.xlu0 %7489
    %7491 = vrot.lane.b32.xlu0 %v7355, 80
    %v7492 = vpop.permute.xlu0 %7491
    %7493 = vrot.lane.b32.xlu0 %v7356, 80
    %v7494 = vpop.permute.xlu0 %7493
    %7495 = vrot.lane.b32.xlu0 %v7348, 80
    %v7496 = vpop.permute.xlu0 %7495
    %7497 = vrot.lane.b32.xlu0 %v7357, 80
    %v7498 = vpop.permute.xlu0 %7497
    %7499 = vrot.lane.b32.xlu0 %v7358, 80
    %v7500 = vpop.permute.xlu0 %7499
    %7501 = vrot.lane.b32.xlu0 %v7354, 80
    %v7502 = vpop.permute.xlu0 %7501
    %7503 = vrot.lane.b32.xlu0 %v7371, 80
    %v7504 = vpop.permute.xlu0 %7503
    %7505 = vrot.lane.b32.xlu0 %v7372, 80
    %v7506 = vpop.permute.xlu0 %7505
    %7507 = vrot.lane.b32.xlu0 %v7364, 80
    %v7508 = vpop.permute.xlu0 %7507
    %7509 = vrot.lane.b32.xlu0 %v7373, 80
    %v7510 = vpop.permute.xlu0 %7509
    %7511 = vrot.lane.b32.xlu0 %v7374, 80
    %v7512 = vpop.permute.xlu0 %7511
    %7513 = vrot.lane.b32.xlu0 %v7370, 80
    %v7514 = vpop.permute.xlu0 %7513
    %7515 = vrot.lane.b32.xlu0 %v7387, 80
    %v7516 = vpop.permute.xlu0 %7515
    %7517 = vrot.lane.b32.xlu0 %v7388, 80
    %v7518 = vpop.permute.xlu0 %7517
    %7519 = vrot.lane.b32.xlu0 %v7380, 80
    %v7520 = vpop.permute.xlu0 %7519
    %7521 = vrot.lane.b32.xlu0 %v7389, 80
    %v7522 = vpop.permute.xlu0 %7521
    %7523 = vrot.lane.b32.xlu0 %v7390, 80
    %v7524 = vpop.permute.xlu0 %7523
    %7525 = vrot.lane.b32.xlu0 %v7386, 80
    %v7526 = vpop.permute.xlu0 %7525
    %7527 = vrot.lane.b32.xlu0 %v7392, 80
    %v7528 = vpop.permute.xlu0 %7527
    %7529 = vrot.lane.b32.xlu0 %v7399, 80
    %v7530 = vpop.permute.xlu0 %7529
    %7531 = vrot.lane.b32.xlu0 %v7394, 80
    %v7532 = vpop.permute.xlu0 %7531
    %7533 = vrot.lane.b32.xlu0 %v7396, 80
    %v7534 = vpop.permute.xlu0 %7533
    %7535 = vrot.lane.b32.xlu0 %v7400, 80
    %v7536 = vpop.permute.xlu0 %7535
    %7537 = vrot.lane.b32.xlu0 %v7398, 80
    %v7538 = vpop.permute.xlu0 %7537
    %v7539 = vsel %vm3343, %v7420, %v7422
    %v7540 = vsel %vm3343, %v7422, %v7424
    %v7541 = vsel %vm3343, %v7426, %v7428
    %v7542 = vsel %vm3343, %v7428, %v7430
    %v7543 = vsel %vm3343, %v7432, %v7434
    %v7544 = vsel %vm3343, %v7434, %v7436
    %v7545 = vsel %vm3343, %v7438, %v7440
    %v7546 = vsel %vm3343, %v7440, %v7442
    %v7547 = vsel %vm3343, %v7444, %v7446
    %v7548 = vsel %vm3343, %v7446, %v7448
    %v7549 = vsel %vm3343, %v7450, %v7452
    %v7550 = vsel %vm3343, %v7452, %v7454
    %v7551 = vsel %vm3343, %v7456, %v7458
    %v7552 = vsel %vm3343, %v7458, %v7460
    %v7553 = vsel %vm3343, %v7462, %v7464
    %v7554 = vsel %vm3343, %v7464, %v7466
    %v7555 = vsel %vm3343, %v7468, %v7470
    %v7556 = vsel %vm3343, %v7470, %v7472
    %v7557 = vsel %vm3343, %v7474, %v7476
    %v7558 = vsel %vm3343, %v7476, %v7478
    %v7559 = vsel %vm3343, %v7480, %v7482
    %v7560 = vsel %vm3343, %v7482, %v7484
    %v7561 = vsel %vm3343, %v7486, %v7488
    %v7562 = vsel %vm3343, %v7488, %v7490
    %v7563 = vsel %vm3343, %v7492, %v7494
    %v7564 = vsel %vm3343, %v7494, %v7496
    %v7565 = vsel %vm3343, %v7498, %v7500
    %v7566 = vsel %vm3343, %v7500, %v7502
    %v7567 = vsel %vm3343, %v7504, %v7506
    %v7568 = vsel %vm3343, %v7506, %v7508
    %v7569 = vsel %vm3343, %v7510, %v7512
    %v7570 = vsel %vm3343, %v7512, %v7514
    %v7571 = vsel %vm3343, %v7516, %v7518
    %v7572 = vsel %vm3343, %v7518, %v7520
    %v7573 = vsel %vm3343, %v7522, %v7524
    %v7574 = vsel %vm3343, %v7524, %v7526
    %v7575 = vsel %vm3343, %v7528, %v7530
    %v7576 = vsel %vm3343, %v7530, %v7532
    %v7577 = vsel %vm3343, %v7534, %v7536
    %v7578 = vsel %vm3343, %v7536, %v7538
    %v7624 = vsel %vm612, %v7403, 0
    %v7627 = vsel %vm612, %v7405, 0
    %7629 = vmatprep.subr.mxu0 %v7566
    %7630 = vmatpush1.msra.mxu0 %v7565
    %7631 = vmatprep.subr.mxu0 %v7564
    %7632 = vmatpush1.msra.mxu0 %v7563
    %7633 = vmatprep.subr.mxu0 %v7562
    %7634 = vmatpush1.msra.mxu0 %v7561
    %7635 = vmatprep.subr.mxu0 %v7560
    %7636 = vmatpush1.msra.mxu0 %v7559
    %7637 = vmatprep.subr.mxu0 %v7558
    %7638 = vmatpush1.msra.mxu0 %v7557
    %7639 = vmatprep.subr.mxu0 %v7556
    %7640 = vmatpush1.msra.mxu0 %v7555
    %7641 = vmatprep.subr.mxu0 %v7554
    %7642 = vmatpush1.msra.mxu0 %v7553
    %7643 = vmatprep.subr.mxu0 %v7552
    %7644 = vmatpush1.msra.mxu0 %v7551
    %7645 = vmatprep.subr.mxu0 %v7550
    %7646 = vmatpush1.msra.mxu0 %v7549
    %7647 = vmatprep.subr.mxu0 %v7548
    %7648 = vmatpush1.msra.mxu0 %v7547
    %7649 = vmatprep.subr.mxu0 %v7546
    %7650 = vmatpush1.msra.mxu0 %v7545
    %7651 = vmatprep.subr.mxu0 %v7544
    %7652 = vmatpush1.msra.mxu0 %v7543
    %7653 = vmatprep.subr.mxu0 %v7542
    %7654 = vmatpush1.msra.mxu0 %v7541
    %7655 = vmatprep.subr.mxu0 %v7540
    %7656 = vmatpush1.msra.mxu0 %v7539
    %7657 = vmatprep.subr.mxu0 %v7342
    %7658 = vmatpush1.msra.mxu0 %v7341
    %7659 = vmatprep.subr.mxu0 %v7340
    %7660 = vmatpush1.msra.mxu0 %v7339
    %7661 = vmatprep.subr.mxu0 0.0
    %7662 = vmatpush2.msra.mxu0 0.0
    %7663 = vmatprep.subr.mxu0 0.0
    %7664 = vmatpush2.msra.mxu0 0.0
    %7665 = vmatprep.subr.mxu0 0.0
    %7666 = vmatpush2.msra.mxu0 0.0
    %7667 = vmatprep.subr.mxu0 0.0
    %7668 = vmatpush2.msra.mxu0 0.0
    %7669 = vmatprep.subr.mxu0 0.0
    %7670 = vmatpush2.msra.mxu0 0.0
    %7671 = vmatprep.subr.mxu0 0.0
    %7672 = vmatpush2.msra.mxu0 0.0
    %7673 = vmatprep.subr.mxu0 0.0
    %7674 = vmatpush2.msra.mxu0 0.0
    %7675 = vmatprep.subr.mxu0 0.0
    %7676 = vmatpush2.msra.mxu0 0.0
    %7677 = vmatprep.subr.mxu0 0.0
    %7678 = vmatpush2.msra.mxu0 0.0
    %7679 = vmatprep.subr.mxu0 0.0
    %7680 = vmatpush2.msra.mxu0 0.0
    %7681 = vmatprep.subr.mxu0 %v7578
    %7682 = vmatpush2.msra.mxu0 %v7577
    %7683 = vmatprep.subr.mxu0 %v7576
    %7684 = vmatpush2.msra.mxu0 %v7575
    %7685 = vmatprep.subr.mxu0 %v7574
    %7686 = vmatpush2.msra.mxu0 %v7573
    %7687 = vmatprep.subr.mxu0 %v7572
    %7688 = vmatpush2.msra.mxu0 %v7571
    %7689 = vmatprep.subr.mxu0 %v7570
    %7690 = vmatpush2.msra.mxu0 %v7569
    %7691 = vmatprep.subr.mxu0 %v7568
    %7692 = vmatpush2.msra.mxu0 %v7567
    %7693 = vmatprep.mubr.f32.mxu0 %v7624
    %7694 = vmatmul.mubr.f32.gmra.mxu0 %v7402
    %v7695 = vpop.f32.mrf.mxu0
    %v7696 = vadd.f32 %v7412, %v7695
    %v7697 = vpop.f32.mrf.mxu0
    %v7698 = vadd.f32 %v7412, %v7697
    %7699 = vmatprep.mubr.f32.mxu0 %v7627
    %7700 = vmatmul.mubr.f32.gmra.mxu0 %v7404
    %v7701 = vpop.f32.mrf.mxu0
    %v7702 = vadd.f32 %v7417, %v7701
    %v7703 = vpop.f32.mrf.mxu0
    %v7704 = vadd.f32 %v7417, %v7703
    %7705 = vdwg.mxu0
    %v7706 = vtanh.pop %v7696
    %v7707 = vtanh.pop %v7698
    %v7708 = vtanh.pop %v7702
    %v7709 = vtanh.pop %v7704
    %v7710 = vsel %vm91, %v7706, 0.0
    %v7711 = vsel %vm92, %v7707, 0.0
    %v7712 = vsel %vm91, %v7708, 0.0
    %v7713 = vsel %vm92, %v7709, 0.0
    %7714 = vst [vmem:[#allocation2 + $0x8] sm:$0xff] %v7710
    %7715 = vst [vmem:[#allocation2 + $0x10] sm:$0xff] %v7711
    %7716 = vst [vmem:[#allocation2 + $0x20] sm:$0xff] %v7712
    %7717 = vst [vmem:[#allocation2 + $0x28] sm:$0xff] %v7713
    %v7718 = vld [vmem:[#allocation2] sm:$0xff]
    %v7719 = vld [vmem:[#allocation2 + $0x8] sm:$0xff]
    %v7720 = vld [vmem:[#allocation2 + $0x10] sm:$0xff]
    %v7721 = vld [vmem:[#allocation2 + $0x18] sm:$0xff]
    %v7722 = vld [vmem:[#allocation2 + $0x20] sm:$0xff]
    %v7723 = vld [vmem:[#allocation2 + $0x28] sm:$0xff]
    %7730 = vrot.lane.b32.xlu0 %v7718, 120
    %v7731 = vpop.permute.xlu0 %7730
    %7732 = vrot.lane.b32.xlu0 %v7719, 120
    %v7733 = vpop.permute.xlu0 %7732
    %7734 = vrot.lane.b32.xlu0 %v7720, 120
    %v7735 = vpop.permute.xlu0 %7734
    %7736 = vrot.lane.b32.xlu0 %v7721, 120
    %v7737 = vpop.permute.xlu0 %7736
    %7738 = vrot.lane.b32.xlu0 %v7722, 120
    %v7739 = vpop.permute.xlu0 %7738
    %7740 = vrot.lane.b32.xlu0 %v7723, 120
    %v7741 = vpop.permute.xlu0 %7740
    %v7742 = vsel %vm342, %v7731, %v7733
    %v7743 = vsel %vm342, %v7733, %v7735
    %v7744 = vsel %vm342, %v7737, %v7739
    %v7745 = vsel %vm342, %v7739, %v7741
    %7746 = vrot.lane.b32.xlu0 %v7718, 112
    %v7747 = vpop.permute.xlu0 %7746
    %7748 = vrot.lane.b32.xlu0 %v7719, 112
    %v7749 = vpop.permute.xlu0 %7748
    %7750 = vrot.lane.b32.xlu0 %v7720, 112
    %v7751 = vpop.permute.xlu0 %7750
    %7752 = vrot.lane.b32.xlu0 %v7721, 112
    %v7753 = vpop.permute.xlu0 %7752
    %7754 = vrot.lane.b32.xlu0 %v7722, 112
    %v7755 = vpop.permute.xlu0 %7754
    %7756 = vrot.lane.b32.xlu0 %v7723, 112
    %v7757 = vpop.permute.xlu0 %7756
    %v7758 = vsel %vm1353, %v7747, %v7749
    %v7759 = vsel %vm1353, %v7749, %v7751
    %v7760 = vsel %vm1353, %v7753, %v7755
    %v7761 = vsel %vm1353, %v7755, %v7757
    %7762 = vrot.lane.b32.xlu0 %v7718, 104
    %v7763 = vpop.permute.xlu0 %7762
    %7764 = vrot.lane.b32.xlu0 %v7719, 104
    %v7765 = vpop.permute.xlu0 %7764
    %7766 = vrot.lane.b32.xlu0 %v7720, 104
    %v7767 = vpop.permute.xlu0 %7766
    %7768 = vrot.lane.b32.xlu0 %v7721, 104
    %v7769 = vpop.permute.xlu0 %7768
    %7770 = vrot.lane.b32.xlu0 %v7722, 104
    %v7771 = vpop.permute.xlu0 %7770
    %7772 = vrot.lane.b32.xlu0 %v7723, 104
    %v7773 = vpop.permute.xlu0 %7772
    %v7774 = vsel %vm2331, %v7763, %v7765
    %v7775 = vsel %vm2331, %v7765, %v7767
    %v7776 = vsel %vm2331, %v7769, %v7771
    %v7777 = vsel %vm2331, %v7771, %v7773
    %7778 = vrot.lane.b32.xlu0 %v7718, 96
    %v7779 = vpop.permute.xlu0 %7778
    %7780 = vrot.lane.b32.xlu0 %v7719, 96
    %v7781 = vpop.permute.xlu0 %7780
    %7782 = vrot.lane.b32.xlu0 %v7720, 96
    %v7783 = vpop.permute.xlu0 %7782
    %7784 = vrot.lane.b32.xlu0 %v7721, 96
    %v7785 = vpop.permute.xlu0 %7784
    %7786 = vrot.lane.b32.xlu0 %v7722, 96
    %v7787 = vpop.permute.xlu0 %7786
    %7788 = vrot.lane.b32.xlu0 %v7723, 96
    %v7789 = vpop.permute.xlu0 %7788
    %v7790 = vsel %vm2365, %v7779, %v7781
    %v7791 = vsel %vm2365, %v7781, %v7783
    %v7792 = vsel %vm2365, %v7785, %v7787
    %v7793 = vsel %vm2365, %v7787, %v7789
    %7794 = vrot.lane.b32.xlu0 %v7718, 88
    %v7795 = vpop.permute.xlu0 %7794
    %7796 = vrot.lane.b32.xlu0 %v7719, 88
    %v7797 = vpop.permute.xlu0 %7796
    %7798 = vrot.lane.b32.xlu0 %v7720, 88
    %v7799 = vpop.permute.xlu0 %7798
    %7800 = vrot.lane.b32.xlu0 %v7721, 88
    %v7801 = vpop.permute.xlu0 %7800
    %7802 = vrot.lane.b32.xlu0 %v7722, 88
    %v7803 = vpop.permute.xlu0 %7802
    %7804 = vrot.lane.b32.xlu0 %v7723, 88
    %v7805 = vpop.permute.xlu0 %7804
    %v7806 = vsel %vm2395, %v7795, %v7797
    %v7807 = vsel %vm2395, %v7797, %v7799
    %v7808 = vsel %vm2395, %v7801, %v7803
    %v7809 = vsel %vm2395, %v7803, %v7805
    %7810 = vrot.lane.b32.xlu0 %v7718, 80
    %v7811 = vpop.permute.xlu0 %7810
    %7812 = vrot.lane.b32.xlu0 %v7719, 80
    %v7813 = vpop.permute.xlu0 %7812
    %7814 = vrot.lane.b32.xlu0 %v7720, 80
    %v7815 = vpop.permute.xlu0 %7814
    %7816 = vrot.lane.b32.xlu0 %v7721, 80
    %v7817 = vpop.permute.xlu0 %7816
    %7818 = vrot.lane.b32.xlu0 %v7722, 80
    %v7819 = vpop.permute.xlu0 %7818
    %7820 = vrot.lane.b32.xlu0 %v7723, 80
    %v7821 = vpop.permute.xlu0 %7820
    %v7822 = vsel %vm3343, %v7811, %v7813
    %v7823 = vsel %vm3343, %v7813, %v7815
    %v7824 = vsel %vm3343, %v7817, %v7819
    %v7825 = vsel %vm3343, %v7819, %v7821
    %7826 = vrot.lane.b32.xlu0 %v7718, 72
    %v7827 = vpop.permute.xlu0 %7826
    %7828 = vrot.lane.b32.xlu0 %v7719, 72
    %v7829 = vpop.permute.xlu0 %7828
    %7830 = vrot.lane.b32.xlu0 %v7720, 72
    %v7831 = vpop.permute.xlu0 %7830
    %7832 = vrot.lane.b32.xlu0 %v7721, 72
    %v7833 = vpop.permute.xlu0 %7832
    %7834 = vrot.lane.b32.xlu0 %v7722, 72
    %v7835 = vpop.permute.xlu0 %7834
    %7836 = vrot.lane.b32.xlu0 %v7723, 72
    %v7837 = vpop.permute.xlu0 %7836
    %v7838 = vsel %vm3360, %v7827, %v7829
    %v7839 = vsel %vm3360, %v7829, %v7831
    %v7840 = vsel %vm3360, %v7833, %v7835
    %v7841 = vsel %vm3360, %v7835, %v7837
    %7842 = vrot.lane.b32.xlu0 %v7718, 64
    %v7843 = vpop.permute.xlu0 %7842
    %7844 = vrot.lane.b32.xlu0 %v7719, 64
    %v7845 = vpop.permute.xlu0 %7844
    %7846 = vrot.lane.b32.xlu0 %v7720, 64
    %v7847 = vpop.permute.xlu0 %7846
    %7848 = vrot.lane.b32.xlu0 %v7721, 64
    %v7849 = vpop.permute.xlu0 %7848
    %7850 = vrot.lane.b32.xlu0 %v7722, 64
    %v7851 = vpop.permute.xlu0 %7850
    %7852 = vrot.lane.b32.xlu0 %v7723, 64
    %v7853 = vpop.permute.xlu0 %7852
    %v7854 = vsel %vm3377, %v7843, %v7845
    %v7855 = vsel %vm3377, %v7845, %v7847
    %v7856 = vsel %vm3377, %v7849, %v7851
    %v7857 = vsel %vm3377, %v7851, %v7853
    %7858 = vrot.lane.b32.xlu0 %v7718, 56
    %v7859 = vpop.permute.xlu0 %7858
    %7860 = vrot.lane.b32.xlu0 %v7719, 56
    %v7861 = vpop.permute.xlu0 %7860
    %7862 = vrot.lane.b32.xlu0 %v7720, 56
    %v7863 = vpop.permute.xlu0 %7862
    %7864 = vrot.lane.b32.xlu0 %v7721, 56
    %v7865 = vpop.permute.xlu0 %7864
    %7866 = vrot.lane.b32.xlu0 %v7722, 56
    %v7867 = vpop.permute.xlu0 %7866
    %7868 = vrot.lane.b32.xlu0 %v7723, 56
    %v7869 = vpop.permute.xlu0 %7868
    %v7870 = vsel %vm3394, %v7859, %v7861
    %v7871 = vsel %vm3394, %v7861, %v7863
    %v7872 = vsel %vm3394, %v7865, %v7867
    %v7873 = vsel %vm3394, %v7867, %v7869
    %7874 = vrot.lane.b32.xlu0 %v7719, 48
    %v7875 = vpop.permute.xlu0 %7874
    %7876 = vrot.lane.b32.xlu0 %v7720, 48
    %v7877 = vpop.permute.xlu0 %7876
    %7878 = vrot.lane.b32.xlu0 %v7722, 48
    %v7879 = vpop.permute.xlu0 %7878
    %7880 = vrot.lane.b32.xlu0 %v7723, 48
    %v7881 = vpop.permute.xlu0 %7880
    %v7882 = vsel %vm612, %v7875, %v7877
    %v7883 = vsel %vm612, %v7879, %v7881
    %s7884 = scalar_lea.vmem [#allocation3], 480
    %v7885 = vld [vmem:[%s7884] sm:$0xff]
    %v7886 = vld [vmem:[%s7884 + $0x8] sm:$0xff]
    %v7887 = vld [vmem:[%s7884 + $0x10] sm:$0xff]
    %v7888 = vld [vmem:[%s7884 + $0x18] sm:$0xff]
    %s7889 = scalar_lea.vmem %s2, 240
    %v7890 = vld [vmem:[%s7889] sm:$0xff]
    %v7891 = vld [vmem:[%s7889 + $0x8] sm:$0xff]
    %7893 = vset.pattern.permute.xlu0 0
    %7894 = vperm.xlu0 %7893, %v7890
    %v7895 = vpop.permute.xlu0 %7894
    %7898 = vset.pattern.permute.xlu0 0
    %7899 = vperm.xlu0 %7898, %v7891
    %v7900 = vpop.permute.xlu0 %7899
    %7902 = vrot.lane.b32.xlu0 %v7742, 80
    %v7903 = vpop.permute.xlu0 %7902
    %7904 = vrot.lane.b32.xlu0 %v7743, 80
    %v7905 = vpop.permute.xlu0 %7904
    %7906 = vrot.lane.b32.xlu0 %v7735, 80
    %v7907 = vpop.permute.xlu0 %7906
    %7908 = vrot.lane.b32.xlu0 %v7744, 80
    %v7909 = vpop.permute.xlu0 %7908
    %7910 = vrot.lane.b32.xlu0 %v7745, 80
    %v7911 = vpop.permute.xlu0 %7910
    %7912 = vrot.lane.b32.xlu0 %v7741, 80
    %v7913 = vpop.permute.xlu0 %7912
    %7914 = vrot.lane.b32.xlu0 %v7758, 80
    %v7915 = vpop.permute.xlu0 %7914
    %7916 = vrot.lane.b32.xlu0 %v7759, 80
    %v7917 = vpop.permute.xlu0 %7916
    %7918 = vrot.lane.b32.xlu0 %v7751, 80
    %v7919 = vpop.permute.xlu0 %7918
    %7920 = vrot.lane.b32.xlu0 %v7760, 80
    %v7921 = vpop.permute.xlu0 %7920
    %7922 = vrot.lane.b32.xlu0 %v7761, 80
    %v7923 = vpop.permute.xlu0 %7922
    %7924 = vrot.lane.b32.xlu0 %v7757, 80
    %v7925 = vpop.permute.xlu0 %7924
    %7926 = vrot.lane.b32.xlu0 %v7774, 80
    %v7927 = vpop.permute.xlu0 %7926
    %7928 = vrot.lane.b32.xlu0 %v7775, 80
    %v7929 = vpop.permute.xlu0 %7928
    %7930 = vrot.lane.b32.xlu0 %v7767, 80
    %v7931 = vpop.permute.xlu0 %7930
    %7932 = vrot.lane.b32.xlu0 %v7776, 80
    %v7933 = vpop.permute.xlu0 %7932
    %7934 = vrot.lane.b32.xlu0 %v7777, 80
    %v7935 = vpop.permute.xlu0 %7934
    %7936 = vrot.lane.b32.xlu0 %v7773, 80
    %v7937 = vpop.permute.xlu0 %7936
    %7938 = vrot.lane.b32.xlu0 %v7790, 80
    %v7939 = vpop.permute.xlu0 %7938
    %7940 = vrot.lane.b32.xlu0 %v7791, 80
    %v7941 = vpop.permute.xlu0 %7940
    %7942 = vrot.lane.b32.xlu0 %v7783, 80
    %v7943 = vpop.permute.xlu0 %7942
    %7944 = vrot.lane.b32.xlu0 %v7792, 80
    %v7945 = vpop.permute.xlu0 %7944
    %7946 = vrot.lane.b32.xlu0 %v7793, 80
    %v7947 = vpop.permute.xlu0 %7946
    %7948 = vrot.lane.b32.xlu0 %v7789, 80
    %v7949 = vpop.permute.xlu0 %7948
    %7950 = vrot.lane.b32.xlu0 %v7806, 80
    %v7951 = vpop.permute.xlu0 %7950
    %7952 = vrot.lane.b32.xlu0 %v7807, 80
    %v7953 = vpop.permute.xlu0 %7952
    %7954 = vrot.lane.b32.xlu0 %v7799, 80
    %v7955 = vpop.permute.xlu0 %7954
    %7956 = vrot.lane.b32.xlu0 %v7808, 80
    %v7957 = vpop.permute.xlu0 %7956
    %7958 = vrot.lane.b32.xlu0 %v7809, 80
    %v7959 = vpop.permute.xlu0 %7958
    %7960 = vrot.lane.b32.xlu0 %v7805, 80
    %v7961 = vpop.permute.xlu0 %7960
    %7962 = vrot.lane.b32.xlu0 %v7822, 80
    %v7963 = vpop.permute.xlu0 %7962
    %7964 = vrot.lane.b32.xlu0 %v7823, 80
    %v7965 = vpop.permute.xlu0 %7964
    %7966 = vrot.lane.b32.xlu0 %v7815, 80
    %v7967 = vpop.permute.xlu0 %7966
    %7968 = vrot.lane.b32.xlu0 %v7824, 80
    %v7969 = vpop.permute.xlu0 %7968
    %7970 = vrot.lane.b32.xlu0 %v7825, 80
    %v7971 = vpop.permute.xlu0 %7970
    %7972 = vrot.lane.b32.xlu0 %v7821, 80
    %v7973 = vpop.permute.xlu0 %7972
    %7974 = vrot.lane.b32.xlu0 %v7838, 80
    %v7975 = vpop.permute.xlu0 %7974
    %7976 = vrot.lane.b32.xlu0 %v7839, 80
    %v7977 = vpop.permute.xlu0 %7976
    %7978 = vrot.lane.b32.xlu0 %v7831, 80
    %v7979 = vpop.permute.xlu0 %7978
    %7980 = vrot.lane.b32.xlu0 %v7840, 80
    %v7981 = vpop.permute.xlu0 %7980
    %7982 = vrot.lane.b32.xlu0 %v7841, 80
    %v7983 = vpop.permute.xlu0 %7982
    %7984 = vrot.lane.b32.xlu0 %v7837, 80
    %v7985 = vpop.permute.xlu0 %7984
    %7986 = vrot.lane.b32.xlu0 %v7854, 80
    %v7987 = vpop.permute.xlu0 %7986
    %7988 = vrot.lane.b32.xlu0 %v7855, 80
    %v7989 = vpop.permute.xlu0 %7988
    %7990 = vrot.lane.b32.xlu0 %v7847, 80
    %v7991 = vpop.permute.xlu0 %7990
    %7992 = vrot.lane.b32.xlu0 %v7856, 80
    %v7993 = vpop.permute.xlu0 %7992
    %7994 = vrot.lane.b32.xlu0 %v7857, 80
    %v7995 = vpop.permute.xlu0 %7994
    %7996 = vrot.lane.b32.xlu0 %v7853, 80
    %v7997 = vpop.permute.xlu0 %7996
    %7998 = vrot.lane.b32.xlu0 %v7870, 80
    %v7999 = vpop.permute.xlu0 %7998
    %8000 = vrot.lane.b32.xlu0 %v7871, 80
    %v8001 = vpop.permute.xlu0 %8000
    %8002 = vrot.lane.b32.xlu0 %v7863, 80
    %v8003 = vpop.permute.xlu0 %8002
    %8004 = vrot.lane.b32.xlu0 %v7872, 80
    %v8005 = vpop.permute.xlu0 %8004
    %8006 = vrot.lane.b32.xlu0 %v7873, 80
    %v8007 = vpop.permute.xlu0 %8006
    %8008 = vrot.lane.b32.xlu0 %v7869, 80
    %v8009 = vpop.permute.xlu0 %8008
    %8010 = vrot.lane.b32.xlu0 %v7875, 80
    %v8011 = vpop.permute.xlu0 %8010
    %8012 = vrot.lane.b32.xlu0 %v7882, 80
    %v8013 = vpop.permute.xlu0 %8012
    %8014 = vrot.lane.b32.xlu0 %v7877, 80
    %v8015 = vpop.permute.xlu0 %8014
    %8016 = vrot.lane.b32.xlu0 %v7879, 80
    %v8017 = vpop.permute.xlu0 %8016
    %8018 = vrot.lane.b32.xlu0 %v7883, 80
    %v8019 = vpop.permute.xlu0 %8018
    %8020 = vrot.lane.b32.xlu0 %v7881, 80
    %v8021 = vpop.permute.xlu0 %8020
    %v8022 = vsel %vm3343, %v7903, %v7905
    %v8023 = vsel %vm3343, %v7905, %v7907
    %v8024 = vsel %vm3343, %v7909, %v7911
    %v8025 = vsel %vm3343, %v7911, %v7913
    %v8026 = vsel %vm3343, %v7915, %v7917
    %v8027 = vsel %vm3343, %v7917, %v7919
    %v8028 = vsel %vm3343, %v7921, %v7923
    %v8029 = vsel %vm3343, %v7923, %v7925
    %v8030 = vsel %vm3343, %v7927, %v7929
    %v8031 = vsel %vm3343, %v7929, %v7931
    %v8032 = vsel %vm3343, %v7933, %v7935
    %v8033 = vsel %vm3343, %v7935, %v7937
    %v8034 = vsel %vm3343, %v7939, %v7941
    %v8035 = vsel %vm3343, %v7941, %v7943
    %v8036 = vsel %vm3343, %v7945, %v7947
    %v8037 = vsel %vm3343, %v7947, %v7949
    %v8038 = vsel %vm3343, %v7951, %v7953
    %v8039 = vsel %vm3343, %v7953, %v7955
    %v8040 = vsel %vm3343, %v7957, %v7959
    %v8041 = vsel %vm3343, %v7959, %v7961
    %v8042 = vsel %vm3343, %v7963, %v7965
    %v8043 = vsel %vm3343, %v7965, %v7967
    %v8044 = vsel %vm3343, %v7969, %v7971
    %v8045 = vsel %vm3343, %v7971, %v7973
    %v8046 = vsel %vm3343, %v7975, %v7977
    %v8047 = vsel %vm3343, %v7977, %v7979
    %v8048 = vsel %vm3343, %v7981, %v7983
    %v8049 = vsel %vm3343, %v7983, %v7985
    %v8050 = vsel %vm3343, %v7987, %v7989
    %v8051 = vsel %vm3343, %v7989, %v7991
    %v8052 = vsel %vm3343, %v7993, %v7995
    %v8053 = vsel %vm3343, %v7995, %v7997
    %v8054 = vsel %vm3343, %v7999, %v8001
    %v8055 = vsel %vm3343, %v8001, %v8003
    %v8056 = vsel %vm3343, %v8005, %v8007
    %v8057 = vsel %vm3343, %v8007, %v8009
    %v8058 = vsel %vm3343, %v8011, %v8013
    %v8059 = vsel %vm3343, %v8013, %v8015
    %v8060 = vsel %vm3343, %v8017, %v8019
    %v8061 = vsel %vm3343, %v8019, %v8021
    %v8107 = vsel %vm612, %v7886, 0
    %v8110 = vsel %vm612, %v7888, 0
    %8112 = vmatprep.subr.mxu0 %v8049
    %8113 = vmatpush1.msra.mxu0 %v8048
    %8114 = vmatprep.subr.mxu0 %v8047
    %8115 = vmatpush1.msra.mxu0 %v8046
    %8116 = vmatprep.subr.mxu0 %v8045
    %8117 = vmatpush1.msra.mxu0 %v8044
    %8118 = vmatprep.subr.mxu0 %v8043
    %8119 = vmatpush1.msra.mxu0 %v8042
    %8120 = vmatprep.subr.mxu0 %v8041
    %8121 = vmatpush1.msra.mxu0 %v8040
    %8122 = vmatprep.subr.mxu0 %v8039
    %8123 = vmatpush1.msra.mxu0 %v8038
    %8124 = vmatprep.subr.mxu0 %v8037
    %8125 = vmatpush1.msra.mxu0 %v8036
    %8126 = vmatprep.subr.mxu0 %v8035
    %8127 = vmatpush1.msra.mxu0 %v8034
    %8128 = vmatprep.subr.mxu0 %v8033
    %8129 = vmatpush1.msra.mxu0 %v8032
    %8130 = vmatprep.subr.mxu0 %v8031
    %8131 = vmatpush1.msra.mxu0 %v8030
    %8132 = vmatprep.subr.mxu0 %v8029
    %8133 = vmatpush1.msra.mxu0 %v8028
    %8134 = vmatprep.subr.mxu0 %v8027
    %8135 = vmatpush1.msra.mxu0 %v8026
    %8136 = vmatprep.subr.mxu0 %v8025
    %8137 = vmatpush1.msra.mxu0 %v8024
    %8138 = vmatprep.subr.mxu0 %v8023
    %8139 = vmatpush1.msra.mxu0 %v8022
    %8140 = vmatprep.subr.mxu0 %v7825
    %8141 = vmatpush1.msra.mxu0 %v7824
    %8142 = vmatprep.subr.mxu0 %v7823
    %8143 = vmatpush1.msra.mxu0 %v7822
    %8144 = vmatprep.subr.mxu0 0.0
    %8145 = vmatpush2.msra.mxu0 0.0
    %8146 = vmatprep.subr.mxu0 0.0
    %8147 = vmatpush2.msra.mxu0 0.0
    %8148 = vmatprep.subr.mxu0 0.0
    %8149 = vmatpush2.msra.mxu0 0.0
    %8150 = vmatprep.subr.mxu0 0.0
    %8151 = vmatpush2.msra.mxu0 0.0
    %8152 = vmatprep.subr.mxu0 0.0
    %8153 = vmatpush2.msra.mxu0 0.0
    %8154 = vmatprep.subr.mxu0 0.0
    %8155 = vmatpush2.msra.mxu0 0.0
    %8156 = vmatprep.subr.mxu0 0.0
    %8157 = vmatpush2.msra.mxu0 0.0
    %8158 = vmatprep.subr.mxu0 0.0
    %8159 = vmatpush2.msra.mxu0 0.0
    %8160 = vmatprep.subr.mxu0 0.0
    %8161 = vmatpush2.msra.mxu0 0.0
    %8162 = vmatprep.subr.mxu0 0.0
    %8163 = vmatpush2.msra.mxu0 0.0
    %8164 = vmatprep.subr.mxu0 %v8061
    %8165 = vmatpush2.msra.mxu0 %v8060
    %8166 = vmatprep.subr.mxu0 %v8059
    %8167 = vmatpush2.msra.mxu0 %v8058
    %8168 = vmatprep.subr.mxu0 %v8057
    %8169 = vmatpush2.msra.mxu0 %v8056
    %8170 = vmatprep.subr.mxu0 %v8055
    %8171 = vmatpush2.msra.mxu0 %v8054
    %8172 = vmatprep.subr.mxu0 %v8053
    %8173 = vmatpush2.msra.mxu0 %v8052
    %8174 = vmatprep.subr.mxu0 %v8051
    %8175 = vmatpush2.msra.mxu0 %v8050
    %8176 = vmatprep.mubr.f32.mxu0 %v8107
    %8177 = vmatmul.mubr.f32.gmra.mxu0 %v7885
    %v8178 = vpop.f32.mrf.mxu0
    %v8179 = vadd.f32 %v7895, %v8178
    %v8180 = vpop.f32.mrf.mxu0
    %v8181 = vadd.f32 %v7895, %v8180
    %8182 = vmatprep.mubr.f32.mxu0 %v8110
    %8183 = vmatmul.mubr.f32.gmra.mxu0 %v7887
    %v8184 = vpop.f32.mrf.mxu0
    %v8185 = vadd.f32 %v7900, %v8184
    %v8186 = vpop.f32.mrf.mxu0
    %v8187 = vadd.f32 %v7900, %v8186
    %8188 = vdwg.mxu0
    %v8189 = vtanh.pop %v8179
    %v8190 = vtanh.pop %v8181
    %v8191 = vtanh.pop %v8185
    %v8192 = vtanh.pop %v8187
    %v8193 = vadd.f32 %v8189, %v7227
    %v8194 = vadd.f32 %v8190, %v7228
    %v8195 = vadd.f32 %v8191, %v7229
    %v8196 = vadd.f32 %v8192, %v7230
    %v8197 = vtanh.pop %v8193
    %v8198 = vtanh.pop %v8194
    %v8199 = vtanh.pop %v8195
    %v8200 = vtanh.pop %v8196
    %v8201 = vsel %vm91, %v8197, 0.0
    %v8202 = vsel %vm92, %v8198, 0.0
    %v8203 = vsel %vm91, %v8199, 0.0
    %v8204 = vsel %vm92, %v8200, 0.0
    %v8205 = vld [vmem:[%s5] sm:$0xff]
    %v8207 = vsel %vm111, %v8205, 0
    %8209 = vmatprep.subr.mxu0 0.0
    %8210 = vmatpush1.msra.mxu0 0.0
    %8211 = vmatprep.subr.mxu0 0.0
    %8212 = vmatpush1.msra.mxu0 0.0
    %8213 = vmatprep.subr.mxu0 0.0
    %8214 = vmatpush1.msra.mxu0 0.0
    %8215 = vmatprep.subr.mxu0 0.0
    %8216 = vmatpush1.msra.mxu0 0.0
    %8217 = vmatprep.subr.mxu0 0.0
    %8218 = vmatpush1.msra.mxu0 0.0
    %8219 = vmatprep.subr.mxu0 0.0
    %8220 = vmatpush1.msra.mxu0 0.0
    %8221 = vmatprep.subr.mxu0 0.0
    %8222 = vmatpush1.msra.mxu0 0.0
    %8223 = vmatprep.subr.mxu0 0.0
    %8224 = vmatpush1.msra.mxu0 0.0
    %8225 = vmatprep.subr.mxu0 0.0
    %8226 = vmatpush1.msra.mxu0 0.0
    %8227 = vmatprep.subr.mxu0 0.0
    %8228 = vmatpush1.msra.mxu0 0.0
    %8229 = vmatprep.subr.mxu0 0.0
    %8230 = vmatpush1.msra.mxu0 0.0
    %8231 = vmatprep.subr.mxu0 0.0
    %8232 = vmatpush1.msra.mxu0 0.0
    %8233 = vmatprep.subr.mxu0 0.0
    %8234 = vmatpush1.msra.mxu0 0.0
    %8235 = vmatprep.subr.mxu0 0.0
    %8236 = vmatpush1.msra.mxu0 0.0
    %8237 = vmatprep.subr.mxu0 %v8204
    %8238 = vmatpush1.msra.mxu0 %v8203
    %8239 = vmatprep.subr.mxu0 %v8202
    %8240 = vmatpush1.msra.mxu0 %v8201
    %8241 = vmatprep.subr.mxu0 0.0
    %8242 = vmatpush2.msra.mxu0 0.0
    %8243 = vmatprep.subr.mxu0 0.0
    %8244 = vmatpush2.msra.mxu0 0.0
    %8245 = vmatprep.subr.mxu0 0.0
    %8246 = vmatpush2.msra.mxu0 0.0
    %8247 = vmatprep.subr.mxu0 0.0
    %8248 = vmatpush2.msra.mxu0 0.0
    %8249 = vmatprep.subr.mxu0 0.0
    %8250 = vmatpush2.msra.mxu0 0.0
    %8251 = vmatprep.subr.mxu0 0.0
    %8252 = vmatpush2.msra.mxu0 0.0
    %8253 = vmatprep.subr.mxu0 0.0
    %8254 = vmatpush2.msra.mxu0 0.0
    %8255 = vmatprep.subr.mxu0 0.0
    %8256 = vmatpush2.msra.mxu0 0.0
    %8257 = vmatprep.subr.mxu0 0.0
    %8258 = vmatpush2.msra.mxu0 0.0
    %8259 = vmatprep.subr.mxu0 0.0
    %8260 = vmatpush2.msra.mxu0 0.0
    %8261 = vmatprep.subr.mxu0 0.0
    %8262 = vmatpush2.msra.mxu0 0.0
    %8263 = vmatprep.subr.mxu0 0.0
    %8264 = vmatpush2.msra.mxu0 0.0
    %8265 = vmatprep.subr.mxu0 0.0
    %8266 = vmatpush2.msra.mxu0 0.0
    %8267 = vmatprep.subr.mxu0 0.0
    %8268 = vmatpush2.msra.mxu0 0.0
    %8269 = vmatprep.subr.mxu0 0.0
    %8270 = vmatpush2.msra.mxu0 0.0
    %8271 = vmatprep.subr.mxu0 0.0
    %8272 = vmatpush2.msra.mxu0 0.0
    %8273 = vmatprep.mubr.f32.mxu0 0.0
    %8274 = vmatmul.mubr.f32.gmra.mxu0 %v8207
    %v8275 = vpop.f32.mrf.mxu0
    %v8276 = vadd.f32 0.0, %v8275
    %v8277 = vpop.f32.mrf.mxu0
    %v8278 = vadd.f32 0.0, %v8277
    %8279 = vdwg.mxu0
    %v8280 = vmul.f32 %v8276, 6.2831855
    %v8281 = vmul.f32 %v8278, 6.2831855
    %v8282 = vand.u32 2147483647, %v8280
    %vm8283 = vcmp.le.f32.partialorder %v8282, 0.7853982
    %vm8284 = vcmp.lt.s32.totalorder %v8280, 0
    %v8285 = vand.u32 %v8280, 2139095040
    %v8286 = vshrl.u32 %v8285, 23
    %v8287 = vsub.s32 %v8286, 127
    %v8288 = vand.u32 2147483647, %v8280
    %v8289 = vand.u32 %v8288, 8388607
    %v8290 = vor.u32 %v8289, 8388608
    %v8291 = vsub.s32 0, %v8290
    %v8292 = vadd.s32 %v8287, 1
    %vm8293 = vcmp.gt.s32.totalorder %v8292, 0
    %v8294 = vsel %vm8293, %v8292, 0
    %v8295 = vshrl.u32 %v8294, 5
    %v8296 = vand.u32 %v8294, 31
    %v8297 = vsub.s32 32, %v8296
    %v8298 = vshrl.u32 683565275, %v8297
    %v8299 = vshll.u32 683565275, %v8296
    %v8300 = vshrl.u32 2475754826, %v8297
    %v8301 = vor.u32 %v8299, %v8300
    %v8302 = vshll.u32 2475754826, %v8296
    %v8303 = vshrl.u32 2131351028, %v8297
    %v8304 = vor.u32 %v8302, %v8303
    %v8305 = vshll.u32 2131351028, %v8296
    %v8306 = vshrl.u32 2102212464, %v8297
    %v8307 = vor.u32 %v8305, %v8306
    %v8308 = vshll.u32 2102212464, %v8296
    %v8309 = vshrl.u32 920167782, %v8297
    %v8310 = vor.u32 %v8308, %v8309
    %v8311 = vshll.u32 920167782, %v8296
    %v8312 = vshrl.u32 1326507024, %v8297
    %v8313 = vor.u32 %v8311, %v8312
    %vm8314 = vcmp.lt.s32.totalorder %v8295, 1
    %vm8315 = vcmp.lt.s32.totalorder %v8295, 2
    %vm8316 = vcmp.lt.s32.totalorder %v8295, 3
    %vm8317 = vcmp.lt.s32.totalorder %v8295, 4
    %v8318 = vsel %vm8314, %v8298, %v8301
    %v8319 = vsel %vm8317, %v8307, 2102212464
    %v8320 = vsel %vm8316, %v8304, %v8319
    %v8321 = vsel %vm8315, %v8318, %v8320
    %v8322 = vsel %vm8314, %v8301, %v8304
    %v8323 = vsel %vm8317, %v8310, 920167782
    %v8324 = vsel %vm8316, %v8307, %v8323
    %v8325 = vsel %vm8315, %v8322, %v8324
    %v8326 = vsel %vm8314, %v8304, %v8307
    %v8327 = vsel %vm8317, %v8313, 1326507024
    %v8328 = vsel %vm8316, %v8310, %v8327
    %v8329 = vsel %vm8315, %v8326, %v8328
    %v8330 = vshll.u32 %v8290, 8
    %v8331 = vmul.u32.u64.compose %v8330, %v8329
    %v8332 = vextract.low.u32 %v8331
    %v8333 = vextract.high.u32 %v8331
    %v8334 = vmul.u32.u64.compose %v8330, %v8325
    %v8335 = vextract.low.u32 %v8334
    %v8336 = vextract.high.u32 %v8334
    %v8337 = vmul.u32 %v8330, %v8321
    %v8338 = vadd.s32 %v8333, %v8335
    %vm8339 = vc.u32 %v8333, %v8335
    %v8340 = vadd.s32 %v8336, 1
    %v8341 = vsel %vm8339, %v8340, %v8336
    %v8342 = vadd.s32 %v8337, %v8341
    %v8343 = vadd.s32 %v8342, 536870912
    %v8344 = vshrl.u32 %v8343, 30
    %v8345 = vshll.u32 %v8344, 30
    %v8346 = vsub.s32 %v8342, %v8345
    %vm8347 = vcmp.lt.s32.totalorder %v8346, 0
    %v8348 = vsub.s32 0, %v8346
    %v8349 = vsel %vm8347, %v8348, %v8346
    %v8350 = vclz %v8349
    %v8351 = vsub.s32 %v8350, 2
    %vm8352 = vcmp.gt.s32.totalorder 0, %v8351
    %v8353 = vsel %vm8352, 0, %v8351
    %v8354 = vsub.s32 32, %v8353
    %v8355 = vshll.u32 %v8346, %v8353
    %v8356 = vshrl.u32 %v8338, %v8354
    %v8357 = vor.u32 %v8355, %v8356
    %v8358 = vsub.s32 4294967266, %v8353
    %v8359 = vadd.s32 %v8358, 127
    %v8360 = vshll.u32 %v8359, 23
    %v8361 = vor.u32 4788187, %v8360
    %v8362 = vand.u32 2147483647, %v8361
    %v8364 = vcvt.s32.f32 %v8357
    %v8365 = vmul.f32 %v8364, %v8362
    %v8366 = vxor.u32 %v8365, 2147483648
    %v8367 = vsel %vm8284, %v8366, %v8365
    %v8368 = vsub.s32 4, %v8344
    %v8369 = vsel %vm8284, %v8368, %v8344
    %v8370 = vsel %vm8283, %v8280, %v8367
    %v8371 = vsel %vm8283, 0, %v8369
    %v8372 = vcosq.f32.pop %v8370
    %v8373 = vsinq.f32.pop %v8370
    %vm8374 = vweird.f32 %v8280
    %v8375 = vand.u32 %v8371, 3
    %vm8376 = vcmp.lt.s32.totalorder %v8375, 2
    %vm8377 = vcmp.eq.s32.totalorder %v8375, 0
    %v8378 = vxor.u32 %v8373, 2147483648
    %v8379 = vsel %vm8377, %v8372, %v8378
    %vm8380 = vcmp.eq.s32.totalorder %v8375, 2
    %v8381 = vxor.u32 %v8372, 2147483648
    %v8382 = vsel %vm8380, %v8381, %v8373
    %v8383 = vsel %vm8376, %v8379, %v8382
    %v8384 = vsel %vm8374, nan, %v8383
    %v8385 = vand.u32 2147483647, %v8281
    %vm8386 = vcmp.le.f32.partialorder %v8385, 0.7853982
    %vm8387 = vcmp.lt.s32.totalorder %v8281, 0
    %v8388 = vand.u32 %v8281, 2139095040
    %v8389 = vshrl.u32 %v8388, 23
    %v8390 = vsub.s32 %v8389, 127
    %v8391 = vand.u32 2147483647, %v8281
    %v8392 = vand.u32 %v8391, 8388607
    %v8393 = vor.u32 %v8392, 8388608
    %v8394 = vsub.s32 0, %v8393
    %v8395 = vadd.s32 %v8390, 1
    %vm8396 = vcmp.gt.s32.totalorder %v8395, 0
    %v8397 = vsel %vm8396, %v8395, 0
    %v8398 = vshrl.u32 %v8397, 5
    %v8399 = vand.u32 %v8397, 31
    %v8400 = vsub.s32 32, %v8399
    %v8401 = vshrl.u32 683565275, %v8400
    %v8402 = vshll.u32 683565275, %v8399
    %v8403 = vshrl.u32 2475754826, %v8400
    %v8404 = vor.u32 %v8402, %v8403
    %v8405 = vshll.u32 2475754826, %v8399
    %v8406 = vshrl.u32 2131351028, %v8400
    %v8407 = vor.u32 %v8405, %v8406
    %v8408 = vshll.u32 2131351028, %v8399
    %v8409 = vshrl.u32 2102212464, %v8400
    %v8410 = vor.u32 %v8408, %v8409
    %v8411 = vshll.u32 2102212464, %v8399
    %v8412 = vshrl.u32 920167782, %v8400
    %v8413 = vor.u32 %v8411, %v8412
    %v8414 = vshll.u32 920167782, %v8399
    %v8415 = vshrl.u32 1326507024, %v8400
    %v8416 = vor.u32 %v8414, %v8415
    %vm8417 = vcmp.lt.s32.totalorder %v8398, 1
    %vm8418 = vcmp.lt.s32.totalorder %v8398, 2
    %vm8419 = vcmp.lt.s32.totalorder %v8398, 3
    %vm8420 = vcmp.lt.s32.totalorder %v8398, 4
    %v8421 = vsel %vm8417, %v8401, %v8404
    %v8422 = vsel %vm8420, %v8410, 2102212464
    %v8423 = vsel %vm8419, %v8407, %v8422
    %v8424 = vsel %vm8418, %v8421, %v8423
    %v8425 = vsel %vm8417, %v8404, %v8407
    %v8426 = vsel %vm8420, %v8413, 920167782
    %v8427 = vsel %vm8419, %v8410, %v8426
    %v8428 = vsel %vm8418, %v8425, %v8427
    %v8429 = vsel %vm8417, %v8407, %v8410
    %v8430 = vsel %vm8420, %v8416, 1326507024
    %v8431 = vsel %vm8419, %v8413, %v8430
    %v8432 = vsel %vm8418, %v8429, %v8431
    %v8433 = vshll.u32 %v8393, 8
    %v8434 = vmul.u32.u64.compose %v8433, %v8432
    %v8435 = vextract.low.u32 %v8434
    %v8436 = vextract.high.u32 %v8434
    %v8437 = vmul.u32.u64.compose %v8433, %v8428
    %v8438 = vextract.low.u32 %v8437
    %v8439 = vextract.high.u32 %v8437
    %v8440 = vmul.u32 %v8433, %v8424
    %v8441 = vadd.s32 %v8436, %v8438
    %vm8442 = vc.u32 %v8436, %v8438
    %v8443 = vadd.s32 %v8439, 1
    %v8444 = vsel %vm8442, %v8443, %v8439
    %v8445 = vadd.s32 %v8440, %v8444
    %v8446 = vadd.s32 %v8445, 536870912
    %v8447 = vshrl.u32 %v8446, 30
    %v8448 = vshll.u32 %v8447, 30
    %v8449 = vsub.s32 %v8445, %v8448
    %vm8450 = vcmp.lt.s32.totalorder %v8449, 0
    %v8451 = vsub.s32 0, %v8449
    %v8452 = vsel %vm8450, %v8451, %v8449
    %v8453 = vclz %v8452
    %v8454 = vsub.s32 %v8453, 2
    %vm8455 = vcmp.gt.s32.totalorder 0, %v8454
    %v8456 = vsel %vm8455, 0, %v8454
    %v8457 = vsub.s32 32, %v8456
    %v8458 = vshll.u32 %v8449, %v8456
    %v8459 = vshrl.u32 %v8441, %v8457
    %v8460 = vor.u32 %v8458, %v8459
    %v8461 = vsub.s32 4294967266, %v8456
    %v8462 = vadd.s32 %v8461, 127
    %v8463 = vshll.u32 %v8462, 23
    %v8464 = vor.u32 4788187, %v8463
    %v8465 = vand.u32 2147483647, %v8464
    %v8467 = vcvt.s32.f32 %v8460
    %v8468 = vmul.f32 %v8467, %v8465
    %v8469 = vxor.u32 %v8468, 2147483648
    %v8470 = vsel %vm8387, %v8469, %v8468
    %v8471 = vsub.s32 4, %v8447
    %v8472 = vsel %vm8387, %v8471, %v8447
    %v8473 = vsel %vm8386, %v8281, %v8470
    %v8474 = vsel %vm8386, 0, %v8472
    %v8475 = vcosq.f32.pop %v8473
    %v8476 = vsinq.f32.pop %v8473
    %vm8477 = vweird.f32 %v8281
    %v8478 = vand.u32 %v8474, 3
    %vm8479 = vcmp.lt.s32.totalorder %v8478, 2
    %vm8480 = vcmp.eq.s32.totalorder %v8478, 0
    %v8481 = vxor.u32 %v8476, 2147483648
    %v8482 = vsel %vm8480, %v8475, %v8481
    %vm8483 = vcmp.eq.s32.totalorder %v8478, 2
    %v8484 = vxor.u32 %v8475, 2147483648
    %v8485 = vsel %vm8483, %v8484, %v8476
    %v8486 = vsel %vm8479, %v8482, %v8485
    %v8487 = vsel %vm8477, nan, %v8486
    %v8488 = vand.u32 2147483647, %v8280
    %vm8489 = vcmp.le.f32.partialorder %v8488, 0.7853982
    %vm8490 = vcmp.lt.s32.totalorder %v8280, 0
    %v8491 = vand.u32 %v8280, 2139095040
    %v8492 = vshrl.u32 %v8491, 23
    %v8493 = vsub.s32 %v8492, 127
    %v8494 = vand.u32 2147483647, %v8280
    %v8495 = vand.u32 %v8494, 8388607
    %v8496 = vor.u32 %v8495, 8388608
    %v8497 = vsub.s32 0, %v8496
    %v8498 = vadd.s32 %v8493, 1
    %vm8499 = vcmp.gt.s32.totalorder %v8498, 0
    %v8500 = vsel %vm8499, %v8498, 0
    %v8501 = vshrl.u32 %v8500, 5
    %v8502 = vand.u32 %v8500, 31
    %v8503 = vsub.s32 32, %v8502
    %v8504 = vshrl.u32 683565275, %v8503
    %v8505 = vshll.u32 683565275, %v8502
    %v8506 = vshrl.u32 2475754826, %v8503
    %v8507 = vor.u32 %v8505, %v8506
    %v8508 = vshll.u32 2475754826, %v8502
    %v8509 = vshrl.u32 2131351028, %v8503
    %v8510 = vor.u32 %v8508, %v8509
    %v8511 = vshll.u32 2131351028, %v8502
    %v8512 = vshrl.u32 2102212464, %v8503
    %v8513 = vor.u32 %v8511, %v8512
    %v8514 = vshll.u32 2102212464, %v8502
    %v8515 = vshrl.u32 920167782, %v8503
    %v8516 = vor.u32 %v8514, %v8515
    %v8517 = vshll.u32 920167782, %v8502
    %v8518 = vshrl.u32 1326507024, %v8503
    %v8519 = vor.u32 %v8517, %v8518
    %vm8520 = vcmp.lt.s32.totalorder %v8501, 1
    %vm8521 = vcmp.lt.s32.totalorder %v8501, 2
    %vm8522 = vcmp.lt.s32.totalorder %v8501, 3
    %vm8523 = vcmp.lt.s32.totalorder %v8501, 4
    %v8524 = vsel %vm8520, %v8504, %v8507
    %v8525 = vsel %vm8523, %v8513, 2102212464
    %v8526 = vsel %vm8522, %v8510, %v8525
    %v8527 = vsel %vm8521, %v8524, %v8526
    %v8528 = vsel %vm8520, %v8507, %v8510
    %v8529 = vsel %vm8523, %v8516, 920167782
    %v8530 = vsel %vm8522, %v8513, %v8529
    %v8531 = vsel %vm8521, %v8528, %v8530
    %v8532 = vsel %vm8520, %v8510, %v8513
    %v8533 = vsel %vm8523, %v8519, 1326507024
    %v8534 = vsel %vm8522, %v8516, %v8533
    %v8535 = vsel %vm8521, %v8532, %v8534
    %v8536 = vshll.u32 %v8496, 8
    %v8537 = vmul.u32.u64.compose %v8536, %v8535
    %v8538 = vextract.low.u32 %v8537
    %v8539 = vextract.high.u32 %v8537
    %v8540 = vmul.u32.u64.compose %v8536, %v8531
    %v8541 = vextract.low.u32 %v8540
    %v8542 = vextract.high.u32 %v8540
    %v8543 = vmul.u32 %v8536, %v8527
    %v8544 = vadd.s32 %v8539, %v8541
    %vm8545 = vc.u32 %v8539, %v8541
    %v8546 = vadd.s32 %v8542, 1
    %v8547 = vsel %vm8545, %v8546, %v8542
    %v8548 = vadd.s32 %v8543, %v8547
    %v8549 = vadd.s32 %v8548, 536870912
    %v8550 = vshrl.u32 %v8549, 30
    %v8551 = vshll.u32 %v8550, 30
    %v8552 = vsub.s32 %v8548, %v8551
    %vm8553 = vcmp.lt.s32.totalorder %v8552, 0
    %v8554 = vsub.s32 0, %v8552
    %v8555 = vsel %vm8553, %v8554, %v8552
    %v8556 = vclz %v8555
    %v8557 = vsub.s32 %v8556, 2
    %vm8558 = vcmp.gt.s32.totalorder 0, %v8557
    %v8559 = vsel %vm8558, 0, %v8557
    %v8560 = vsub.s32 32, %v8559
    %v8561 = vshll.u32 %v8552, %v8559
    %v8562 = vshrl.u32 %v8544, %v8560
    %v8563 = vor.u32 %v8561, %v8562
    %v8564 = vsub.s32 4294967266, %v8559
    %v8565 = vadd.s32 %v8564, 127
    %v8566 = vshll.u32 %v8565, 23
    %v8567 = vor.u32 4788187, %v8566
    %v8568 = vand.u32 2147483647, %v8567
    %v8570 = vcvt.s32.f32 %v8563
    %v8571 = vmul.f32 %v8570, %v8568
    %v8572 = vxor.u32 %v8571, 2147483648
    %v8573 = vsel %vm8490, %v8572, %v8571
    %v8574 = vsub.s32 4, %v8550
    %v8575 = vsel %vm8490, %v8574, %v8550
    %v8576 = vsel %vm8489, %v8280, %v8573
    %v8577 = vsel %vm8489, 0, %v8575
    %v8578 = vcosq.f32.pop %v8576
    %v8579 = vsinq.f32.pop %v8576
    %vm8580 = vweird.f32 %v8280
    %v8581 = vadd.s32 %v8577, 3
    %v8582 = vand.u32 %v8581, 3
    %vm8583 = vcmp.lt.s32.totalorder %v8582, 2
    %vm8584 = vcmp.eq.s32.totalorder %v8582, 0
    %v8585 = vxor.u32 %v8579, 2147483648
    %v8586 = vsel %vm8584, %v8578, %v8585
    %vm8587 = vcmp.eq.s32.totalorder %v8582, 2
    %v8588 = vxor.u32 %v8578, 2147483648
    %v8589 = vsel %vm8587, %v8588, %v8579
    %v8590 = vsel %vm8583, %v8586, %v8589
    %v8591 = vsel %vm8580, nan, %v8590
    %v8592 = vand.u32 2147483647, %v8281
    %vm8593 = vcmp.le.f32.partialorder %v8592, 0.7853982
    %vm8594 = vcmp.lt.s32.totalorder %v8281, 0
    %v8595 = vand.u32 %v8281, 2139095040
    %v8596 = vshrl.u32 %v8595, 23
    %v8597 = vsub.s32 %v8596, 127
    %v8598 = vand.u32 2147483647, %v8281
    %v8599 = vand.u32 %v8598, 8388607
    %v8600 = vor.u32 %v8599, 8388608
    %v8601 = vsub.s32 0, %v8600
    %v8602 = vadd.s32 %v8597, 1
    %vm8603 = vcmp.gt.s32.totalorder %v8602, 0
    %v8604 = vsel %vm8603, %v8602, 0
    %v8605 = vshrl.u32 %v8604, 5
    %v8606 = vand.u32 %v8604, 31
    %v8607 = vsub.s32 32, %v8606
    %v8608 = vshrl.u32 683565275, %v8607
    %v8609 = vshll.u32 683565275, %v8606
    %v8610 = vshrl.u32 2475754826, %v8607
    %v8611 = vor.u32 %v8609, %v8610
    %v8612 = vshll.u32 2475754826, %v8606
    %v8613 = vshrl.u32 2131351028, %v8607
    %v8614 = vor.u32 %v8612, %v8613
    %v8615 = vshll.u32 2131351028, %v8606
    %v8616 = vshrl.u32 2102212464, %v8607
    %v8617 = vor.u32 %v8615, %v8616
    %v8618 = vshll.u32 2102212464, %v8606
    %v8619 = vshrl.u32 920167782, %v8607
    %v8620 = vor.u32 %v8618, %v8619
    %v8621 = vshll.u32 920167782, %v8606
    %v8622 = vshrl.u32 1326507024, %v8607
    %v8623 = vor.u32 %v8621, %v8622
    %vm8624 = vcmp.lt.s32.totalorder %v8605, 1
    %vm8625 = vcmp.lt.s32.totalorder %v8605, 2
    %vm8626 = vcmp.lt.s32.totalorder %v8605, 3
    %vm8627 = vcmp.lt.s32.totalorder %v8605, 4
    %v8628 = vsel %vm8624, %v8608, %v8611
    %v8629 = vsel %vm8627, %v8617, 2102212464
    %v8630 = vsel %vm8626, %v8614, %v8629
    %v8631 = vsel %vm8625, %v8628, %v8630
    %v8632 = vsel %vm8624, %v8611, %v8614
    %v8633 = vsel %vm8627, %v8620, 920167782
    %v8634 = vsel %vm8626, %v8617, %v8633
    %v8635 = vsel %vm8625, %v8632, %v8634
    %v8636 = vsel %vm8624, %v8614, %v8617
    %v8637 = vsel %vm8627, %v8623, 1326507024
    %v8638 = vsel %vm8626, %v8620, %v8637
    %v8639 = vsel %vm8625, %v8636, %v8638
    %v8640 = vshll.u32 %v8600, 8
    %v8641 = vmul.u32.u64.compose %v8640, %v8639
    %v8642 = vextract.low.u32 %v8641
    %v8643 = vextract.high.u32 %v8641
    %v8644 = vmul.u32.u64.compose %v8640, %v8635
    %v8645 = vextract.low.u32 %v8644
    %v8646 = vextract.high.u32 %v8644
    %v8647 = vmul.u32 %v8640, %v8631
    %v8648 = vadd.s32 %v8643, %v8645
    %vm8649 = vc.u32 %v8643, %v8645
    %v8650 = vadd.s32 %v8646, 1
    %v8651 = vsel %vm8649, %v8650, %v8646
    %v8652 = vadd.s32 %v8647, %v8651
    %v8653 = vadd.s32 %v8652, 536870912
    %v8654 = vshrl.u32 %v8653, 30
    %v8655 = vshll.u32 %v8654, 30
    %v8656 = vsub.s32 %v8652, %v8655
    %vm8657 = vcmp.lt.s32.totalorder %v8656, 0
    %v8658 = vsub.s32 0, %v8656
    %v8659 = vsel %vm8657, %v8658, %v8656
    %v8660 = vclz %v8659
    %v8661 = vsub.s32 %v8660, 2
    %vm8662 = vcmp.gt.s32.totalorder 0, %v8661
    %v8663 = vsel %vm8662, 0, %v8661
    %v8664 = vsub.s32 32, %v8663
    %v8665 = vshll.u32 %v8656, %v8663
    %v8666 = vshrl.u32 %v8648, %v8664
    %v8667 = vor.u32 %v8665, %v8666
    %v8668 = vsub.s32 4294967266, %v8663
    %v8669 = vadd.s32 %v8668, 127
    %v8670 = vshll.u32 %v8669, 23
    %v8671 = vor.u32 4788187, %v8670
    %v8672 = vand.u32 2147483647, %v8671
    %v8674 = vcvt.s32.f32 %v8667
    %v8675 = vmul.f32 %v8674, %v8672
    %v8676 = vxor.u32 %v8675, 2147483648
    %v8677 = vsel %vm8594, %v8676, %v8675
    %v8678 = vsub.s32 4, %v8654
    %v8679 = vsel %vm8594, %v8678, %v8654
    %v8680 = vsel %vm8593, %v8281, %v8677
    %v8681 = vsel %vm8593, 0, %v8679
    %v8682 = vcosq.f32.pop %v8680
    %v8683 = vsinq.f32.pop %v8680
    %vm8684 = vweird.f32 %v8281
    %v8685 = vadd.s32 %v8681, 3
    %v8686 = vand.u32 %v8685, 3
    %vm8687 = vcmp.lt.s32.totalorder %v8686, 2
    %vm8688 = vcmp.eq.s32.totalorder %v8686, 0
    %v8689 = vxor.u32 %v8683, 2147483648
    %v8690 = vsel %vm8688, %v8682, %v8689
    %vm8691 = vcmp.eq.s32.totalorder %v8686, 2
    %v8692 = vxor.u32 %v8682, 2147483648
    %v8693 = vsel %vm8691, %v8692, %v8683
    %v8694 = vsel %vm8687, %v8690, %v8693
    %v8695 = vsel %vm8684, nan, %v8694
    %v8696 = vld [vmem:[%s6] sm:$0xf]
    %v8697 = vld [vmem:[%s7] sm:$0xf]
    %8699 = vset.pattern.permute.xlu0 0
    %8700 = vperm.xlu0 %8699, %v8697
    %v8701 = vpop.permute.xlu0 %8700
    %v8704 = vsel %vm111, %v8696, 0
    %8706 = vmatprep.subr.mxu0 0.0
    %8707 = vmatpush1.msra.mxu0 0.0
    %8708 = vmatprep.subr.mxu0 0.0
    %8709 = vmatpush1.msra.mxu0 0.0
    %8710 = vmatprep.subr.mxu0 0.0
    %8711 = vmatpush1.msra.mxu0 0.0
    %8712 = vmatprep.subr.mxu0 0.0
    %8713 = vmatpush1.msra.mxu0 0.0
    %8714 = vmatprep.subr.mxu0 0.0
    %8715 = vmatpush1.msra.mxu0 0.0
    %8716 = vmatprep.subr.mxu0 0.0
    %8717 = vmatpush1.msra.mxu0 0.0
    %8718 = vmatprep.subr.mxu0 0.0
    %8719 = vmatpush1.msra.mxu0 0.0
    %8720 = vmatprep.subr.mxu0 0.0
    %8721 = vmatpush1.msra.mxu0 0.0
    %8722 = vmatprep.subr.mxu0 0.0
    %8723 = vmatpush1.msra.mxu0 0.0
    %8724 = vmatprep.subr.mxu0 0.0
    %8725 = vmatpush1.msra.mxu0 0.0
    %8726 = vmatprep.subr.mxu0 0.0
    %8727 = vmatpush1.msra.mxu0 0.0
    %8728 = vmatprep.subr.mxu0 0.0
    %8729 = vmatpush1.msra.mxu0 0.0
    %8730 = vmatprep.subr.mxu0 0.0
    %8731 = vmatpush1.msra.mxu0 0.0
    %8732 = vmatprep.subr.mxu0 0.0
    %8733 = vmatpush1.msra.mxu0 0.0
    %8734 = vmatprep.subr.mxu0 %v8695
    %8735 = vmatpush1.msra.mxu0 %v8591
    %8736 = vmatprep.subr.mxu0 %v8487
    %8737 = vmatpush1.msra.mxu0 %v8384
    %8738 = vmatprep.subr.mxu0 0.0
    %8739 = vmatpush2.msra.mxu0 0.0
    %8740 = vmatprep.subr.mxu0 0.0
    %8741 = vmatpush2.msra.mxu0 0.0
    %8742 = vmatprep.subr.mxu0 0.0
    %8743 = vmatpush2.msra.mxu0 0.0
    %8744 = vmatprep.subr.mxu0 0.0
    %8745 = vmatpush2.msra.mxu0 0.0
    %8746 = vmatprep.subr.mxu0 0.0
    %8747 = vmatpush2.msra.mxu0 0.0
    %8748 = vmatprep.subr.mxu0 0.0
    %8749 = vmatpush2.msra.mxu0 0.0
    %8750 = vmatprep.subr.mxu0 0.0
    %8751 = vmatpush2.msra.mxu0 0.0
    %8752 = vmatprep.subr.mxu0 0.0
    %8753 = vmatpush2.msra.mxu0 0.0
    %8754 = vmatprep.subr.mxu0 0.0
    %8755 = vmatpush2.msra.mxu0 0.0
    %8756 = vmatprep.subr.mxu0 0.0
    %8757 = vmatpush2.msra.mxu0 0.0
    %8758 = vmatprep.subr.mxu0 0.0
    %8759 = vmatpush2.msra.mxu0 0.0
    %8760 = vmatprep.subr.mxu0 0.0
    %8761 = vmatpush2.msra.mxu0 0.0
    %8762 = vmatprep.subr.mxu0 0.0
    %8763 = vmatpush2.msra.mxu0 0.0
    %8764 = vmatprep.subr.mxu0 0.0
    %8765 = vmatpush2.msra.mxu0 0.0
    %8766 = vmatprep.subr.mxu0 0.0
    %8767 = vmatpush2.msra.mxu0 0.0
    %8768 = vmatprep.subr.mxu0 0.0
    %8769 = vmatpush2.msra.mxu0 0.0
    %8770 = vmatprep.mubr.f32.mxu0 0.0
    %8771 = vmatmul.mubr.f32.gmra.mxu0 %v8704
    %v8772 = vpop.f32.mrf.mxu0
    %v8773 = vadd.f32 %v8701, %v8772
    %v8774 = vpop.f32.mrf.mxu0
    %v8775 = vadd.f32 %v8701, %v8774
    %8776 = vdwg.mxu0
    %v8779 = vcombine.low %v8773, %v8775
    %8781 = vst [vmem:[#allocation6] sm:$0xff] %v8779
    // Predicated region
    $region38: #{tpu_custom_call.1} parent=1 // pred_check
      _
    $region39: #{tpu_custom_call.1} parent=1 // pred_check_branch
      %8783 = sbr.rel (0) target = $region41
    $region40: #{tpu_custom_call.1} parent=1 // pred_region
      %s8785 = ssub.s32 128, 128
      %8786 = vsyncadd [#allocation5], %s8785
      %s8788 = sshll.u32 [#allocation6], 4
      %s8789 = int_to_ptr.vmem [resolvable:$true] %s8788
      %8791 = dma.vmem_to_hbm [thread:$0]  %s8789, 128, %s8, [#allocation5]
    $region41: #{tpu_custom_call.1} parent=1 // pred_fallthru
      _
    // Predicated region
    $region42: #{tpu_custom_call.1} parent=1 // pred_check
      _
    $region43: #{tpu_custom_call.1} parent=1 // pred_check_branch
      %8793 = sbr.rel (0) target = $region45
    $region44: #{tpu_custom_call.1} parent=1 // pred_region
      %8794 = dma.done [#allocation5], 128
    $region45: #{tpu_custom_call.1} parent=1 // pred_fallthru
      _
    %8795 = vsyncpa [#allocation4], 1
    %8796 = vsyncpa [#allocation5], 1

</llo_original>
